<compile_context>
chip_gen: v6e
topology: v6e:2x2x1
jax: 0.10.0
libtpu: 0.0.40
codegen_flags: <defaults>
</compile_context>

<pallas_src>
import jax
import jax.numpy as jnp
from jax import lax
from jax.experimental import pallas as pl
from jax.experimental.pallas import tpu as pltpu

GROUPS = 32       # normalization() in guided_diffusion == GroupNorm32(32, C)
EPS = 1e-5


# ----------------------------- kernel helpers (traced inside the kernel) -----

def _silu(v):
    # sigmoid with the divide pushed to the EUP slot (approx reciprocal).
    return v * pl.reciprocal(1.0 + jnp.exp(-v), approx=True)


def _group_norm(h, gamma, beta, mem, mem_t):
    """GroupNorm over a (NB, HW, C) block; per-sample, per-group statistics."""
    NB, HW, C = h.shape
    Cg = C // GROUPS
    n = float(HW * Cg)
    s_c = jnp.sum(h, axis=1)                                            # (NB, C)
    sq_c = jnp.sum(h * h, axis=1)                                       # (NB, C)
    s_g = jnp.dot(s_c, mem, preferred_element_type=jnp.float32)         # (NB, G)
    sq_g = jnp.dot(sq_c, mem, preferred_element_type=jnp.float32)       # (NB, G)
    mean_g = s_g / n
    var_g = sq_g / n - mean_g * mean_g
    inv_g = lax.rsqrt(var_g + EPS)
    mean_c = jnp.dot(mean_g, mem_t, preferred_element_type=jnp.float32)  # (NB, C)
    inv_c = jnp.dot(inv_g, mem_t, preferred_element_type=jnp.float32)    # (NB, C)
    return (h - mean_c[:, None, :]) * inv_c[:, None, :] * gamma + beta


def _conv3x3(h_img, pad_ref, w_ref, b_ref):
    """3x3 'SAME' conv as ONE im2col matmul: (NB,H,W,C) bf16 -> (NB*H*W, Cout) f32.

    pad_ref is a (NB, H+2, W+2, C) bf16 scratch.  Only the 1-pixel halo ring is
    zeroed; the interior is fully overwritten on every call, so no stale data can
    leak between grid iterations (safe under megacore 'parallel' sharding too).
    """
    NB, H, W, C = h_img.shape
    dt = pad_ref.dtype
    pad_ref[:, 0:1, :, :] = jnp.zeros((NB, 1, W + 2, C), dt)
    pad_ref[:, H + 1:H + 2, :, :] = jnp.zeros((NB, 1, W + 2, C), dt)
    pad_ref[:, :, 0:1, :] = jnp.zeros((NB, H + 2, 1, C), dt)
    pad_ref[:, :, W + 1:W + 2, :] = jnp.zeros((NB, H + 2, 1, C), dt)
    pad_ref[:, 1:H + 1, 1:W + 1, :] = h_img
    taps = [pad_ref[:, dy:dy + H, dx:dx + W, :]
            for dy in range(3) for dx in range(3)]
    patches = jnp.concatenate(taps, axis=-1).reshape(NB * H * W, 9 * C)   # bf16
    acc = jnp.dot(patches, w_ref[...], preferred_element_type=jnp.float32)
    return acc + b_ref[...]                                               # (NB*HW, Cout)


# ---------------------------------- fused ResBlock kernel (NB batch elems) ---

def resblock_kernel(x_ref, emb_ref,
                    gn1_w_ref, gn1_b_ref, m1_ref, mt1_ref,
                    conv1_w_ref, conv1_b_ref,
                    gn2_w_ref, gn2_b_ref, m2_ref, mt2_ref,
                    conv2_w_ref, conv2_b_ref,
                    skip_w_ref, skip_b_ref,
                    out_ref,
                    pad1_ref, pad2_ref):
    NB, H, W, Cin = x_ref.shape
    Cout = out_ref.shape[3]
    HW = H * W

    x = x_ref[...]                                       # (NB, H, W, Cin) f32
    x3 = x.reshape(NB, HW, Cin)

    # in_layers: GroupNorm -> SiLU -> Conv3x3 (one bf16 im2col matmul)
    h = _silu(_group_norm(x3, gn1_w_ref[...], gn1_b_ref[...],
                          m1_ref[...], mt1_ref[...]))
    h = _conv3x3(h.astype(jnp.bfloat16).reshape(NB, H, W, Cin),
                 pad1_ref, conv1_w_ref, conv1_b_ref)     # (NB*HW, Cout) f32

    # emb_layers (SiLU -> Linear) is precomputed in the wrapper; broadcast-add it.
    h = h.reshape(NB, HW, Cout) + emb_ref[...]           # (NB,HW,Cout) + (NB,1,Cout)

    # out_layers: GroupNorm -> SiLU -> Dropout -> zero-initialized Conv3x3
    # TODO(synk): Dropout is identity in eval mode; training-mode RNG dropout not implemented.
    h = _silu(_group_norm(h, gn2_w_ref[...], gn2_b_ref[...],
                          m2_ref[...], mt2_ref[...]))
    h = _conv3x3(h.astype(jnp.bfloat16).reshape(NB, H, W, Cout),
                 pad2_ref, conv2_w_ref, conv2_b_ref)     # (NB*HW, Cout) f32

    # skip_connection: 1x1 conv (channels != out_channels path)
    skip = jnp.dot(x3.reshape(NB * HW, Cin).astype(jnp.bfloat16), skip_w_ref[...],
                   preferred_element_type=jnp.float32) + skip_b_ref[...]

    out_ref[...] = (skip + h).reshape(NB, H, W, Cout)


# --------------------------------------------------------------- wrapper -----

def _group_masks(C):
    g = jnp.arange(C, dtype=jnp.int32) // (C // GROUPS)
    m = (g[:, None] == jnp.arange(GROUPS, dtype=jnp.int32)[None, :]).astype(jnp.float32)
    return m, m.T                                        # (C, G), (G, C)


def resblock_forward(x, emb, p, *, batch_block=None):
    N, H, W, Cin = x.shape
    Cout = p["conv1_w"].shape[-1]
    NB = batch_block if batch_block is not None else min(N, 2)
    assert N % NB == 0, (N, NB)
    assert Cin % GROUPS == 0 and Cout % GROUPS == 0, (Cin, Cout)

    # Hoist emb_layers (SiLU -> Linear) out of the kernel: one batched XLA matmul.
    emb_out = (emb * jax.nn.sigmoid(emb)) @ p["emb_w"] + p["emb_b"]       # (N, Cout)
    emb_out = emb_out.reshape(N, 1, Cout).astype(jnp.float32)

    # GroupNorm group-membership matrices (built once on host, not per grid step).
    m1, mt1 = _group_masks(Cin)
    m2, mt2 = _group_masks(Cout)

    # bf16 MXU operands; accumulation stays f32 via preferred_element_type.
    conv1_w = p["conv1_w"].reshape(9 * Cin, Cout).astype(jnp.bfloat16)
    conv2_w = p["conv2_w"].reshape(9 * Cout, Cout).astype(jnp.bfloat16)
    skip_w = p["skip_w"].astype(jnp.bfloat16)

    def full(a):
        shp = a.shape
        return pl.BlockSpec(shp, lambda n: (0,) * len(shp))

    in_specs = [
        pl.BlockSpec((NB, H, W, Cin), lambda n: (n, 0, 0, 0)),   # x
        pl.BlockSpec((NB, 1, Cout), lambda n: (n, 0, 0)),        # precomputed emb_out
        full(p["gn1_w"]), full(p["gn1_b"]), full(m1), full(mt1),
        full(conv1_w), full(p["conv1_b"]),
        full(p["gn2_w"]), full(p["gn2_b"]), full(m2), full(mt2),
        full(conv2_w), full(p["conv2_b"]),
        full(skip_w), full(p["skip_b"]),
    ]
    out_spec = pl.BlockSpec((NB, H, W, Cout), lambda n: (n, 0, 0, 0))

    # TODO(synk): for production channel counts on v7x (64 MiB VMEM), tile the spatial
    # dims into row strips (halo in the index_map) and single-buffer the grid-invariant
    # weight inputs; not needed at these shapes.
    return pl.pallas_call(
        resblock_kernel,
        out_shape=jax.ShapeDtypeStruct((N, H, W, Cout), jnp.float32),
        grid=(N // NB,),
        in_specs=in_specs,
        out_specs=out_spec,
        scratch_shapes=[pltpu.VMEM((NB, H + 2, W + 2, Cin), jnp.bfloat16),
                        pltpu.VMEM((NB, H + 2, W + 2, Cout), jnp.bfloat16)],
        compiler_params=pltpu.CompilerParams(dimension_semantics=("parallel",)),
    )(x, emb_out,
      p["gn1_w"], p["gn1_b"], m1, mt1, conv1_w, p["conv1_b"],
      p["gn2_w"], p["gn2_b"], m2, mt2, conv2_w, p["conv2_b"],
      skip_w, p["skip_b"])


# ------------------------------------------------------- pure-JAX reference --

def ref_forward(x, emb, p):
    def gn(h, gamma, beta):
        Nn, Hh, Ww, C = h.shape
        hg = h.reshape(Nn, Hh, Ww, GROUPS, C // GROUPS)
        mean = hg.mean(axis=(1, 2, 4), keepdims=True)
        var = hg.var(axis=(1, 2, 4), keepdims=True)
        hg = (hg - mean) / jnp.sqrt(var + EPS)
        return hg.reshape(Nn, Hh, Ww, C) * gamma.reshape(1, 1, 1, C) + beta.reshape(1, 1, 1, C)

    def silu(v):
        return v * jax.nn.sigmoid(v)

    def conv3(h, w9, b):
        Cin_, Cout_ = w9.shape[1], w9.shape[2]
        w = w9.reshape(3, 3, Cin_, Cout_)
        y = lax.conv_general_dilated(h, w, (1, 1), "SAME",
                                     dimension_numbers=("NHWC", "HWIO", "NHWC"),
                                     precision=lax.Precision.HIGHEST)
        return y + b.reshape(1, 1, 1, Cout_)

    h = conv3(silu(gn(x, p["gn1_w"], p["gn1_b"])), p["conv1_w"], p["conv1_b"])
    e = silu(emb) @ p["emb_w"] + p["emb_b"]
    h = h + e[:, None, None, :]
    h = conv3(silu(gn(h, p["gn2_w"], p["gn2_b"])), p["conv2_w"], p["conv2_b"])
    skip = jnp.einsum("nhwc,cd->nhwd", x, p["skip_w"],
                      precision=lax.Precision.HIGHEST) + p["skip_b"].reshape(1, 1, 1, -1)
    return skip + h


# ------------------------------------------------------------------- main ----

if __name__ == "__main__":
    key = jax.random.PRNGKey(0)
    N, H, W = 4, 8, 8
    Cin, Cout, emb_ch = 64, 128, 128     # channels=64, out_channels=128, emb_channels=128
    ks = jax.random.split(key, 14)

    x = jax.random.normal(ks[0], (N, H, W, Cin), jnp.float32)
    emb = jax.random.normal(ks[1], (N, emb_ch), jnp.float32)

    params = {
        "gn1_w": 1.0 + 0.1 * jax.random.normal(ks[2], (1, Cin), jnp.float32),
        "gn1_b": 0.1 * jax.random.normal(ks[3], (1, Cin), jnp.float32),
        "conv1_w": 0.03 * jax.random.normal(ks[4], (9, Cin, Cout), jnp.float32),
        "conv1_b": 0.01 * jax.random.normal(ks[5], (1, Cout), jnp.float32),
        "emb_w": 0.05 * jax.random.normal(ks[6], (emb_ch, Cout), jnp.float32),
        "emb_b": 0.01 * jax.random.normal(ks[7], (1, Cout), jnp.float32),
        "gn2_w": 1.0 + 0.1 * jax.random.normal(ks[8], (1, Cout), jnp.float32),
        "gn2_b": 0.1 * jax.random.normal(ks[9], (1, Cout), jnp.float32),
        # out_layers conv is zero_module(...) only at init; small random weights here so
        # the conv2 path is exercised numerically (forward semantics are identical).
        "conv2_w": 0.03 * jax.random.normal(ks[10], (9, Cout, Cout), jnp.float32),
        "conv2_b": 0.01 * jax.random.normal(ks[11], (1, Cout), jnp.float32),
        "skip_w": 0.05 * jax.random.normal(ks[12], (Cin, Cout), jnp.float32),
        "skip_b": 0.01 * jax.random.normal(ks[13], (1, Cout), jnp.float32),
    }

    out = jax.block_until_ready(resblock_forward(x, emb, params, batch_block=2))

    ref = jax.block_until_ready(ref_forward(x, emb, params))
    max_err = float(jnp.max(jnp.abs(out - ref)))
    assert out.shape == (N, H, W, Cout), out.shape
    # bf16 MXU operands (f32 accumulation) + approx-EUP sigmoid vs. the f32/HIGHEST
    # reference widen the numerical error slightly; tolerance documented accordingly.
    assert jnp.allclose(out, ref, atol=6e-2, rtol=6e-2), f"max abs err {max_err}"

    print("KERNEL_OK")
</pallas_src>

<mosaic_0001>
module attributes {stable_mosaic.version = 11 : i64} {
  func.func @resblock_kernel(%arg0: i32, %arg1: memref<2x8x8x64xf32, #tpu.memory_space<vmem>>, %arg2: memref<2x1x128xf32, #tpu.memory_space<vmem>>, %arg3: memref<1x64xf32, #tpu.memory_space<vmem>>, %arg4: memref<1x64xf32, #tpu.memory_space<vmem>>, %arg5: memref<64x32xf32, #tpu.memory_space<vmem>>, %arg6: memref<32x64xf32, #tpu.memory_space<vmem>>, %arg7: memref<576x128xbf16, #tpu.memory_space<vmem>>, %arg8: memref<1x128xf32, #tpu.memory_space<vmem>>, %arg9: memref<1x128xf32, #tpu.memory_space<vmem>>, %arg10: memref<1x128xf32, #tpu.memory_space<vmem>>, %arg11: memref<128x32xf32, #tpu.memory_space<vmem>>, %arg12: memref<32x128xf32, #tpu.memory_space<vmem>>, %arg13: memref<1152x128xbf16, #tpu.memory_space<vmem>>, %arg14: memref<1x128xf32, #tpu.memory_space<vmem>>, %arg15: memref<64x128xbf16, #tpu.memory_space<vmem>>, %arg16: memref<1x128xf32, #tpu.memory_space<vmem>>, %arg17: memref<2x8x8x128xf32, #tpu.memory_space<vmem>>, %arg18: memref<2x10x10x64xbf16, #tpu.memory_space<vmem>>, %arg19: memref<2x10x10x128xbf16, #tpu.memory_space<vmem>>) attributes {dimension_semantics = [#tpu.dimension_semantics<parallel>], iteration_bounds = array<i64: 2>, scalar_prefetch = 0 : i64, scratch_operands = 2 : i64, tpu.core_type = #tpu.core_type<tc>, window_params = [{transform_indices = @transform_0, window_bounds = array<i64: 2, 8, 8, 64>}, {transform_indices = @transform_1, window_bounds = array<i64: 2, 1, 128>}, {pipeline_mode = #tpu.pipeline_mode<synchronous>, transform_indices = @transform_2, window_bounds = array<i64: 1, 64>}, {pipeline_mode = #tpu.pipeline_mode<synchronous>, transform_indices = @transform_3, window_bounds = array<i64: 1, 64>}, {pipeline_mode = #tpu.pipeline_mode<synchronous>, transform_indices = @transform_4, window_bounds = array<i64: 64, 32>}, {pipeline_mode = #tpu.pipeline_mode<synchronous>, transform_indices = @transform_5, window_bounds = array<i64: 32, 64>}, {pipeline_mode = #tpu.pipeline_mode<synchronous>, transform_indices = @transform_6, window_bounds = array<i64: 576, 128>}, {pipeline_mode = #tpu.pipeline_mode<synchronous>, transform_indices = @transform_7, window_bounds = array<i64: 1, 128>}, {pipeline_mode = #tpu.pipeline_mode<synchronous>, transform_indices = @transform_8, window_bounds = array<i64: 1, 128>}, {pipeline_mode = #tpu.pipeline_mode<synchronous>, transform_indices = @transform_9, window_bounds = array<i64: 1, 128>}, {pipeline_mode = #tpu.pipeline_mode<synchronous>, transform_indices = @transform_10, window_bounds = array<i64: 128, 32>}, {pipeline_mode = #tpu.pipeline_mode<synchronous>, transform_indices = @transform_11, window_bounds = array<i64: 32, 128>}, {pipeline_mode = #tpu.pipeline_mode<synchronous>, transform_indices = @transform_12, window_bounds = array<i64: 1152, 128>}, {pipeline_mode = #tpu.pipeline_mode<synchronous>, transform_indices = @transform_13, window_bounds = array<i64: 1, 128>}, {pipeline_mode = #tpu.pipeline_mode<synchronous>, transform_indices = @transform_14, window_bounds = array<i64: 64, 128>}, {pipeline_mode = #tpu.pipeline_mode<synchronous>, transform_indices = @transform_15, window_bounds = array<i64: 1, 128>}, {transform_indices = @transform_16, window_bounds = array<i64: 2, 8, 8, 128>}]} {
    %c0 = arith.constant 0 : index
    %c0_0 = arith.constant 0 : index
    %c0_1 = arith.constant 0 : index
    %c0_2 = arith.constant 0 : index
    %0 = vector.load %arg1[%c0, %c0_0, %c0_1, %c0_2] : memref<2x8x8x64xf32, #tpu.memory_space<vmem>>, vector<2x8x8x64xf32>
    %1 = vector.shape_cast %0 : vector<2x8x8x64xf32> to vector<2x64x64xf32>
    %c0_3 = arith.constant 0 : index
    %c0_4 = arith.constant 0 : index
    %2 = vector.load %arg3[%c0_3, %c0_4] : memref<1x64xf32, #tpu.memory_space<vmem>>, vector<1x64xf32>
    %c0_5 = arith.constant 0 : index
    %c0_6 = arith.constant 0 : index
    %3 = vector.load %arg4[%c0_5, %c0_6] : memref<1x64xf32, #tpu.memory_space<vmem>>, vector<1x64xf32>
    %c0_7 = arith.constant 0 : index
    %c0_8 = arith.constant 0 : index
    %4 = vector.load %arg5[%c0_7, %c0_8] : memref<64x32xf32, #tpu.memory_space<vmem>>, vector<64x32xf32>
    %c0_9 = arith.constant 0 : index
    %c0_10 = arith.constant 0 : index
    %5 = vector.load %arg6[%c0_9, %c0_10] : memref<32x64xf32, #tpu.memory_space<vmem>>, vector<32x64xf32>
    %cst = arith.constant dense<0.000000e+00> : vector<2x64xf32>
    %6 = vector.multi_reduction <add>, %1, %cst [1] : vector<2x64x64xf32> to vector<2x64xf32>
    %7 = arith.mulf %1, %1 : vector<2x64x64xf32>
    %cst_11 = arith.constant dense<0.000000e+00> : vector<2x64xf32>
    %8 = vector.multi_reduction <add>, %7, %cst_11 [1] : vector<2x64x64xf32> to vector<2x64xf32>
    %cst_12 = arith.constant dense<0.000000e+00> : vector<2x32xf32>
    %9 = tpu.matmul %6, %4, %cst_12 {dimension_numbers = #tpu.dot_dimension_numbers<[1], [0], [0], [1], [0, 0, 1, 1], [], []>} : vector<2x64xf32>, vector<64x32xf32>, vector<2x32xf32> -> vector<2x32xf32>
    %cst_13 = arith.constant dense<0.000000e+00> : vector<2x32xf32>
    %10 = tpu.matmul %8, %4, %cst_13 {dimension_numbers = #tpu.dot_dimension_numbers<[1], [0], [0], [1], [0, 0, 1, 1], [], []>} : vector<2x64xf32>, vector<64x32xf32>, vector<2x32xf32> -> vector<2x32xf32>
    %cst_14 = arith.constant 1.280000e+02 : f32
    %11 = vector.broadcast %cst_14 : f32 to vector<2x32xf32>
    %12 = arith.divf %9, %11 : vector<2x32xf32>
    %cst_15 = arith.constant 1.280000e+02 : f32
    %13 = vector.broadcast %cst_15 : f32 to vector<2x32xf32>
    %14 = arith.divf %10, %13 : vector<2x32xf32>
    %15 = arith.mulf %12, %12 : vector<2x32xf32>
    %16 = arith.subf %14, %15 : vector<2x32xf32>
    %cst_16 = arith.constant 9.99999974E-6 : f32
    %17 = vector.broadcast %cst_16 : f32 to vector<2x32xf32>
    %18 = arith.addf %16, %17 : vector<2x32xf32>
    %19 = math.rsqrt %18 : vector<2x32xf32>
    %cst_17 = arith.constant dense<0.000000e+00> : vector<2x64xf32>
    %20 = tpu.matmul %12, %5, %cst_17 {dimension_numbers = #tpu.dot_dimension_numbers<[1], [0], [0], [1], [0, 0, 1, 1], [], []>} : vector<2x32xf32>, vector<32x64xf32>, vector<2x64xf32> -> vector<2x64xf32>
    %cst_18 = arith.constant dense<0.000000e+00> : vector<2x64xf32>
    %21 = tpu.matmul %19, %5, %cst_18 {dimension_numbers = #tpu.dot_dimension_numbers<[1], [0], [0], [1], [0, 0, 1, 1], [], []>} : vector<2x32xf32>, vector<32x64xf32>, vector<2x64xf32> -> vector<2x64xf32>
    %22 = vector.shape_cast %20 : vector<2x64xf32> to vector<2x1x64xf32>
    %23 = vector.broadcast %22 : vector<2x1x64xf32> to vector<2x64x64xf32>
    %24 = arith.subf %1, %23 : vector<2x64x64xf32>
    %25 = vector.shape_cast %21 : vector<2x64xf32> to vector<2x1x64xf32>
    %26 = vector.broadcast %25 : vector<2x1x64xf32> to vector<2x64x64xf32>
    %27 = arith.mulf %24, %26 : vector<2x64x64xf32>
    %28 = vector.shape_cast %2 : vector<1x64xf32> to vector<1x1x64xf32>
    %29 = vector.broadcast %28 : vector<1x1x64xf32> to vector<2x64x64xf32>
    %30 = arith.mulf %27, %29 : vector<2x64x64xf32>
    %31 = vector.shape_cast %3 : vector<1x64xf32> to vector<1x1x64xf32>
    %32 = vector.broadcast %31 : vector<1x1x64xf32> to vector<2x64x64xf32>
    %33 = arith.addf %30, %32 : vector<2x64x64xf32>
    %cst_19 = arith.constant 0.000000e+00 : f32
    %34 = vector.broadcast %cst_19 : f32 to vector<2x64x64xf32>
    %35 = arith.subf %34, %33 : vector<2x64x64xf32>
    %36 = math.exp %35 : vector<2x64x64xf32>
    %cst_20 = arith.constant 1.000000e+00 : f32
    %37 = vector.broadcast %cst_20 : f32 to vector<2x64x64xf32>
    %38 = arith.addf %37, %36 : vector<2x64x64xf32>
    %39 = tpu.reciprocal %38 {approx = true} : vector<2x64x64xf32> -> vector<2x64x64xf32>
    %40 = arith.mulf %33, %39 : vector<2x64x64xf32>
    %41 = arith.truncf %40 : vector<2x64x64xf32> to vector<2x64x64xbf16>
    %42 = vector.shape_cast %41 : vector<2x64x64xbf16> to vector<2x8x8x64xbf16>
    %cst_21 = arith.constant 0.000000e+00 : bf16
    %43 = vector.broadcast %cst_21 : bf16 to vector<2x1x10x64xbf16>
    %c0_22 = arith.constant 0 : index
    %c0_23 = arith.constant 0 : index
    %c0_24 = arith.constant 0 : index
    %c0_25 = arith.constant 0 : index
    %44 = vector.load %arg18[%c0_22, %c0_23, %c0_24, %c0_25] : memref<2x10x10x64xbf16, #tpu.memory_space<vmem>>, vector<2x1x10x64xbf16>
    tpu.vector_store %arg18[%c0_22, %c0_23, %c0_24, %c0_25], %43 {strides = array<i32>} : memref<2x10x10x64xbf16, #tpu.memory_space<vmem>>, vector<2x1x10x64xbf16>,
    %cst_26 = arith.constant 0.000000e+00 : bf16
    %45 = vector.broadcast %cst_26 : bf16 to vector<2x1x10x64xbf16>
    %c0_27 = arith.constant 0 : index
    %c9 = arith.constant 9 : index
    %c0_28 = arith.constant 0 : index
    %c0_29 = arith.constant 0 : index
    %46 = vector.load %arg18[%c0_27, %c9, %c0_28, %c0_29] : memref<2x10x10x64xbf16, #tpu.memory_space<vmem>>, vector<2x1x10x64xbf16>
    tpu.vector_store %arg18[%c0_27, %c9, %c0_28, %c0_29], %45 {strides = array<i32>} : memref<2x10x10x64xbf16, #tpu.memory_space<vmem>>, vector<2x1x10x64xbf16>,
    %cst_30 = arith.constant 0.000000e+00 : bf16
    %47 = vector.broadcast %cst_30 : bf16 to vector<2x10x1x64xbf16>
    %c0_31 = arith.constant 0 : index
    %c0_32 = arith.constant 0 : index
    %c0_33 = arith.constant 0 : index
    %c0_34 = arith.constant 0 : index
    %48 = vector.load %arg18[%c0_31, %c0_32, %c0_33, %c0_34] : memref<2x10x10x64xbf16, #tpu.memory_space<vmem>>, vector<2x10x1x64xbf16>
    tpu.vector_store %arg18[%c0_31, %c0_32, %c0_33, %c0_34], %47 {strides = array<i32>} : memref<2x10x10x64xbf16, #tpu.memory_space<vmem>>, vector<2x10x1x64xbf16>,
    %cst_35 = arith.constant 0.000000e+00 : bf16
    %49 = vector.broadcast %cst_35 : bf16 to vector<2x10x1x64xbf16>
    %c0_36 = arith.constant 0 : index
    %c0_37 = arith.constant 0 : index
    %c9_38 = arith.constant 9 : index
    %c0_39 = arith.constant 0 : index
    %50 = vector.load %arg18[%c0_36, %c0_37, %c9_38, %c0_39] : memref<2x10x10x64xbf16, #tpu.memory_space<vmem>>, vector<2x10x1x64xbf16>
    tpu.vector_store %arg18[%c0_36, %c0_37, %c9_38, %c0_39], %49 {strides = array<i32>} : memref<2x10x10x64xbf16, #tpu.memory_space<vmem>>, vector<2x10x1x64xbf16>,
    %c0_40 = arith.constant 0 : index
    %c1 = arith.constant 1 : index
    %c1_41 = arith.constant 1 : index
    %c0_42 = arith.constant 0 : index
    %51 = vector.load %arg18[%c0_40, %c1, %c1_41, %c0_42] : memref<2x10x10x64xbf16, #tpu.memory_space<vmem>>, vector<2x8x8x64xbf16>
    tpu.vector_store %arg18[%c0_40, %c1, %c1_41, %c0_42], %42 {strides = array<i32>} : memref<2x10x10x64xbf16, #tpu.memory_space<vmem>>, vector<2x8x8x64xbf16>,
    %c0_43 = arith.constant 0 : index
    %c0_44 = arith.constant 0 : index
    %c0_45 = arith.constant 0 : index
    %c0_46 = arith.constant 0 : index
    %52 = vector.load %arg18[%c0_43, %c0_44, %c0_45, %c0_46] : memref<2x10x10x64xbf16, #tpu.memory_space<vmem>>, vector<2x8x8x64xbf16>
    %c0_47 = arith.constant 0 : index
    %c0_48 = arith.constant 0 : index
    %c1_49 = arith.constant 1 : index
    %c0_50 = arith.constant 0 : index
    %53 = vector.load %arg18[%c0_47, %c0_48, %c1_49, %c0_50] : memref<2x10x10x64xbf16, #tpu.memory_space<vmem>>, vector<2x8x8x64xbf16>
    %c0_51 = arith.constant 0 : index
    %c0_52 = arith.constant 0 : index
    %c2 = arith.constant 2 : index
    %c0_53 = arith.constant 0 : index
    %54 = vector.load %arg18[%c0_51, %c0_52, %c2, %c0_53] : memref<2x10x10x64xbf16, #tpu.memory_space<vmem>>, vector<2x8x8x64xbf16>
    %c0_54 = arith.constant 0 : index
    %c1_55 = arith.constant 1 : index
    %c0_56 = arith.constant 0 : index
    %c0_57 = arith.constant 0 : index
    %55 = vector.load %arg18[%c0_54, %c1_55, %c0_56, %c0_57] : memref<2x10x10x64xbf16, #tpu.memory_space<vmem>>, vector<2x8x8x64xbf16>
    %c0_58 = arith.constant 0 : index
    %c1_59 = arith.constant 1 : index
    %c1_60 = arith.constant 1 : index
    %c0_61 = arith.constant 0 : index
    %56 = vector.load %arg18[%c0_58, %c1_59, %c1_60, %c0_61] : memref<2x10x10x64xbf16, #tpu.memory_space<vmem>>, vector<2x8x8x64xbf16>
    %c0_62 = arith.constant 0 : index
    %c1_63 = arith.constant 1 : index
    %c2_64 = arith.constant 2 : index
    %c0_65 = arith.constant 0 : index
    %57 = vector.load %arg18[%c0_62, %c1_63, %c2_64, %c0_65] : memref<2x10x10x64xbf16, #tpu.memory_space<vmem>>, vector<2x8x8x64xbf16>
    %c0_66 = arith.constant 0 : index
    %c2_67 = arith.constant 2 : index
    %c0_68 = arith.constant 0 : index
    %c0_69 = arith.constant 0 : index
    %58 = vector.load %arg18[%c0_66, %c2_67, %c0_68, %c0_69] : memref<2x10x10x64xbf16, #tpu.memory_space<vmem>>, vector<2x8x8x64xbf16>
    %c0_70 = arith.constant 0 : index
    %c2_71 = arith.constant 2 : index
    %c1_72 = arith.constant 1 : index
    %c0_73 = arith.constant 0 : index
    %59 = vector.load %arg18[%c0_70, %c2_71, %c1_72, %c0_73] : memref<2x10x10x64xbf16, #tpu.memory_space<vmem>>, vector<2x8x8x64xbf16>
    %c0_74 = arith.constant 0 : index
    %c2_75 = arith.constant 2 : index
    %c2_76 = arith.constant 2 : index
    %c0_77 = arith.constant 0 : index
    %60 = vector.load %arg18[%c0_74, %c2_75, %c2_76, %c0_77] : memref<2x10x10x64xbf16, #tpu.memory_space<vmem>>, vector<2x8x8x64xbf16>
    %61 = tpu.concatenate %52, %53, %54, %55, %56, %57, %58, %59, %60 in 3 : vector<2x8x8x64xbf16>, vector<2x8x8x64xbf16>, vector<2x8x8x64xbf16>, vector<2x8x8x64xbf16>, vector<2x8x8x64xbf16>, vector<2x8x8x64xbf16>, vector<2x8x8x64xbf16>, vector<2x8x8x64xbf16>, vector<2x8x8x64xbf16> -> vector<2x8x8x576xbf16>
    %62 = vector.shape_cast %61 : vector<2x8x8x576xbf16> to vector<128x576xbf16>
    %c0_78 = arith.constant 0 : index
    %c0_79 = arith.constant 0 : index
    %63 = vector.load %arg7[%c0_78, %c0_79] : memref<576x128xbf16, #tpu.memory_space<vmem>>, vector<576x128xbf16>
    %cst_80 = arith.constant dense<0.000000e+00> : vector<128x128xf32>
    %64 = tpu.matmul %62, %63, %cst_80 {dimension_numbers = #tpu.dot_dimension_numbers<[1], [0], [0], [1], [0, 0, 1, 1], [], []>} : vector<128x576xbf16>, vector<576x128xbf16>, vector<128x128xf32> -> vector<128x128xf32>
    %c0_81 = arith.constant 0 : index
    %c0_82 = arith.constant 0 : index
    %65 = vector.load %arg8[%c0_81, %c0_82] : memref<1x128xf32, #tpu.memory_space<vmem>>, vector<1x128xf32>
    %66 = vector.broadcast %65 : vector<1x128xf32> to vector<128x128xf32>
    %67 = arith.addf %64, %66 : vector<128x128xf32>
    %68 = vector.shape_cast %67 : vector<128x128xf32> to vector<2x64x128xf32>
    %c0_83 = arith.constant 0 : index
    %c0_84 = arith.constant 0 : index
    %c0_85 = arith.constant 0 : index
    %69 = vector.load %arg2[%c0_83, %c0_84, %c0_85] : memref<2x1x128xf32, #tpu.memory_space<vmem>>, vector<2x1x128xf32>
    %70 = vector.broadcast %69 : vector<2x1x128xf32> to vector<2x64x128xf32>
    %71 = arith.addf %68, %70 : vector<2x64x128xf32>
    %c0_86 = arith.constant 0 : index
    %c0_87 = arith.constant 0 : index
    %72 = vector.load %arg9[%c0_86, %c0_87] : memref<1x128xf32, #tpu.memory_space<vmem>>, vector<1x128xf32>
    %c0_88 = arith.constant 0 : index
    %c0_89 = arith.constant 0 : index
    %73 = vector.load %arg10[%c0_88, %c0_89] : memref<1x128xf32, #tpu.memory_space<vmem>>, vector<1x128xf32>
    %c0_90 = arith.constant 0 : index
    %c0_91 = arith.constant 0 : index
    %74 = vector.load %arg11[%c0_90, %c0_91] : memref<128x32xf32, #tpu.memory_space<vmem>>, vector<128x32xf32>
    %c0_92 = arith.constant 0 : index
    %c0_93 = arith.constant 0 : index
    %75 = vector.load %arg12[%c0_92, %c0_93] : memref<32x128xf32, #tpu.memory_space<vmem>>, vector<32x128xf32>
    %cst_94 = arith.constant dense<0.000000e+00> : vector<2x128xf32>
    %76 = vector.multi_reduction <add>, %71, %cst_94 [1] : vector<2x64x128xf32> to vector<2x128xf32>
    %77 = arith.mulf %71, %71 : vector<2x64x128xf32>
    %cst_95 = arith.constant dense<0.000000e+00> : vector<2x128xf32>
    %78 = vector.multi_reduction <add>, %77, %cst_95 [1] : vector<2x64x128xf32> to vector<2x128xf32>
    %cst_96 = arith.constant dense<0.000000e+00> : vector<2x32xf32>
    %79 = tpu.matmul %76, %74, %cst_96 {dimension_numbers = #tpu.dot_dimension_numbers<[1], [0], [0], [1], [0, 0, 1, 1], [], []>} : vector<2x128xf32>, vector<128x32xf32>, vector<2x32xf32> -> vector<2x32xf32>
    %cst_97 = arith.constant dense<0.000000e+00> : vector<2x32xf32>
    %80 = tpu.matmul %78, %74, %cst_97 {dimension_numbers = #tpu.dot_dimension_numbers<[1], [0], [0], [1], [0, 0, 1, 1], [], []>} : vector<2x128xf32>, vector<128x32xf32>, vector<2x32xf32> -> vector<2x32xf32>
    %cst_98 = arith.constant 2.560000e+02 : f32
    %81 = vector.broadcast %cst_98 : f32 to vector<2x32xf32>
    %82 = arith.divf %79, %81 : vector<2x32xf32>
    %cst_99 = arith.constant 2.560000e+02 : f32
    %83 = vector.broadcast %cst_99 : f32 to vector<2x32xf32>
    %84 = arith.divf %80, %83 : vector<2x32xf32>
    %85 = arith.mulf %82, %82 : vector<2x32xf32>
    %86 = arith.subf %84, %85 : vector<2x32xf32>
    %cst_100 = arith.constant 9.99999974E-6 : f32
    %87 = vector.broadcast %cst_100 : f32 to vector<2x32xf32>
    %88 = arith.addf %86, %87 : vector<2x32xf32>
    %89 = math.rsqrt %88 : vector<2x32xf32>
    %cst_101 = arith.constant dense<0.000000e+00> : vector<2x128xf32>
    %90 = tpu.matmul %82, %75, %cst_101 {dimension_numbers = #tpu.dot_dimension_numbers<[1], [0], [0], [1], [0, 0, 1, 1], [], []>} : vector<2x32xf32>, vector<32x128xf32>, vector<2x128xf32> -> vector<2x128xf32>
    %cst_102 = arith.constant dense<0.000000e+00> : vector<2x128xf32>
    %91 = tpu.matmul %89, %75, %cst_102 {dimension_numbers = #tpu.dot_dimension_numbers<[1], [0], [0], [1], [0, 0, 1, 1], [], []>} : vector<2x32xf32>, vector<32x128xf32>, vector<2x128xf32> -> vector<2x128xf32>
    %92 = vector.shape_cast %90 : vector<2x128xf32> to vector<2x1x128xf32>
    %93 = vector.broadcast %92 : vector<2x1x128xf32> to vector<2x64x128xf32>
    %94 = arith.subf %71, %93 : vector<2x64x128xf32>
    %95 = vector.shape_cast %91 : vector<2x128xf32> to vector<2x1x128xf32>
    %96 = vector.broadcast %95 : vector<2x1x128xf32> to vector<2x64x128xf32>
    %97 = arith.mulf %94, %96 : vector<2x64x128xf32>
    %98 = vector.shape_cast %72 : vector<1x128xf32> to vector<1x1x128xf32>
    %99 = vector.broadcast %98 : vector<1x1x128xf32> to vector<2x64x128xf32>
    %100 = arith.mulf %97, %99 : vector<2x64x128xf32>
    %101 = vector.shape_cast %73 : vector<1x128xf32> to vector<1x1x128xf32>
    %102 = vector.broadcast %101 : vector<1x1x128xf32> to vector<2x64x128xf32>
    %103 = arith.addf %100, %102 : vector<2x64x128xf32>
    %cst_103 = arith.constant 0.000000e+00 : f32
    %104 = vector.broadcast %cst_103 : f32 to vector<2x64x128xf32>
    %105 = arith.subf %104, %103 : vector<2x64x128xf32>
    %106 = math.exp %105 : vector<2x64x128xf32>
    %cst_104 = arith.constant 1.000000e+00 : f32
    %107 = vector.broadcast %cst_104 : f32 to vector<2x64x128xf32>
    %108 = arith.addf %107, %106 : vector<2x64x128xf32>
    %109 = tpu.reciprocal %108 {approx = true} : vector<2x64x128xf32> -> vector<2x64x128xf32>
    %110 = arith.mulf %103, %109 : vector<2x64x128xf32>
    %111 = arith.truncf %110 : vector<2x64x128xf32> to vector<2x64x128xbf16>
    %112 = vector.shape_cast %111 : vector<2x64x128xbf16> to vector<2x8x8x128xbf16>
    %cst_105 = arith.constant 0.000000e+00 : bf16
    %113 = vector.broadcast %cst_105 : bf16 to vector<2x1x10x128xbf16>
    %c0_106 = arith.constant 0 : index
    %c0_107 = arith.constant 0 : index
    %c0_108 = arith.constant 0 : index
    %c0_109 = arith.constant 0 : index
    %114 = vector.load %arg19[%c0_106, %c0_107, %c0_108, %c0_109] : memref<2x10x10x128xbf16, #tpu.memory_space<vmem>>, vector<2x1x10x128xbf16>
    tpu.vector_store %arg19[%c0_106, %c0_107, %c0_108, %c0_109], %113 {strides = array<i32>} : memref<2x10x10x128xbf16, #tpu.memory_space<vmem>>, vector<2x1x10x128xbf16>,
    %cst_110 = arith.constant 0.000000e+00 : bf16
    %115 = vector.broadcast %cst_110 : bf16 to vector<2x1x10x128xbf16>
    %c0_111 = arith.constant 0 : index
    %c9_112 = arith.constant 9 : index
    %c0_113 = arith.constant 0 : index
    %c0_114 = arith.constant 0 : index
    %116 = vector.load %arg19[%c0_111, %c9_112, %c0_113, %c0_114] : memref<2x10x10x128xbf16, #tpu.memory_space<vmem>>, vector<2x1x10x128xbf16>
    tpu.vector_store %arg19[%c0_111, %c9_112, %c0_113, %c0_114], %115 {strides = array<i32>} : memref<2x10x10x128xbf16, #tpu.memory_space<vmem>>, vector<2x1x10x128xbf16>,
    %cst_115 = arith.constant 0.000000e+00 : bf16
    %117 = vector.broadcast %cst_115 : bf16 to vector<2x10x1x128xbf16>
    %c0_116 = arith.constant 0 : index
    %c0_117 = arith.constant 0 : index
    %c0_118 = arith.constant 0 : index
    %c0_119 = arith.constant 0 : index
    %118 = vector.load %arg19[%c0_116, %c0_117, %c0_118, %c0_119] : memref<2x10x10x128xbf16, #tpu.memory_space<vmem>>, vector<2x10x1x128xbf16>
    tpu.vector_store %arg19[%c0_116, %c0_117, %c0_118, %c0_119], %117 {strides = array<i32>} : memref<2x10x10x128xbf16, #tpu.memory_space<vmem>>, vector<2x10x1x128xbf16>,
    %cst_120 = arith.constant 0.000000e+00 : bf16
    %119 = vector.broadcast %cst_120 : bf16 to vector<2x10x1x128xbf16>
    %c0_121 = arith.constant 0 : index
    %c0_122 = arith.constant 0 : index
    %c9_123 = arith.constant 9 : index
    %c0_124 = arith.constant 0 : index
    %120 = vector.load %arg19[%c0_121, %c0_122, %c9_123, %c0_124] : memref<2x10x10x128xbf16, #tpu.memory_space<vmem>>, vector<2x10x1x128xbf16>
    tpu.vector_store %arg19[%c0_121, %c0_122, %c9_123, %c0_124], %119 {strides = array<i32>} : memref<2x10x10x128xbf16, #tpu.memory_space<vmem>>, vector<2x10x1x128xbf16>,
    %c0_125 = arith.constant 0 : index
    %c1_126 = arith.constant 1 : index
    %c1_127 = arith.constant 1 : index
    %c0_128 = arith.constant 0 : index
    %121 = vector.load %arg19[%c0_125, %c1_126, %c1_127, %c0_128] : memref<2x10x10x128xbf16, #tpu.memory_space<vmem>>, vector<2x8x8x128xbf16>
    tpu.vector_store %arg19[%c0_125, %c1_126, %c1_127, %c0_128], %112 {strides = array<i32>} : memref<2x10x10x128xbf16, #tpu.memory_space<vmem>>, vector<2x8x8x128xbf16>,
    %c0_129 = arith.constant 0 : index
    %c0_130 = arith.constant 0 : index
    %c0_131 = arith.constant 0 : index
    %c0_132 = arith.constant 0 : index
    %122 = vector.load %arg19[%c0_129, %c0_130, %c0_131, %c0_132] : memref<2x10x10x128xbf16, #tpu.memory_space<vmem>>, vector<2x8x8x128xbf16>
    %c0_133 = arith.constant 0 : index
    %c0_134 = arith.constant 0 : index
    %c1_135 = arith.constant 1 : index
    %c0_136 = arith.constant 0 : index
    %123 = vector.load %arg19[%c0_133, %c0_134, %c1_135, %c0_136] : memref<2x10x10x128xbf16, #tpu.memory_space<vmem>>, vector<2x8x8x128xbf16>
    %c0_137 = arith.constant 0 : index
    %c0_138 = arith.constant 0 : index
    %c2_139 = arith.constant 2 : index
    %c0_140 = arith.constant 0 : index
    %124 = vector.load %arg19[%c0_137, %c0_138, %c2_139, %c0_140] : memref<2x10x10x128xbf16, #tpu.memory_space<vmem>>, vector<2x8x8x128xbf16>
    %c0_141 = arith.constant 0 : index
    %c1_142 = arith.constant 1 : index
    %c0_143 = arith.constant 0 : index
    %c0_144 = arith.constant 0 : index
    %125 = vector.load %arg19[%c0_141, %c1_142, %c0_143, %c0_144] : memref<2x10x10x128xbf16, #tpu.memory_space<vmem>>, vector<2x8x8x128xbf16>
    %c0_145 = arith.constant 0 : index
    %c1_146 = arith.constant 1 : index
    %c1_147 = arith.constant 1 : index
    %c0_148 = arith.constant 0 : index
    %126 = vector.load %arg19[%c0_145, %c1_146, %c1_147, %c0_148] : memref<2x10x10x128xbf16, #tpu.memory_space<vmem>>, vector<2x8x8x128xbf16>
    %c0_149 = arith.constant 0 : index
    %c1_150 = arith.constant 1 : index
    %c2_151 = arith.constant 2 : index
    %c0_152 = arith.constant 0 : index
    %127 = vector.load %arg19[%c0_149, %c1_150, %c2_151, %c0_152] : memref<2x10x10x128xbf16, #tpu.memory_space<vmem>>, vector<2x8x8x128xbf16>
    %c0_153 = arith.constant 0 : index
    %c2_154 = arith.constant 2 : index
    %c0_155 = arith.constant 0 : index
    %c0_156 = arith.constant 0 : index
    %128 = vector.load %arg19[%c0_153, %c2_154, %c0_155, %c0_156] : memref<2x10x10x128xbf16, #tpu.memory_space<vmem>>, vector<2x8x8x128xbf16>
    %c0_157 = arith.constant 0 : index
    %c2_158 = arith.constant 2 : index
    %c1_159 = arith.constant 1 : index
    %c0_160 = arith.constant 0 : index
    %129 = vector.load %arg19[%c0_157, %c2_158, %c1_159, %c0_160] : memref<2x10x10x128xbf16, #tpu.memory_space<vmem>>, vector<2x8x8x128xbf16>
    %c0_161 = arith.constant 0 : index
    %c2_162 = arith.constant 2 : index
    %c2_163 = arith.constant 2 : index
    %c0_164 = arith.constant 0 : index
    %130 = vector.load %arg19[%c0_161, %c2_162, %c2_163, %c0_164] : memref<2x10x10x128xbf16, #tpu.memory_space<vmem>>, vector<2x8x8x128xbf16>
    %131 = tpu.concatenate %122, %123, %124, %125, %126, %127, %128, %129, %130 in 3 : vector<2x8x8x128xbf16>, vector<2x8x8x128xbf16>, vector<2x8x8x128xbf16>, vector<2x8x8x128xbf16>, vector<2x8x8x128xbf16>, vector<2x8x8x128xbf16>, vector<2x8x8x128xbf16>, vector<2x8x8x128xbf16>, vector<2x8x8x128xbf16> -> vector<2x8x8x1152xbf16>
    %132 = vector.shape_cast %131 : vector<2x8x8x1152xbf16> to vector<128x1152xbf16>
    %c0_165 = arith.constant 0 : index
    %c0_166 = arith.constant 0 : index
    %133 = vector.load %arg13[%c0_165, %c0_166] : memref<1152x128xbf16, #tpu.memory_space<vmem>>, vector<1152x128xbf16>
    %cst_167 = arith.constant dense<0.000000e+00> : vector<128x128xf32>
    %134 = tpu.matmul %132, %133, %cst_167 {dimension_numbers = #tpu.dot_dimension_numbers<[1], [0], [0], [1], [0, 0, 1, 1], [], []>} : vector<128x1152xbf16>, vector<1152x128xbf16>, vector<128x128xf32> -> vector<128x128xf32>
    %c0_168 = arith.constant 0 : index
    %c0_169 = arith.constant 0 : index
    %135 = vector.load %arg14[%c0_168, %c0_169] : memref<1x128xf32, #tpu.memory_space<vmem>>, vector<1x128xf32>
    %136 = vector.broadcast %135 : vector<1x128xf32> to vector<128x128xf32>
    %137 = arith.addf %134, %136 : vector<128x128xf32>
    %138 = vector.shape_cast %1 : vector<2x64x64xf32> to vector<128x64xf32>
    %139 = arith.truncf %138 : vector<128x64xf32> to vector<128x64xbf16>
    %c0_170 = arith.constant 0 : index
    %c0_171 = arith.constant 0 : index
    %140 = vector.load %arg15[%c0_170, %c0_171] : memref<64x128xbf16, #tpu.memory_space<vmem>>, vector<64x128xbf16>
    %cst_172 = arith.constant dense<0.000000e+00> : vector<128x128xf32>
    %141 = tpu.matmul %139, %140, %cst_172 {dimension_numbers = #tpu.dot_dimension_numbers<[1], [0], [0], [1], [0, 0, 1, 1], [], []>} : vector<128x64xbf16>, vector<64x128xbf16>, vector<128x128xf32> -> vector<128x128xf32>
    %c0_173 = arith.constant 0 : index
    %c0_174 = arith.constant 0 : index
    %142 = vector.load %arg16[%c0_173, %c0_174] : memref<1x128xf32, #tpu.memory_space<vmem>>, vector<1x128xf32>
    %143 = vector.broadcast %142 : vector<1x128xf32> to vector<128x128xf32>
    %144 = arith.addf %141, %143 : vector<128x128xf32>
    %145 = arith.addf %144, %137 : vector<128x128xf32>
    %146 = vector.shape_cast %145 : vector<128x128xf32> to vector<2x8x8x128xf32>
    %c0_175 = arith.constant 0 : index
    %c0_176 = arith.constant 0 : index
    %c0_177 = arith.constant 0 : index
    %c0_178 = arith.constant 0 : index
    %147 = vector.load %arg17[%c0_175, %c0_176, %c0_177, %c0_178] : memref<2x8x8x128xf32, #tpu.memory_space<vmem>>, vector<2x8x8x128xf32>
    tpu.vector_store %arg17[%c0_175, %c0_176, %c0_177, %c0_178], %146 {strides = array<i32>} : memref<2x8x8x128xf32, #tpu.memory_space<vmem>>, vector<2x8x8x128xf32>,
    return
  }
  func.func @transform_0(%arg0: i32) -> (i32, i32, i32, i32) {
    %c0_i32 = arith.constant 0 : i32
    %c0_i32_0 = arith.constant 0 : i32
    %c0_i32_1 = arith.constant 0 : i32
    %c0_i32_2 = arith.constant 0 : i32
    return %arg0, %c0_i32, %c0_i32_0, %c0_i32_1 : i32, i32, i32, i32
  }
  func.func @transform_1(%arg0: i32) -> (i32, i32, i32) {
    %c0_i32 = arith.constant 0 : i32
    %c0_i32_0 = arith.constant 0 : i32
    %c0_i32_1 = arith.constant 0 : i32
    return %arg0, %c0_i32, %c0_i32_0 : i32, i32, i32
  }
  func.func @transform_2(%arg0: i32) -> (i32, i32) {
    %c0_i32 = arith.constant 0 : i32
    %c0_i32_0 = arith.constant 0 : i32
    %c0_i32_1 = arith.constant 0 : i32
    return %c0_i32, %c0_i32_0 : i32, i32
  }
  func.func @transform_3(%arg0: i32) -> (i32, i32) {
    %c0_i32 = arith.constant 0 : i32
    %c0_i32_0 = arith.constant 0 : i32
    %c0_i32_1 = arith.constant 0 : i32
    return %c0_i32, %c0_i32_0 : i32, i32
  }
  func.func @transform_4(%arg0: i32) -> (i32, i32) {
    %c0_i32 = arith.constant 0 : i32
    %c0_i32_0 = arith.constant 0 : i32
    %c0_i32_1 = arith.constant 0 : i32
    return %c0_i32, %c0_i32_0 : i32, i32
  }
  func.func @transform_5(%arg0: i32) -> (i32, i32) {
    %c0_i32 = arith.constant 0 : i32
    %c0_i32_0 = arith.constant 0 : i32
    %c0_i32_1 = arith.constant 0 : i32
    return %c0_i32, %c0_i32_0 : i32, i32
  }
  func.func @transform_6(%arg0: i32) -> (i32, i32) {
    %c0_i32 = arith.constant 0 : i32
    %c0_i32_0 = arith.constant 0 : i32
    %c0_i32_1 = arith.constant 0 : i32
    return %c0_i32, %c0_i32_0 : i32, i32
  }
  func.func @transform_7(%arg0: i32) -> (i32, i32) {
    %c0_i32 = arith.constant 0 : i32
    %c0_i32_0 = arith.constant 0 : i32
    %c0_i32_1 = arith.constant 0 : i32
    return %c0_i32, %c0_i32_0 : i32, i32
  }
  func.func @transform_8(%arg0: i32) -> (i32, i32) {
    %c0_i32 = arith.constant 0 : i32
    %c0_i32_0 = arith.constant 0 : i32
    %c0_i32_1 = arith.constant 0 : i32
    return %c0_i32, %c0_i32_0 : i32, i32
  }
  func.func @transform_9(%arg0: i32) -> (i32, i32) {
    %c0_i32 = arith.constant 0 : i32
    %c0_i32_0 = arith.constant 0 : i32
    %c0_i32_1 = arith.constant 0 : i32
    return %c0_i32, %c0_i32_0 : i32, i32
  }
  func.func @transform_10(%arg0: i32) -> (i32, i32) {
    %c0_i32 = arith.constant 0 : i32
    %c0_i32_0 = arith.constant 0 : i32
    %c0_i32_1 = arith.constant 0 : i32
    return %c0_i32, %c0_i32_0 : i32, i32
  }
  func.func @transform_11(%arg0: i32) -> (i32, i32) {
    %c0_i32 = arith.constant 0 : i32
    %c0_i32_0 = arith.constant 0 : i32
    %c0_i32_1 = arith.constant 0 : i32
    return %c0_i32, %c0_i32_0 : i32, i32
  }
  func.func @transform_12(%arg0: i32) -> (i32, i32) {
    %c0_i32 = arith.constant 0 : i32
    %c0_i32_0 = arith.constant 0 : i32
    %c0_i32_1 = arith.constant 0 : i32
    return %c0_i32, %c0_i32_0 : i32, i32
  }
  func.func @transform_13(%arg0: i32) -> (i32, i32) {
    %c0_i32 = arith.constant 0 : i32
    %c0_i32_0 = arith.constant 0 : i32
    %c0_i32_1 = arith.constant 0 : i32
    return %c0_i32, %c0_i32_0 : i32, i32
  }
  func.func @transform_14(%arg0: i32) -> (i32, i32) {
    %c0_i32 = arith.constant 0 : i32
    %c0_i32_0 = arith.constant 0 : i32
    %c0_i32_1 = arith.constant 0 : i32
    return %c0_i32, %c0_i32_0 : i32, i32
  }
  func.func @transform_15(%arg0: i32) -> (i32, i32) {
    %c0_i32 = arith.constant 0 : i32
    %c0_i32_0 = arith.constant 0 : i32
    %c0_i32_1 = arith.constant 0 : i32
    return %c0_i32, %c0_i32_0 : i32, i32
  }
  func.func @transform_16(%arg0: i32) -> (i32, i32, i32, i32) {
    %c0_i32 = arith.constant 0 : i32
    %c0_i32_0 = arith.constant 0 : i32
    %c0_i32_1 = arith.constant 0 : i32
    %c0_i32_2 = arith.constant 0 : i32
    return %arg0, %c0_i32, %c0_i32_0, %c0_i32_1 : i32, i32, i32, i32
  }
}

</mosaic_0001>

<llo_original>
// kernel: tpu_custom_call.1
$region0: #{tpu_custom_call.1}
  #allocation0 [shape = 'u32[]', space=smem, size = 0x4, offset = 0x4, fixed_abs, tag = 'smem constant byte address 0x4 - core index']
  #allocation1 [shape = 'u32[144,128]{1,0:T(1,128)}', space=vmem, size = 0x12000, scoped, tag = 'internal scratch']
  #allocation2 [shape = 'bf16[2,10,10,64]{3,2,1,0:T(8,128)(2,1)}', space=vmem, size = 0x14000, scoped, tag = 'scratch operand']
  #allocation3 [shape = 'bf16[2,10,10,128]{3,2,1,0:T(8,128)(2,1)}', space=vmem, size = 0x14000, scoped, tag = 'scratch operand']
  %s0 = inlined_call_operand.vmem [shape: f32[4,8,8,64], index: 0, kind: input, shape index: {}]
  %s1 = inlined_call_operand.hbm [shape: f32[4,1,128], index: 1, kind: input, shape index: {}]
  %s2 = inlined_call_operand.vmem [shape: f32[1,64], index: 2, kind: input, shape index: {}]
  %s3 = inlined_call_operand.vmem [shape: f32[1,64], index: 3, kind: input, shape index: {}]
  %s4 = inlined_call_operand.vmem [shape: f32[64,32], index: 4, kind: input, shape index: {}]
  %s5 = inlined_call_operand.hbm [shape: f32[32,64], index: 5, kind: input, shape index: {}]
  %s6 = inlined_call_operand.hbm [shape: bf16[576,128], index: 6, kind: input, shape index: {}]
  %s7 = inlined_call_operand.vmem [shape: f32[1,128], index: 7, kind: input, shape index: {}]
  %s8 = inlined_call_operand.vmem [shape: f32[1,128], index: 8, kind: input, shape index: {}]
  %s9 = inlined_call_operand.vmem [shape: f32[1,128], index: 9, kind: input, shape index: {}]
  %s10 = inlined_call_operand.vmem [shape: f32[128,32], index: 10, kind: input, shape index: {}]
  %s11 = inlined_call_operand.hbm [shape: f32[32,128], index: 11, kind: input, shape index: {}]
  %s12 = inlined_call_operand.hbm [shape: bf16[1152,128], index: 12, kind: input, shape index: {}]
  %s13 = inlined_call_operand.vmem [shape: f32[1,128], index: 13, kind: input, shape index: {}]
  %s14 = inlined_call_operand.hbm [shape: bf16[64,128], index: 14, kind: input, shape index: {}]
  %s15 = inlined_call_operand.vmem [shape: f32[1,128], index: 15, kind: input, shape index: {}]
  %s16 = inlined_call_operand.hbm [shape: f32[4,8,8,128], index: 16, kind: output, shape index: {}]
  %s17 = sld [smem:[#allocation0]]
  $region121: #{tpu_custom_call.1} parent=0
    _
  %s19 = ssub.s32 1, %s17
  %s20 = scalar_select 0, %s19, %s17
  $region1: #{tpu_custom_call.1} parent=0
    #allocation4 [shape = 'u8[2048]{0}', space=vmem, size = 0x800, scoped, tag = 'input window, operand 1']
    #allocation5 [shape = 's32[2]{0}', space=sflag, size = 0x8, scoped, tag = 'scoped memory for tpu_custom_call.1']
    #allocation6 [shape = 's32[2]{0}', space=sflag, size = 0x8, scoped, tag = 'scoped memory for tpu_custom_call.1']
    #allocation7 [shape = 'u8[16384]{0}', space=vmem, size = 0x4000, scoped, tag = 'input window, operand 5, single buffered']
    #allocation8 [shape = 's32[1]{0}', space=sflag, size = 0x4, scoped, tag = 'scoped memory for tpu_custom_call.1']
    #allocation9 [shape = 'u8[147456]{0}', space=vmem, size = 0x24000, scoped, tag = 'input window, operand 6, single buffered']
    #allocation10 [shape = 'u8[16384]{0}', space=vmem, size = 0x4000, scoped, tag = 'input window, operand 11, single buffered']
    #allocation11 [shape = 's32[1]{0}', space=sflag, size = 0x4, scoped, tag = 'scoped memory for tpu_custom_call.1']
    #allocation12 [shape = 'u8[294912]{0}', space=vmem, size = 0x48000, scoped, tag = 'input window, operand 12, single buffered']
    #allocation13 [shape = 'u8[16384]{0}', space=vmem, size = 0x4000, scoped, tag = 'input window, operand 14, single buffered']
    #allocation14 [shape = 's32[1]{0}', space=sflag, size = 0x4, scoped, tag = 'scoped memory for tpu_custom_call.1']
    #allocation15 [shape = 'u8[131072]{0}', space=vmem, size = 0x20000, scoped, tag = 'output window, operand 0']
    %21 = vsyncpa [#allocation5], 0
    %s22 = scalar_lea.sflag [#allocation5], 1
    %23 = vsyncpa %s22, 0
    %24 = vsyncpa [#allocation8], 0
    %25 = vsyncpa [#allocation11], 0
    %26 = vsyncpa [#allocation14], 0
    %27 = vsyncpa [#allocation6], 0
    %s28 = scalar_lea.sflag [#allocation6], 1
    %29 = vsyncpa %s28, 0
    loop: start=0, step=1, limit=4
    $region2: #{tpu_custom_call.1} parent=1 // loop_pre_header
      _
    $region3: #{tpu_custom_call.1} parent=1 // loop_header
      %s31 = sphi 0, %s35
      %p32 = scmp.ge.s32.totalorder %s31, 4
      %s41 = sphi 0, %s43
      %s44 = sphi 0, %s41
      %s45 = sphi 0, %s44
      %s61 = sphi 0, %s45
      %s67 = sphi 0, %s69
      %s70 = sphi 0, %s67
      %s71 = sphi 0, %s70
      %s87 = sphi 0, %s71
      %s91 = sphi 0, %s91
      %s93 = sphi 0, %s91
      %s94 = sphi 0, %s93
      %s108 = sphi 0, %s94
      %s112 = sphi 0, %s112
      %s114 = sphi 0, %s112
      %s115 = sphi 0, %s114
      %s129 = sphi 0, %s115
      %s133 = sphi 0, %s133
      %s135 = sphi 0, %s133
      %s136 = sphi 0, %s135
      %s150 = sphi 0, %s136
      %s154 = sphi 0, %s154
      %s156 = sphi 0, %s154
      %s157 = sphi 0, %s156
      %s171 = sphi 0, %s157
      %s175 = sphi 0, %s175
      %s177 = sphi 0, %s175
      %s178 = sphi 0, %s177
      %s192 = sphi 0, %s178
      %s196 = sphi 0, %s196
      %s198 = sphi 0, %s196
      %s199 = sphi 0, %s198
      %s213 = sphi 0, %s199
      %s217 = sphi 0, %s217
      %s219 = sphi 0, %s217
      %s220 = sphi 0, %s219
      %s234 = sphi 0, %s220
      %s238 = sphi 0, %s238
      %s240 = sphi 0, %s238
      %s241 = sphi 0, %s240
      %s255 = sphi 0, %s241
      %s259 = sphi 0, %s259
      %s261 = sphi 0, %s259
      %s262 = sphi 0, %s261
      %s276 = sphi 0, %s262
      %s280 = sphi 0, %s280
      %s282 = sphi 0, %s280
      %s283 = sphi 0, %s282
      %s297 = sphi 0, %s283
      %s301 = sphi 0, %s301
      %s303 = sphi 0, %s301
      %s304 = sphi 0, %s303
      %s318 = sphi 0, %s304
      %s322 = sphi 0, %s322
      %s324 = sphi 0, %s322
      %s325 = sphi 0, %s324
      %s339 = sphi 0, %s325
      %s343 = sphi 0, %s343
      %s345 = sphi 0, %s343
      %s346 = sphi 0, %s345
      %s360 = sphi 0, %s346
      %s364 = sphi 0, %s364
      %s366 = sphi 0, %s364
      %s367 = sphi 0, %s366
      %s381 = sphi 0, %s367
      %s387 = sphi 0, %s389
      %s390 = sphi 0, %s387
      %s391 = sphi 0, %s390
      %s407 = sphi 0, %s391
    $region4: #{tpu_custom_call.1} parent=1 // loop_header_branch
      %34 = sbr.rel (%p32) target = $region8
    $region5: #{tpu_custom_call.1} parent=1 // loop_body
      %s36 = ssub.s32 %s31, 1
      %s37 = ssub.s32 %s31, 2
      %s38 = sadd.s32 %s31, 1
      %s39 = ssub.s32 %s31, %s38
      %p40 = scmp.eq.s32.totalorder %s39, 0
      %s42 = sadd.s32 %s41, 1
      %s43 = scalar_select %p40, %s41, %s42
      %p46 = pneg %p40
      %p47 = scmp.eq.s32.totalorder %s31, 1
      %p48 = por %p46, %p47
      %p49 = scmp.ne.s32.totalorder %s41, %s44
      %p50 = scmp.eq.s32.totalorder %s31, 0
      %p51 = por %p49, %p50
      %p52 = scmp.ne.s32.totalorder %s41, %s44
      %p53 = scmp.eq.s32.totalorder %s36, 1
      %p54 = por %p52, %p53
      %p55 = scmp.ne.s32.totalorder %s44, %s45
      %p56 = scmp.eq.s32.totalorder %s36, 0
      %p57 = por %p55, %p56
      %p58 = scmp.ne.s32.totalorder %s44, %s45
      %p59 = scmp.eq.s32.totalorder %s37, 1
      %p60 = por %p58, %p59
      %p62 = scmp.ne.s32.totalorder %s45, %s61
      %p63 = scmp.eq.s32.totalorder %s37, 0
      %p64 = por %p62, %p63
      %s65 = ssub.s32 %s31, %s38
      %p66 = scmp.eq.s32.totalorder %s65, 0
      %s68 = sadd.s32 %s67, 1
      %s69 = scalar_select %p66, %s67, %s68
      %p72 = pneg %p66
      %p73 = scmp.eq.s32.totalorder %s31, 1
      %p74 = por %p72, %p73
      %p75 = scmp.ne.s32.totalorder %s67, %s70
      %p76 = scmp.eq.s32.totalorder %s31, 0
      %p77 = por %p75, %p76
      %p78 = scmp.ne.s32.totalorder %s67, %s70
      %p79 = scmp.eq.s32.totalorder %s36, 1
      %p80 = por %p78, %p79
      %p81 = scmp.ne.s32.totalorder %s70, %s71
      %p82 = scmp.eq.s32.totalorder %s36, 0
      %p83 = por %p81, %p82
      %p84 = scmp.ne.s32.totalorder %s70, %s71
      %p85 = scmp.eq.s32.totalorder %s37, 1
      %p86 = por %p84, %p85
      %p88 = scmp.ne.s32.totalorder %s71, %s87
      %p89 = scmp.eq.s32.totalorder %s37, 0
      %p90 = por %p88, %p89
      %s92 = sadd.s32 %s91, 1
      %p95 = scmp.eq.s32.totalorder %s31, 1
      %p96 = scmp.ne.s32.totalorder %s91, %s93
      %p97 = scmp.eq.s32.totalorder %s31, 0
      %p98 = por %p96, %p97
      %p99 = scmp.ne.s32.totalorder %s91, %s93
      %p100 = scmp.eq.s32.totalorder %s36, 1
      %p101 = por %p99, %p100
      %p102 = scmp.ne.s32.totalorder %s93, %s94
      %p103 = scmp.eq.s32.totalorder %s36, 0
      %p104 = por %p102, %p103
      %p105 = scmp.ne.s32.totalorder %s93, %s94
      %p106 = scmp.eq.s32.totalorder %s37, 1
      %p107 = por %p105, %p106
      %p109 = scmp.ne.s32.totalorder %s94, %s108
      %p110 = scmp.eq.s32.totalorder %s37, 0
      %p111 = por %p109, %p110
      %s113 = sadd.s32 %s112, 1
      %p116 = scmp.eq.s32.totalorder %s31, 1
      %p117 = scmp.ne.s32.totalorder %s112, %s114
      %p118 = scmp.eq.s32.totalorder %s31, 0
      %p119 = por %p117, %p118
      %p120 = scmp.ne.s32.totalorder %s112, %s114
      %p121 = scmp.eq.s32.totalorder %s36, 1
      %p122 = por %p120, %p121
      %p123 = scmp.ne.s32.totalorder %s114, %s115
      %p124 = scmp.eq.s32.totalorder %s36, 0
      %p125 = por %p123, %p124
      %p126 = scmp.ne.s32.totalorder %s114, %s115
      %p127 = scmp.eq.s32.totalorder %s37, 1
      %p128 = por %p126, %p127
      %p130 = scmp.ne.s32.totalorder %s115, %s129
      %p131 = scmp.eq.s32.totalorder %s37, 0
      %p132 = por %p130, %p131
      %s134 = sadd.s32 %s133, 1
      %p137 = scmp.eq.s32.totalorder %s31, 1
      %p138 = scmp.ne.s32.totalorder %s133, %s135
      %p139 = scmp.eq.s32.totalorder %s31, 0
      %p140 = por %p138, %p139
      %p141 = scmp.ne.s32.totalorder %s133, %s135
      %p142 = scmp.eq.s32.totalorder %s36, 1
      %p143 = por %p141, %p142
      %p144 = scmp.ne.s32.totalorder %s135, %s136
      %p145 = scmp.eq.s32.totalorder %s36, 0
      %p146 = por %p144, %p145
      %p147 = scmp.ne.s32.totalorder %s135, %s136
      %p148 = scmp.eq.s32.totalorder %s37, 1
      %p149 = por %p147, %p148
      %p151 = scmp.ne.s32.totalorder %s136, %s150
      %p152 = scmp.eq.s32.totalorder %s37, 0
      %p153 = por %p151, %p152
      %s155 = sadd.s32 %s154, 1
      %p158 = scmp.eq.s32.totalorder %s31, 1
      %p159 = scmp.ne.s32.totalorder %s154, %s156
      %p160 = scmp.eq.s32.totalorder %s31, 0
      %p161 = por %p159, %p160
      %p162 = scmp.ne.s32.totalorder %s154, %s156
      %p163 = scmp.eq.s32.totalorder %s36, 1
      %p164 = por %p162, %p163
      %p165 = scmp.ne.s32.totalorder %s156, %s157
      %p166 = scmp.eq.s32.totalorder %s36, 0
      %p167 = por %p165, %p166
      %p168 = scmp.ne.s32.totalorder %s156, %s157
      %p169 = scmp.eq.s32.totalorder %s37, 1
      %p170 = por %p168, %p169
      %p172 = scmp.ne.s32.totalorder %s157, %s171
      %p173 = scmp.eq.s32.totalorder %s37, 0
      %p174 = por %p172, %p173
      %s176 = sadd.s32 %s175, 1
      %p179 = scmp.eq.s32.totalorder %s31, 1
      %p180 = scmp.ne.s32.totalorder %s175, %s177
      %p181 = scmp.eq.s32.totalorder %s31, 0
      %p182 = por %p180, %p181
      %p183 = scmp.ne.s32.totalorder %s175, %s177
      %p184 = scmp.eq.s32.totalorder %s36, 1
      %p185 = por %p183, %p184
      %p186 = scmp.ne.s32.totalorder %s177, %s178
      %p187 = scmp.eq.s32.totalorder %s36, 0
      %p188 = por %p186, %p187
      %p189 = scmp.ne.s32.totalorder %s177, %s178
      %p190 = scmp.eq.s32.totalorder %s37, 1
      %p191 = por %p189, %p190
      %p193 = scmp.ne.s32.totalorder %s178, %s192
      %p194 = scmp.eq.s32.totalorder %s37, 0
      %p195 = por %p193, %p194
      %s197 = sadd.s32 %s196, 1
      %p200 = scmp.eq.s32.totalorder %s31, 1
      %p201 = scmp.ne.s32.totalorder %s196, %s198
      %p202 = scmp.eq.s32.totalorder %s31, 0
      %p203 = por %p201, %p202
      %p204 = scmp.ne.s32.totalorder %s196, %s198
      %p205 = scmp.eq.s32.totalorder %s36, 1
      %p206 = por %p204, %p205
      %p207 = scmp.ne.s32.totalorder %s198, %s199
      %p208 = scmp.eq.s32.totalorder %s36, 0
      %p209 = por %p207, %p208
      %p210 = scmp.ne.s32.totalorder %s198, %s199
      %p211 = scmp.eq.s32.totalorder %s37, 1
      %p212 = por %p210, %p211
      %p214 = scmp.ne.s32.totalorder %s199, %s213
      %p215 = scmp.eq.s32.totalorder %s37, 0
      %p216 = por %p214, %p215
      %s218 = sadd.s32 %s217, 1
      %p221 = scmp.eq.s32.totalorder %s31, 1
      %p222 = scmp.ne.s32.totalorder %s217, %s219
      %p223 = scmp.eq.s32.totalorder %s31, 0
      %p224 = por %p222, %p223
      %p225 = scmp.ne.s32.totalorder %s217, %s219
      %p226 = scmp.eq.s32.totalorder %s36, 1
      %p227 = por %p225, %p226
      %p228 = scmp.ne.s32.totalorder %s219, %s220
      %p229 = scmp.eq.s32.totalorder %s36, 0
      %p230 = por %p228, %p229
      %p231 = scmp.ne.s32.totalorder %s219, %s220
      %p232 = scmp.eq.s32.totalorder %s37, 1
      %p233 = por %p231, %p232
      %p235 = scmp.ne.s32.totalorder %s220, %s234
      %p236 = scmp.eq.s32.totalorder %s37, 0
      %p237 = por %p235, %p236
      %s239 = sadd.s32 %s238, 1
      %p242 = scmp.eq.s32.totalorder %s31, 1
      %p243 = scmp.ne.s32.totalorder %s238, %s240
      %p244 = scmp.eq.s32.totalorder %s31, 0
      %p245 = por %p243, %p244
      %p246 = scmp.ne.s32.totalorder %s238, %s240
      %p247 = scmp.eq.s32.totalorder %s36, 1
      %p248 = por %p246, %p247
      %p249 = scmp.ne.s32.totalorder %s240, %s241
      %p250 = scmp.eq.s32.totalorder %s36, 0
      %p251 = por %p249, %p250
      %p252 = scmp.ne.s32.totalorder %s240, %s241
      %p253 = scmp.eq.s32.totalorder %s37, 1
      %p254 = por %p252, %p253
      %p256 = scmp.ne.s32.totalorder %s241, %s255
      %p257 = scmp.eq.s32.totalorder %s37, 0
      %p258 = por %p256, %p257
      %s260 = sadd.s32 %s259, 1
      %p263 = scmp.eq.s32.totalorder %s31, 1
      %p264 = scmp.ne.s32.totalorder %s259, %s261
      %p265 = scmp.eq.s32.totalorder %s31, 0
      %p266 = por %p264, %p265
      %p267 = scmp.ne.s32.totalorder %s259, %s261
      %p268 = scmp.eq.s32.totalorder %s36, 1
      %p269 = por %p267, %p268
      %p270 = scmp.ne.s32.totalorder %s261, %s262
      %p271 = scmp.eq.s32.totalorder %s36, 0
      %p272 = por %p270, %p271
      %p273 = scmp.ne.s32.totalorder %s261, %s262
      %p274 = scmp.eq.s32.totalorder %s37, 1
      %p275 = por %p273, %p274
      %p277 = scmp.ne.s32.totalorder %s262, %s276
      %p278 = scmp.eq.s32.totalorder %s37, 0
      %p279 = por %p277, %p278
      %s281 = sadd.s32 %s280, 1
      %p284 = scmp.eq.s32.totalorder %s31, 1
      %p285 = scmp.ne.s32.totalorder %s280, %s282
      %p286 = scmp.eq.s32.totalorder %s31, 0
      %p287 = por %p285, %p286
      %p288 = scmp.ne.s32.totalorder %s280, %s282
      %p289 = scmp.eq.s32.totalorder %s36, 1
      %p290 = por %p288, %p289
      %p291 = scmp.ne.s32.totalorder %s282, %s283
      %p292 = scmp.eq.s32.totalorder %s36, 0
      %p293 = por %p291, %p292
      %p294 = scmp.ne.s32.totalorder %s282, %s283
      %p295 = scmp.eq.s32.totalorder %s37, 1
      %p296 = por %p294, %p295
      %p298 = scmp.ne.s32.totalorder %s283, %s297
      %p299 = scmp.eq.s32.totalorder %s37, 0
      %p300 = por %p298, %p299
      %s302 = sadd.s32 %s301, 1
      %p305 = scmp.eq.s32.totalorder %s31, 1
      %p306 = scmp.ne.s32.totalorder %s301, %s303
      %p307 = scmp.eq.s32.totalorder %s31, 0
      %p308 = por %p306, %p307
      %p309 = scmp.ne.s32.totalorder %s301, %s303
      %p310 = scmp.eq.s32.totalorder %s36, 1
      %p311 = por %p309, %p310
      %p312 = scmp.ne.s32.totalorder %s303, %s304
      %p313 = scmp.eq.s32.totalorder %s36, 0
      %p314 = por %p312, %p313
      %p315 = scmp.ne.s32.totalorder %s303, %s304
      %p316 = scmp.eq.s32.totalorder %s37, 1
      %p317 = por %p315, %p316
      %p319 = scmp.ne.s32.totalorder %s304, %s318
      %p320 = scmp.eq.s32.totalorder %s37, 0
      %p321 = por %p319, %p320
      %s323 = sadd.s32 %s322, 1
      %p326 = scmp.eq.s32.totalorder %s31, 1
      %p327 = scmp.ne.s32.totalorder %s322, %s324
      %p328 = scmp.eq.s32.totalorder %s31, 0
      %p329 = por %p327, %p328
      %p330 = scmp.ne.s32.totalorder %s322, %s324
      %p331 = scmp.eq.s32.totalorder %s36, 1
      %p332 = por %p330, %p331
      %p333 = scmp.ne.s32.totalorder %s324, %s325
      %p334 = scmp.eq.s32.totalorder %s36, 0
      %p335 = por %p333, %p334
      %p336 = scmp.ne.s32.totalorder %s324, %s325
      %p337 = scmp.eq.s32.totalorder %s37, 1
      %p338 = por %p336, %p337
      %p340 = scmp.ne.s32.totalorder %s325, %s339
      %p341 = scmp.eq.s32.totalorder %s37, 0
      %p342 = por %p340, %p341
      %s344 = sadd.s32 %s343, 1
      %p347 = scmp.eq.s32.totalorder %s31, 1
      %p348 = scmp.ne.s32.totalorder %s343, %s345
      %p349 = scmp.eq.s32.totalorder %s31, 0
      %p350 = por %p348, %p349
      %p351 = scmp.ne.s32.totalorder %s343, %s345
      %p352 = scmp.eq.s32.totalorder %s36, 1
      %p353 = por %p351, %p352
      %p354 = scmp.ne.s32.totalorder %s345, %s346
      %p355 = scmp.eq.s32.totalorder %s36, 0
      %p356 = por %p354, %p355
      %p357 = scmp.ne.s32.totalorder %s345, %s346
      %p358 = scmp.eq.s32.totalorder %s37, 1
      %p359 = por %p357, %p358
      %p361 = scmp.ne.s32.totalorder %s346, %s360
      %p362 = scmp.eq.s32.totalorder %s37, 0
      %p363 = por %p361, %p362
      %s365 = sadd.s32 %s364, 1
      %p368 = scmp.eq.s32.totalorder %s31, 1
      %p369 = scmp.ne.s32.totalorder %s364, %s366
      %p370 = scmp.eq.s32.totalorder %s31, 0
      %p371 = por %p369, %p370
      %p372 = scmp.ne.s32.totalorder %s364, %s366
      %p373 = scmp.eq.s32.totalorder %s36, 1
      %p374 = por %p372, %p373
      %p375 = scmp.ne.s32.totalorder %s366, %s367
      %p376 = scmp.eq.s32.totalorder %s36, 0
      %p377 = por %p375, %p376
      %p378 = scmp.ne.s32.totalorder %s366, %s367
      %p379 = scmp.eq.s32.totalorder %s37, 1
      %p380 = por %p378, %p379
      %p382 = scmp.ne.s32.totalorder %s367, %s381
      %p383 = scmp.eq.s32.totalorder %s37, 0
      %p384 = por %p382, %p383
      %s385 = ssub.s32 %s31, %s38
      %p386 = scmp.eq.s32.totalorder %s385, 0
      %s388 = sadd.s32 %s387, 1
      %s389 = scalar_select %p386, %s387, %s388
      %p392 = pneg %p386
      %p393 = scmp.eq.s32.totalorder %s31, 1
      %p394 = por %p392, %p393
      %p395 = scmp.ne.s32.totalorder %s387, %s390
      %p396 = scmp.eq.s32.totalorder %s31, 0
      %p397 = por %p395, %p396
      %p398 = scmp.ne.s32.totalorder %s387, %s390
      %p399 = scmp.eq.s32.totalorder %s36, 1
      %p400 = por %p398, %p399
      %p401 = scmp.ne.s32.totalorder %s390, %s391
      %p402 = scmp.eq.s32.totalorder %s36, 0
      %p403 = por %p401, %p402
      %p404 = scmp.ne.s32.totalorder %s390, %s391
      %p405 = scmp.eq.s32.totalorder %s37, 1
      %p406 = por %p404, %p405
      %p408 = scmp.ne.s32.totalorder %s391, %s407
      %p409 = scmp.eq.s32.totalorder %s37, 0
      %p410 = por %p408, %p409
      %p411 = scmp.le.s32.totalorder 1, %s31
      %p412 = scmp.lt.s32.totalorder %s31, 3
      %p413 = pnand %p411, %p412
      %p414 = pneg %p413
      // Predicated region
      $region9: #{tpu_custom_call.1} parent=5 // pred_check
        _
      $region10: #{tpu_custom_call.1} parent=5 // pred_check_branch
        %416 = sbr.rel (%p413) target = $region12
      $region11: #{tpu_custom_call.1} parent=5 // pred_region
        %s417 = ssub.s32 %s31, 1
        // Predicated region
        $region13: #{tpu_custom_call.1} parent=11 // pred_check
          %p418 = pneg %p104
        $region14: #{tpu_custom_call.1} parent=11 // pred_check_branch
          %420 = sbr.rel (%p418) target = $region16
        $region15: #{tpu_custom_call.1} parent=11 // pred_region
          _
        $region16: #{tpu_custom_call.1} parent=11 // pred_fallthru
          _
        // Predicated region
        $region17: #{tpu_custom_call.1} parent=11 // pred_check
          %p421 = pneg %p125
        $region18: #{tpu_custom_call.1} parent=11 // pred_check_branch
          %423 = sbr.rel (%p421) target = $region20
        $region19: #{tpu_custom_call.1} parent=11 // pred_region
          _
        $region20: #{tpu_custom_call.1} parent=11 // pred_fallthru
          _
        // Predicated region
        $region21: #{tpu_custom_call.1} parent=11 // pred_check
          %p424 = pneg %p146
        $region22: #{tpu_custom_call.1} parent=11 // pred_check_branch
          %426 = sbr.rel (%p424) target = $region24
        $region23: #{tpu_custom_call.1} parent=11 // pred_region
          _
        $region24: #{tpu_custom_call.1} parent=11 // pred_fallthru
          _
        // Predicated region
        $region25: #{tpu_custom_call.1} parent=11 // pred_check
          %p427 = pneg %p167
        $region26: #{tpu_custom_call.1} parent=11 // pred_check_branch
          %429 = sbr.rel (%p427) target = $region28
        $region27: #{tpu_custom_call.1} parent=11 // pred_region
          %s431 = ssub.s32 512, 512
          %432 = vsyncadd [#allocation8], %s431
          %s433 = sshll.u32 [#allocation7], 4
          %s434 = int_to_ptr.vmem [resolvable:$true] %s433
          %439 = dma.hbm_to_vmem [thread:$0]  %s5, 512, %s434, [#allocation8], 128, 128, 8
        $region28: #{tpu_custom_call.1} parent=11 // pred_fallthru
          _
        // Predicated region
        $region29: #{tpu_custom_call.1} parent=11 // pred_check
          %p440 = pneg %p188
        $region30: #{tpu_custom_call.1} parent=11 // pred_check_branch
          %442 = sbr.rel (%p440) target = $region32
        $region31: #{tpu_custom_call.1} parent=11 // pred_region
          %s444 = ssub.s32 4608, 4608
          %445 = vsyncadd [#allocation8], %s444
          %s446 = sshll.u32 [#allocation9], 4
          %s447 = int_to_ptr.vmem [resolvable:$true] %s446
          %452 = dma.hbm_to_vmem [thread:$0]  %s6, 4608, %s447, [#allocation8], 64, 64, 4
        $region32: #{tpu_custom_call.1} parent=11 // pred_fallthru
          _
        // Predicated region
        $region33: #{tpu_custom_call.1} parent=11 // pred_check
          %p453 = pneg %p209
        $region34: #{tpu_custom_call.1} parent=11 // pred_check_branch
          %455 = sbr.rel (%p453) target = $region36
        $region35: #{tpu_custom_call.1} parent=11 // pred_region
          _
        $region36: #{tpu_custom_call.1} parent=11 // pred_fallthru
          _
        // Predicated region
        $region37: #{tpu_custom_call.1} parent=11 // pred_check
          %p456 = pneg %p230
        $region38: #{tpu_custom_call.1} parent=11 // pred_check_branch
          %458 = sbr.rel (%p456) target = $region40
        $region39: #{tpu_custom_call.1} parent=11 // pred_region
          _
        $region40: #{tpu_custom_call.1} parent=11 // pred_fallthru
          _
        // Predicated region
        $region41: #{tpu_custom_call.1} parent=11 // pred_check
          %p459 = pneg %p251
        $region42: #{tpu_custom_call.1} parent=11 // pred_check_branch
          %461 = sbr.rel (%p459) target = $region44
        $region43: #{tpu_custom_call.1} parent=11 // pred_region
          _
        $region44: #{tpu_custom_call.1} parent=11 // pred_fallthru
          _
        // Predicated region
        $region45: #{tpu_custom_call.1} parent=11 // pred_check
          %p462 = pneg %p272
        $region46: #{tpu_custom_call.1} parent=11 // pred_check_branch
          %464 = sbr.rel (%p462) target = $region48
        $region47: #{tpu_custom_call.1} parent=11 // pred_region
          _
        $region48: #{tpu_custom_call.1} parent=11 // pred_fallthru
          _
        // Predicated region
        $region49: #{tpu_custom_call.1} parent=11 // pred_check
          %p465 = pneg %p293
        $region50: #{tpu_custom_call.1} parent=11 // pred_check_branch
          %467 = sbr.rel (%p465) target = $region52
        $region51: #{tpu_custom_call.1} parent=11 // pred_region
          %s469 = ssub.s32 512, 512
          %470 = vsyncadd [#allocation11], %s469
          %s471 = sshll.u32 [#allocation10], 4
          %s472 = int_to_ptr.vmem [resolvable:$true] %s471
          %477 = dma.hbm_to_vmem [thread:$0]  %s11, 512, %s472, [#allocation11], 128, 128, 8
        $region52: #{tpu_custom_call.1} parent=11 // pred_fallthru
          _
        // Predicated region
        $region53: #{tpu_custom_call.1} parent=11 // pred_check
          %p478 = pneg %p314
        $region54: #{tpu_custom_call.1} parent=11 // pred_check_branch
          %480 = sbr.rel (%p478) target = $region56
        $region55: #{tpu_custom_call.1} parent=11 // pred_region
          %s482 = ssub.s32 9216, 9216
          %483 = vsyncadd [#allocation11], %s482
          %s484 = sshll.u32 [#allocation12], 4
          %s485 = int_to_ptr.vmem [resolvable:$true] %s484
          %490 = dma.hbm_to_vmem [thread:$0]  %s12, 9216, %s485, [#allocation11], 64, 64, 4
        $region56: #{tpu_custom_call.1} parent=11 // pred_fallthru
          _
        // Predicated region
        $region57: #{tpu_custom_call.1} parent=11 // pred_check
          %p491 = pneg %p335
        $region58: #{tpu_custom_call.1} parent=11 // pred_check_branch
          %493 = sbr.rel (%p491) target = $region60
        $region59: #{tpu_custom_call.1} parent=11 // pred_region
          _
        $region60: #{tpu_custom_call.1} parent=11 // pred_fallthru
          _
        // Predicated region
        $region61: #{tpu_custom_call.1} parent=11 // pred_check
          %p494 = pneg %p356
        $region62: #{tpu_custom_call.1} parent=11 // pred_check_branch
          %496 = sbr.rel (%p494) target = $region64
        $region63: #{tpu_custom_call.1} parent=11 // pred_region
          %s498 = ssub.s32 512, 512
          %499 = vsyncadd [#allocation14], %s498
          %s500 = sshll.u32 [#allocation13], 4
          %s501 = int_to_ptr.vmem [resolvable:$true] %s500
          %506 = dma.hbm_to_vmem [thread:$0]  %s14, 512, %s501, [#allocation14], 64, 64, 4
        $region64: #{tpu_custom_call.1} parent=11 // pred_fallthru
          _
        // Predicated region
        $region65: #{tpu_custom_call.1} parent=11 // pred_check
          %p507 = pneg %p377
        $region66: #{tpu_custom_call.1} parent=11 // pred_check_branch
          %509 = sbr.rel (%p507) target = $region68
        $region67: #{tpu_custom_call.1} parent=11 // pred_region
          _
        $region68: #{tpu_custom_call.1} parent=11 // pred_fallthru
          _
      $region12: #{tpu_custom_call.1} parent=5 // pred_fallthru
        _
      %p510 = scmp.lt.s32.totalorder %s31, 2
      // Predicated region
      $region69: #{tpu_custom_call.1} parent=5 // pred_check
        %p511 = pneg %p510
      $region70: #{tpu_custom_call.1} parent=5 // pred_check_branch
        %513 = sbr.rel (%p511) target = $region72
      $region71: #{tpu_custom_call.1} parent=5 // pred_region
        // Predicated region
        $region73: #{tpu_custom_call.1} parent=71 // pred_check
          %p514 = pneg %p51
        $region74: #{tpu_custom_call.1} parent=71 // pred_check_branch
          %516 = sbr.rel (%p514) target = $region76
        $region75: #{tpu_custom_call.1} parent=71 // pred_region
          %s517 = smul.u32 2, %s31
          %p518 = scmp.lt.s32.totalorder %s517, 3
          %s519 = scalar_select %p518, %s517, 3
          %s520 = smul.addr %s519, 8
          %s521 = smul.addr %s520, 8
          %s522 = scalar_lea.vmem %s0, %s521
          %s523 = smul.u32 2, %s31
        $region76: #{tpu_custom_call.1} parent=71 // pred_fallthru
          _
        // Predicated region
        $region77: #{tpu_custom_call.1} parent=71 // pred_check
          %p524 = pneg %p77
        $region78: #{tpu_custom_call.1} parent=71 // pred_check_branch
          %526 = sbr.rel (%p524) target = $region80
        $region79: #{tpu_custom_call.1} parent=71 // pred_region
          %s527 = sand.u32 %s67, 1
          %s528 = scalar_lea.sflag [#allocation5], %s527
          %s529 = sand.u32 %s67, 1
          %s530 = smul.addr %s529, 2
          %s531 = scalar_lea.vmem [#allocation4], %s530
          %s532 = smul.u32 2, %s31
          %s534 = ssub.s32 32, 32
          %535 = vsyncadd %s528, %s534
          %s536 = smul.addr %s532, 16
          %s537 = scalar_lea.hbm %s1, %s536
          %s538 = sshll.u32 %s531, 4
          %s539 = int_to_ptr.vmem [resolvable:$true] %s538
          %544 = dma.hbm_to_vmem [thread:$0]  %s537, 32, %s539, %s528, 16, 16, 1
        $region80: #{tpu_custom_call.1} parent=71 // pred_fallthru
          _
      $region72: #{tpu_custom_call.1} parent=5 // pred_fallthru
        _
      %p545 = scmp.le.s32.totalorder 1, %s31
      %p546 = scmp.lt.s32.totalorder %s31, 3
      %p547 = pnand %p545, %p546
      %p548 = pneg %p547
      // Predicated region
      $region81: #{tpu_custom_call.1} parent=5 // pred_check
        _
      $region82: #{tpu_custom_call.1} parent=5 // pred_check_branch
        %550 = sbr.rel (%p547) target = $region84
      $region83: #{tpu_custom_call.1} parent=5 // pred_region
        %s551 = ssub.s32 %s31, 1
        %s552 = sand.u32 %s70, 1
        %s553 = scalar_lea.sflag [#allocation5], %s552
        %s554 = sand.u32 %s70, 1
        %s555 = smul.addr %s554, 2
        %s556 = scalar_lea.vmem [#allocation4], %s555
        // Predicated region
        $region85: #{tpu_custom_call.1} parent=83 // pred_check
          %p557 = pneg %p83
        $region86: #{tpu_custom_call.1} parent=83 // pred_check_branch
          %559 = sbr.rel (%p557) target = $region88
        $region87: #{tpu_custom_call.1} parent=83 // pred_region
          %560 = dma.done %s553, 32
        $region88: #{tpu_custom_call.1} parent=83 // pred_fallthru
          _
        // Predicated region
        $region89: #{tpu_custom_call.1} parent=83 // pred_check
          %p561 = pneg %p167
        $region90: #{tpu_custom_call.1} parent=83 // pred_check_branch
          %563 = sbr.rel (%p561) target = $region92
        $region91: #{tpu_custom_call.1} parent=83 // pred_region
          %564 = dma.done [#allocation8], 512
        $region92: #{tpu_custom_call.1} parent=83 // pred_fallthru
          _
        // Predicated region
        $region93: #{tpu_custom_call.1} parent=83 // pred_check
          %p565 = pneg %p188
        $region94: #{tpu_custom_call.1} parent=83 // pred_check_branch
          %567 = sbr.rel (%p565) target = $region96
        $region95: #{tpu_custom_call.1} parent=83 // pred_region
          %568 = dma.done [#allocation8], 4608
        $region96: #{tpu_custom_call.1} parent=83 // pred_fallthru
          _
        // Predicated region
        $region97: #{tpu_custom_call.1} parent=83 // pred_check
          %p569 = pneg %p293
        $region98: #{tpu_custom_call.1} parent=83 // pred_check_branch
          %571 = sbr.rel (%p569) target = $region100
        $region99: #{tpu_custom_call.1} parent=83 // pred_region
          %572 = dma.done [#allocation11], 512
        $region100: #{tpu_custom_call.1} parent=83 // pred_fallthru
          _
        // Predicated region
        $region101: #{tpu_custom_call.1} parent=83 // pred_check
          %p573 = pneg %p314
        $region102: #{tpu_custom_call.1} parent=83 // pred_check_branch
          %575 = sbr.rel (%p573) target = $region104
        $region103: #{tpu_custom_call.1} parent=83 // pred_region
          %576 = dma.done [#allocation11], 9216
        $region104: #{tpu_custom_call.1} parent=83 // pred_fallthru
          _
        // Predicated region
        $region105: #{tpu_custom_call.1} parent=83 // pred_check
          %p577 = pneg %p356
        $region106: #{tpu_custom_call.1} parent=83 // pred_check_branch
          %579 = sbr.rel (%p577) target = $region108
        $region107: #{tpu_custom_call.1} parent=83 // pred_region
          %580 = dma.done [#allocation14], 512
        $region108: #{tpu_custom_call.1} parent=83 // pred_fallthru
          _
        %s581 = smul.u32 2, %s36
        %p582 = scmp.lt.s32.totalorder %s581, 3
        %s583 = scalar_select %p582, %s581, 3
        %s584 = smul.addr %s583, 8
        %s585 = smul.addr %s584, 8
        %s586 = scalar_lea.vmem %s0, %s585
        %p587 = pneg %p57
        %p588 = pneg %p54
        %s589 = sand.u32 %s70, 1
        %s590 = scalar_lea.sflag [#allocation5], %s589
        %s591 = sand.u32 %s70, 1
        %s592 = smul.addr %s591, 2
        %s593 = scalar_lea.vmem [#allocation4], %s592
        %p594 = pneg %p83
        %p595 = pneg %p80
        %p596 = pneg %p104
        %p597 = pneg %p101
        %p598 = pneg %p125
        %p599 = pneg %p122
        %p600 = pneg %p146
        %p601 = pneg %p143
        %p602 = pneg %p167
        %p603 = pneg %p164
        %p604 = pneg %p188
        %p605 = pneg %p185
        %p606 = pneg %p209
        %p607 = pneg %p206
        %p608 = pneg %p230
        %p609 = pneg %p227
        %p610 = pneg %p251
        %p611 = pneg %p248
        %p612 = pneg %p272
        %p613 = pneg %p269
        %p614 = pneg %p293
        %p615 = pneg %p290
        %p616 = pneg %p314
        %p617 = pneg %p311
        %p618 = pneg %p335
        %p619 = pneg %p332
        %p620 = pneg %p356
        %p621 = pneg %p353
        %p622 = pneg %p377
        %p623 = pneg %p374
        %p624 = pneg %p403
        %p625 = pneg %p400
        %s626 = sand.u32 %s390, 1
        %s627 = scalar_lea.sflag [#allocation6], %s626
        %s628 = sand.u32 %s390, 1
        %s629 = smul.addr %s628, 128
        %s630 = scalar_lea.vmem [#allocation15], %s629
        %s631 = smul.u32 2, %s36
        %p632 = scmp.lt.s32.totalorder %s631, 3
        %s633 = scalar_select %p632, %s631, 3
        %s634 = smul.addr %s633, 8
        %s635 = smul.addr %s634, 8
        %s636 = scalar_lea.vmem %s0, %s635
        %s637 = smul.u32 2, %s36
        %s638 = smul.u32 2, %s36
        %s639 = smul.u32 2, %s36
        %v641 = vld [vmem:[%s636] sm:$0xff]
        %v642 = vld [vmem:[%s636 + $0x8] sm:$0xff]
        %v643 = vld [vmem:[%s636 + $0x10] sm:$0xff]
        %v644 = vld [vmem:[%s636 + $0x18] sm:$0xff]
        %v645 = vld [vmem:[%s636 + $0x20] sm:$0xff]
        %v646 = vld [vmem:[%s636 + $0x28] sm:$0xff]
        %v647 = vld [vmem:[%s636 + $0x30] sm:$0xff]
        %v648 = vld [vmem:[%s636 + $0x38] sm:$0xff]
        %v649 = vld [vmem:[%s636 + $0x40] sm:$0xff]
        %v650 = vld [vmem:[%s636 + $0x48] sm:$0xff]
        %v651 = vld [vmem:[%s636 + $0x50] sm:$0xff]
        %v652 = vld [vmem:[%s636 + $0x58] sm:$0xff]
        %v653 = vld [vmem:[%s636 + $0x60] sm:$0xff]
        %v654 = vld [vmem:[%s636 + $0x68] sm:$0xff]
        %v655 = vld [vmem:[%s636 + $0x70] sm:$0xff]
        %v656 = vld [vmem:[%s636 + $0x78] sm:$0xff]
        %v657 = vld [vmem:[%s2] sm:$0x1]
        %v658 = vld [vmem:[%s3] sm:$0x1]
        %v659 = vld [vmem:[%s4] sm:$0xff]
        %v660 = vld [vmem:[%s4 + $0x8] sm:$0xff]
        %v661 = vld [vmem:[%s4 + $0x10] sm:$0xff]
        %v662 = vld [vmem:[%s4 + $0x18] sm:$0xff]
        %v663 = vld [vmem:[%s4 + $0x20] sm:$0xff]
        %v664 = vld [vmem:[%s4 + $0x28] sm:$0xff]
        %v665 = vld [vmem:[%s4 + $0x30] sm:$0xff]
        %v666 = vld [vmem:[%s4 + $0x38] sm:$0xff]
        %v667 = vld [vmem:[#allocation7] sm:$0xff]
        %v668 = vld [vmem:[#allocation7 + $0x8] sm:$0xff]
        %v669 = vld [vmem:[#allocation7 + $0x10] sm:$0xff]
        %v670 = vld [vmem:[#allocation7 + $0x18] sm:$0xff]
        %vm671 = vcmask 523264
        %v672 = vsel %vm671, %v641, 0.0
        %v673 = vsel %vm671, %v642, 0.0
        %v674 = vadd.f32 %v672, %v673
        %v675 = vsel %vm671, %v643, 0.0
        %v676 = vadd.f32 %v674, %v675
        %v677 = vsel %vm671, %v644, 0.0
        %v678 = vadd.f32 %v676, %v677
        %v679 = vsel %vm671, %v645, 0.0
        %v680 = vadd.f32 %v678, %v679
        %v681 = vsel %vm671, %v646, 0.0
        %v682 = vadd.f32 %v680, %v681
        %v683 = vsel %vm671, %v647, 0.0
        %v684 = vadd.f32 %v682, %v683
        %v685 = vsel %vm671, %v648, 0.0
        %v686 = vadd.f32 %v684, %v685
        %v687 = vrot.slane %v686, 4
        %v688 = vadd.f32 %v686, %v687
        %v689 = vrot.slane %v688, 2
        %v690 = vadd.f32 %v688, %v689
        %v691 = vrot.slane %v690, 1
        %v692 = vadd.f32 %v690, %v691
        %v693 = vsel %vm671, %v649, 0.0
        %v694 = vsel %vm671, %v650, 0.0
        %v695 = vadd.f32 %v693, %v694
        %v696 = vsel %vm671, %v651, 0.0
        %v697 = vadd.f32 %v695, %v696
        %v698 = vsel %vm671, %v652, 0.0
        %v699 = vadd.f32 %v697, %v698
        %v700 = vsel %vm671, %v653, 0.0
        %v701 = vadd.f32 %v699, %v700
        %v702 = vsel %vm671, %v654, 0.0
        %v703 = vadd.f32 %v701, %v702
        %v704 = vsel %vm671, %v655, 0.0
        %v705 = vadd.f32 %v703, %v704
        %v706 = vsel %vm671, %v656, 0.0
        %v707 = vadd.f32 %v705, %v706
        %v708 = vrot.slane %v707, 4
        %v709 = vadd.f32 %v707, %v708
        %v710 = vrot.slane %v709, 2
        %v711 = vadd.f32 %v709, %v710
        %v712 = vrot.slane %v711, 1
        %v713 = vadd.f32 %v711, %v712
        %v714 = vmul.f32 %v641, %v641
        %v715 = vmul.f32 %v642, %v642
        %v716 = vmul.f32 %v643, %v643
        %v717 = vmul.f32 %v644, %v644
        %v718 = vmul.f32 %v645, %v645
        %v719 = vmul.f32 %v646, %v646
        %v720 = vmul.f32 %v647, %v647
        %v721 = vmul.f32 %v648, %v648
        %v722 = vmul.f32 %v649, %v649
        %v723 = vmul.f32 %v650, %v650
        %v724 = vmul.f32 %v651, %v651
        %v725 = vmul.f32 %v652, %v652
        %v726 = vmul.f32 %v653, %v653
        %v727 = vmul.f32 %v654, %v654
        %v728 = vmul.f32 %v655, %v655
        %v729 = vmul.f32 %v656, %v656
        %v730 = vsel %vm671, %v714, 0.0
        %v731 = vsel %vm671, %v715, 0.0
        %v732 = vadd.f32 %v730, %v731
        %v733 = vsel %vm671, %v716, 0.0
        %v734 = vadd.f32 %v732, %v733
        %v735 = vsel %vm671, %v717, 0.0
        %v736 = vadd.f32 %v734, %v735
        %v737 = vsel %vm671, %v718, 0.0
        %v738 = vadd.f32 %v736, %v737
        %v739 = vsel %vm671, %v719, 0.0
        %v740 = vadd.f32 %v738, %v739
        %v741 = vsel %vm671, %v720, 0.0
        %v742 = vadd.f32 %v740, %v741
        %v743 = vsel %vm671, %v721, 0.0
        %v744 = vadd.f32 %v742, %v743
        %v745 = vrot.slane %v744, 4
        %v746 = vadd.f32 %v744, %v745
        %v747 = vrot.slane %v746, 2
        %v748 = vadd.f32 %v746, %v747
        %v749 = vrot.slane %v748, 1
        %v750 = vadd.f32 %v748, %v749
        %v751 = vsel %vm671, %v722, 0.0
        %v752 = vsel %vm671, %v723, 0.0
        %v753 = vadd.f32 %v751, %v752
        %v754 = vsel %vm671, %v724, 0.0
        %v755 = vadd.f32 %v753, %v754
        %v756 = vsel %vm671, %v725, 0.0
        %v757 = vadd.f32 %v755, %v756
        %v758 = vsel %vm671, %v726, 0.0
        %v759 = vadd.f32 %v757, %v758
        %v760 = vsel %vm671, %v727, 0.0
        %v761 = vadd.f32 %v759, %v760
        %v762 = vsel %vm671, %v728, 0.0
        %v763 = vadd.f32 %v761, %v762
        %v764 = vsel %vm671, %v729, 0.0
        %v765 = vadd.f32 %v763, %v764
        %v766 = vrot.slane %v765, 4
        %v767 = vadd.f32 %v765, %v766
        %v768 = vrot.slane %v767, 2
        %v769 = vadd.f32 %v767, %v768
        %v770 = vrot.slane %v769, 1
        %v771 = vadd.f32 %v769, %v770
        %vm774 = vcmask 1041409
        %v775 = vsel %vm774, %v713, %v692
        %v776 = vsel %vm671, %v775, 0
        %778 = vmatprep.subr.mxu0 0.0
        %779 = vmatpush1.msra.mxu0 0.0
        %780 = vmatprep.subr.mxu0 0.0
        %781 = vmatpush1.msra.mxu0 0.0
        %782 = vmatprep.subr.mxu0 0.0
        %783 = vmatpush1.msra.mxu0 0.0
        %784 = vmatprep.subr.mxu0 0.0
        %785 = vmatpush1.msra.mxu0 0.0
        %786 = vmatprep.subr.mxu0 0.0
        %787 = vmatpush1.msra.mxu0 0.0
        %788 = vmatprep.subr.mxu0 0.0
        %789 = vmatpush1.msra.mxu0 0.0
        %790 = vmatprep.subr.mxu0 0.0
        %791 = vmatpush1.msra.mxu0 0.0
        %792 = vmatprep.subr.mxu0 0.0
        %793 = vmatpush1.msra.mxu0 0.0
        %794 = vmatprep.subr.mxu0 0.0
        %795 = vmatpush1.msra.mxu0 %v666
        %796 = vmatprep.subr.mxu0 0.0
        %797 = vmatpush1.msra.mxu0 %v665
        %798 = vmatprep.subr.mxu0 0.0
        %799 = vmatpush1.msra.mxu0 %v664
        %800 = vmatprep.subr.mxu0 0.0
        %801 = vmatpush1.msra.mxu0 %v663
        %802 = vmatprep.subr.mxu0 0.0
        %803 = vmatpush1.msra.mxu0 %v662
        %804 = vmatprep.subr.mxu0 0.0
        %805 = vmatpush1.msra.mxu0 %v661
        %806 = vmatprep.subr.mxu0 0.0
        %807 = vmatpush1.msra.mxu0 %v660
        %808 = vmatprep.subr.mxu0 0.0
        %809 = vmatpush1.msra.mxu0 %v659
        %810 = vmatprep.subr.mxu0 0.0
        %811 = vmatpush2.msra.mxu0 0.0
        %812 = vmatprep.subr.mxu0 0.0
        %813 = vmatpush2.msra.mxu0 0.0
        %814 = vmatprep.subr.mxu0 0.0
        %815 = vmatpush2.msra.mxu0 0.0
        %816 = vmatprep.subr.mxu0 0.0
        %817 = vmatpush2.msra.mxu0 0.0
        %818 = vmatprep.subr.mxu0 0.0
        %819 = vmatpush2.msra.mxu0 0.0
        %820 = vmatprep.subr.mxu0 0.0
        %821 = vmatpush2.msra.mxu0 0.0
        %822 = vmatprep.subr.mxu0 0.0
        %823 = vmatpush2.msra.mxu0 0.0
        %824 = vmatprep.subr.mxu0 0.0
        %825 = vmatpush2.msra.mxu0 0.0
        %826 = vmatprep.subr.mxu0 0.0
        %827 = vmatpush2.msra.mxu0 0.0
        %828 = vmatprep.subr.mxu0 0.0
        %829 = vmatpush2.msra.mxu0 0.0
        %830 = vmatprep.subr.mxu0 0.0
        %831 = vmatpush2.msra.mxu0 0.0
        %832 = vmatprep.subr.mxu0 0.0
        %833 = vmatpush2.msra.mxu0 0.0
        %834 = vmatprep.subr.mxu0 0.0
        %835 = vmatpush2.msra.mxu0 0.0
        %836 = vmatprep.subr.mxu0 0.0
        %837 = vmatpush2.msra.mxu0 0.0
        %838 = vmatprep.subr.mxu0 0.0
        %839 = vmatpush2.msra.mxu0 0.0
        %840 = vmatprep.subr.mxu0 0.0
        %841 = vmatpush2.msra.mxu0 0.0
        %842 = vmatprep.mubr.f32.mxu0 0.0
        %843 = vmatmul.mubr.f32.gmra.mxu0 %v776
        %v844 = vpop.f32.mrf.mxu0
        %v845 = vadd.f32 0.0, %v844
        %v846 = vpop.f32.mrf.mxu0
        %847 = vdwg.mxu0
        %v850 = vsel %vm774, %v771, %v750
        %v851 = vsel %vm671, %v850, 0
        %853 = vmatprep.subr.mxu0 0.0
        %854 = vmatpush1.msra.mxu0 0.0
        %855 = vmatprep.subr.mxu0 0.0
        %856 = vmatpush1.msra.mxu0 0.0
        %857 = vmatprep.subr.mxu0 0.0
        %858 = vmatpush1.msra.mxu0 0.0
        %859 = vmatprep.subr.mxu0 0.0
        %860 = vmatpush1.msra.mxu0 0.0
        %861 = vmatprep.subr.mxu0 0.0
        %862 = vmatpush1.msra.mxu0 0.0
        %863 = vmatprep.subr.mxu0 0.0
        %864 = vmatpush1.msra.mxu0 0.0
        %865 = vmatprep.subr.mxu0 0.0
        %866 = vmatpush1.msra.mxu0 0.0
        %867 = vmatprep.subr.mxu0 0.0
        %868 = vmatpush1.msra.mxu0 0.0
        %869 = vmatprep.subr.mxu0 0.0
        %870 = vmatpush1.msra.mxu0 %v666
        %871 = vmatprep.subr.mxu0 0.0
        %872 = vmatpush1.msra.mxu0 %v665
        %873 = vmatprep.subr.mxu0 0.0
        %874 = vmatpush1.msra.mxu0 %v664
        %875 = vmatprep.subr.mxu0 0.0
        %876 = vmatpush1.msra.mxu0 %v663
        %877 = vmatprep.subr.mxu0 0.0
        %878 = vmatpush1.msra.mxu0 %v662
        %879 = vmatprep.subr.mxu0 0.0
        %880 = vmatpush1.msra.mxu0 %v661
        %881 = vmatprep.subr.mxu0 0.0
        %882 = vmatpush1.msra.mxu0 %v660
        %883 = vmatprep.subr.mxu0 0.0
        %884 = vmatpush1.msra.mxu0 %v659
        %885 = vmatprep.subr.mxu0 0.0
        %886 = vmatpush2.msra.mxu0 0.0
        %887 = vmatprep.subr.mxu0 0.0
        %888 = vmatpush2.msra.mxu0 0.0
        %889 = vmatprep.subr.mxu0 0.0
        %890 = vmatpush2.msra.mxu0 0.0
        %891 = vmatprep.subr.mxu0 0.0
        %892 = vmatpush2.msra.mxu0 0.0
        %893 = vmatprep.subr.mxu0 0.0
        %894 = vmatpush2.msra.mxu0 0.0
        %895 = vmatprep.subr.mxu0 0.0
        %896 = vmatpush2.msra.mxu0 0.0
        %897 = vmatprep.subr.mxu0 0.0
        %898 = vmatpush2.msra.mxu0 0.0
        %899 = vmatprep.subr.mxu0 0.0
        %900 = vmatpush2.msra.mxu0 0.0
        %901 = vmatprep.subr.mxu0 0.0
        %902 = vmatpush2.msra.mxu0 0.0
        %903 = vmatprep.subr.mxu0 0.0
        %904 = vmatpush2.msra.mxu0 0.0
        %905 = vmatprep.subr.mxu0 0.0
        %906 = vmatpush2.msra.mxu0 0.0
        %907 = vmatprep.subr.mxu0 0.0
        %908 = vmatpush2.msra.mxu0 0.0
        %909 = vmatprep.subr.mxu0 0.0
        %910 = vmatpush2.msra.mxu0 0.0
        %911 = vmatprep.subr.mxu0 0.0
        %912 = vmatpush2.msra.mxu0 0.0
        %913 = vmatprep.subr.mxu0 0.0
        %914 = vmatpush2.msra.mxu0 0.0
        %915 = vmatprep.subr.mxu0 0.0
        %916 = vmatpush2.msra.mxu0 0.0
        %917 = vmatprep.mubr.f32.mxu0 0.0
        %918 = vmatmul.mubr.f32.gmra.mxu0 %v851
        %v919 = vpop.f32.mrf.mxu0
        %v920 = vadd.f32 0.0, %v919
        %v921 = vpop.f32.mrf.mxu0
        %922 = vdwg.mxu0
        %v923 = vrcp.pop 128.0
        %v924 = vmul.f32 %v845, %v923
        %v925 = vmul.f32 %v920, %v923
        %v926 = vmul.f32 %v924, %v924
        %v927 = vsub.f32 %v925, %v926
        %v928 = vadd.f32 %v927, 1e-05
        %v929 = vrsqrt.pop %v928
        %vm930 = vcmask 261120
        %v932 = vsel %vm930, %v924, 0
        %934 = vmatprep.subr.mxu0 0.0
        %935 = vmatpush1.msra.mxu0 0.0
        %936 = vmatprep.subr.mxu0 0.0
        %937 = vmatpush1.msra.mxu0 0.0
        %938 = vmatprep.subr.mxu0 0.0
        %939 = vmatpush1.msra.mxu0 0.0
        %940 = vmatprep.subr.mxu0 0.0
        %941 = vmatpush1.msra.mxu0 0.0
        %942 = vmatprep.subr.mxu0 0.0
        %943 = vmatpush1.msra.mxu0 0.0
        %944 = vmatprep.subr.mxu0 0.0
        %945 = vmatpush1.msra.mxu0 0.0
        %946 = vmatprep.subr.mxu0 0.0
        %947 = vmatpush1.msra.mxu0 0.0
        %948 = vmatprep.subr.mxu0 0.0
        %949 = vmatpush1.msra.mxu0 0.0
        %950 = vmatprep.subr.mxu0 0.0
        %951 = vmatpush1.msra.mxu0 0.0
        %952 = vmatprep.subr.mxu0 0.0
        %953 = vmatpush1.msra.mxu0 0.0
        %954 = vmatprep.subr.mxu0 0.0
        %955 = vmatpush1.msra.mxu0 0.0
        %956 = vmatprep.subr.mxu0 0.0
        %957 = vmatpush1.msra.mxu0 0.0
        %958 = vmatprep.subr.mxu0 0.0
        %959 = vmatpush1.msra.mxu0 %v670
        %960 = vmatprep.subr.mxu0 0.0
        %961 = vmatpush1.msra.mxu0 %v669
        %962 = vmatprep.subr.mxu0 0.0
        %963 = vmatpush1.msra.mxu0 %v668
        %964 = vmatprep.subr.mxu0 0.0
        %965 = vmatpush1.msra.mxu0 %v667
        %966 = vmatprep.subr.mxu0 0.0
        %967 = vmatpush2.msra.mxu0 0.0
        %968 = vmatprep.subr.mxu0 0.0
        %969 = vmatpush2.msra.mxu0 0.0
        %970 = vmatprep.subr.mxu0 0.0
        %971 = vmatpush2.msra.mxu0 0.0
        %972 = vmatprep.subr.mxu0 0.0
        %973 = vmatpush2.msra.mxu0 0.0
        %974 = vmatprep.subr.mxu0 0.0
        %975 = vmatpush2.msra.mxu0 0.0
        %976 = vmatprep.subr.mxu0 0.0
        %977 = vmatpush2.msra.mxu0 0.0
        %978 = vmatprep.subr.mxu0 0.0
        %979 = vmatpush2.msra.mxu0 0.0
        %980 = vmatprep.subr.mxu0 0.0
        %981 = vmatpush2.msra.mxu0 0.0
        %982 = vmatprep.subr.mxu0 0.0
        %983 = vmatpush2.msra.mxu0 0.0
        %984 = vmatprep.subr.mxu0 0.0
        %985 = vmatpush2.msra.mxu0 0.0
        %986 = vmatprep.subr.mxu0 0.0
        %987 = vmatpush2.msra.mxu0 0.0
        %988 = vmatprep.subr.mxu0 0.0
        %989 = vmatpush2.msra.mxu0 0.0
        %990 = vmatprep.subr.mxu0 0.0
        %991 = vmatpush2.msra.mxu0 0.0
        %992 = vmatprep.subr.mxu0 0.0
        %993 = vmatpush2.msra.mxu0 0.0
        %994 = vmatprep.subr.mxu0 0.0
        %995 = vmatpush2.msra.mxu0 0.0
        %996 = vmatprep.subr.mxu0 0.0
        %997 = vmatpush2.msra.mxu0 0.0
        %998 = vmatprep.mubr.f32.mxu0 0.0
        %999 = vmatmul.mubr.f32.gmra.mxu0 %v932
        %v1000 = vpop.f32.mrf.mxu0
        %v1001 = vadd.f32 0.0, %v1000
        %v1002 = vpop.f32.mrf.mxu0
        %1003 = vdwg.mxu0
        %v1005 = vsel %vm930, %v929, 0
        %1007 = vmatprep.subr.mxu0 0.0
        %1008 = vmatpush1.msra.mxu0 0.0
        %1009 = vmatprep.subr.mxu0 0.0
        %1010 = vmatpush1.msra.mxu0 0.0
        %1011 = vmatprep.subr.mxu0 0.0
        %1012 = vmatpush1.msra.mxu0 0.0
        %1013 = vmatprep.subr.mxu0 0.0
        %1014 = vmatpush1.msra.mxu0 0.0
        %1015 = vmatprep.subr.mxu0 0.0
        %1016 = vmatpush1.msra.mxu0 0.0
        %1017 = vmatprep.subr.mxu0 0.0
        %1018 = vmatpush1.msra.mxu0 0.0
        %1019 = vmatprep.subr.mxu0 0.0
        %1020 = vmatpush1.msra.mxu0 0.0
        %1021 = vmatprep.subr.mxu0 0.0
        %1022 = vmatpush1.msra.mxu0 0.0
        %1023 = vmatprep.subr.mxu0 0.0
        %1024 = vmatpush1.msra.mxu0 0.0
        %1025 = vmatprep.subr.mxu0 0.0
        %1026 = vmatpush1.msra.mxu0 0.0
        %1027 = vmatprep.subr.mxu0 0.0
        %1028 = vmatpush1.msra.mxu0 0.0
        %1029 = vmatprep.subr.mxu0 0.0
        %1030 = vmatpush1.msra.mxu0 0.0
        %1031 = vmatprep.subr.mxu0 0.0
        %1032 = vmatpush1.msra.mxu0 %v670
        %1033 = vmatprep.subr.mxu0 0.0
        %1034 = vmatpush1.msra.mxu0 %v669
        %1035 = vmatprep.subr.mxu0 0.0
        %1036 = vmatpush1.msra.mxu0 %v668
        %1037 = vmatprep.subr.mxu0 0.0
        %1038 = vmatpush1.msra.mxu0 %v667
        %1039 = vmatprep.subr.mxu0 0.0
        %1040 = vmatpush2.msra.mxu0 0.0
        %1041 = vmatprep.subr.mxu0 0.0
        %1042 = vmatpush2.msra.mxu0 0.0
        %1043 = vmatprep.subr.mxu0 0.0
        %1044 = vmatpush2.msra.mxu0 0.0
        %1045 = vmatprep.subr.mxu0 0.0
        %1046 = vmatpush2.msra.mxu0 0.0
        %1047 = vmatprep.subr.mxu0 0.0
        %1048 = vmatpush2.msra.mxu0 0.0
        %1049 = vmatprep.subr.mxu0 0.0
        %1050 = vmatpush2.msra.mxu0 0.0
        %1051 = vmatprep.subr.mxu0 0.0
        %1052 = vmatpush2.msra.mxu0 0.0
        %1053 = vmatprep.subr.mxu0 0.0
        %1054 = vmatpush2.msra.mxu0 0.0
        %1055 = vmatprep.subr.mxu0 0.0
        %1056 = vmatpush2.msra.mxu0 0.0
        %1057 = vmatprep.subr.mxu0 0.0
        %1058 = vmatpush2.msra.mxu0 0.0
        %1059 = vmatprep.subr.mxu0 0.0
        %1060 = vmatpush2.msra.mxu0 0.0
        %1061 = vmatprep.subr.mxu0 0.0
        %1062 = vmatpush2.msra.mxu0 0.0
        %1063 = vmatprep.subr.mxu0 0.0
        %1064 = vmatpush2.msra.mxu0 0.0
        %1065 = vmatprep.subr.mxu0 0.0
        %1066 = vmatpush2.msra.mxu0 0.0
        %1067 = vmatprep.subr.mxu0 0.0
        %1068 = vmatpush2.msra.mxu0 0.0
        %1069 = vmatprep.subr.mxu0 0.0
        %1070 = vmatpush2.msra.mxu0 0.0
        %1071 = vmatprep.mubr.f32.mxu0 0.0
        %1072 = vmatmul.mubr.f32.gmra.mxu0 %v1005
        %v1073 = vpop.f32.mrf.mxu0
        %v1074 = vadd.f32 0.0, %v1073
        %v1075 = vpop.f32.mrf.mxu0
        %1076 = vdwg.mxu0
        %v1079 = vunpack.c.l.s4 1966171168
        %v1080 = vunpack.c.0.s8 %v1079
        %v1081 = vlaneseq
        %v1082 = vshrl.u32 %v1081, 7
        %v1083 = vsub.s32 %v1080, %v1082
        %v1084 = vrot.slane %v1001, %v1083
        %v1085 = vcombine.high %v1084, %v1084
        %v1087 = vunpack.c.l.s4 1966171168
        %v1088 = vunpack.c.0.s8 %v1087
        %v1089 = vlaneseq
        %v1090 = vshrl.u32 %v1089, 7
        %v1091 = vsub.s32 %v1088, %v1090
        %v1092 = vrot.slane %v1084, %v1091
        %v1094 = vunpack.c.l.s4 1966171168
        %v1095 = vunpack.c.0.s8 %v1094
        %v1096 = vlaneseq
        %v1097 = vshrl.u32 %v1096, 7
        %v1098 = vsub.s32 %v1095, %v1097
        %v1099 = vrot.slane %v1085, %v1098
        %v1100 = vlaneseq
        %v1101 = vshrl.u32 %v1100, 7
        %v1102 = vsub.s32 0, %v1101
        %v1103 = vrot.slane %v1092, %v1102
        %v1104 = vlaneseq
        %v1105 = vshrl.u32 %v1104, 7
        %v1106 = vsub.s32 0, %v1105
        %v1107 = vrot.slane %v1099, %v1106
        %v1110 = vsub.f32 %v641, %v1103
        %v1111 = vsub.f32 %v642, %v1103
        %v1112 = vsub.f32 %v643, %v1103
        %v1113 = vsub.f32 %v644, %v1103
        %v1114 = vsub.f32 %v645, %v1103
        %v1115 = vsub.f32 %v646, %v1103
        %v1116 = vsub.f32 %v647, %v1103
        %v1117 = vsub.f32 %v648, %v1103
        %v1118 = vsub.f32 %v649, %v1107
        %v1119 = vsub.f32 %v650, %v1107
        %v1120 = vsub.f32 %v651, %v1107
        %v1121 = vsub.f32 %v652, %v1107
        %v1122 = vsub.f32 %v653, %v1107
        %v1123 = vsub.f32 %v654, %v1107
        %v1124 = vsub.f32 %v655, %v1107
        %v1125 = vsub.f32 %v656, %v1107
        %v1128 = vunpack.c.l.s4 1966171168
        %v1129 = vunpack.c.0.s8 %v1128
        %v1130 = vlaneseq
        %v1131 = vshrl.u32 %v1130, 7
        %v1132 = vsub.s32 %v1129, %v1131
        %v1133 = vrot.slane %v1074, %v1132
        %v1134 = vcombine.high %v1133, %v1133
        %v1136 = vunpack.c.l.s4 1966171168
        %v1137 = vunpack.c.0.s8 %v1136
        %v1138 = vlaneseq
        %v1139 = vshrl.u32 %v1138, 7
        %v1140 = vsub.s32 %v1137, %v1139
        %v1141 = vrot.slane %v1133, %v1140
        %v1143 = vunpack.c.l.s4 1966171168
        %v1144 = vunpack.c.0.s8 %v1143
        %v1145 = vlaneseq
        %v1146 = vshrl.u32 %v1145, 7
        %v1147 = vsub.s32 %v1144, %v1146
        %v1148 = vrot.slane %v1134, %v1147
        %v1149 = vlaneseq
        %v1150 = vshrl.u32 %v1149, 7
        %v1151 = vsub.s32 0, %v1150
        %v1152 = vrot.slane %v1141, %v1151
        %v1153 = vlaneseq
        %v1154 = vshrl.u32 %v1153, 7
        %v1155 = vsub.s32 0, %v1154
        %v1156 = vrot.slane %v1148, %v1155
        %v1159 = vmul.f32 %v1110, %v1152
        %v1160 = vmul.f32 %v1111, %v1152
        %v1161 = vmul.f32 %v1112, %v1152
        %v1162 = vmul.f32 %v1113, %v1152
        %v1163 = vmul.f32 %v1114, %v1152
        %v1164 = vmul.f32 %v1115, %v1152
        %v1165 = vmul.f32 %v1116, %v1152
        %v1166 = vmul.f32 %v1117, %v1152
        %v1167 = vmul.f32 %v1118, %v1156
        %v1168 = vmul.f32 %v1119, %v1156
        %v1169 = vmul.f32 %v1120, %v1156
        %v1170 = vmul.f32 %v1121, %v1156
        %v1171 = vmul.f32 %v1122, %v1156
        %v1172 = vmul.f32 %v1123, %v1156
        %v1173 = vmul.f32 %v1124, %v1156
        %v1174 = vmul.f32 %v1125, %v1156
        %v1176 = vlaneseq
        %v1177 = vshrl.u32 %v1176, 7
        %v1178 = vsub.s32 0, %v1177
        %v1179 = vrot.slane %v657, %v1178
        %v1181 = vmul.f32 %v1159, %v1179
        %v1182 = vmul.f32 %v1160, %v1179
        %v1183 = vmul.f32 %v1161, %v1179
        %v1184 = vmul.f32 %v1162, %v1179
        %v1185 = vmul.f32 %v1163, %v1179
        %v1186 = vmul.f32 %v1164, %v1179
        %v1187 = vmul.f32 %v1165, %v1179
        %v1188 = vmul.f32 %v1166, %v1179
        %v1189 = vmul.f32 %v1167, %v1179
        %v1190 = vmul.f32 %v1168, %v1179
        %v1191 = vmul.f32 %v1169, %v1179
        %v1192 = vmul.f32 %v1170, %v1179
        %v1193 = vmul.f32 %v1171, %v1179
        %v1194 = vmul.f32 %v1172, %v1179
        %v1195 = vmul.f32 %v1173, %v1179
        %v1196 = vmul.f32 %v1174, %v1179
        %v1198 = vlaneseq
        %v1199 = vshrl.u32 %v1198, 7
        %v1200 = vsub.s32 0, %v1199
        %v1201 = vrot.slane %v658, %v1200
        %v1203 = vadd.f32 %v1181, %v1201
        %v1204 = vadd.f32 %v1182, %v1201
        %v1205 = vadd.f32 %v1183, %v1201
        %v1206 = vadd.f32 %v1184, %v1201
        %v1207 = vadd.f32 %v1185, %v1201
        %v1208 = vadd.f32 %v1186, %v1201
        %v1209 = vadd.f32 %v1187, %v1201
        %v1210 = vadd.f32 %v1188, %v1201
        %v1211 = vadd.f32 %v1189, %v1201
        %v1212 = vadd.f32 %v1190, %v1201
        %v1213 = vadd.f32 %v1191, %v1201
        %v1214 = vadd.f32 %v1192, %v1201
        %v1215 = vadd.f32 %v1193, %v1201
        %v1216 = vadd.f32 %v1194, %v1201
        %v1217 = vadd.f32 %v1195, %v1201
        %v1218 = vadd.f32 %v1196, %v1201
        %v1219 = vsub.f32 0.0, %v1203
        %v1220 = vsub.f32 0.0, %v1204
        %v1221 = vsub.f32 0.0, %v1205
        %v1222 = vsub.f32 0.0, %v1206
        %v1223 = vsub.f32 0.0, %v1207
        %v1224 = vsub.f32 0.0, %v1208
        %v1225 = vsub.f32 0.0, %v1209
        %v1226 = vsub.f32 0.0, %v1210
        %v1227 = vsub.f32 0.0, %v1211
        %v1228 = vsub.f32 0.0, %v1212
        %v1229 = vsub.f32 0.0, %v1213
        %v1230 = vsub.f32 0.0, %v1214
        %v1231 = vsub.f32 0.0, %v1215
        %v1232 = vsub.f32 0.0, %v1216
        %v1233 = vsub.f32 0.0, %v1217
        %v1234 = vsub.f32 0.0, %v1218
        %v1235 = vmul.f32 %v1219, 1.442695
        %v1236 = vpow.pop %v1235
        %v1237 = vmul.f32 %v1220, 1.442695
        %v1238 = vpow.pop %v1237
        %v1239 = vmul.f32 %v1221, 1.442695
        %v1240 = vpow.pop %v1239
        %v1241 = vmul.f32 %v1222, 1.442695
        %v1242 = vpow.pop %v1241
        %v1243 = vmul.f32 %v1223, 1.442695
        %v1244 = vpow.pop %v1243
        %v1245 = vmul.f32 %v1224, 1.442695
        %v1246 = vpow.pop %v1245
        %v1247 = vmul.f32 %v1225, 1.442695
        %v1248 = vpow.pop %v1247
        %v1249 = vmul.f32 %v1226, 1.442695
        %v1250 = vpow.pop %v1249
        %v1251 = vmul.f32 %v1227, 1.442695
        %v1252 = vpow.pop %v1251
        %v1253 = vmul.f32 %v1228, 1.442695
        %v1254 = vpow.pop %v1253
        %v1255 = vmul.f32 %v1229, 1.442695
        %v1256 = vpow.pop %v1255
        %v1257 = vmul.f32 %v1230, 1.442695
        %v1258 = vpow.pop %v1257
        %v1259 = vmul.f32 %v1231, 1.442695
        %v1260 = vpow.pop %v1259
        %v1261 = vmul.f32 %v1232, 1.442695
        %v1262 = vpow.pop %v1261
        %v1263 = vmul.f32 %v1233, 1.442695
        %v1264 = vpow.pop %v1263
        %v1265 = vmul.f32 %v1234, 1.442695
        %v1266 = vpow.pop %v1265
        %v1267 = vadd.f32 %v1236, 1.0
        %v1268 = vadd.f32 %v1238, 1.0
        %v1269 = vadd.f32 %v1240, 1.0
        %v1270 = vadd.f32 %v1242, 1.0
        %v1271 = vadd.f32 %v1244, 1.0
        %v1272 = vadd.f32 %v1246, 1.0
        %v1273 = vadd.f32 %v1248, 1.0
        %v1274 = vadd.f32 %v1250, 1.0
        %v1275 = vadd.f32 %v1252, 1.0
        %v1276 = vadd.f32 %v1254, 1.0
        %v1277 = vadd.f32 %v1256, 1.0
        %v1278 = vadd.f32 %v1258, 1.0
        %v1279 = vadd.f32 %v1260, 1.0
        %v1280 = vadd.f32 %v1262, 1.0
        %v1281 = vadd.f32 %v1264, 1.0
        %v1282 = vadd.f32 %v1266, 1.0
        %v1283 = vrcp.pop %v1267
        %v1284 = vrcp.pop %v1268
        %v1285 = vrcp.pop %v1269
        %v1286 = vrcp.pop %v1270
        %v1287 = vrcp.pop %v1271
        %v1288 = vrcp.pop %v1272
        %v1289 = vrcp.pop %v1273
        %v1290 = vrcp.pop %v1274
        %v1291 = vrcp.pop %v1275
        %v1292 = vrcp.pop %v1276
        %v1293 = vrcp.pop %v1277
        %v1294 = vrcp.pop %v1278
        %v1295 = vrcp.pop %v1279
        %v1296 = vrcp.pop %v1280
        %v1297 = vrcp.pop %v1281
        %v1298 = vrcp.pop %v1282
        %v1299 = vmul.f32 %v1203, %v1283
        %v1300 = vmul.f32 %v1204, %v1284
        %v1301 = vmul.f32 %v1205, %v1285
        %v1302 = vmul.f32 %v1206, %v1286
        %v1303 = vmul.f32 %v1207, %v1287
        %v1304 = vmul.f32 %v1208, %v1288
        %v1305 = vmul.f32 %v1209, %v1289
        %v1306 = vmul.f32 %v1210, %v1290
        %v1307 = vmul.f32 %v1211, %v1291
        %v1308 = vmul.f32 %v1212, %v1292
        %v1309 = vmul.f32 %v1213, %v1293
        %v1310 = vmul.f32 %v1214, %v1294
        %v1311 = vmul.f32 %v1215, %v1295
        %v1312 = vmul.f32 %v1216, %v1296
        %v1313 = vmul.f32 %v1217, %v1297
        %v1314 = vmul.f32 %v1218, %v1298
        %v1315 = vpack.c.bf16 %v1300, %v1299
        %v1316 = vpack.c.bf16 %v1302, %v1301
        %v1317 = vpack.c.bf16 %v1304, %v1303
        %v1318 = vpack.c.bf16 %v1306, %v1305
        %v1319 = vpack.c.bf16 %v1308, %v1307
        %v1320 = vpack.c.bf16 %v1310, %v1309
        %v1321 = vpack.c.bf16 %v1312, %v1311
        %v1322 = vpack.c.bf16 %v1314, %v1313
        %v1331 = vunpack.c.l.b16 %v1315
        %v1332 = vunpack.c.h.b16 %v1315
        %v1333 = vunpack.c.l.b16 %v1316
        %v1334 = vunpack.c.h.b16 %v1316
        %v1335 = vunpack.c.l.b16 %v1317
        %v1336 = vunpack.c.h.b16 %v1317
        %v1337 = vunpack.c.l.b16 %v1318
        %v1338 = vunpack.c.h.b16 %v1318
        %v1339 = vunpack.c.l.b16 %v1319
        %v1340 = vunpack.c.h.b16 %v1319
        %v1341 = vunpack.c.l.b16 %v1320
        %v1342 = vunpack.c.h.b16 %v1320
        %v1343 = vunpack.c.l.b16 %v1321
        %v1344 = vunpack.c.h.b16 %v1321
        %v1345 = vunpack.c.l.b16 %v1322
        %v1346 = vunpack.c.h.b16 %v1322
        %v1347 = vpack.c.b16 %v1331, %v1331
        %v1348 = vpack.c.b16 %v1332, %v1332
        %v1349 = vpack.c.b16 %v1333, %v1333
        %v1350 = vpack.c.b16 %v1334, %v1334
        %v1351 = vpack.c.b16 %v1335, %v1335
        %v1352 = vpack.c.b16 %v1336, %v1336
        %v1353 = vpack.c.b16 %v1337, %v1337
        %v1354 = vpack.c.b16 %v1338, %v1338
        %v1355 = vpack.c.b16 %v1339, %v1339
        %v1356 = vpack.c.b16 %v1340, %v1340
        %v1357 = vpack.c.b16 %v1341, %v1341
        %v1358 = vpack.c.b16 %v1342, %v1342
        %v1359 = vpack.c.b16 %v1343, %v1343
        %v1360 = vpack.c.b16 %v1344, %v1344
        %v1361 = vpack.c.b16 %v1345, %v1345
        %v1362 = vpack.c.b16 %v1346, %v1346
        %vm1363 = vcmask 519168
        %1364 = vst.msk [vmem:[#allocation2] sm:$0xf] %vm1363, 0
        %vm1365 = vcmask 516096
        %1366 = vst.msk [vmem:[#allocation2 + $0x4] sm:$0x1] %vm1365, 0
        %1367 = vst.msk [vmem:[#allocation2 + $0x50] sm:$0xf] %vm1363, 0
        %1368 = vst.msk [vmem:[#allocation2 + $0x54] sm:$0x1] %vm1365, 0
        %s1369 = scalar_lea.vmem [#allocation2], 72
        %1370 = vst.msk [vmem:[%s1369] sm:$0xf] %vm1363, 0
        %1371 = vst.msk [vmem:[%s1369 + $0x4] sm:$0x1] %vm1365, 0
        %1372 = vst.msk [vmem:[%s1369 + $0x50] sm:$0xf] %vm1363, 0
        %1373 = vst.msk [vmem:[%s1369 + $0x54] sm:$0x1] %vm1365, 0
        %vm1374 = vcmask 516096
        %vm1375 = vsmask.f32 256
        %vm1376 = vmand %vm1374, %vm1375
        %v1377 = vld [vmem:[#allocation2] sm:$0x1]
        %v1378 = vsel %vm1376, 0, %v1377
        %1379 = vst [vmem:[#allocation2] sm:$0x1] %v1378
        %v1380 = vld [vmem:[#allocation2 + $0x8] sm:$0x1]
        %v1381 = vsel %vm1376, 0, %v1380
        %1382 = vst [vmem:[#allocation2 + $0x8] sm:$0x1] %v1381
        %v1383 = vld [vmem:[#allocation2 + $0x10] sm:$0x1]
        %v1384 = vsel %vm1376, 0, %v1383
        %1385 = vst [vmem:[#allocation2 + $0x10] sm:$0x1] %v1384
        %v1386 = vld [vmem:[#allocation2 + $0x18] sm:$0x1]
        %v1387 = vsel %vm1376, 0, %v1386
        %1388 = vst [vmem:[#allocation2 + $0x18] sm:$0x1] %v1387
        %v1389 = vld [vmem:[#allocation2 + $0x20] sm:$0x1]
        %v1390 = vsel %vm1376, 0, %v1389
        %1391 = vst [vmem:[#allocation2 + $0x20] sm:$0x1] %v1390
        %v1392 = vld [vmem:[#allocation2 + $0x28] sm:$0x1]
        %v1393 = vsel %vm1376, 0, %v1392
        %1394 = vst [vmem:[#allocation2 + $0x28] sm:$0x1] %v1393
        %v1395 = vld [vmem:[#allocation2 + $0x30] sm:$0x1]
        %v1396 = vsel %vm1376, 0, %v1395
        %1397 = vst [vmem:[#allocation2 + $0x30] sm:$0x1] %v1396
        %v1398 = vld [vmem:[#allocation2 + $0x38] sm:$0x1]
        %v1399 = vsel %vm1376, 0, %v1398
        %1400 = vst [vmem:[#allocation2 + $0x38] sm:$0x1] %v1399
        %v1401 = vld [vmem:[#allocation2 + $0x40] sm:$0x1]
        %v1402 = vsel %vm1376, 0, %v1401
        %1403 = vst [vmem:[#allocation2 + $0x40] sm:$0x1] %v1402
        %v1404 = vld [vmem:[#allocation2 + $0x48] sm:$0x1]
        %v1405 = vsel %vm1376, 0, %v1404
        %1406 = vst [vmem:[#allocation2 + $0x48] sm:$0x1] %v1405
        %v1407 = vld [vmem:[#allocation2 + $0x50] sm:$0x1]
        %v1408 = vsel %vm1376, 0, %v1407
        %1409 = vst [vmem:[#allocation2 + $0x50] sm:$0x1] %v1408
        %v1410 = vld [vmem:[#allocation2 + $0x58] sm:$0x1]
        %v1411 = vsel %vm1376, 0, %v1410
        %1412 = vst [vmem:[#allocation2 + $0x58] sm:$0x1] %v1411
        %v1413 = vld [vmem:[#allocation2 + $0x60] sm:$0x1]
        %v1414 = vsel %vm1376, 0, %v1413
        %1415 = vst [vmem:[#allocation2 + $0x60] sm:$0x1] %v1414
        %v1416 = vld [vmem:[#allocation2 + $0x68] sm:$0x1]
        %v1417 = vsel %vm1376, 0, %v1416
        %1418 = vst [vmem:[#allocation2 + $0x68] sm:$0x1] %v1417
        %v1419 = vld [vmem:[#allocation2 + $0x70] sm:$0x1]
        %v1420 = vsel %vm1376, 0, %v1419
        %1421 = vst [vmem:[#allocation2 + $0x70] sm:$0x1] %v1420
        %v1422 = vld [vmem:[#allocation2 + $0x78] sm:$0x1]
        %v1423 = vsel %vm1376, 0, %v1422
        %1424 = vst [vmem:[#allocation2 + $0x78] sm:$0x1] %v1423
        %v1425 = vld [vmem:[#allocation2 + $0x80] sm:$0x1]
        %v1426 = vsel %vm1376, 0, %v1425
        %1427 = vst [vmem:[#allocation2 + $0x80] sm:$0x1] %v1426
        %v1428 = vld [vmem:[#allocation2 + $0x88] sm:$0x1]
        %v1429 = vsel %vm1376, 0, %v1428
        %1430 = vst [vmem:[#allocation2 + $0x88] sm:$0x1] %v1429
        %v1431 = vld [vmem:[#allocation2 + $0x90] sm:$0x1]
        %v1432 = vsel %vm1376, 0, %v1431
        %1433 = vst [vmem:[#allocation2 + $0x90] sm:$0x1] %v1432
        %v1434 = vld [vmem:[#allocation2 + $0x98] sm:$0x1]
        %v1435 = vsel %vm1376, 0, %v1434
        %1436 = vst [vmem:[#allocation2 + $0x98] sm:$0x1] %v1435
        %vm1437 = vsmask.f32 7938
        %vm1438 = vmand %vm1374, %vm1437
        %v1439 = vld [vmem:[#allocation2 + $0x4] sm:$0x1]
        %v1440 = vsel %vm1438, 0, %v1439
        %1441 = vst [vmem:[#allocation2 + $0x4] sm:$0x1] %v1440
        %v1442 = vld [vmem:[#allocation2 + $0xc] sm:$0x1]
        %v1443 = vsel %vm1438, 0, %v1442
        %1444 = vst [vmem:[#allocation2 + $0xc] sm:$0x1] %v1443
        %v1445 = vld [vmem:[#allocation2 + $0x14] sm:$0x1]
        %v1446 = vsel %vm1438, 0, %v1445
        %1447 = vst [vmem:[#allocation2 + $0x14] sm:$0x1] %v1446
        %v1448 = vld [vmem:[#allocation2 + $0x1c] sm:$0x1]
        %v1449 = vsel %vm1438, 0, %v1448
        %1450 = vst [vmem:[#allocation2 + $0x1c] sm:$0x1] %v1449
        %v1451 = vld [vmem:[#allocation2 + $0x24] sm:$0x1]
        %v1452 = vsel %vm1438, 0, %v1451
        %1453 = vst [vmem:[#allocation2 + $0x24] sm:$0x1] %v1452
        %v1454 = vld [vmem:[#allocation2 + $0x2c] sm:$0x1]
        %v1455 = vsel %vm1438, 0, %v1454
        %1456 = vst [vmem:[#allocation2 + $0x2c] sm:$0x1] %v1455
        %v1457 = vld [vmem:[#allocation2 + $0x34] sm:$0x1]
        %v1458 = vsel %vm1438, 0, %v1457
        %1459 = vst [vmem:[#allocation2 + $0x34] sm:$0x1] %v1458
        %v1460 = vld [vmem:[#allocation2 + $0x3c] sm:$0x1]
        %v1461 = vsel %vm1438, 0, %v1460
        %1462 = vst [vmem:[#allocation2 + $0x3c] sm:$0x1] %v1461
        %v1463 = vld [vmem:[#allocation2 + $0x44] sm:$0x1]
        %v1464 = vsel %vm1438, 0, %v1463
        %1465 = vst [vmem:[#allocation2 + $0x44] sm:$0x1] %v1464
        %v1466 = vld [vmem:[#allocation2 + $0x4c] sm:$0x1]
        %v1467 = vsel %vm1438, 0, %v1466
        %1468 = vst [vmem:[#allocation2 + $0x4c] sm:$0x1] %v1467
        %v1469 = vld [vmem:[#allocation2 + $0x54] sm:$0x1]
        %v1470 = vsel %vm1438, 0, %v1469
        %1471 = vst [vmem:[#allocation2 + $0x54] sm:$0x1] %v1470
        %v1472 = vld [vmem:[#allocation2 + $0x5c] sm:$0x1]
        %v1473 = vsel %vm1438, 0, %v1472
        %1474 = vst [vmem:[#allocation2 + $0x5c] sm:$0x1] %v1473
        %v1475 = vld [vmem:[#allocation2 + $0x64] sm:$0x1]
        %v1476 = vsel %vm1438, 0, %v1475
        %1477 = vst [vmem:[#allocation2 + $0x64] sm:$0x1] %v1476
        %v1478 = vld [vmem:[#allocation2 + $0x6c] sm:$0x1]
        %v1479 = vsel %vm1438, 0, %v1478
        %1480 = vst [vmem:[#allocation2 + $0x6c] sm:$0x1] %v1479
        %v1481 = vld [vmem:[#allocation2 + $0x74] sm:$0x1]
        %v1482 = vsel %vm1438, 0, %v1481
        %1483 = vst [vmem:[#allocation2 + $0x74] sm:$0x1] %v1482
        %v1484 = vld [vmem:[#allocation2 + $0x7c] sm:$0x1]
        %v1485 = vsel %vm1438, 0, %v1484
        %1486 = vst [vmem:[#allocation2 + $0x7c] sm:$0x1] %v1485
        %v1487 = vld [vmem:[#allocation2 + $0x84] sm:$0x1]
        %v1488 = vsel %vm1438, 0, %v1487
        %1489 = vst [vmem:[#allocation2 + $0x84] sm:$0x1] %v1488
        %v1490 = vld [vmem:[#allocation2 + $0x8c] sm:$0x1]
        %v1491 = vsel %vm1438, 0, %v1490
        %1492 = vst [vmem:[#allocation2 + $0x8c] sm:$0x1] %v1491
        %v1493 = vld [vmem:[#allocation2 + $0x94] sm:$0x1]
        %v1494 = vsel %vm1438, 0, %v1493
        %1495 = vst [vmem:[#allocation2 + $0x94] sm:$0x1] %v1494
        %v1496 = vld [vmem:[#allocation2 + $0x9c] sm:$0x1]
        %v1497 = vsel %vm1438, 0, %v1496
        %1498 = vst [vmem:[#allocation2 + $0x9c] sm:$0x1] %v1497
        %v1500 = vshrl.u32 %v1347, 16
        %v1502 = vrot.slane %v1500, 7
        %v1503 = vshll.u32 %v1347, 16
        %v1505 = vor.u32 %v1502, %v1503
        %v1506 = vrot.slane %v1502, 4
        %v1508 = vshrl.u32 %v1348, 16
        %v1510 = vrot.slane %v1508, 7
        %v1511 = vshll.u32 %v1348, 16
        %v1513 = vor.u32 %v1510, %v1511
        %v1514 = vrot.slane %v1510, 4
        %v1516 = vshrl.u32 %v1349, 16
        %v1518 = vrot.slane %v1516, 7
        %v1519 = vshll.u32 %v1349, 16
        %v1521 = vor.u32 %v1518, %v1519
        %v1522 = vrot.slane %v1518, 4
        %v1524 = vshrl.u32 %v1350, 16
        %v1526 = vrot.slane %v1524, 7
        %v1527 = vshll.u32 %v1350, 16
        %v1529 = vor.u32 %v1526, %v1527
        %v1530 = vrot.slane %v1526, 4
        %v1532 = vshrl.u32 %v1351, 16
        %v1534 = vrot.slane %v1532, 7
        %v1535 = vshll.u32 %v1351, 16
        %v1537 = vor.u32 %v1534, %v1535
        %v1538 = vrot.slane %v1534, 4
        %v1540 = vshrl.u32 %v1352, 16
        %v1542 = vrot.slane %v1540, 7
        %v1543 = vshll.u32 %v1352, 16
        %v1545 = vor.u32 %v1542, %v1543
        %v1546 = vrot.slane %v1542, 4
        %v1548 = vshrl.u32 %v1353, 16
        %v1550 = vrot.slane %v1548, 7
        %v1551 = vshll.u32 %v1353, 16
        %v1553 = vor.u32 %v1550, %v1551
        %v1554 = vrot.slane %v1550, 4
        %v1556 = vshrl.u32 %v1354, 16
        %v1558 = vrot.slane %v1556, 7
        %v1559 = vshll.u32 %v1354, 16
        %v1561 = vor.u32 %v1558, %v1559
        %v1562 = vrot.slane %v1558, 4
        %v1564 = vshrl.u32 %v1355, 16
        %v1566 = vrot.slane %v1564, 7
        %v1567 = vshll.u32 %v1355, 16
        %v1569 = vor.u32 %v1566, %v1567
        %v1570 = vrot.slane %v1566, 4
        %v1572 = vshrl.u32 %v1356, 16
        %v1574 = vrot.slane %v1572, 7
        %v1575 = vshll.u32 %v1356, 16
        %v1577 = vor.u32 %v1574, %v1575
        %v1578 = vrot.slane %v1574, 4
        %v1580 = vshrl.u32 %v1357, 16
        %v1582 = vrot.slane %v1580, 7
        %v1583 = vshll.u32 %v1357, 16
        %v1585 = vor.u32 %v1582, %v1583
        %v1586 = vrot.slane %v1582, 4
        %v1588 = vshrl.u32 %v1358, 16
        %v1590 = vrot.slane %v1588, 7
        %v1591 = vshll.u32 %v1358, 16
        %v1593 = vor.u32 %v1590, %v1591
        %v1594 = vrot.slane %v1590, 4
        %v1596 = vshrl.u32 %v1359, 16
        %v1598 = vrot.slane %v1596, 7
        %v1599 = vshll.u32 %v1359, 16
        %v1601 = vor.u32 %v1598, %v1599
        %v1602 = vrot.slane %v1598, 4
        %v1604 = vshrl.u32 %v1360, 16
        %v1606 = vrot.slane %v1604, 7
        %v1607 = vshll.u32 %v1360, 16
        %v1609 = vor.u32 %v1606, %v1607
        %v1610 = vrot.slane %v1606, 4
        %v1612 = vshrl.u32 %v1361, 16
        %v1614 = vrot.slane %v1612, 7
        %v1615 = vshll.u32 %v1361, 16
        %v1617 = vor.u32 %v1614, %v1615
        %v1618 = vrot.slane %v1614, 4
        %v1620 = vshrl.u32 %v1362, 16
        %v1622 = vrot.slane %v1620, 7
        %v1623 = vshll.u32 %v1362, 16
        %v1625 = vor.u32 %v1622, %v1623
        %v1626 = vrot.slane %v1622, 4
        %s1659 = scalar_lea.vmem [#allocation2], 8
        %vm1660 = vcmask 519168
        %vm1661 = vmand %vm1660, %vm1437
        %v1662 = vld [vmem:[%s1659] sm:$0xf]
        %v1663 = vsel %vm1661, %v1505, %v1662
        %1664 = vst [vmem:[%s1659] sm:$0xf] %v1663
        %v1665 = vld [vmem:[%s1659 + $0x4] sm:$0x1]
        %v1666 = vsel %vm1376, %v1506, %v1665
        %1667 = vst [vmem:[%s1659 + $0x4] sm:$0x1] %v1666
        %v1668 = vld [vmem:[%s1659 + $0x8] sm:$0xf]
        %v1669 = vsel %vm1661, %v1513, %v1668
        %1670 = vst [vmem:[%s1659 + $0x8] sm:$0xf] %v1669
        %v1671 = vld [vmem:[%s1659 + $0xc] sm:$0x1]
        %v1672 = vsel %vm1376, %v1514, %v1671
        %1673 = vst [vmem:[%s1659 + $0xc] sm:$0x1] %v1672
        %v1674 = vld [vmem:[%s1659 + $0x10] sm:$0xf]
        %v1675 = vsel %vm1661, %v1521, %v1674
        %1676 = vst [vmem:[%s1659 + $0x10] sm:$0xf] %v1675
        %v1677 = vld [vmem:[%s1659 + $0x14] sm:$0x1]
        %v1678 = vsel %vm1376, %v1522, %v1677
        %1679 = vst [vmem:[%s1659 + $0x14] sm:$0x1] %v1678
        %v1680 = vld [vmem:[%s1659 + $0x18] sm:$0xf]
        %v1681 = vsel %vm1661, %v1529, %v1680
        %1682 = vst [vmem:[%s1659 + $0x18] sm:$0xf] %v1681
        %v1683 = vld [vmem:[%s1659 + $0x1c] sm:$0x1]
        %v1684 = vsel %vm1376, %v1530, %v1683
        %1685 = vst [vmem:[%s1659 + $0x1c] sm:$0x1] %v1684
        %v1686 = vld [vmem:[%s1659 + $0x20] sm:$0xf]
        %v1687 = vsel %vm1661, %v1537, %v1686
        %1688 = vst [vmem:[%s1659 + $0x20] sm:$0xf] %v1687
        %v1689 = vld [vmem:[%s1659 + $0x24] sm:$0x1]
        %v1690 = vsel %vm1376, %v1538, %v1689
        %1691 = vst [vmem:[%s1659 + $0x24] sm:$0x1] %v1690
        %v1692 = vld [vmem:[%s1659 + $0x28] sm:$0xf]
        %v1693 = vsel %vm1661, %v1545, %v1692
        %1694 = vst [vmem:[%s1659 + $0x28] sm:$0xf] %v1693
        %v1695 = vld [vmem:[%s1659 + $0x2c] sm:$0x1]
        %v1696 = vsel %vm1376, %v1546, %v1695
        %1697 = vst [vmem:[%s1659 + $0x2c] sm:$0x1] %v1696
        %v1698 = vld [vmem:[%s1659 + $0x30] sm:$0xf]
        %v1699 = vsel %vm1661, %v1553, %v1698
        %1700 = vst [vmem:[%s1659 + $0x30] sm:$0xf] %v1699
        %v1701 = vld [vmem:[%s1659 + $0x34] sm:$0x1]
        %v1702 = vsel %vm1376, %v1554, %v1701
        %1703 = vst [vmem:[%s1659 + $0x34] sm:$0x1] %v1702
        %v1704 = vld [vmem:[%s1659 + $0x38] sm:$0xf]
        %v1705 = vsel %vm1661, %v1561, %v1704
        %1706 = vst [vmem:[%s1659 + $0x38] sm:$0xf] %v1705
        %v1707 = vld [vmem:[%s1659 + $0x3c] sm:$0x1]
        %v1708 = vsel %vm1376, %v1562, %v1707
        %1709 = vst [vmem:[%s1659 + $0x3c] sm:$0x1] %v1708
        %v1710 = vld [vmem:[%s1659 + $0x50] sm:$0xf]
        %v1711 = vsel %vm1661, %v1569, %v1710
        %1712 = vst [vmem:[%s1659 + $0x50] sm:$0xf] %v1711
        %v1713 = vld [vmem:[%s1659 + $0x54] sm:$0x1]
        %v1714 = vsel %vm1376, %v1570, %v1713
        %1715 = vst [vmem:[%s1659 + $0x54] sm:$0x1] %v1714
        %v1716 = vld [vmem:[%s1659 + $0x58] sm:$0xf]
        %v1717 = vsel %vm1661, %v1577, %v1716
        %1718 = vst [vmem:[%s1659 + $0x58] sm:$0xf] %v1717
        %v1719 = vld [vmem:[%s1659 + $0x5c] sm:$0x1]
        %v1720 = vsel %vm1376, %v1578, %v1719
        %1721 = vst [vmem:[%s1659 + $0x5c] sm:$0x1] %v1720
        %v1722 = vld [vmem:[%s1659 + $0x60] sm:$0xf]
        %v1723 = vsel %vm1661, %v1585, %v1722
        %1724 = vst [vmem:[%s1659 + $0x60] sm:$0xf] %v1723
        %v1725 = vld [vmem:[%s1659 + $0x64] sm:$0x1]
        %v1726 = vsel %vm1376, %v1586, %v1725
        %1727 = vst [vmem:[%s1659 + $0x64] sm:$0x1] %v1726
        %v1728 = vld [vmem:[%s1659 + $0x68] sm:$0xf]
        %v1729 = vsel %vm1661, %v1593, %v1728
        %1730 = vst [vmem:[%s1659 + $0x68] sm:$0xf] %v1729
        %v1731 = vld [vmem:[%s1659 + $0x6c] sm:$0x1]
        %v1732 = vsel %vm1376, %v1594, %v1731
        %1733 = vst [vmem:[%s1659 + $0x6c] sm:$0x1] %v1732
        %v1734 = vld [vmem:[%s1659 + $0x70] sm:$0xf]
        %v1735 = vsel %vm1661, %v1601, %v1734
        %1736 = vst [vmem:[%s1659 + $0x70] sm:$0xf] %v1735
        %v1737 = vld [vmem:[%s1659 + $0x74] sm:$0x1]
        %v1738 = vsel %vm1376, %v1602, %v1737
        %1739 = vst [vmem:[%s1659 + $0x74] sm:$0x1] %v1738
        %v1740 = vld [vmem:[%s1659 + $0x78] sm:$0xf]
        %v1741 = vsel %vm1661, %v1609, %v1740
        %1742 = vst [vmem:[%s1659 + $0x78] sm:$0xf] %v1741
        %v1743 = vld [vmem:[%s1659 + $0x7c] sm:$0x1]
        %v1744 = vsel %vm1376, %v1610, %v1743
        %1745 = vst [vmem:[%s1659 + $0x7c] sm:$0x1] %v1744
        %v1746 = vld [vmem:[%s1659 + $0x80] sm:$0xf]
        %v1747 = vsel %vm1661, %v1617, %v1746
        %1748 = vst [vmem:[%s1659 + $0x80] sm:$0xf] %v1747
        %v1749 = vld [vmem:[%s1659 + $0x84] sm:$0x1]
        %v1750 = vsel %vm1376, %v1618, %v1749
        %1751 = vst [vmem:[%s1659 + $0x84] sm:$0x1] %v1750
        %v1752 = vld [vmem:[%s1659 + $0x88] sm:$0xf]
        %v1753 = vsel %vm1661, %v1625, %v1752
        %1754 = vst [vmem:[%s1659 + $0x88] sm:$0xf] %v1753
        %v1755 = vld [vmem:[%s1659 + $0x8c] sm:$0x1]
        %v1756 = vsel %vm1376, %v1626, %v1755
        %1757 = vst [vmem:[%s1659 + $0x8c] sm:$0x1] %v1756
        %v1758 = vld [vmem:[#allocation2] sm:$0xf]
        %v1759 = vld [vmem:[#allocation2 + $0x8] sm:$0xf]
        %v1760 = vld [vmem:[#allocation2 + $0x10] sm:$0xf]
        %v1761 = vld [vmem:[#allocation2 + $0x18] sm:$0xf]
        %v1762 = vld [vmem:[#allocation2 + $0x20] sm:$0xf]
        %v1763 = vld [vmem:[#allocation2 + $0x28] sm:$0xf]
        %v1764 = vld [vmem:[#allocation2 + $0x30] sm:$0xf]
        %v1765 = vld [vmem:[#allocation2 + $0x38] sm:$0xf]
        %v1766 = vld [vmem:[#allocation2 + $0x50] sm:$0xf]
        %v1767 = vld [vmem:[#allocation2 + $0x58] sm:$0xf]
        %v1768 = vld [vmem:[#allocation2 + $0x60] sm:$0xf]
        %v1769 = vld [vmem:[#allocation2 + $0x68] sm:$0xf]
        %v1770 = vld [vmem:[#allocation2 + $0x70] sm:$0xf]
        %v1771 = vld [vmem:[#allocation2 + $0x78] sm:$0xf]
        %v1772 = vld [vmem:[#allocation2 + $0x80] sm:$0xf]
        %v1773 = vld [vmem:[#allocation2 + $0x88] sm:$0xf]
        %v1774 = vld [vmem:[#allocation2 + $0x4] sm:$0x1]
        %v1775 = vld [vmem:[#allocation2 + $0xc] sm:$0x1]
        %v1776 = vld [vmem:[#allocation2 + $0x14] sm:$0x1]
        %v1777 = vld [vmem:[#allocation2 + $0x1c] sm:$0x1]
        %v1778 = vld [vmem:[#allocation2 + $0x24] sm:$0x1]
        %v1779 = vld [vmem:[#allocation2 + $0x2c] sm:$0x1]
        %v1780 = vld [vmem:[#allocation2 + $0x34] sm:$0x1]
        %v1781 = vld [vmem:[#allocation2 + $0x3c] sm:$0x1]
        %v1782 = vld [vmem:[#allocation2 + $0x54] sm:$0x1]
        %v1783 = vld [vmem:[#allocation2 + $0x5c] sm:$0x1]
        %v1784 = vld [vmem:[#allocation2 + $0x64] sm:$0x1]
        %v1785 = vld [vmem:[#allocation2 + $0x6c] sm:$0x1]
        %v1786 = vld [vmem:[#allocation2 + $0x74] sm:$0x1]
        %v1787 = vld [vmem:[#allocation2 + $0x7c] sm:$0x1]
        %v1788 = vld [vmem:[#allocation2 + $0x84] sm:$0x1]
        %v1789 = vld [vmem:[#allocation2 + $0x8c] sm:$0x1]
        %v1790 = vld [vmem:[#allocation2] sm:$0xe]
        %v1791 = vld [vmem:[#allocation2 + $0x8] sm:$0xe]
        %v1792 = vld [vmem:[#allocation2 + $0x10] sm:$0xe]
        %v1793 = vld [vmem:[#allocation2 + $0x18] sm:$0xe]
        %v1794 = vld [vmem:[#allocation2 + $0x20] sm:$0xe]
        %v1795 = vld [vmem:[#allocation2 + $0x28] sm:$0xe]
        %v1796 = vld [vmem:[#allocation2 + $0x30] sm:$0xe]
        %v1797 = vld [vmem:[#allocation2 + $0x38] sm:$0xe]
        %v1798 = vld [vmem:[#allocation2 + $0x50] sm:$0xe]
        %v1799 = vld [vmem:[#allocation2 + $0x58] sm:$0xe]
        %v1800 = vld [vmem:[#allocation2 + $0x60] sm:$0xe]
        %v1801 = vld [vmem:[#allocation2 + $0x68] sm:$0xe]
        %v1802 = vld [vmem:[#allocation2 + $0x70] sm:$0xe]
        %v1803 = vld [vmem:[#allocation2 + $0x78] sm:$0xe]
        %v1804 = vld [vmem:[#allocation2 + $0x80] sm:$0xe]
        %v1805 = vld [vmem:[#allocation2 + $0x88] sm:$0xe]
        %v1806 = vld [vmem:[%s1659] sm:$0xf]
        %v1807 = vld [vmem:[%s1659 + $0x8] sm:$0xf]
        %v1808 = vld [vmem:[%s1659 + $0x10] sm:$0xf]
        %v1809 = vld [vmem:[%s1659 + $0x18] sm:$0xf]
        %v1810 = vld [vmem:[%s1659 + $0x20] sm:$0xf]
        %v1811 = vld [vmem:[%s1659 + $0x28] sm:$0xf]
        %v1812 = vld [vmem:[%s1659 + $0x30] sm:$0xf]
        %v1813 = vld [vmem:[%s1659 + $0x38] sm:$0xf]
        %v1814 = vld [vmem:[%s1659 + $0x50] sm:$0xf]
        %v1815 = vld [vmem:[%s1659 + $0x58] sm:$0xf]
        %v1816 = vld [vmem:[%s1659 + $0x60] sm:$0xf]
        %v1817 = vld [vmem:[%s1659 + $0x68] sm:$0xf]
        %v1818 = vld [vmem:[%s1659 + $0x70] sm:$0xf]
        %v1819 = vld [vmem:[%s1659 + $0x78] sm:$0xf]
        %v1820 = vld [vmem:[%s1659 + $0x80] sm:$0xf]
        %v1821 = vld [vmem:[%s1659 + $0x88] sm:$0xf]
        %v1822 = vld [vmem:[%s1659 + $0x4] sm:$0x1]
        %v1823 = vld [vmem:[%s1659 + $0xc] sm:$0x1]
        %v1824 = vld [vmem:[%s1659 + $0x14] sm:$0x1]
        %v1825 = vld [vmem:[%s1659 + $0x1c] sm:$0x1]
        %v1826 = vld [vmem:[%s1659 + $0x24] sm:$0x1]
        %v1827 = vld [vmem:[%s1659 + $0x2c] sm:$0x1]
        %v1828 = vld [vmem:[%s1659 + $0x34] sm:$0x1]
        %v1829 = vld [vmem:[%s1659 + $0x3c] sm:$0x1]
        %v1830 = vld [vmem:[%s1659 + $0x54] sm:$0x1]
        %v1831 = vld [vmem:[%s1659 + $0x5c] sm:$0x1]
        %v1832 = vld [vmem:[%s1659 + $0x64] sm:$0x1]
        %v1833 = vld [vmem:[%s1659 + $0x6c] sm:$0x1]
        %v1834 = vld [vmem:[%s1659 + $0x74] sm:$0x1]
        %v1835 = vld [vmem:[%s1659 + $0x7c] sm:$0x1]
        %v1836 = vld [vmem:[%s1659 + $0x84] sm:$0x1]
        %v1837 = vld [vmem:[%s1659 + $0x8c] sm:$0x1]
        %v1838 = vld [vmem:[%s1659] sm:$0xe]
        %v1839 = vld [vmem:[%s1659 + $0x8] sm:$0xe]
        %v1840 = vld [vmem:[%s1659 + $0x10] sm:$0xe]
        %v1841 = vld [vmem:[%s1659 + $0x18] sm:$0xe]
        %v1842 = vld [vmem:[%s1659 + $0x20] sm:$0xe]
        %v1843 = vld [vmem:[%s1659 + $0x28] sm:$0xe]
        %v1844 = vld [vmem:[%s1659 + $0x30] sm:$0xe]
        %v1845 = vld [vmem:[%s1659 + $0x38] sm:$0xe]
        %v1846 = vld [vmem:[%s1659 + $0x50] sm:$0xe]
        %v1847 = vld [vmem:[%s1659 + $0x58] sm:$0xe]
        %v1848 = vld [vmem:[%s1659 + $0x60] sm:$0xe]
        %v1849 = vld [vmem:[%s1659 + $0x68] sm:$0xe]
        %v1850 = vld [vmem:[%s1659 + $0x70] sm:$0xe]
        %v1851 = vld [vmem:[%s1659 + $0x78] sm:$0xe]
        %v1852 = vld [vmem:[%s1659 + $0x80] sm:$0xe]
        %v1853 = vld [vmem:[%s1659 + $0x88] sm:$0xe]
        %s1854 = scalar_lea.vmem [#allocation2], 16
        %v1855 = vld [vmem:[%s1854] sm:$0xf]
        %v1856 = vld [vmem:[%s1854 + $0x8] sm:$0xf]
        %v1857 = vld [vmem:[%s1854 + $0x10] sm:$0xf]
        %v1858 = vld [vmem:[%s1854 + $0x18] sm:$0xf]
        %v1859 = vld [vmem:[%s1854 + $0x20] sm:$0xf]
        %v1860 = vld [vmem:[%s1854 + $0x28] sm:$0xf]
        %v1861 = vld [vmem:[%s1854 + $0x30] sm:$0xf]
        %v1862 = vld [vmem:[%s1854 + $0x38] sm:$0xf]
        %v1863 = vld [vmem:[%s1854 + $0x50] sm:$0xf]
        %v1864 = vld [vmem:[%s1854 + $0x58] sm:$0xf]
        %v1865 = vld [vmem:[%s1854 + $0x60] sm:$0xf]
        %v1866 = vld [vmem:[%s1854 + $0x68] sm:$0xf]
        %v1867 = vld [vmem:[%s1854 + $0x70] sm:$0xf]
        %v1868 = vld [vmem:[%s1854 + $0x78] sm:$0xf]
        %v1869 = vld [vmem:[%s1854 + $0x80] sm:$0xf]
        %v1870 = vld [vmem:[%s1854 + $0x88] sm:$0xf]
        %v1871 = vld [vmem:[%s1854 + $0x4] sm:$0x1]
        %v1872 = vld [vmem:[%s1854 + $0xc] sm:$0x1]
        %v1873 = vld [vmem:[%s1854 + $0x14] sm:$0x1]
        %v1874 = vld [vmem:[%s1854 + $0x1c] sm:$0x1]
        %v1875 = vld [vmem:[%s1854 + $0x24] sm:$0x1]
        %v1876 = vld [vmem:[%s1854 + $0x2c] sm:$0x1]
        %v1877 = vld [vmem:[%s1854 + $0x34] sm:$0x1]
        %v1878 = vld [vmem:[%s1854 + $0x3c] sm:$0x1]
        %v1879 = vld [vmem:[%s1854 + $0x54] sm:$0x1]
        %v1880 = vld [vmem:[%s1854 + $0x5c] sm:$0x1]
        %v1881 = vld [vmem:[%s1854 + $0x64] sm:$0x1]
        %v1882 = vld [vmem:[%s1854 + $0x6c] sm:$0x1]
        %v1883 = vld [vmem:[%s1854 + $0x74] sm:$0x1]
        %v1884 = vld [vmem:[%s1854 + $0x7c] sm:$0x1]
        %v1885 = vld [vmem:[%s1854 + $0x84] sm:$0x1]
        %v1886 = vld [vmem:[%s1854 + $0x8c] sm:$0x1]
        %v1887 = vld [vmem:[%s1854] sm:$0xe]
        %v1888 = vld [vmem:[%s1854 + $0x8] sm:$0xe]
        %v1889 = vld [vmem:[%s1854 + $0x10] sm:$0xe]
        %v1890 = vld [vmem:[%s1854 + $0x18] sm:$0xe]
        %v1891 = vld [vmem:[%s1854 + $0x20] sm:$0xe]
        %v1892 = vld [vmem:[%s1854 + $0x28] sm:$0xe]
        %v1893 = vld [vmem:[%s1854 + $0x30] sm:$0xe]
        %v1894 = vld [vmem:[%s1854 + $0x38] sm:$0xe]
        %v1895 = vld [vmem:[%s1854 + $0x50] sm:$0xe]
        %v1896 = vld [vmem:[%s1854 + $0x58] sm:$0xe]
        %v1897 = vld [vmem:[%s1854 + $0x60] sm:$0xe]
        %v1898 = vld [vmem:[%s1854 + $0x68] sm:$0xe]
        %v1899 = vld [vmem:[%s1854 + $0x70] sm:$0xe]
        %v1900 = vld [vmem:[%s1854 + $0x78] sm:$0xe]
        %v1901 = vld [vmem:[%s1854 + $0x80] sm:$0xe]
        %v1902 = vld [vmem:[%s1854 + $0x88] sm:$0xe]
        %v1935 = vunpack.c.l.b16 %v1758
        %v1936 = vunpack.c.l.b16 %v1774
        %v1937 = vunpack.c.l.b16 %v1759
        %v1938 = vunpack.c.l.b16 %v1775
        %v1939 = vunpack.c.l.b16 %v1760
        %v1940 = vunpack.c.l.b16 %v1776
        %v1941 = vunpack.c.l.b16 %v1761
        %v1942 = vunpack.c.l.b16 %v1777
        %v1943 = vunpack.c.l.b16 %v1762
        %v1944 = vunpack.c.l.b16 %v1778
        %v1945 = vunpack.c.l.b16 %v1763
        %v1946 = vunpack.c.l.b16 %v1779
        %v1947 = vunpack.c.l.b16 %v1764
        %v1948 = vunpack.c.l.b16 %v1780
        %v1949 = vunpack.c.l.b16 %v1765
        %v1950 = vunpack.c.l.b16 %v1781
        %v1951 = vunpack.c.l.b16 %v1766
        %v1952 = vunpack.c.l.b16 %v1782
        %v1953 = vunpack.c.l.b16 %v1767
        %v1954 = vunpack.c.l.b16 %v1783
        %v1955 = vunpack.c.l.b16 %v1768
        %v1956 = vunpack.c.l.b16 %v1784
        %v1957 = vunpack.c.l.b16 %v1769
        %v1958 = vunpack.c.l.b16 %v1785
        %v1959 = vunpack.c.l.b16 %v1770
        %v1960 = vunpack.c.l.b16 %v1786
        %v1961 = vunpack.c.l.b16 %v1771
        %v1962 = vunpack.c.l.b16 %v1787
        %v1963 = vunpack.c.l.b16 %v1772
        %v1964 = vunpack.c.l.b16 %v1788
        %v1965 = vunpack.c.l.b16 %v1773
        %v1966 = vunpack.c.l.b16 %v1789
        %v1967 = vpack.c.b16 %v1936, %v1935
        %v1968 = vpack.c.b16 %v1938, %v1937
        %v1969 = vpack.c.b16 %v1940, %v1939
        %v1970 = vpack.c.b16 %v1942, %v1941
        %v1971 = vpack.c.b16 %v1944, %v1943
        %v1972 = vpack.c.b16 %v1946, %v1945
        %v1973 = vpack.c.b16 %v1948, %v1947
        %v1974 = vpack.c.b16 %v1950, %v1949
        %v1975 = vpack.c.b16 %v1952, %v1951
        %v1976 = vpack.c.b16 %v1954, %v1953
        %v1977 = vpack.c.b16 %v1956, %v1955
        %v1978 = vpack.c.b16 %v1958, %v1957
        %v1979 = vpack.c.b16 %v1960, %v1959
        %v1980 = vpack.c.b16 %v1962, %v1961
        %v1981 = vpack.c.b16 %v1964, %v1963
        %v1982 = vpack.c.b16 %v1966, %v1965
        %v1984 = vshrl.u32 %v1967, 16
        %v1986 = vshll.u32 %v1967, 16
        %v1988 = vrot.slane %v1986, 1
        %v1989 = vor.u32 %v1984, %v1988
        %v1991 = vshrl.u32 %v1968, 16
        %v1993 = vshll.u32 %v1968, 16
        %v1995 = vrot.slane %v1993, 1
        %v1996 = vor.u32 %v1991, %v1995
        %v1998 = vshrl.u32 %v1969, 16
        %v2000 = vshll.u32 %v1969, 16
        %v2002 = vrot.slane %v2000, 1
        %v2003 = vor.u32 %v1998, %v2002
        %v2005 = vshrl.u32 %v1970, 16
        %v2007 = vshll.u32 %v1970, 16
        %v2009 = vrot.slane %v2007, 1
        %v2010 = vor.u32 %v2005, %v2009
        %v2012 = vshrl.u32 %v1971, 16
        %v2014 = vshll.u32 %v1971, 16
        %v2016 = vrot.slane %v2014, 1
        %v2017 = vor.u32 %v2012, %v2016
        %v2019 = vshrl.u32 %v1972, 16
        %v2021 = vshll.u32 %v1972, 16
        %v2023 = vrot.slane %v2021, 1
        %v2024 = vor.u32 %v2019, %v2023
        %v2026 = vshrl.u32 %v1973, 16
        %v2028 = vshll.u32 %v1973, 16
        %v2030 = vrot.slane %v2028, 1
        %v2031 = vor.u32 %v2026, %v2030
        %v2033 = vshrl.u32 %v1974, 16
        %v2035 = vshll.u32 %v1974, 16
        %v2037 = vrot.slane %v2035, 1
        %v2038 = vor.u32 %v2033, %v2037
        %v2040 = vshrl.u32 %v1975, 16
        %v2042 = vshll.u32 %v1975, 16
        %v2044 = vrot.slane %v2042, 1
        %v2045 = vor.u32 %v2040, %v2044
        %v2047 = vshrl.u32 %v1976, 16
        %v2049 = vshll.u32 %v1976, 16
        %v2051 = vrot.slane %v2049, 1
        %v2052 = vor.u32 %v2047, %v2051
        %v2054 = vshrl.u32 %v1977, 16
        %v2056 = vshll.u32 %v1977, 16
        %v2058 = vrot.slane %v2056, 1
        %v2059 = vor.u32 %v2054, %v2058
        %v2061 = vshrl.u32 %v1978, 16
        %v2063 = vshll.u32 %v1978, 16
        %v2065 = vrot.slane %v2063, 1
        %v2066 = vor.u32 %v2061, %v2065
        %v2068 = vshrl.u32 %v1979, 16
        %v2070 = vshll.u32 %v1979, 16
        %v2072 = vrot.slane %v2070, 1
        %v2073 = vor.u32 %v2068, %v2072
        %v2075 = vshrl.u32 %v1980, 16
        %v2077 = vshll.u32 %v1980, 16
        %v2079 = vrot.slane %v2077, 1
        %v2080 = vor.u32 %v2075, %v2079
        %v2082 = vshrl.u32 %v1981, 16
        %v2084 = vshll.u32 %v1981, 16
        %v2086 = vrot.slane %v2084, 1
        %v2087 = vor.u32 %v2082, %v2086
        %v2089 = vshrl.u32 %v1982, 16
        %v2091 = vshll.u32 %v1982, 16
        %v2093 = vrot.slane %v2091, 1
        %v2094 = vor.u32 %v2089, %v2093
        %2095 = vrot.lane.b32.xlu0 %v1989, 64
        %v2096 = vpop.permute.xlu0 %2095
        %2097 = vrot.lane.b32.xlu0 %v1996, 64
        %v2098 = vpop.permute.xlu0 %2097
        %2099 = vrot.lane.b32.xlu0 %v2003, 64
        %v2100 = vpop.permute.xlu0 %2099
        %2101 = vrot.lane.b32.xlu0 %v2010, 64
        %v2102 = vpop.permute.xlu0 %2101
        %2103 = vrot.lane.b32.xlu0 %v2017, 64
        %v2104 = vpop.permute.xlu0 %2103
        %2105 = vrot.lane.b32.xlu0 %v2024, 64
        %v2106 = vpop.permute.xlu0 %2105
        %2107 = vrot.lane.b32.xlu0 %v2031, 64
        %v2108 = vpop.permute.xlu0 %2107
        %2109 = vrot.lane.b32.xlu0 %v2038, 64
        %v2110 = vpop.permute.xlu0 %2109
        %2111 = vrot.lane.b32.xlu0 %v2045, 64
        %v2112 = vpop.permute.xlu0 %2111
        %2113 = vrot.lane.b32.xlu0 %v2052, 64
        %v2114 = vpop.permute.xlu0 %2113
        %2115 = vrot.lane.b32.xlu0 %v2059, 64
        %v2116 = vpop.permute.xlu0 %2115
        %2117 = vrot.lane.b32.xlu0 %v2066, 64
        %v2118 = vpop.permute.xlu0 %2117
        %2119 = vrot.lane.b32.xlu0 %v2073, 64
        %v2120 = vpop.permute.xlu0 %2119
        %2121 = vrot.lane.b32.xlu0 %v2080, 64
        %v2122 = vpop.permute.xlu0 %2121
        %2123 = vrot.lane.b32.xlu0 %v2087, 64
        %v2124 = vpop.permute.xlu0 %2123
        %2125 = vrot.lane.b32.xlu0 %v2094, 64
        %v2126 = vpop.permute.xlu0 %2125
        %v2143 = vunpack.c.l.b16 %v1790
        %v2144 = vunpack.c.l.b16 %v1791
        %v2145 = vunpack.c.l.b16 %v1792
        %v2146 = vunpack.c.l.b16 %v1793
        %v2147 = vunpack.c.l.b16 %v1794
        %v2148 = vunpack.c.l.b16 %v1795
        %v2149 = vunpack.c.l.b16 %v1796
        %v2150 = vunpack.c.l.b16 %v1797
        %v2151 = vunpack.c.l.b16 %v1798
        %v2152 = vunpack.c.l.b16 %v1799
        %v2153 = vunpack.c.l.b16 %v1800
        %v2154 = vunpack.c.l.b16 %v1801
        %v2155 = vunpack.c.l.b16 %v1802
        %v2156 = vunpack.c.l.b16 %v1803
        %v2157 = vunpack.c.l.b16 %v1804
        %v2158 = vunpack.c.l.b16 %v1805
        %v2159 = vpack.c.b16 %v1936, %v2143
        %v2160 = vpack.c.b16 %v1938, %v2144
        %v2161 = vpack.c.b16 %v1940, %v2145
        %v2162 = vpack.c.b16 %v1942, %v2146
        %v2163 = vpack.c.b16 %v1944, %v2147
        %v2164 = vpack.c.b16 %v1946, %v2148
        %v2165 = vpack.c.b16 %v1948, %v2149
        %v2166 = vpack.c.b16 %v1950, %v2150
        %v2167 = vpack.c.b16 %v1952, %v2151
        %v2168 = vpack.c.b16 %v1954, %v2152
        %v2169 = vpack.c.b16 %v1956, %v2153
        %v2170 = vpack.c.b16 %v1958, %v2154
        %v2171 = vpack.c.b16 %v1960, %v2155
        %v2172 = vpack.c.b16 %v1962, %v2156
        %v2173 = vpack.c.b16 %v1964, %v2157
        %v2174 = vpack.c.b16 %v1966, %v2158
        %v2175 = vrot.slane %v2159, 1
        %v2176 = vrot.slane %v2160, 1
        %v2177 = vrot.slane %v2161, 1
        %v2178 = vrot.slane %v2162, 1
        %v2179 = vrot.slane %v2163, 1
        %v2180 = vrot.slane %v2164, 1
        %v2181 = vrot.slane %v2165, 1
        %v2182 = vrot.slane %v2166, 1
        %v2183 = vrot.slane %v2167, 1
        %v2184 = vrot.slane %v2168, 1
        %v2185 = vrot.slane %v2169, 1
        %v2186 = vrot.slane %v2170, 1
        %v2187 = vrot.slane %v2171, 1
        %v2188 = vrot.slane %v2172, 1
        %v2189 = vrot.slane %v2173, 1
        %v2190 = vrot.slane %v2174, 1
        %v2207 = vunpack.c.l.b16 %v1806
        %v2208 = vunpack.c.l.b16 %v1807
        %v2209 = vunpack.c.l.b16 %v1808
        %v2210 = vunpack.c.l.b16 %v1809
        %v2211 = vunpack.c.l.b16 %v1810
        %v2212 = vunpack.c.l.b16 %v1811
        %v2213 = vunpack.c.l.b16 %v1812
        %v2214 = vunpack.c.l.b16 %v1813
        %v2215 = vunpack.c.l.b16 %v1814
        %v2216 = vunpack.c.l.b16 %v1815
        %v2217 = vunpack.c.l.b16 %v1816
        %v2218 = vunpack.c.l.b16 %v1817
        %v2219 = vunpack.c.l.b16 %v1818
        %v2220 = vunpack.c.l.b16 %v1819
        %v2221 = vunpack.c.l.b16 %v1820
        %v2222 = vunpack.c.l.b16 %v1821
        %v2223 = vpack.c.b16 %v2207, %v2207
        %v2224 = vpack.c.b16 %v2208, %v2208
        %v2225 = vpack.c.b16 %v2209, %v2209
        %v2226 = vpack.c.b16 %v2210, %v2210
        %v2227 = vpack.c.b16 %v2211, %v2211
        %v2228 = vpack.c.b16 %v2212, %v2212
        %v2229 = vpack.c.b16 %v2213, %v2213
        %v2230 = vpack.c.b16 %v2214, %v2214
        %v2231 = vpack.c.b16 %v2215, %v2215
        %v2232 = vpack.c.b16 %v2216, %v2216
        %v2233 = vpack.c.b16 %v2217, %v2217
        %v2234 = vpack.c.b16 %v2218, %v2218
        %v2235 = vpack.c.b16 %v2219, %v2219
        %v2236 = vpack.c.b16 %v2220, %v2220
        %v2237 = vpack.c.b16 %v2221, %v2221
        %v2238 = vpack.c.b16 %v2222, %v2222
        %2239 = vrot.lane.b32.xlu0 %v2223, 64
        %v2240 = vpop.permute.xlu0 %2239
        %2241 = vrot.lane.b32.xlu0 %v2224, 64
        %v2242 = vpop.permute.xlu0 %2241
        %2243 = vrot.lane.b32.xlu0 %v2225, 64
        %v2244 = vpop.permute.xlu0 %2243
        %2245 = vrot.lane.b32.xlu0 %v2226, 64
        %v2246 = vpop.permute.xlu0 %2245
        %2247 = vrot.lane.b32.xlu0 %v2227, 64
        %v2248 = vpop.permute.xlu0 %2247
        %2249 = vrot.lane.b32.xlu0 %v2228, 64
        %v2250 = vpop.permute.xlu0 %2249
        %2251 = vrot.lane.b32.xlu0 %v2229, 64
        %v2252 = vpop.permute.xlu0 %2251
        %2253 = vrot.lane.b32.xlu0 %v2230, 64
        %v2254 = vpop.permute.xlu0 %2253
        %2255 = vrot.lane.b32.xlu0 %v2231, 64
        %v2256 = vpop.permute.xlu0 %2255
        %2257 = vrot.lane.b32.xlu0 %v2232, 64
        %v2258 = vpop.permute.xlu0 %2257
        %2259 = vrot.lane.b32.xlu0 %v2233, 64
        %v2260 = vpop.permute.xlu0 %2259
        %2261 = vrot.lane.b32.xlu0 %v2234, 64
        %v2262 = vpop.permute.xlu0 %2261
        %2263 = vrot.lane.b32.xlu0 %v2235, 64
        %v2264 = vpop.permute.xlu0 %2263
        %2265 = vrot.lane.b32.xlu0 %v2236, 64
        %v2266 = vpop.permute.xlu0 %2265
        %2267 = vrot.lane.b32.xlu0 %v2237, 64
        %v2268 = vpop.permute.xlu0 %2267
        %2269 = vrot.lane.b32.xlu0 %v2238, 64
        %v2270 = vpop.permute.xlu0 %2269
        %v2287 = vunpack.c.l.b16 %v1822
        %v2288 = vunpack.c.l.b16 %v1823
        %v2289 = vunpack.c.l.b16 %v1824
        %v2290 = vunpack.c.l.b16 %v1825
        %v2291 = vunpack.c.l.b16 %v1826
        %v2292 = vunpack.c.l.b16 %v1827
        %v2293 = vunpack.c.l.b16 %v1828
        %v2294 = vunpack.c.l.b16 %v1829
        %v2295 = vunpack.c.l.b16 %v1830
        %v2296 = vunpack.c.l.b16 %v1831
        %v2297 = vunpack.c.l.b16 %v1832
        %v2298 = vunpack.c.l.b16 %v1833
        %v2299 = vunpack.c.l.b16 %v1834
        %v2300 = vunpack.c.l.b16 %v1835
        %v2301 = vunpack.c.l.b16 %v1836
        %v2302 = vunpack.c.l.b16 %v1837
        %v2303 = vpack.c.b16 %v2287, %v2207
        %v2304 = vpack.c.b16 %v2288, %v2208
        %v2305 = vpack.c.b16 %v2289, %v2209
        %v2306 = vpack.c.b16 %v2290, %v2210
        %v2307 = vpack.c.b16 %v2291, %v2211
        %v2308 = vpack.c.b16 %v2292, %v2212
        %v2309 = vpack.c.b16 %v2293, %v2213
        %v2310 = vpack.c.b16 %v2294, %v2214
        %v2311 = vpack.c.b16 %v2295, %v2215
        %v2312 = vpack.c.b16 %v2296, %v2216
        %v2313 = vpack.c.b16 %v2297, %v2217
        %v2314 = vpack.c.b16 %v2298, %v2218
        %v2315 = vpack.c.b16 %v2299, %v2219
        %v2316 = vpack.c.b16 %v2300, %v2220
        %v2317 = vpack.c.b16 %v2301, %v2221
        %v2318 = vpack.c.b16 %v2302, %v2222
        %v2320 = vshrl.u32 %v2303, 16
        %v2322 = vshll.u32 %v2303, 16
        %v2324 = vrot.slane %v2322, 1
        %v2325 = vor.u32 %v2320, %v2324
        %v2327 = vshrl.u32 %v2304, 16
        %v2329 = vshll.u32 %v2304, 16
        %v2331 = vrot.slane %v2329, 1
        %v2332 = vor.u32 %v2327, %v2331
        %v2334 = vshrl.u32 %v2305, 16
        %v2336 = vshll.u32 %v2305, 16
        %v2338 = vrot.slane %v2336, 1
        %v2339 = vor.u32 %v2334, %v2338
        %v2341 = vshrl.u32 %v2306, 16
        %v2343 = vshll.u32 %v2306, 16
        %v2345 = vrot.slane %v2343, 1
        %v2346 = vor.u32 %v2341, %v2345
        %v2348 = vshrl.u32 %v2307, 16
        %v2350 = vshll.u32 %v2307, 16
        %v2352 = vrot.slane %v2350, 1
        %v2353 = vor.u32 %v2348, %v2352
        %v2355 = vshrl.u32 %v2308, 16
        %v2357 = vshll.u32 %v2308, 16
        %v2359 = vrot.slane %v2357, 1
        %v2360 = vor.u32 %v2355, %v2359
        %v2362 = vshrl.u32 %v2309, 16
        %v2364 = vshll.u32 %v2309, 16
        %v2366 = vrot.slane %v2364, 1
        %v2367 = vor.u32 %v2362, %v2366
        %v2369 = vshrl.u32 %v2310, 16
        %v2371 = vshll.u32 %v2310, 16
        %v2373 = vrot.slane %v2371, 1
        %v2374 = vor.u32 %v2369, %v2373
        %v2376 = vshrl.u32 %v2311, 16
        %v2378 = vshll.u32 %v2311, 16
        %v2380 = vrot.slane %v2378, 1
        %v2381 = vor.u32 %v2376, %v2380
        %v2383 = vshrl.u32 %v2312, 16
        %v2385 = vshll.u32 %v2312, 16
        %v2387 = vrot.slane %v2385, 1
        %v2388 = vor.u32 %v2383, %v2387
        %v2390 = vshrl.u32 %v2313, 16
        %v2392 = vshll.u32 %v2313, 16
        %v2394 = vrot.slane %v2392, 1
        %v2395 = vor.u32 %v2390, %v2394
        %v2397 = vshrl.u32 %v2314, 16
        %v2399 = vshll.u32 %v2314, 16
        %v2401 = vrot.slane %v2399, 1
        %v2402 = vor.u32 %v2397, %v2401
        %v2404 = vshrl.u32 %v2315, 16
        %v2406 = vshll.u32 %v2315, 16
        %v2408 = vrot.slane %v2406, 1
        %v2409 = vor.u32 %v2404, %v2408
        %v2411 = vshrl.u32 %v2316, 16
        %v2413 = vshll.u32 %v2316, 16
        %v2415 = vrot.slane %v2413, 1
        %v2416 = vor.u32 %v2411, %v2415
        %v2418 = vshrl.u32 %v2317, 16
        %v2420 = vshll.u32 %v2317, 16
        %v2422 = vrot.slane %v2420, 1
        %v2423 = vor.u32 %v2418, %v2422
        %v2425 = vshrl.u32 %v2318, 16
        %v2427 = vshll.u32 %v2318, 16
        %v2429 = vrot.slane %v2427, 1
        %v2430 = vor.u32 %v2425, %v2429
        %v2447 = vunpack.c.l.b16 %v1838
        %v2448 = vunpack.c.l.b16 %v1839
        %v2449 = vunpack.c.l.b16 %v1840
        %v2450 = vunpack.c.l.b16 %v1841
        %v2451 = vunpack.c.l.b16 %v1842
        %v2452 = vunpack.c.l.b16 %v1843
        %v2453 = vunpack.c.l.b16 %v1844
        %v2454 = vunpack.c.l.b16 %v1845
        %v2455 = vunpack.c.l.b16 %v1846
        %v2456 = vunpack.c.l.b16 %v1847
        %v2457 = vunpack.c.l.b16 %v1848
        %v2458 = vunpack.c.l.b16 %v1849
        %v2459 = vunpack.c.l.b16 %v1850
        %v2460 = vunpack.c.l.b16 %v1851
        %v2461 = vunpack.c.l.b16 %v1852
        %v2462 = vunpack.c.l.b16 %v1853
        %v2463 = vpack.c.b16 %v2287, %v2447
        %v2464 = vpack.c.b16 %v2288, %v2448
        %v2465 = vpack.c.b16 %v2289, %v2449
        %v2466 = vpack.c.b16 %v2290, %v2450
        %v2467 = vpack.c.b16 %v2291, %v2451
        %v2468 = vpack.c.b16 %v2292, %v2452
        %v2469 = vpack.c.b16 %v2293, %v2453
        %v2470 = vpack.c.b16 %v2294, %v2454
        %v2471 = vpack.c.b16 %v2295, %v2455
        %v2472 = vpack.c.b16 %v2296, %v2456
        %v2473 = vpack.c.b16 %v2297, %v2457
        %v2474 = vpack.c.b16 %v2298, %v2458
        %v2475 = vpack.c.b16 %v2299, %v2459
        %v2476 = vpack.c.b16 %v2300, %v2460
        %v2477 = vpack.c.b16 %v2301, %v2461
        %v2478 = vpack.c.b16 %v2302, %v2462
        %v2479 = vrot.slane %v2463, 1
        %v2480 = vrot.slane %v2464, 1
        %v2481 = vrot.slane %v2465, 1
        %v2482 = vrot.slane %v2466, 1
        %v2483 = vrot.slane %v2467, 1
        %v2484 = vrot.slane %v2468, 1
        %v2485 = vrot.slane %v2469, 1
        %v2486 = vrot.slane %v2470, 1
        %v2487 = vrot.slane %v2471, 1
        %v2488 = vrot.slane %v2472, 1
        %v2489 = vrot.slane %v2473, 1
        %v2490 = vrot.slane %v2474, 1
        %v2491 = vrot.slane %v2475, 1
        %v2492 = vrot.slane %v2476, 1
        %v2493 = vrot.slane %v2477, 1
        %v2494 = vrot.slane %v2478, 1
        %2495 = vrot.lane.b32.xlu0 %v2479, 64
        %v2496 = vpop.permute.xlu0 %2495
        %2497 = vrot.lane.b32.xlu0 %v2480, 64
        %v2498 = vpop.permute.xlu0 %2497
        %2499 = vrot.lane.b32.xlu0 %v2481, 64
        %v2500 = vpop.permute.xlu0 %2499
        %2501 = vrot.lane.b32.xlu0 %v2482, 64
        %v2502 = vpop.permute.xlu0 %2501
        %2503 = vrot.lane.b32.xlu0 %v2483, 64
        %v2504 = vpop.permute.xlu0 %2503
        %2505 = vrot.lane.b32.xlu0 %v2484, 64
        %v2506 = vpop.permute.xlu0 %2505
        %2507 = vrot.lane.b32.xlu0 %v2485, 64
        %v2508 = vpop.permute.xlu0 %2507
        %2509 = vrot.lane.b32.xlu0 %v2486, 64
        %v2510 = vpop.permute.xlu0 %2509
        %2511 = vrot.lane.b32.xlu0 %v2487, 64
        %v2512 = vpop.permute.xlu0 %2511
        %2513 = vrot.lane.b32.xlu0 %v2488, 64
        %v2514 = vpop.permute.xlu0 %2513
        %2515 = vrot.lane.b32.xlu0 %v2489, 64
        %v2516 = vpop.permute.xlu0 %2515
        %2517 = vrot.lane.b32.xlu0 %v2490, 64
        %v2518 = vpop.permute.xlu0 %2517
        %2519 = vrot.lane.b32.xlu0 %v2491, 64
        %v2520 = vpop.permute.xlu0 %2519
        %2521 = vrot.lane.b32.xlu0 %v2492, 64
        %v2522 = vpop.permute.xlu0 %2521
        %2523 = vrot.lane.b32.xlu0 %v2493, 64
        %v2524 = vpop.permute.xlu0 %2523
        %2525 = vrot.lane.b32.xlu0 %v2494, 64
        %v2526 = vpop.permute.xlu0 %2525
        %v2559 = vunpack.c.l.b16 %v1855
        %v2560 = vunpack.c.l.b16 %v1871
        %v2561 = vunpack.c.l.b16 %v1856
        %v2562 = vunpack.c.l.b16 %v1872
        %v2563 = vunpack.c.l.b16 %v1857
        %v2564 = vunpack.c.l.b16 %v1873
        %v2565 = vunpack.c.l.b16 %v1858
        %v2566 = vunpack.c.l.b16 %v1874
        %v2567 = vunpack.c.l.b16 %v1859
        %v2568 = vunpack.c.l.b16 %v1875
        %v2569 = vunpack.c.l.b16 %v1860
        %v2570 = vunpack.c.l.b16 %v1876
        %v2571 = vunpack.c.l.b16 %v1861
        %v2572 = vunpack.c.l.b16 %v1877
        %v2573 = vunpack.c.l.b16 %v1862
        %v2574 = vunpack.c.l.b16 %v1878
        %v2575 = vunpack.c.l.b16 %v1863
        %v2576 = vunpack.c.l.b16 %v1879
        %v2577 = vunpack.c.l.b16 %v1864
        %v2578 = vunpack.c.l.b16 %v1880
        %v2579 = vunpack.c.l.b16 %v1865
        %v2580 = vunpack.c.l.b16 %v1881
        %v2581 = vunpack.c.l.b16 %v1866
        %v2582 = vunpack.c.l.b16 %v1882
        %v2583 = vunpack.c.l.b16 %v1867
        %v2584 = vunpack.c.l.b16 %v1883
        %v2585 = vunpack.c.l.b16 %v1868
        %v2586 = vunpack.c.l.b16 %v1884
        %v2587 = vunpack.c.l.b16 %v1869
        %v2588 = vunpack.c.l.b16 %v1885
        %v2589 = vunpack.c.l.b16 %v1870
        %v2590 = vunpack.c.l.b16 %v1886
        %v2591 = vpack.c.b16 %v2560, %v2559
        %v2592 = vpack.c.b16 %v2562, %v2561
        %v2593 = vpack.c.b16 %v2564, %v2563
        %v2594 = vpack.c.b16 %v2566, %v2565
        %v2595 = vpack.c.b16 %v2568, %v2567
        %v2596 = vpack.c.b16 %v2570, %v2569
        %v2597 = vpack.c.b16 %v2572, %v2571
        %v2598 = vpack.c.b16 %v2574, %v2573
        %v2599 = vpack.c.b16 %v2576, %v2575
        %v2600 = vpack.c.b16 %v2578, %v2577
        %v2601 = vpack.c.b16 %v2580, %v2579
        %v2602 = vpack.c.b16 %v2582, %v2581
        %v2603 = vpack.c.b16 %v2584, %v2583
        %v2604 = vpack.c.b16 %v2586, %v2585
        %v2605 = vpack.c.b16 %v2588, %v2587
        %v2606 = vpack.c.b16 %v2590, %v2589
        %v2608 = vshrl.u32 %v2591, 16
        %v2610 = vshll.u32 %v2591, 16
        %v2612 = vrot.slane %v2610, 1
        %v2613 = vor.u32 %v2608, %v2612
        %v2615 = vshrl.u32 %v2592, 16
        %v2617 = vshll.u32 %v2592, 16
        %v2619 = vrot.slane %v2617, 1
        %v2620 = vor.u32 %v2615, %v2619
        %v2622 = vshrl.u32 %v2593, 16
        %v2624 = vshll.u32 %v2593, 16
        %v2626 = vrot.slane %v2624, 1
        %v2627 = vor.u32 %v2622, %v2626
        %v2629 = vshrl.u32 %v2594, 16
        %v2631 = vshll.u32 %v2594, 16
        %v2633 = vrot.slane %v2631, 1
        %v2634 = vor.u32 %v2629, %v2633
        %v2636 = vshrl.u32 %v2595, 16
        %v2638 = vshll.u32 %v2595, 16
        %v2640 = vrot.slane %v2638, 1
        %v2641 = vor.u32 %v2636, %v2640
        %v2643 = vshrl.u32 %v2596, 16
        %v2645 = vshll.u32 %v2596, 16
        %v2647 = vrot.slane %v2645, 1
        %v2648 = vor.u32 %v2643, %v2647
        %v2650 = vshrl.u32 %v2597, 16
        %v2652 = vshll.u32 %v2597, 16
        %v2654 = vrot.slane %v2652, 1
        %v2655 = vor.u32 %v2650, %v2654
        %v2657 = vshrl.u32 %v2598, 16
        %v2659 = vshll.u32 %v2598, 16
        %v2661 = vrot.slane %v2659, 1
        %v2662 = vor.u32 %v2657, %v2661
        %v2664 = vshrl.u32 %v2599, 16
        %v2666 = vshll.u32 %v2599, 16
        %v2668 = vrot.slane %v2666, 1
        %v2669 = vor.u32 %v2664, %v2668
        %v2671 = vshrl.u32 %v2600, 16
        %v2673 = vshll.u32 %v2600, 16
        %v2675 = vrot.slane %v2673, 1
        %v2676 = vor.u32 %v2671, %v2675
        %v2678 = vshrl.u32 %v2601, 16
        %v2680 = vshll.u32 %v2601, 16
        %v2682 = vrot.slane %v2680, 1
        %v2683 = vor.u32 %v2678, %v2682
        %v2685 = vshrl.u32 %v2602, 16
        %v2687 = vshll.u32 %v2602, 16
        %v2689 = vrot.slane %v2687, 1
        %v2690 = vor.u32 %v2685, %v2689
        %v2692 = vshrl.u32 %v2603, 16
        %v2694 = vshll.u32 %v2603, 16
        %v2696 = vrot.slane %v2694, 1
        %v2697 = vor.u32 %v2692, %v2696
        %v2699 = vshrl.u32 %v2604, 16
        %v2701 = vshll.u32 %v2604, 16
        %v2703 = vrot.slane %v2701, 1
        %v2704 = vor.u32 %v2699, %v2703
        %v2706 = vshrl.u32 %v2605, 16
        %v2708 = vshll.u32 %v2605, 16
        %v2710 = vrot.slane %v2708, 1
        %v2711 = vor.u32 %v2706, %v2710
        %v2713 = vshrl.u32 %v2606, 16
        %v2715 = vshll.u32 %v2606, 16
        %v2717 = vrot.slane %v2715, 1
        %v2718 = vor.u32 %v2713, %v2717
        %2719 = vrot.lane.b32.xlu0 %v2613, 64
        %v2720 = vpop.permute.xlu0 %2719
        %2721 = vrot.lane.b32.xlu0 %v2620, 64
        %v2722 = vpop.permute.xlu0 %2721
        %2723 = vrot.lane.b32.xlu0 %v2627, 64
        %v2724 = vpop.permute.xlu0 %2723
        %2725 = vrot.lane.b32.xlu0 %v2634, 64
        %v2726 = vpop.permute.xlu0 %2725
        %2727 = vrot.lane.b32.xlu0 %v2641, 64
        %v2728 = vpop.permute.xlu0 %2727
        %2729 = vrot.lane.b32.xlu0 %v2648, 64
        %v2730 = vpop.permute.xlu0 %2729
        %2731 = vrot.lane.b32.xlu0 %v2655, 64
        %v2732 = vpop.permute.xlu0 %2731
        %2733 = vrot.lane.b32.xlu0 %v2662, 64
        %v2734 = vpop.permute.xlu0 %2733
        %2735 = vrot.lane.b32.xlu0 %v2669, 64
        %v2736 = vpop.permute.xlu0 %2735
        %2737 = vrot.lane.b32.xlu0 %v2676, 64
        %v2738 = vpop.permute.xlu0 %2737
        %2739 = vrot.lane.b32.xlu0 %v2683, 64
        %v2740 = vpop.permute.xlu0 %2739
        %2741 = vrot.lane.b32.xlu0 %v2690, 64
        %v2742 = vpop.permute.xlu0 %2741
        %2743 = vrot.lane.b32.xlu0 %v2697, 64
        %v2744 = vpop.permute.xlu0 %2743
        %2745 = vrot.lane.b32.xlu0 %v2704, 64
        %v2746 = vpop.permute.xlu0 %2745
        %2747 = vrot.lane.b32.xlu0 %v2711, 64
        %v2748 = vpop.permute.xlu0 %2747
        %2749 = vrot.lane.b32.xlu0 %v2718, 64
        %v2750 = vpop.permute.xlu0 %2749
        %v2767 = vunpack.c.l.b16 %v1887
        %v2768 = vunpack.c.l.b16 %v1888
        %v2769 = vunpack.c.l.b16 %v1889
        %v2770 = vunpack.c.l.b16 %v1890
        %v2771 = vunpack.c.l.b16 %v1891
        %v2772 = vunpack.c.l.b16 %v1892
        %v2773 = vunpack.c.l.b16 %v1893
        %v2774 = vunpack.c.l.b16 %v1894
        %v2775 = vunpack.c.l.b16 %v1895
        %v2776 = vunpack.c.l.b16 %v1896
        %v2777 = vunpack.c.l.b16 %v1897
        %v2778 = vunpack.c.l.b16 %v1898
        %v2779 = vunpack.c.l.b16 %v1899
        %v2780 = vunpack.c.l.b16 %v1900
        %v2781 = vunpack.c.l.b16 %v1901
        %v2782 = vunpack.c.l.b16 %v1902
        %v2783 = vpack.c.b16 %v2560, %v2767
        %v2784 = vpack.c.b16 %v2562, %v2768
        %v2785 = vpack.c.b16 %v2564, %v2769
        %v2786 = vpack.c.b16 %v2566, %v2770
        %v2787 = vpack.c.b16 %v2568, %v2771
        %v2788 = vpack.c.b16 %v2570, %v2772
        %v2789 = vpack.c.b16 %v2572, %v2773
        %v2790 = vpack.c.b16 %v2574, %v2774
        %v2791 = vpack.c.b16 %v2576, %v2775
        %v2792 = vpack.c.b16 %v2578, %v2776
        %v2793 = vpack.c.b16 %v2580, %v2777
        %v2794 = vpack.c.b16 %v2582, %v2778
        %v2795 = vpack.c.b16 %v2584, %v2779
        %v2796 = vpack.c.b16 %v2586, %v2780
        %v2797 = vpack.c.b16 %v2588, %v2781
        %v2798 = vpack.c.b16 %v2590, %v2782
        %v2799 = vrot.slane %v2783, 1
        %v2800 = vrot.slane %v2784, 1
        %v2801 = vrot.slane %v2785, 1
        %v2802 = vrot.slane %v2786, 1
        %v2803 = vrot.slane %v2787, 1
        %v2804 = vrot.slane %v2788, 1
        %v2805 = vrot.slane %v2789, 1
        %v2806 = vrot.slane %v2790, 1
        %v2807 = vrot.slane %v2791, 1
        %v2808 = vrot.slane %v2792, 1
        %v2809 = vrot.slane %v2793, 1
        %v2810 = vrot.slane %v2794, 1
        %v2811 = vrot.slane %v2795, 1
        %v2812 = vrot.slane %v2796, 1
        %v2813 = vrot.slane %v2797, 1
        %v2814 = vrot.slane %v2798, 1
        %v2817 = vsel %vm671, %v1758, %v2096
        %v2820 = vsel %vm671, %v1759, %v2098
        %v2823 = vsel %vm671, %v1760, %v2100
        %v2826 = vsel %vm671, %v1761, %v2102
        %v2829 = vsel %vm671, %v1762, %v2104
        %v2832 = vsel %vm671, %v1763, %v2106
        %v2835 = vsel %vm671, %v1764, %v2108
        %v2838 = vsel %vm671, %v1765, %v2110
        %v2841 = vsel %vm671, %v1766, %v2112
        %v2844 = vsel %vm671, %v1767, %v2114
        %v2847 = vsel %vm671, %v1768, %v2116
        %v2850 = vsel %vm671, %v1769, %v2118
        %v2853 = vsel %vm671, %v1770, %v2120
        %v2856 = vsel %vm671, %v1771, %v2122
        %v2859 = vsel %vm671, %v1772, %v2124
        %v2862 = vsel %vm671, %v1773, %v2126
        %v2865 = vsel %vm671, %v2175, %v2240
        %v2868 = vsel %vm671, %v2176, %v2242
        %v2871 = vsel %vm671, %v2177, %v2244
        %v2874 = vsel %vm671, %v2178, %v2246
        %v2877 = vsel %vm671, %v2179, %v2248
        %v2880 = vsel %vm671, %v2180, %v2250
        %v2883 = vsel %vm671, %v2181, %v2252
        %v2886 = vsel %vm671, %v2182, %v2254
        %v2889 = vsel %vm671, %v2183, %v2256
        %v2892 = vsel %vm671, %v2184, %v2258
        %v2895 = vsel %vm671, %v2185, %v2260
        %v2898 = vsel %vm671, %v2186, %v2262
        %v2901 = vsel %vm671, %v2187, %v2264
        %v2904 = vsel %vm671, %v2188, %v2266
        %v2907 = vsel %vm671, %v2189, %v2268
        %v2910 = vsel %vm671, %v2190, %v2270
        %v2913 = vsel %vm671, %v2325, %v2496
        %v2916 = vsel %vm671, %v2332, %v2498
        %v2919 = vsel %vm671, %v2339, %v2500
        %v2922 = vsel %vm671, %v2346, %v2502
        %v2925 = vsel %vm671, %v2353, %v2504
        %v2928 = vsel %vm671, %v2360, %v2506
        %v2931 = vsel %vm671, %v2367, %v2508
        %v2934 = vsel %vm671, %v2374, %v2510
        %v2937 = vsel %vm671, %v2381, %v2512
        %v2940 = vsel %vm671, %v2388, %v2514
        %v2943 = vsel %vm671, %v2395, %v2516
        %v2946 = vsel %vm671, %v2402, %v2518
        %v2949 = vsel %vm671, %v2409, %v2520
        %v2952 = vsel %vm671, %v2416, %v2522
        %v2955 = vsel %vm671, %v2423, %v2524
        %v2958 = vsel %vm671, %v2430, %v2526
        %v2961 = vsel %vm671, %v1855, %v2720
        %v2964 = vsel %vm671, %v1856, %v2722
        %v2967 = vsel %vm671, %v1857, %v2724
        %v2970 = vsel %vm671, %v1858, %v2726
        %v2973 = vsel %vm671, %v1859, %v2728
        %v2976 = vsel %vm671, %v1860, %v2730
        %v2979 = vsel %vm671, %v1861, %v2732
        %v2982 = vsel %vm671, %v1862, %v2734
        %v2985 = vsel %vm671, %v1863, %v2736
        %v2988 = vsel %vm671, %v1864, %v2738
        %v2991 = vsel %vm671, %v1865, %v2740
        %v2994 = vsel %vm671, %v1866, %v2742
        %v2997 = vsel %vm671, %v1867, %v2744
        %v3000 = vsel %vm671, %v1868, %v2746
        %v3003 = vsel %vm671, %v1869, %v2748
        %v3006 = vsel %vm671, %v1870, %v2750
        %v3071 = vunpack.c.l.b16 %v2817
        %v3072 = vunpack.c.l.b16 %v2865
        %v3073 = vunpack.c.l.b16 %v2913
        %v3074 = vunpack.c.l.b16 %v2961
        %v3075 = vunpack.c.l.b16 %v2799
        %v3076 = vunpack.c.l.b16 %v2820
        %v3077 = vunpack.c.l.b16 %v2868
        %v3078 = vunpack.c.l.b16 %v2916
        %v3079 = vunpack.c.l.b16 %v2964
        %v3080 = vunpack.c.l.b16 %v2800
        %v3081 = vunpack.c.l.b16 %v2823
        %v3082 = vunpack.c.l.b16 %v2871
        %v3083 = vunpack.c.l.b16 %v2919
        %v3084 = vunpack.c.l.b16 %v2967
        %v3085 = vunpack.c.l.b16 %v2801
        %v3086 = vunpack.c.l.b16 %v2826
        %v3087 = vunpack.c.l.b16 %v2874
        %v3088 = vunpack.c.l.b16 %v2922
        %v3089 = vunpack.c.l.b16 %v2970
        %v3090 = vunpack.c.l.b16 %v2802
        %v3091 = vunpack.c.l.b16 %v2829
        %v3092 = vunpack.c.l.b16 %v2877
        %v3093 = vunpack.c.l.b16 %v2925
        %v3094 = vunpack.c.l.b16 %v2973
        %v3095 = vunpack.c.l.b16 %v2803
        %v3096 = vunpack.c.l.b16 %v2832
        %v3097 = vunpack.c.l.b16 %v2880
        %v3098 = vunpack.c.l.b16 %v2928
        %v3099 = vunpack.c.l.b16 %v2976
        %v3100 = vunpack.c.l.b16 %v2804
        %v3101 = vunpack.c.l.b16 %v2835
        %v3102 = vunpack.c.l.b16 %v2883
        %v3103 = vunpack.c.l.b16 %v2931
        %v3104 = vunpack.c.l.b16 %v2979
        %v3105 = vunpack.c.l.b16 %v2805
        %v3106 = vunpack.c.l.b16 %v2838
        %v3107 = vunpack.c.l.b16 %v2886
        %v3108 = vunpack.c.l.b16 %v2934
        %v3109 = vunpack.c.l.b16 %v2982
        %v3110 = vunpack.c.l.b16 %v2806
        %v3111 = vunpack.c.l.b16 %v2841
        %v3112 = vunpack.c.l.b16 %v2889
        %v3113 = vunpack.c.l.b16 %v2937
        %v3114 = vunpack.c.l.b16 %v2985
        %v3115 = vunpack.c.l.b16 %v2807
        %v3116 = vunpack.c.l.b16 %v2844
        %v3117 = vunpack.c.l.b16 %v2892
        %v3118 = vunpack.c.l.b16 %v2940
        %v3119 = vunpack.c.l.b16 %v2988
        %v3120 = vunpack.c.l.b16 %v2808
        %v3121 = vunpack.c.l.b16 %v2847
        %v3122 = vunpack.c.l.b16 %v2895
        %v3123 = vunpack.c.l.b16 %v2943
        %v3124 = vunpack.c.l.b16 %v2991
        %v3125 = vunpack.c.l.b16 %v2809
        %v3126 = vunpack.c.l.b16 %v2850
        %v3127 = vunpack.c.l.b16 %v2898
        %v3128 = vunpack.c.l.b16 %v2946
        %v3129 = vunpack.c.l.b16 %v2994
        %v3130 = vunpack.c.l.b16 %v2810
        %v3131 = vunpack.c.l.b16 %v2853
        %v3132 = vunpack.c.l.b16 %v2901
        %v3133 = vunpack.c.l.b16 %v2949
        %v3134 = vunpack.c.l.b16 %v2997
        %v3135 = vunpack.c.l.b16 %v2811
        %v3136 = vunpack.c.l.b16 %v2856
        %v3137 = vunpack.c.l.b16 %v2904
        %v3138 = vunpack.c.l.b16 %v2952
        %v3139 = vunpack.c.l.b16 %v3000
        %v3140 = vunpack.c.l.b16 %v2812
        %v3141 = vunpack.c.l.b16 %v2859
        %v3142 = vunpack.c.l.b16 %v2907
        %v3143 = vunpack.c.l.b16 %v2955
        %v3144 = vunpack.c.l.b16 %v3003
        %v3145 = vunpack.c.l.b16 %v2813
        %v3146 = vunpack.c.l.b16 %v2862
        %v3147 = vunpack.c.l.b16 %v2910
        %v3148 = vunpack.c.l.b16 %v2958
        %v3149 = vunpack.c.l.b16 %v3006
        %v3150 = vunpack.c.l.b16 %v2814
        %v3151 = vld [vmem:[#allocation9] sm:$0xf]
        %v3152 = vld [vmem:[#allocation9 + $0x4] sm:$0xf]
        %v3153 = vld [vmem:[#allocation9 + $0x8] sm:$0xf]
        %v3154 = vld [vmem:[#allocation9 + $0xc] sm:$0xf]
        %v3155 = vld [vmem:[#allocation9 + $0x10] sm:$0xf]
        %v3156 = vld [vmem:[#allocation9 + $0x14] sm:$0xf]
        %v3157 = vld [vmem:[#allocation9 + $0x18] sm:$0xf]
        %v3158 = vld [vmem:[#allocation9 + $0x1c] sm:$0xf]
        %v3159 = vld [vmem:[#allocation9 + $0x20] sm:$0xf]
        %v3160 = vld [vmem:[#allocation9 + $0x24] sm:$0xf]
        %v3161 = vld [vmem:[#allocation9 + $0x28] sm:$0xf]
        %v3162 = vld [vmem:[#allocation9 + $0x2c] sm:$0xf]
        %v3163 = vld [vmem:[#allocation9 + $0x30] sm:$0xf]
        %v3164 = vld [vmem:[#allocation9 + $0x34] sm:$0xf]
        %v3165 = vld [vmem:[#allocation9 + $0x38] sm:$0xf]
        %v3166 = vld [vmem:[#allocation9 + $0x3c] sm:$0xf]
        %v3167 = vld [vmem:[#allocation9 + $0x40] sm:$0xf]
        %v3168 = vld [vmem:[#allocation9 + $0x44] sm:$0xf]
        %v3169 = vld [vmem:[#allocation9 + $0x48] sm:$0xf]
        %v3170 = vld [vmem:[#allocation9 + $0x4c] sm:$0xf]
        %v3171 = vld [vmem:[#allocation9 + $0x50] sm:$0xf]
        %v3172 = vld [vmem:[#allocation9 + $0x54] sm:$0xf]
        %v3173 = vld [vmem:[#allocation9 + $0x58] sm:$0xf]
        %v3174 = vld [vmem:[#allocation9 + $0x5c] sm:$0xf]
        %v3175 = vld [vmem:[#allocation9 + $0x60] sm:$0xf]
        %v3176 = vld [vmem:[#allocation9 + $0x64] sm:$0xf]
        %v3177 = vld [vmem:[#allocation9 + $0x68] sm:$0xf]
        %v3178 = vld [vmem:[#allocation9 + $0x6c] sm:$0xf]
        %v3179 = vld [vmem:[#allocation9 + $0x70] sm:$0xf]
        %v3180 = vld [vmem:[#allocation9 + $0x74] sm:$0xf]
        %v3181 = vld [vmem:[#allocation9 + $0x78] sm:$0xf]
        %v3182 = vld [vmem:[#allocation9 + $0x7c] sm:$0xf]
        %v3183 = vld [vmem:[#allocation9 + $0x80] sm:$0xf]
        %v3184 = vld [vmem:[#allocation9 + $0x84] sm:$0xf]
        %v3185 = vld [vmem:[#allocation9 + $0x88] sm:$0xf]
        %v3186 = vld [vmem:[#allocation9 + $0x8c] sm:$0xf]
        %v3187 = vld [vmem:[#allocation9 + $0x90] sm:$0xf]
        %v3188 = vld [vmem:[#allocation9 + $0x94] sm:$0xf]
        %v3189 = vld [vmem:[#allocation9 + $0x98] sm:$0xf]
        %v3190 = vld [vmem:[#allocation9 + $0x9c] sm:$0xf]
        %v3191 = vld [vmem:[#allocation9 + $0xa0] sm:$0xf]
        %v3192 = vld [vmem:[#allocation9 + $0xa4] sm:$0xf]
        %v3193 = vld [vmem:[#allocation9 + $0xa8] sm:$0xf]
        %v3194 = vld [vmem:[#allocation9 + $0xac] sm:$0xf]
        %v3195 = vld [vmem:[#allocation9 + $0xb0] sm:$0xf]
        %v3196 = vld [vmem:[#allocation9 + $0xb4] sm:$0xf]
        %v3197 = vld [vmem:[#allocation9 + $0xb8] sm:$0xf]
        %v3198 = vld [vmem:[#allocation9 + $0xbc] sm:$0xf]
        %v3199 = vld [vmem:[#allocation9 + $0xc0] sm:$0xf]
        %v3200 = vld [vmem:[#allocation9 + $0xc4] sm:$0xf]
        %v3201 = vld [vmem:[#allocation9 + $0xc8] sm:$0xf]
        %v3202 = vld [vmem:[#allocation9 + $0xcc] sm:$0xf]
        %v3203 = vld [vmem:[#allocation9 + $0xd0] sm:$0xf]
        %v3204 = vld [vmem:[#allocation9 + $0xd4] sm:$0xf]
        %v3205 = vld [vmem:[#allocation9 + $0xd8] sm:$0xf]
        %v3206 = vld [vmem:[#allocation9 + $0xdc] sm:$0xf]
        %v3207 = vld [vmem:[#allocation9 + $0xe0] sm:$0xf]
        %v3208 = vld [vmem:[#allocation9 + $0xe4] sm:$0xf]
        %v3209 = vld [vmem:[#allocation9 + $0xe8] sm:$0xf]
        %v3210 = vld [vmem:[#allocation9 + $0xec] sm:$0xf]
        %v3211 = vld [vmem:[#allocation9 + $0xf0] sm:$0xf]
        %v3212 = vld [vmem:[#allocation9 + $0xf4] sm:$0xf]
        %v3213 = vld [vmem:[#allocation9 + $0xf8] sm:$0xf]
        %v3214 = vld [vmem:[#allocation9 + $0xfc] sm:$0xf]
        %v3215 = vld [vmem:[#allocation9 + $0x100] sm:$0xf]
        %v3216 = vld [vmem:[#allocation9 + $0x104] sm:$0xf]
        %v3217 = vld [vmem:[#allocation9 + $0x108] sm:$0xf]
        %v3218 = vld [vmem:[#allocation9 + $0x10c] sm:$0xf]
        %v3219 = vld [vmem:[#allocation9 + $0x110] sm:$0xf]
        %v3220 = vld [vmem:[#allocation9 + $0x114] sm:$0xf]
        %v3221 = vld [vmem:[#allocation9 + $0x118] sm:$0xf]
        %v3222 = vld [vmem:[#allocation9 + $0x11c] sm:$0xf]
        %v3223 = vld [vmem:[%s7] sm:$0x1]
        %v3225 = vlaneseq
        %v3226 = vshrl.u32 %v3225, 7
        %v3227 = vsub.s32 0, %v3226
        %v3228 = vrot.slane %v3223, %v3227
        %v3230 = vpack.c.b16 %v3076, %v3071
        %v3231 = vpack.c.b16 %v3077, %v3072
        %v3232 = vpack.c.b16 %v3078, %v3073
        %v3233 = vpack.c.b16 %v3079, %v3074
        %v3234 = vpack.c.b16 %v3080, %v3075
        %v3235 = vpack.c.b16 %v3086, %v3081
        %v3236 = vpack.c.b16 %v3087, %v3082
        %v3237 = vpack.c.b16 %v3088, %v3083
        %v3238 = vpack.c.b16 %v3089, %v3084
        %v3239 = vpack.c.b16 %v3090, %v3085
        %v3240 = vpack.c.b16 %v3096, %v3091
        %v3241 = vpack.c.b16 %v3097, %v3092
        %v3242 = vpack.c.b16 %v3098, %v3093
        %v3243 = vpack.c.b16 %v3099, %v3094
        %v3244 = vpack.c.b16 %v3100, %v3095
        %v3245 = vpack.c.b16 %v3106, %v3101
        %v3246 = vpack.c.b16 %v3107, %v3102
        %v3247 = vpack.c.b16 %v3108, %v3103
        %v3248 = vpack.c.b16 %v3109, %v3104
        %v3249 = vpack.c.b16 %v3110, %v3105
        %v3250 = vpack.c.b16 %v3116, %v3111
        %v3251 = vpack.c.b16 %v3117, %v3112
        %v3252 = vpack.c.b16 %v3118, %v3113
        %v3253 = vpack.c.b16 %v3119, %v3114
        %v3254 = vpack.c.b16 %v3120, %v3115
        %v3255 = vpack.c.b16 %v3126, %v3121
        %v3256 = vpack.c.b16 %v3127, %v3122
        %v3257 = vpack.c.b16 %v3128, %v3123
        %v3258 = vpack.c.b16 %v3129, %v3124
        %v3259 = vpack.c.b16 %v3130, %v3125
        %v3260 = vpack.c.b16 %v3136, %v3131
        %v3261 = vpack.c.b16 %v3137, %v3132
        %v3262 = vpack.c.b16 %v3138, %v3133
        %v3263 = vpack.c.b16 %v3139, %v3134
        %v3264 = vpack.c.b16 %v3140, %v3135
        %v3265 = vpack.c.b16 %v3146, %v3141
        %v3266 = vpack.c.b16 %v3147, %v3142
        %v3267 = vpack.c.b16 %v3148, %v3143
        %v3268 = vpack.c.b16 %v3149, %v3144
        %v3269 = vpack.c.b16 %v3150, %v3145
        %v3374 = vunpack.c.l.b16 %v3151
        %v3375 = vunpack.c.l.b16 %v3152
        %v3376 = vunpack.c.l.b16 %v3153
        %v3377 = vunpack.c.l.b16 %v3154
        %v3378 = vunpack.c.l.b16 %v3155
        %v3379 = vunpack.c.l.b16 %v3156
        %v3380 = vunpack.c.l.b16 %v3157
        %v3381 = vunpack.c.l.b16 %v3158
        %v3382 = vunpack.c.l.b16 %v3159
        %v3383 = vunpack.c.l.b16 %v3160
        %v3384 = vunpack.c.l.b16 %v3161
        %v3385 = vunpack.c.l.b16 %v3162
        %v3386 = vunpack.c.l.b16 %v3163
        %v3387 = vunpack.c.l.b16 %v3164
        %v3388 = vunpack.c.l.b16 %v3165
        %v3389 = vunpack.c.l.b16 %v3166
        %v3390 = vunpack.c.l.b16 %v3167
        %v3391 = vunpack.c.l.b16 %v3168
        %v3392 = vunpack.c.l.b16 %v3169
        %v3393 = vunpack.c.l.b16 %v3170
        %v3394 = vunpack.c.l.b16 %v3171
        %v3395 = vunpack.c.l.b16 %v3172
        %v3396 = vunpack.c.l.b16 %v3173
        %v3397 = vunpack.c.l.b16 %v3174
        %v3398 = vunpack.c.l.b16 %v3175
        %v3399 = vunpack.c.l.b16 %v3176
        %v3400 = vunpack.c.l.b16 %v3177
        %v3401 = vunpack.c.l.b16 %v3178
        %v3402 = vunpack.c.l.b16 %v3179
        %v3403 = vunpack.c.l.b16 %v3180
        %v3404 = vunpack.c.l.b16 %v3181
        %v3405 = vunpack.c.l.b16 %v3182
        %v3406 = vunpack.c.l.b16 %v3183
        %v3407 = vunpack.c.l.b16 %v3184
        %v3408 = vunpack.c.l.b16 %v3185
        %v3409 = vunpack.c.l.b16 %v3186
        %v3410 = vunpack.c.l.b16 %v3187
        %v3411 = vunpack.c.l.b16 %v3188
        %v3412 = vunpack.c.l.b16 %v3189
        %v3413 = vunpack.c.l.b16 %v3190
        %v3414 = vunpack.c.l.b16 %v3191
        %v3415 = vunpack.c.l.b16 %v3192
        %v3416 = vunpack.c.l.b16 %v3193
        %v3417 = vunpack.c.l.b16 %v3194
        %v3418 = vunpack.c.l.b16 %v3195
        %v3419 = vunpack.c.l.b16 %v3196
        %v3420 = vunpack.c.l.b16 %v3197
        %v3421 = vunpack.c.l.b16 %v3198
        %v3422 = vunpack.c.l.b16 %v3199
        %v3423 = vunpack.c.l.b16 %v3200
        %v3424 = vunpack.c.l.b16 %v3201
        %v3425 = vunpack.c.l.b16 %v3202
        %v3426 = vunpack.c.l.b16 %v3203
        %v3427 = vunpack.c.l.b16 %v3204
        %v3428 = vunpack.c.l.b16 %v3205
        %v3429 = vunpack.c.l.b16 %v3206
        %v3430 = vunpack.c.l.b16 %v3207
        %v3431 = vunpack.c.l.b16 %v3208
        %v3432 = vunpack.c.l.b16 %v3209
        %v3433 = vunpack.c.l.b16 %v3210
        %v3434 = vunpack.c.l.b16 %v3211
        %v3435 = vunpack.c.l.b16 %v3212
        %v3436 = vunpack.c.l.b16 %v3213
        %v3437 = vunpack.c.l.b16 %v3214
        %v3438 = vunpack.c.l.b16 %v3215
        %v3439 = vunpack.c.l.b16 %v3216
        %v3440 = vunpack.c.l.b16 %v3217
        %v3441 = vunpack.c.l.b16 %v3218
        %v3442 = vunpack.c.l.b16 %v3219
        %v3443 = vunpack.c.l.b16 %v3220
        %v3444 = vunpack.c.l.b16 %v3221
        %v3445 = vunpack.c.l.b16 %v3222
        %v3446 = vpack.c.b16 %v3375, %v3374
        %v3447 = vpack.c.b16 %v3377, %v3376
        %v3448 = vpack.c.b16 %v3379, %v3378
        %v3449 = vpack.c.b16 %v3381, %v3380
        %v3450 = vpack.c.b16 %v3383, %v3382
        %v3451 = vpack.c.b16 %v3385, %v3384
        %v3452 = vpack.c.b16 %v3387, %v3386
        %v3453 = vpack.c.b16 %v3389, %v3388
        %v3454 = vpack.c.b16 %v3391, %v3390
        %v3455 = vpack.c.b16 %v3393, %v3392
        %v3456 = vpack.c.b16 %v3395, %v3394
        %v3457 = vpack.c.b16 %v3397, %v3396
        %v3458 = vpack.c.b16 %v3399, %v3398
        %v3459 = vpack.c.b16 %v3401, %v3400
        %v3460 = vpack.c.b16 %v3403, %v3402
        %v3461 = vpack.c.b16 %v3405, %v3404
        %v3462 = vpack.c.b16 %v3407, %v3406
        %v3463 = vpack.c.b16 %v3409, %v3408
        %v3464 = vpack.c.b16 %v3411, %v3410
        %v3465 = vpack.c.b16 %v3413, %v3412
        %v3466 = vpack.c.b16 %v3415, %v3414
        %v3467 = vpack.c.b16 %v3417, %v3416
        %v3468 = vpack.c.b16 %v3419, %v3418
        %v3469 = vpack.c.b16 %v3421, %v3420
        %v3470 = vpack.c.b16 %v3423, %v3422
        %v3471 = vpack.c.b16 %v3425, %v3424
        %v3472 = vpack.c.b16 %v3427, %v3426
        %v3473 = vpack.c.b16 %v3429, %v3428
        %v3474 = vpack.c.b16 %v3431, %v3430
        %v3475 = vpack.c.b16 %v3433, %v3432
        %v3476 = vpack.c.b16 %v3435, %v3434
        %v3477 = vpack.c.b16 %v3437, %v3436
        %v3478 = vpack.c.b16 %v3439, %v3438
        %v3479 = vpack.c.b16 %v3441, %v3440
        %v3480 = vpack.c.b16 %v3443, %v3442
        %v3481 = vpack.c.b16 %v3445, %v3444
        %v3519 = vsel %vm671, %v3234, 0
        %v3522 = vsel %vm671, %v3239, 0
        %v3525 = vsel %vm671, %v3244, 0
        %v3528 = vsel %vm671, %v3249, 0
        %v3531 = vsel %vm671, %v3254, 0
        %v3534 = vsel %vm671, %v3259, 0
        %v3537 = vsel %vm671, %v3264, 0
        %v3540 = vsel %vm671, %v3269, 0
        %3542 = vmatprep.subr.bf16.mxu0 0
        %3543 = vmatpush1.bf16.msra.mxu0 %v3453
        %3544 = vmatprep.subr.bf16.mxu0 0
        %3545 = vmatpush1.bf16.msra.mxu0 %v3452
        %3546 = vmatprep.subr.bf16.mxu0 0
        %3547 = vmatpush1.bf16.msra.mxu0 %v3451
        %3548 = vmatprep.subr.bf16.mxu0 0
        %3549 = vmatpush1.bf16.msra.mxu0 %v3450
        %3550 = vmatprep.subr.bf16.mxu0 0
        %3551 = vmatpush1.bf16.msra.mxu0 %v3449
        %3552 = vmatprep.subr.bf16.mxu0 0
        %3553 = vmatpush1.bf16.msra.mxu0 %v3448
        %3554 = vmatprep.subr.bf16.mxu0 0
        %3555 = vmatpush1.bf16.msra.mxu0 %v3447
        %3556 = vmatprep.subr.bf16.mxu0 0
        %3557 = vmatpush1.bf16.msra.mxu0 %v3446
        %3558 = vmatprep.subr.bf16.mxu0 0
        %3559 = vmatpush2.bf16.msra.mxu0 %v3461
        %3560 = vmatprep.subr.bf16.mxu0 0
        %3561 = vmatpush2.bf16.msra.mxu0 %v3460
        %3562 = vmatprep.subr.bf16.mxu0 0
        %3563 = vmatpush2.bf16.msra.mxu0 %v3459
        %3564 = vmatprep.subr.bf16.mxu0 0
        %3565 = vmatpush2.bf16.msra.mxu0 %v3458
        %3566 = vmatprep.subr.bf16.mxu0 0
        %3567 = vmatpush2.bf16.msra.mxu0 %v3457
        %3568 = vmatprep.subr.bf16.mxu0 0
        %3569 = vmatpush2.bf16.msra.mxu0 %v3456
        %3570 = vmatprep.subr.bf16.mxu0 0
        %3571 = vmatpush2.bf16.msra.mxu0 %v3455
        %3572 = vmatprep.subr.bf16.mxu0 0
        %3573 = vmatpush2.bf16.msra.mxu0 %v3454
        %3574 = vmatprep.mubr.bf16.mxu0 %v3231
        %3575 = vmatmul.mubr.bf16.gmra.mxu0 %v3230
        %v3576 = vpop.f32.mrf.mxu0
        %v3577 = vadd.f32 %v3228, %v3576
        %v3578 = vpop.f32.mrf.mxu0
        %v3579 = vpop.f32.mrf.mxu0
        %v3580 = vadd.f32 %v3228, %v3579
        %v3581 = vpop.f32.mrf.mxu0
        %3582 = vmatprep.mubr.bf16.mxu0 %v3236
        %3583 = vmatmul.mubr.bf16.gmra.mxu0 %v3235
        %v3584 = vpop.f32.mrf.mxu0
        %v3585 = vadd.f32 %v3228, %v3584
        %v3586 = vpop.f32.mrf.mxu0
        %v3587 = vpop.f32.mrf.mxu0
        %v3588 = vadd.f32 %v3228, %v3587
        %v3589 = vpop.f32.mrf.mxu0
        %3590 = vmatprep.mubr.bf16.mxu0 %v3241
        %3591 = vmatmul.mubr.bf16.gmra.mxu0 %v3240
        %v3592 = vpop.f32.mrf.mxu0
        %v3593 = vadd.f32 %v3228, %v3592
        %v3594 = vpop.f32.mrf.mxu0
        %v3595 = vpop.f32.mrf.mxu0
        %v3596 = vadd.f32 %v3228, %v3595
        %v3597 = vpop.f32.mrf.mxu0
        %3598 = vmatprep.mubr.bf16.mxu0 %v3246
        %3599 = vmatmul.mubr.bf16.gmra.mxu0 %v3245
        %v3600 = vpop.f32.mrf.mxu0
        %v3601 = vadd.f32 %v3228, %v3600
        %v3602 = vpop.f32.mrf.mxu0
        %v3603 = vpop.f32.mrf.mxu0
        %v3604 = vadd.f32 %v3228, %v3603
        %v3605 = vpop.f32.mrf.mxu0
        %3606 = vmatprep.mubr.bf16.mxu0 %v3251
        %3607 = vmatmul.mubr.bf16.gmra.mxu0 %v3250
        %v3608 = vpop.f32.mrf.mxu0
        %v3609 = vadd.f32 %v3228, %v3608
        %v3610 = vpop.f32.mrf.mxu0
        %v3611 = vpop.f32.mrf.mxu0
        %v3612 = vadd.f32 %v3228, %v3611
        %v3613 = vpop.f32.mrf.mxu0
        %3614 = vmatprep.mubr.bf16.mxu0 %v3256
        %3615 = vmatmul.mubr.bf16.gmra.mxu0 %v3255
        %v3616 = vpop.f32.mrf.mxu0
        %v3617 = vadd.f32 %v3228, %v3616
        %v3618 = vpop.f32.mrf.mxu0
        %v3619 = vpop.f32.mrf.mxu0
        %v3620 = vadd.f32 %v3228, %v3619
        %v3621 = vpop.f32.mrf.mxu0
        %3622 = vmatprep.mubr.bf16.mxu0 %v3261
        %3623 = vmatmul.mubr.bf16.gmra.mxu0 %v3260
        %v3624 = vpop.f32.mrf.mxu0
        %v3625 = vadd.f32 %v3228, %v3624
        %v3626 = vpop.f32.mrf.mxu0
        %v3627 = vpop.f32.mrf.mxu0
        %v3628 = vadd.f32 %v3228, %v3627
        %v3629 = vpop.f32.mrf.mxu0
        %3630 = vmatprep.mubr.bf16.mxu0 %v3266
        %3631 = vmatmul.mubr.bf16.gmra.mxu0 %v3265
        %v3632 = vpop.f32.mrf.mxu0
        %v3633 = vadd.f32 %v3228, %v3632
        %v3634 = vpop.f32.mrf.mxu0
        %v3635 = vpop.f32.mrf.mxu0
        %v3636 = vadd.f32 %v3228, %v3635
        %v3637 = vpop.f32.mrf.mxu0
        %3638 = vdwg.mxu0
        %3639 = vmatprep.subr.bf16.mxu0 0
        %3640 = vmatpush1.bf16.msra.mxu0 %v3469
        %3641 = vmatprep.subr.bf16.mxu0 0
        %3642 = vmatpush1.bf16.msra.mxu0 %v3468
        %3643 = vmatprep.subr.bf16.mxu0 0
        %3644 = vmatpush1.bf16.msra.mxu0 %v3467
        %3645 = vmatprep.subr.bf16.mxu0 0
        %3646 = vmatpush1.bf16.msra.mxu0 %v3466
        %3647 = vmatprep.subr.bf16.mxu0 0
        %3648 = vmatpush1.bf16.msra.mxu0 %v3465
        %3649 = vmatprep.subr.bf16.mxu0 0
        %3650 = vmatpush1.bf16.msra.mxu0 %v3464
        %3651 = vmatprep.subr.bf16.mxu0 0
        %3652 = vmatpush1.bf16.msra.mxu0 %v3463
        %3653 = vmatprep.subr.bf16.mxu0 0
        %3654 = vmatpush1.bf16.msra.mxu0 %v3462
        %3655 = vmatprep.subr.bf16.mxu0 0
        %3656 = vmatpush2.bf16.msra.mxu0 %v3477
        %3657 = vmatprep.subr.bf16.mxu0 0
        %3658 = vmatpush2.bf16.msra.mxu0 %v3476
        %3659 = vmatprep.subr.bf16.mxu0 0
        %3660 = vmatpush2.bf16.msra.mxu0 %v3475
        %3661 = vmatprep.subr.bf16.mxu0 0
        %3662 = vmatpush2.bf16.msra.mxu0 %v3474
        %3663 = vmatprep.subr.bf16.mxu0 0
        %3664 = vmatpush2.bf16.msra.mxu0 %v3473
        %3665 = vmatprep.subr.bf16.mxu0 0
        %3666 = vmatpush2.bf16.msra.mxu0 %v3472
        %3667 = vmatprep.subr.bf16.mxu0 0
        %3668 = vmatpush2.bf16.msra.mxu0 %v3471
        %3669 = vmatprep.subr.bf16.mxu0 0
        %3670 = vmatpush2.bf16.msra.mxu0 %v3470
        %3671 = vmatprep.mubr.bf16.mxu0 %v3233
        %3672 = vmatmul.mubr.bf16.gmra.mxu0 %v3232
        %v3673 = vpop.f32.mrf.mxu0
        %v3674 = vadd.f32 %v3577, %v3673
        %v3675 = vpop.f32.mrf.mxu0
        %v3676 = vpop.f32.mrf.mxu0
        %v3677 = vadd.f32 %v3580, %v3676
        %v3678 = vpop.f32.mrf.mxu0
        %3679 = vmatprep.mubr.bf16.mxu0 %v3238
        %3680 = vmatmul.mubr.bf16.gmra.mxu0 %v3237
        %v3681 = vpop.f32.mrf.mxu0
        %v3682 = vadd.f32 %v3585, %v3681
        %v3683 = vpop.f32.mrf.mxu0
        %v3684 = vpop.f32.mrf.mxu0
        %v3685 = vadd.f32 %v3588, %v3684
        %v3686 = vpop.f32.mrf.mxu0
        %3687 = vmatprep.mubr.bf16.mxu0 %v3243
        %3688 = vmatmul.mubr.bf16.gmra.mxu0 %v3242
        %v3689 = vpop.f32.mrf.mxu0
        %v3690 = vadd.f32 %v3593, %v3689
        %v3691 = vpop.f32.mrf.mxu0
        %v3692 = vpop.f32.mrf.mxu0
        %v3693 = vadd.f32 %v3596, %v3692
        %v3694 = vpop.f32.mrf.mxu0
        %3695 = vmatprep.mubr.bf16.mxu0 %v3248
        %3696 = vmatmul.mubr.bf16.gmra.mxu0 %v3247
        %v3697 = vpop.f32.mrf.mxu0
        %v3698 = vadd.f32 %v3601, %v3697
        %v3699 = vpop.f32.mrf.mxu0
        %v3700 = vpop.f32.mrf.mxu0
        %v3701 = vadd.f32 %v3604, %v3700
        %v3702 = vpop.f32.mrf.mxu0
        %3703 = vmatprep.mubr.bf16.mxu0 %v3253
        %3704 = vmatmul.mubr.bf16.gmra.mxu0 %v3252
        %v3705 = vpop.f32.mrf.mxu0
        %v3706 = vadd.f32 %v3609, %v3705
        %v3707 = vpop.f32.mrf.mxu0
        %v3708 = vpop.f32.mrf.mxu0
        %v3709 = vadd.f32 %v3612, %v3708
        %v3710 = vpop.f32.mrf.mxu0
        %3711 = vmatprep.mubr.bf16.mxu0 %v3258
        %3712 = vmatmul.mubr.bf16.gmra.mxu0 %v3257
        %v3713 = vpop.f32.mrf.mxu0
        %v3714 = vadd.f32 %v3617, %v3713
        %v3715 = vpop.f32.mrf.mxu0
        %v3716 = vpop.f32.mrf.mxu0
        %v3717 = vadd.f32 %v3620, %v3716
        %v3718 = vpop.f32.mrf.mxu0
        %3719 = vmatprep.mubr.bf16.mxu0 %v3263
        %3720 = vmatmul.mubr.bf16.gmra.mxu0 %v3262
        %v3721 = vpop.f32.mrf.mxu0
        %v3722 = vadd.f32 %v3625, %v3721
        %v3723 = vpop.f32.mrf.mxu0
        %v3724 = vpop.f32.mrf.mxu0
        %v3725 = vadd.f32 %v3628, %v3724
        %v3726 = vpop.f32.mrf.mxu0
        %3727 = vmatprep.mubr.bf16.mxu0 %v3268
        %3728 = vmatmul.mubr.bf16.gmra.mxu0 %v3267
        %v3729 = vpop.f32.mrf.mxu0
        %v3730 = vadd.f32 %v3633, %v3729
        %v3731 = vpop.f32.mrf.mxu0
        %v3732 = vpop.f32.mrf.mxu0
        %v3733 = vadd.f32 %v3636, %v3732
        %v3734 = vpop.f32.mrf.mxu0
        %3735 = vdwg.mxu0
        %3736 = vmatprep.subr.bf16.mxu0 0
        %3737 = vmatpush1.bf16.msra.mxu0 0
        %3738 = vmatprep.subr.bf16.mxu0 0
        %3739 = vmatpush1.bf16.msra.mxu0 0
        %3740 = vmatprep.subr.bf16.mxu0 0
        %3741 = vmatpush1.bf16.msra.mxu0 0
        %3742 = vmatprep.subr.bf16.mxu0 0
        %3743 = vmatpush1.bf16.msra.mxu0 0
        %3744 = vmatprep.subr.bf16.mxu0 0
        %3745 = vmatpush1.bf16.msra.mxu0 %v3481
        %3746 = vmatprep.subr.bf16.mxu0 0
        %3747 = vmatpush1.bf16.msra.mxu0 %v3480
        %3748 = vmatprep.subr.bf16.mxu0 0
        %3749 = vmatpush1.bf16.msra.mxu0 %v3479
        %3750 = vmatprep.subr.bf16.mxu0 0
        %3751 = vmatpush1.bf16.msra.mxu0 %v3478
        %3752 = vmatprep.subr.bf16.mxu0 0
        %3753 = vmatpush2.bf16.msra.mxu0 0
        %3754 = vmatprep.subr.bf16.mxu0 0
        %3755 = vmatpush2.bf16.msra.mxu0 0
        %3756 = vmatprep.subr.bf16.mxu0 0
        %3757 = vmatpush2.bf16.msra.mxu0 0
        %3758 = vmatprep.subr.bf16.mxu0 0
        %3759 = vmatpush2.bf16.msra.mxu0 0
        %3760 = vmatprep.subr.bf16.mxu0 0
        %3761 = vmatpush2.bf16.msra.mxu0 0
        %3762 = vmatprep.subr.bf16.mxu0 0
        %3763 = vmatpush2.bf16.msra.mxu0 0
        %3764 = vmatprep.subr.bf16.mxu0 0
        %3765 = vmatpush2.bf16.msra.mxu0 0
        %3766 = vmatprep.subr.bf16.mxu0 0
        %3767 = vmatpush2.bf16.msra.mxu0 0
        %3768 = vmatprep.mubr.bf16.mxu0 0
        %3769 = vmatmul.mubr.bf16.gmra.mxu0 %v3519
        %v3770 = vpop.f32.mrf.mxu0
        %v3771 = vadd.f32 %v3674, %v3770
        %v3772 = vpop.f32.mrf.mxu0
        %v3773 = vpop.f32.mrf.mxu0
        %v3774 = vadd.f32 %v3677, %v3773
        %v3775 = vpop.f32.mrf.mxu0
        %3776 = vmatprep.mubr.bf16.mxu0 0
        %3777 = vmatmul.mubr.bf16.gmra.mxu0 %v3522
        %v3778 = vpop.f32.mrf.mxu0
        %v3779 = vadd.f32 %v3682, %v3778
        %v3780 = vpop.f32.mrf.mxu0
        %v3781 = vpop.f32.mrf.mxu0
        %v3782 = vadd.f32 %v3685, %v3781
        %v3783 = vpop.f32.mrf.mxu0
        %3784 = vmatprep.mubr.bf16.mxu0 0
        %3785 = vmatmul.mubr.bf16.gmra.mxu0 %v3525
        %v3786 = vpop.f32.mrf.mxu0
        %v3787 = vadd.f32 %v3690, %v3786
        %v3788 = vpop.f32.mrf.mxu0
        %v3789 = vpop.f32.mrf.mxu0
        %v3790 = vadd.f32 %v3693, %v3789
        %v3791 = vpop.f32.mrf.mxu0
        %3792 = vmatprep.mubr.bf16.mxu0 0
        %3793 = vmatmul.mubr.bf16.gmra.mxu0 %v3528
        %v3794 = vpop.f32.mrf.mxu0
        %v3795 = vadd.f32 %v3698, %v3794
        %v3796 = vpop.f32.mrf.mxu0
        %v3797 = vpop.f32.mrf.mxu0
        %v3798 = vadd.f32 %v3701, %v3797
        %v3799 = vpop.f32.mrf.mxu0
        %3800 = vmatprep.mubr.bf16.mxu0 0
        %3801 = vmatmul.mubr.bf16.gmra.mxu0 %v3531
        %v3802 = vpop.f32.mrf.mxu0
        %v3803 = vadd.f32 %v3706, %v3802
        %v3804 = vpop.f32.mrf.mxu0
        %v3805 = vpop.f32.mrf.mxu0
        %v3806 = vadd.f32 %v3709, %v3805
        %v3807 = vpop.f32.mrf.mxu0
        %3808 = vmatprep.mubr.bf16.mxu0 0
        %3809 = vmatmul.mubr.bf16.gmra.mxu0 %v3534
        %v3810 = vpop.f32.mrf.mxu0
        %v3811 = vadd.f32 %v3714, %v3810
        %v3812 = vpop.f32.mrf.mxu0
        %v3813 = vpop.f32.mrf.mxu0
        %v3814 = vadd.f32 %v3717, %v3813
        %v3815 = vpop.f32.mrf.mxu0
        %3816 = vmatprep.mubr.bf16.mxu0 0
        %3817 = vmatmul.mubr.bf16.gmra.mxu0 %v3537
        %v3818 = vpop.f32.mrf.mxu0
        %v3819 = vadd.f32 %v3722, %v3818
        %v3820 = vpop.f32.mrf.mxu0
        %v3821 = vpop.f32.mrf.mxu0
        %v3822 = vadd.f32 %v3725, %v3821
        %v3823 = vpop.f32.mrf.mxu0
        %3824 = vmatprep.mubr.bf16.mxu0 0
        %3825 = vmatmul.mubr.bf16.gmra.mxu0 %v3540
        %v3826 = vpop.f32.mrf.mxu0
        %v3827 = vadd.f32 %v3730, %v3826
        %v3828 = vpop.f32.mrf.mxu0
        %v3829 = vpop.f32.mrf.mxu0
        %v3830 = vadd.f32 %v3733, %v3829
        %v3831 = vpop.f32.mrf.mxu0
        %3832 = vdwg.mxu0
        %v3833 = vld [vmem:[%s556] sm:$0x1]
        %v3834 = vld [vmem:[%s556 + $0x1] sm:$0x1]
        %v3837 = vlaneseq
        %v3838 = vshrl.u32 %v3837, 7
        %v3839 = vsub.s32 0, %v3838
        %v3840 = vrot.slane %v3833, %v3839
        %v3841 = vlaneseq
        %v3842 = vshrl.u32 %v3841, 7
        %v3843 = vsub.s32 0, %v3842
        %v3844 = vrot.slane %v3834, %v3843
        %v3847 = vadd.f32 %v3771, %v3840
        %v3848 = vadd.f32 %v3774, %v3840
        %v3849 = vadd.f32 %v3779, %v3840
        %v3850 = vadd.f32 %v3782, %v3840
        %v3851 = vadd.f32 %v3787, %v3840
        %v3852 = vadd.f32 %v3790, %v3840
        %v3853 = vadd.f32 %v3795, %v3840
        %v3854 = vadd.f32 %v3798, %v3840
        %v3855 = vadd.f32 %v3803, %v3844
        %v3856 = vadd.f32 %v3806, %v3844
        %v3857 = vadd.f32 %v3811, %v3844
        %v3858 = vadd.f32 %v3814, %v3844
        %v3859 = vadd.f32 %v3819, %v3844
        %v3860 = vadd.f32 %v3822, %v3844
        %v3861 = vadd.f32 %v3827, %v3844
        %v3862 = vadd.f32 %v3830, %v3844
        %v3863 = vld [vmem:[%s8] sm:$0x1]
        %v3864 = vld [vmem:[%s9] sm:$0x1]
        %v3865 = vld [vmem:[%s10] sm:$0xff]
        %v3866 = vld [vmem:[%s10 + $0x8] sm:$0xff]
        %v3867 = vld [vmem:[%s10 + $0x10] sm:$0xff]
        %v3868 = vld [vmem:[%s10 + $0x18] sm:$0xff]
        %v3869 = vld [vmem:[%s10 + $0x20] sm:$0xff]
        %v3870 = vld [vmem:[%s10 + $0x28] sm:$0xff]
        %v3871 = vld [vmem:[%s10 + $0x30] sm:$0xff]
        %v3872 = vld [vmem:[%s10 + $0x38] sm:$0xff]
        %v3873 = vld [vmem:[%s10 + $0x40] sm:$0xff]
        %v3874 = vld [vmem:[%s10 + $0x48] sm:$0xff]
        %v3875 = vld [vmem:[%s10 + $0x50] sm:$0xff]
        %v3876 = vld [vmem:[%s10 + $0x58] sm:$0xff]
        %v3877 = vld [vmem:[%s10 + $0x60] sm:$0xff]
        %v3878 = vld [vmem:[%s10 + $0x68] sm:$0xff]
        %v3879 = vld [vmem:[%s10 + $0x70] sm:$0xff]
        %v3880 = vld [vmem:[%s10 + $0x78] sm:$0xff]
        %v3881 = vld [vmem:[#allocation10] sm:$0xff]
        %v3882 = vld [vmem:[#allocation10 + $0x8] sm:$0xff]
        %v3883 = vld [vmem:[#allocation10 + $0x10] sm:$0xff]
        %v3884 = vld [vmem:[#allocation10 + $0x18] sm:$0xff]
        %v3885 = vadd.f32 %v3847, %v3848
        %v3886 = vadd.f32 %v3885, %v3849
        %v3887 = vadd.f32 %v3886, %v3850
        %v3888 = vadd.f32 %v3887, %v3851
        %v3889 = vadd.f32 %v3888, %v3852
        %v3890 = vadd.f32 %v3889, %v3853
        %v3891 = vadd.f32 %v3890, %v3854
        %v3892 = vrot.slane %v3891, 4
        %v3893 = vadd.f32 %v3891, %v3892
        %v3894 = vrot.slane %v3893, 2
        %v3895 = vadd.f32 %v3893, %v3894
        %v3896 = vrot.slane %v3895, 1
        %v3897 = vadd.f32 %v3895, %v3896
        %v3898 = vadd.f32 %v3855, %v3856
        %v3899 = vadd.f32 %v3898, %v3857
        %v3900 = vadd.f32 %v3899, %v3858
        %v3901 = vadd.f32 %v3900, %v3859
        %v3902 = vadd.f32 %v3901, %v3860
        %v3903 = vadd.f32 %v3902, %v3861
        %v3904 = vadd.f32 %v3903, %v3862
        %v3905 = vrot.slane %v3904, 4
        %v3906 = vadd.f32 %v3904, %v3905
        %v3907 = vrot.slane %v3906, 2
        %v3908 = vadd.f32 %v3906, %v3907
        %v3909 = vrot.slane %v3908, 1
        %v3910 = vadd.f32 %v3908, %v3909
        %v3911 = vmul.f32 %v3847, %v3847
        %v3912 = vmul.f32 %v3848, %v3848
        %v3913 = vmul.f32 %v3849, %v3849
        %v3914 = vmul.f32 %v3850, %v3850
        %v3915 = vmul.f32 %v3851, %v3851
        %v3916 = vmul.f32 %v3852, %v3852
        %v3917 = vmul.f32 %v3853, %v3853
        %v3918 = vmul.f32 %v3854, %v3854
        %v3919 = vmul.f32 %v3855, %v3855
        %v3920 = vmul.f32 %v3856, %v3856
        %v3921 = vmul.f32 %v3857, %v3857
        %v3922 = vmul.f32 %v3858, %v3858
        %v3923 = vmul.f32 %v3859, %v3859
        %v3924 = vmul.f32 %v3860, %v3860
        %v3925 = vmul.f32 %v3861, %v3861
        %v3926 = vmul.f32 %v3862, %v3862
        %v3927 = vadd.f32 %v3911, %v3912
        %v3928 = vadd.f32 %v3927, %v3913
        %v3929 = vadd.f32 %v3928, %v3914
        %v3930 = vadd.f32 %v3929, %v3915
        %v3931 = vadd.f32 %v3930, %v3916
        %v3932 = vadd.f32 %v3931, %v3917
        %v3933 = vadd.f32 %v3932, %v3918
        %v3934 = vrot.slane %v3933, 4
        %v3935 = vadd.f32 %v3933, %v3934
        %v3936 = vrot.slane %v3935, 2
        %v3937 = vadd.f32 %v3935, %v3936
        %v3938 = vrot.slane %v3937, 1
        %v3939 = vadd.f32 %v3937, %v3938
        %v3940 = vadd.f32 %v3919, %v3920
        %v3941 = vadd.f32 %v3940, %v3921
        %v3942 = vadd.f32 %v3941, %v3922
        %v3943 = vadd.f32 %v3942, %v3923
        %v3944 = vadd.f32 %v3943, %v3924
        %v3945 = vadd.f32 %v3944, %v3925
        %v3946 = vadd.f32 %v3945, %v3926
        %v3947 = vrot.slane %v3946, 4
        %v3948 = vadd.f32 %v3946, %v3947
        %v3949 = vrot.slane %v3948, 2
        %v3950 = vadd.f32 %v3948, %v3949
        %v3951 = vrot.slane %v3950, 1
        %v3952 = vadd.f32 %v3950, %v3951
        %v3955 = vsel %vm774, %v3910, %v3897
        %3957 = vmatprep.subr.mxu0 0.0
        %3958 = vmatpush1.msra.mxu0 %v3880
        %3959 = vmatprep.subr.mxu0 0.0
        %3960 = vmatpush1.msra.mxu0 %v3879
        %3961 = vmatprep.subr.mxu0 0.0
        %3962 = vmatpush1.msra.mxu0 %v3878
        %3963 = vmatprep.subr.mxu0 0.0
        %3964 = vmatpush1.msra.mxu0 %v3877
        %3965 = vmatprep.subr.mxu0 0.0
        %3966 = vmatpush1.msra.mxu0 %v3876
        %3967 = vmatprep.subr.mxu0 0.0
        %3968 = vmatpush1.msra.mxu0 %v3875
        %3969 = vmatprep.subr.mxu0 0.0
        %3970 = vmatpush1.msra.mxu0 %v3874
        %3971 = vmatprep.subr.mxu0 0.0
        %3972 = vmatpush1.msra.mxu0 %v3873
        %3973 = vmatprep.subr.mxu0 0.0
        %3974 = vmatpush1.msra.mxu0 %v3872
        %3975 = vmatprep.subr.mxu0 0.0
        %3976 = vmatpush1.msra.mxu0 %v3871
        %3977 = vmatprep.subr.mxu0 0.0
        %3978 = vmatpush1.msra.mxu0 %v3870
        %3979 = vmatprep.subr.mxu0 0.0
        %3980 = vmatpush1.msra.mxu0 %v3869
        %3981 = vmatprep.subr.mxu0 0.0
        %3982 = vmatpush1.msra.mxu0 %v3868
        %3983 = vmatprep.subr.mxu0 0.0
        %3984 = vmatpush1.msra.mxu0 %v3867
        %3985 = vmatprep.subr.mxu0 0.0
        %3986 = vmatpush1.msra.mxu0 %v3866
        %3987 = vmatprep.subr.mxu0 0.0
        %3988 = vmatpush1.msra.mxu0 %v3865
        %3989 = vmatprep.subr.mxu0 0.0
        %3990 = vmatpush2.msra.mxu0 0.0
        %3991 = vmatprep.subr.mxu0 0.0
        %3992 = vmatpush2.msra.mxu0 0.0
        %3993 = vmatprep.subr.mxu0 0.0
        %3994 = vmatpush2.msra.mxu0 0.0
        %3995 = vmatprep.subr.mxu0 0.0
        %3996 = vmatpush2.msra.mxu0 0.0
        %3997 = vmatprep.subr.mxu0 0.0
        %3998 = vmatpush2.msra.mxu0 0.0
        %3999 = vmatprep.subr.mxu0 0.0
        %4000 = vmatpush2.msra.mxu0 0.0
        %4001 = vmatprep.subr.mxu0 0.0
        %4002 = vmatpush2.msra.mxu0 0.0
        %4003 = vmatprep.subr.mxu0 0.0
        %4004 = vmatpush2.msra.mxu0 0.0
        %4005 = vmatprep.subr.mxu0 0.0
        %4006 = vmatpush2.msra.mxu0 0.0
        %4007 = vmatprep.subr.mxu0 0.0
        %4008 = vmatpush2.msra.mxu0 0.0
        %4009 = vmatprep.subr.mxu0 0.0
        %4010 = vmatpush2.msra.mxu0 0.0
        %4011 = vmatprep.subr.mxu0 0.0
        %4012 = vmatpush2.msra.mxu0 0.0
        %4013 = vmatprep.subr.mxu0 0.0
        %4014 = vmatpush2.msra.mxu0 0.0
        %4015 = vmatprep.subr.mxu0 0.0
        %4016 = vmatpush2.msra.mxu0 0.0
        %4017 = vmatprep.subr.mxu0 0.0
        %4018 = vmatpush2.msra.mxu0 0.0
        %4019 = vmatprep.subr.mxu0 0.0
        %4020 = vmatpush2.msra.mxu0 0.0
        %4021 = vmatprep.mubr.f32.mxu0 0.0
        %4022 = vmatmul.mubr.f32.gmra.mxu0 %v3955
        %v4023 = vpop.f32.mrf.mxu0
        %v4024 = vadd.f32 0.0, %v4023
        %v4025 = vpop.f32.mrf.mxu0
        %4026 = vdwg.mxu0
        %v4029 = vsel %vm774, %v3952, %v3939
        %4031 = vmatprep.subr.mxu0 0.0
        %4032 = vmatpush1.msra.mxu0 %v3880
        %4033 = vmatprep.subr.mxu0 0.0
        %4034 = vmatpush1.msra.mxu0 %v3879
        %4035 = vmatprep.subr.mxu0 0.0
        %4036 = vmatpush1.msra.mxu0 %v3878
        %4037 = vmatprep.subr.mxu0 0.0
        %4038 = vmatpush1.msra.mxu0 %v3877
        %4039 = vmatprep.subr.mxu0 0.0
        %4040 = vmatpush1.msra.mxu0 %v3876
        %4041 = vmatprep.subr.mxu0 0.0
        %4042 = vmatpush1.msra.mxu0 %v3875
        %4043 = vmatprep.subr.mxu0 0.0
        %4044 = vmatpush1.msra.mxu0 %v3874
        %4045 = vmatprep.subr.mxu0 0.0
        %4046 = vmatpush1.msra.mxu0 %v3873
        %4047 = vmatprep.subr.mxu0 0.0
        %4048 = vmatpush1.msra.mxu0 %v3872
        %4049 = vmatprep.subr.mxu0 0.0
        %4050 = vmatpush1.msra.mxu0 %v3871
        %4051 = vmatprep.subr.mxu0 0.0
        %4052 = vmatpush1.msra.mxu0 %v3870
        %4053 = vmatprep.subr.mxu0 0.0
        %4054 = vmatpush1.msra.mxu0 %v3869
        %4055 = vmatprep.subr.mxu0 0.0
        %4056 = vmatpush1.msra.mxu0 %v3868
        %4057 = vmatprep.subr.mxu0 0.0
        %4058 = vmatpush1.msra.mxu0 %v3867
        %4059 = vmatprep.subr.mxu0 0.0
        %4060 = vmatpush1.msra.mxu0 %v3866
        %4061 = vmatprep.subr.mxu0 0.0
        %4062 = vmatpush1.msra.mxu0 %v3865
        %4063 = vmatprep.subr.mxu0 0.0
        %4064 = vmatpush2.msra.mxu0 0.0
        %4065 = vmatprep.subr.mxu0 0.0
        %4066 = vmatpush2.msra.mxu0 0.0
        %4067 = vmatprep.subr.mxu0 0.0
        %4068 = vmatpush2.msra.mxu0 0.0
        %4069 = vmatprep.subr.mxu0 0.0
        %4070 = vmatpush2.msra.mxu0 0.0
        %4071 = vmatprep.subr.mxu0 0.0
        %4072 = vmatpush2.msra.mxu0 0.0
        %4073 = vmatprep.subr.mxu0 0.0
        %4074 = vmatpush2.msra.mxu0 0.0
        %4075 = vmatprep.subr.mxu0 0.0
        %4076 = vmatpush2.msra.mxu0 0.0
        %4077 = vmatprep.subr.mxu0 0.0
        %4078 = vmatpush2.msra.mxu0 0.0
        %4079 = vmatprep.subr.mxu0 0.0
        %4080 = vmatpush2.msra.mxu0 0.0
        %4081 = vmatprep.subr.mxu0 0.0
        %4082 = vmatpush2.msra.mxu0 0.0
        %4083 = vmatprep.subr.mxu0 0.0
        %4084 = vmatpush2.msra.mxu0 0.0
        %4085 = vmatprep.subr.mxu0 0.0
        %4086 = vmatpush2.msra.mxu0 0.0
        %4087 = vmatprep.subr.mxu0 0.0
        %4088 = vmatpush2.msra.mxu0 0.0
        %4089 = vmatprep.subr.mxu0 0.0
        %4090 = vmatpush2.msra.mxu0 0.0
        %4091 = vmatprep.subr.mxu0 0.0
        %4092 = vmatpush2.msra.mxu0 0.0
        %4093 = vmatprep.subr.mxu0 0.0
        %4094 = vmatpush2.msra.mxu0 0.0
        %4095 = vmatprep.mubr.f32.mxu0 0.0
        %4096 = vmatmul.mubr.f32.gmra.mxu0 %v4029
        %v4097 = vpop.f32.mrf.mxu0
        %v4098 = vadd.f32 0.0, %v4097
        %v4099 = vpop.f32.mrf.mxu0
        %4100 = vdwg.mxu0
        %v4101 = vrcp.pop 256.0
        %v4102 = vmul.f32 %v4024, %v4101
        %v4103 = vmul.f32 %v4098, %v4101
        %v4104 = vmul.f32 %v4102, %v4102
        %v4105 = vsub.f32 %v4103, %v4104
        %v4106 = vadd.f32 %v4105, 1e-05
        %v4107 = vrsqrt.pop %v4106
        %v4109 = vsel %vm930, %v4102, 0
        %4111 = vmatprep.subr.mxu0 0.0
        %4112 = vmatpush1.msra.mxu0 0.0
        %4113 = vmatprep.subr.mxu0 0.0
        %4114 = vmatpush1.msra.mxu0 0.0
        %4115 = vmatprep.subr.mxu0 0.0
        %4116 = vmatpush1.msra.mxu0 0.0
        %4117 = vmatprep.subr.mxu0 0.0
        %4118 = vmatpush1.msra.mxu0 0.0
        %4119 = vmatprep.subr.mxu0 0.0
        %4120 = vmatpush1.msra.mxu0 0.0
        %4121 = vmatprep.subr.mxu0 0.0
        %4122 = vmatpush1.msra.mxu0 0.0
        %4123 = vmatprep.subr.mxu0 0.0
        %4124 = vmatpush1.msra.mxu0 0.0
        %4125 = vmatprep.subr.mxu0 0.0
        %4126 = vmatpush1.msra.mxu0 0.0
        %4127 = vmatprep.subr.mxu0 0.0
        %4128 = vmatpush1.msra.mxu0 0.0
        %4129 = vmatprep.subr.mxu0 0.0
        %4130 = vmatpush1.msra.mxu0 0.0
        %4131 = vmatprep.subr.mxu0 0.0
        %4132 = vmatpush1.msra.mxu0 0.0
        %4133 = vmatprep.subr.mxu0 0.0
        %4134 = vmatpush1.msra.mxu0 0.0
        %4135 = vmatprep.subr.mxu0 0.0
        %4136 = vmatpush1.msra.mxu0 %v3884
        %4137 = vmatprep.subr.mxu0 0.0
        %4138 = vmatpush1.msra.mxu0 %v3883
        %4139 = vmatprep.subr.mxu0 0.0
        %4140 = vmatpush1.msra.mxu0 %v3882
        %4141 = vmatprep.subr.mxu0 0.0
        %4142 = vmatpush1.msra.mxu0 %v3881
        %4143 = vmatprep.subr.mxu0 0.0
        %4144 = vmatpush2.msra.mxu0 0.0
        %4145 = vmatprep.subr.mxu0 0.0
        %4146 = vmatpush2.msra.mxu0 0.0
        %4147 = vmatprep.subr.mxu0 0.0
        %4148 = vmatpush2.msra.mxu0 0.0
        %4149 = vmatprep.subr.mxu0 0.0
        %4150 = vmatpush2.msra.mxu0 0.0
        %4151 = vmatprep.subr.mxu0 0.0
        %4152 = vmatpush2.msra.mxu0 0.0
        %4153 = vmatprep.subr.mxu0 0.0
        %4154 = vmatpush2.msra.mxu0 0.0
        %4155 = vmatprep.subr.mxu0 0.0
        %4156 = vmatpush2.msra.mxu0 0.0
        %4157 = vmatprep.subr.mxu0 0.0
        %4158 = vmatpush2.msra.mxu0 0.0
        %4159 = vmatprep.subr.mxu0 0.0
        %4160 = vmatpush2.msra.mxu0 0.0
        %4161 = vmatprep.subr.mxu0 0.0
        %4162 = vmatpush2.msra.mxu0 0.0
        %4163 = vmatprep.subr.mxu0 0.0
        %4164 = vmatpush2.msra.mxu0 0.0
        %4165 = vmatprep.subr.mxu0 0.0
        %4166 = vmatpush2.msra.mxu0 0.0
        %4167 = vmatprep.subr.mxu0 0.0
        %4168 = vmatpush2.msra.mxu0 0.0
        %4169 = vmatprep.subr.mxu0 0.0
        %4170 = vmatpush2.msra.mxu0 0.0
        %4171 = vmatprep.subr.mxu0 0.0
        %4172 = vmatpush2.msra.mxu0 0.0
        %4173 = vmatprep.subr.mxu0 0.0
        %4174 = vmatpush2.msra.mxu0 0.0
        %4175 = vmatprep.mubr.f32.mxu0 0.0
        %4176 = vmatmul.mubr.f32.gmra.mxu0 %v4109
        %v4177 = vpop.f32.mrf.mxu0
        %v4178 = vadd.f32 0.0, %v4177
        %v4179 = vpop.f32.mrf.mxu0
        %4180 = vdwg.mxu0
        %v4182 = vsel %vm930, %v4107, 0
        %4184 = vmatprep.subr.mxu0 0.0
        %4185 = vmatpush1.msra.mxu0 0.0
        %4186 = vmatprep.subr.mxu0 0.0
        %4187 = vmatpush1.msra.mxu0 0.0
        %4188 = vmatprep.subr.mxu0 0.0
        %4189 = vmatpush1.msra.mxu0 0.0
        %4190 = vmatprep.subr.mxu0 0.0
        %4191 = vmatpush1.msra.mxu0 0.0
        %4192 = vmatprep.subr.mxu0 0.0
        %4193 = vmatpush1.msra.mxu0 0.0
        %4194 = vmatprep.subr.mxu0 0.0
        %4195 = vmatpush1.msra.mxu0 0.0
        %4196 = vmatprep.subr.mxu0 0.0
        %4197 = vmatpush1.msra.mxu0 0.0
        %4198 = vmatprep.subr.mxu0 0.0
        %4199 = vmatpush1.msra.mxu0 0.0
        %4200 = vmatprep.subr.mxu0 0.0
        %4201 = vmatpush1.msra.mxu0 0.0
        %4202 = vmatprep.subr.mxu0 0.0
        %4203 = vmatpush1.msra.mxu0 0.0
        %4204 = vmatprep.subr.mxu0 0.0
        %4205 = vmatpush1.msra.mxu0 0.0
        %4206 = vmatprep.subr.mxu0 0.0
        %4207 = vmatpush1.msra.mxu0 0.0
        %4208 = vmatprep.subr.mxu0 0.0
        %4209 = vmatpush1.msra.mxu0 %v3884
        %4210 = vmatprep.subr.mxu0 0.0
        %4211 = vmatpush1.msra.mxu0 %v3883
        %4212 = vmatprep.subr.mxu0 0.0
        %4213 = vmatpush1.msra.mxu0 %v3882
        %4214 = vmatprep.subr.mxu0 0.0
        %4215 = vmatpush1.msra.mxu0 %v3881
        %4216 = vmatprep.subr.mxu0 0.0
        %4217 = vmatpush2.msra.mxu0 0.0
        %4218 = vmatprep.subr.mxu0 0.0
        %4219 = vmatpush2.msra.mxu0 0.0
        %4220 = vmatprep.subr.mxu0 0.0
        %4221 = vmatpush2.msra.mxu0 0.0
        %4222 = vmatprep.subr.mxu0 0.0
        %4223 = vmatpush2.msra.mxu0 0.0
        %4224 = vmatprep.subr.mxu0 0.0
        %4225 = vmatpush2.msra.mxu0 0.0
        %4226 = vmatprep.subr.mxu0 0.0
        %4227 = vmatpush2.msra.mxu0 0.0
        %4228 = vmatprep.subr.mxu0 0.0
        %4229 = vmatpush2.msra.mxu0 0.0
        %4230 = vmatprep.subr.mxu0 0.0
        %4231 = vmatpush2.msra.mxu0 0.0
        %4232 = vmatprep.subr.mxu0 0.0
        %4233 = vmatpush2.msra.mxu0 0.0
        %4234 = vmatprep.subr.mxu0 0.0
        %4235 = vmatpush2.msra.mxu0 0.0
        %4236 = vmatprep.subr.mxu0 0.0
        %4237 = vmatpush2.msra.mxu0 0.0
        %4238 = vmatprep.subr.mxu0 0.0
        %4239 = vmatpush2.msra.mxu0 0.0
        %4240 = vmatprep.subr.mxu0 0.0
        %4241 = vmatpush2.msra.mxu0 0.0
        %4242 = vmatprep.subr.mxu0 0.0
        %4243 = vmatpush2.msra.mxu0 0.0
        %4244 = vmatprep.subr.mxu0 0.0
        %4245 = vmatpush2.msra.mxu0 0.0
        %4246 = vmatprep.subr.mxu0 0.0
        %4247 = vmatpush2.msra.mxu0 0.0
        %4248 = vmatprep.mubr.f32.mxu0 0.0
        %4249 = vmatmul.mubr.f32.gmra.mxu0 %v4182
        %v4250 = vpop.f32.mrf.mxu0
        %v4251 = vadd.f32 0.0, %v4250
        %v4252 = vpop.f32.mrf.mxu0
        %4253 = vdwg.mxu0
        %v4256 = vunpack.c.l.s4 1966171168
        %v4257 = vunpack.c.0.s8 %v4256
        %v4258 = vlaneseq
        %v4259 = vshrl.u32 %v4258, 7
        %v4260 = vsub.s32 %v4257, %v4259
        %v4261 = vrot.slane %v4178, %v4260
        %v4262 = vcombine.high %v4261, %v4261
        %v4264 = vunpack.c.l.s4 1966171168
        %v4265 = vunpack.c.0.s8 %v4264
        %v4266 = vlaneseq
        %v4267 = vshrl.u32 %v4266, 7
        %v4268 = vsub.s32 %v4265, %v4267
        %v4269 = vrot.slane %v4261, %v4268
        %v4271 = vunpack.c.l.s4 1966171168
        %v4272 = vunpack.c.0.s8 %v4271
        %v4273 = vlaneseq
        %v4274 = vshrl.u32 %v4273, 7
        %v4275 = vsub.s32 %v4272, %v4274
        %v4276 = vrot.slane %v4262, %v4275
        %v4277 = vlaneseq
        %v4278 = vshrl.u32 %v4277, 7
        %v4279 = vsub.s32 0, %v4278
        %v4280 = vrot.slane %v4269, %v4279
        %v4281 = vlaneseq
        %v4282 = vshrl.u32 %v4281, 7
        %v4283 = vsub.s32 0, %v4282
        %v4284 = vrot.slane %v4276, %v4283
        %v4287 = vsub.f32 %v3847, %v4280
        %v4288 = vsub.f32 %v3848, %v4280
        %v4289 = vsub.f32 %v3849, %v4280
        %v4290 = vsub.f32 %v3850, %v4280
        %v4291 = vsub.f32 %v3851, %v4280
        %v4292 = vsub.f32 %v3852, %v4280
        %v4293 = vsub.f32 %v3853, %v4280
        %v4294 = vsub.f32 %v3854, %v4280
        %v4295 = vsub.f32 %v3855, %v4284
        %v4296 = vsub.f32 %v3856, %v4284
        %v4297 = vsub.f32 %v3857, %v4284
        %v4298 = vsub.f32 %v3858, %v4284
        %v4299 = vsub.f32 %v3859, %v4284
        %v4300 = vsub.f32 %v3860, %v4284
        %v4301 = vsub.f32 %v3861, %v4284
        %v4302 = vsub.f32 %v3862, %v4284
        %v4305 = vunpack.c.l.s4 1966171168
        %v4306 = vunpack.c.0.s8 %v4305
        %v4307 = vlaneseq
        %v4308 = vshrl.u32 %v4307, 7
        %v4309 = vsub.s32 %v4306, %v4308
        %v4310 = vrot.slane %v4251, %v4309
        %v4311 = vcombine.high %v4310, %v4310
        %v4313 = vunpack.c.l.s4 1966171168
        %v4314 = vunpack.c.0.s8 %v4313
        %v4315 = vlaneseq
        %v4316 = vshrl.u32 %v4315, 7
        %v4317 = vsub.s32 %v4314, %v4316
        %v4318 = vrot.slane %v4310, %v4317
        %v4320 = vunpack.c.l.s4 1966171168
        %v4321 = vunpack.c.0.s8 %v4320
        %v4322 = vlaneseq
        %v4323 = vshrl.u32 %v4322, 7
        %v4324 = vsub.s32 %v4321, %v4323
        %v4325 = vrot.slane %v4311, %v4324
        %v4326 = vlaneseq
        %v4327 = vshrl.u32 %v4326, 7
        %v4328 = vsub.s32 0, %v4327
        %v4329 = vrot.slane %v4318, %v4328
        %v4330 = vlaneseq
        %v4331 = vshrl.u32 %v4330, 7
        %v4332 = vsub.s32 0, %v4331
        %v4333 = vrot.slane %v4325, %v4332
        %v4336 = vmul.f32 %v4287, %v4329
        %v4337 = vmul.f32 %v4288, %v4329
        %v4338 = vmul.f32 %v4289, %v4329
        %v4339 = vmul.f32 %v4290, %v4329
        %v4340 = vmul.f32 %v4291, %v4329
        %v4341 = vmul.f32 %v4292, %v4329
        %v4342 = vmul.f32 %v4293, %v4329
        %v4343 = vmul.f32 %v4294, %v4329
        %v4344 = vmul.f32 %v4295, %v4333
        %v4345 = vmul.f32 %v4296, %v4333
        %v4346 = vmul.f32 %v4297, %v4333
        %v4347 = vmul.f32 %v4298, %v4333
        %v4348 = vmul.f32 %v4299, %v4333
        %v4349 = vmul.f32 %v4300, %v4333
        %v4350 = vmul.f32 %v4301, %v4333
        %v4351 = vmul.f32 %v4302, %v4333
        %v4353 = vlaneseq
        %v4354 = vshrl.u32 %v4353, 7
        %v4355 = vsub.s32 0, %v4354
        %v4356 = vrot.slane %v3863, %v4355
        %v4358 = vmul.f32 %v4336, %v4356
        %v4359 = vmul.f32 %v4337, %v4356
        %v4360 = vmul.f32 %v4338, %v4356
        %v4361 = vmul.f32 %v4339, %v4356
        %v4362 = vmul.f32 %v4340, %v4356
        %v4363 = vmul.f32 %v4341, %v4356
        %v4364 = vmul.f32 %v4342, %v4356
        %v4365 = vmul.f32 %v4343, %v4356
        %v4366 = vmul.f32 %v4344, %v4356
        %v4367 = vmul.f32 %v4345, %v4356
        %v4368 = vmul.f32 %v4346, %v4356
        %v4369 = vmul.f32 %v4347, %v4356
        %v4370 = vmul.f32 %v4348, %v4356
        %v4371 = vmul.f32 %v4349, %v4356
        %v4372 = vmul.f32 %v4350, %v4356
        %v4373 = vmul.f32 %v4351, %v4356
        %v4375 = vlaneseq
        %v4376 = vshrl.u32 %v4375, 7
        %v4377 = vsub.s32 0, %v4376
        %v4378 = vrot.slane %v3864, %v4377
        %v4380 = vadd.f32 %v4358, %v4378
        %v4381 = vadd.f32 %v4359, %v4378
        %v4382 = vadd.f32 %v4360, %v4378
        %v4383 = vadd.f32 %v4361, %v4378
        %v4384 = vadd.f32 %v4362, %v4378
        %v4385 = vadd.f32 %v4363, %v4378
        %v4386 = vadd.f32 %v4364, %v4378
        %v4387 = vadd.f32 %v4365, %v4378
        %v4388 = vadd.f32 %v4366, %v4378
        %v4389 = vadd.f32 %v4367, %v4378
        %v4390 = vadd.f32 %v4368, %v4378
        %v4391 = vadd.f32 %v4369, %v4378
        %v4392 = vadd.f32 %v4370, %v4378
        %v4393 = vadd.f32 %v4371, %v4378
        %v4394 = vadd.f32 %v4372, %v4378
        %v4395 = vadd.f32 %v4373, %v4378
        %v4396 = vsub.f32 0.0, %v4380
        %v4397 = vsub.f32 0.0, %v4381
        %v4398 = vsub.f32 0.0, %v4382
        %v4399 = vsub.f32 0.0, %v4383
        %v4400 = vsub.f32 0.0, %v4384
        %v4401 = vsub.f32 0.0, %v4385
        %v4402 = vsub.f32 0.0, %v4386
        %v4403 = vsub.f32 0.0, %v4387
        %v4404 = vsub.f32 0.0, %v4388
        %v4405 = vsub.f32 0.0, %v4389
        %v4406 = vsub.f32 0.0, %v4390
        %v4407 = vsub.f32 0.0, %v4391
        %v4408 = vsub.f32 0.0, %v4392
        %v4409 = vsub.f32 0.0, %v4393
        %v4410 = vsub.f32 0.0, %v4394
        %v4411 = vsub.f32 0.0, %v4395
        %v4412 = vmul.f32 %v4396, 1.442695
        %v4413 = vpow.pop %v4412
        %v4414 = vmul.f32 %v4397, 1.442695
        %v4415 = vpow.pop %v4414
        %v4416 = vmul.f32 %v4398, 1.442695
        %v4417 = vpow.pop %v4416
        %v4418 = vmul.f32 %v4399, 1.442695
        %v4419 = vpow.pop %v4418
        %v4420 = vmul.f32 %v4400, 1.442695
        %v4421 = vpow.pop %v4420
        %v4422 = vmul.f32 %v4401, 1.442695
        %v4423 = vpow.pop %v4422
        %v4424 = vmul.f32 %v4402, 1.442695
        %v4425 = vpow.pop %v4424
        %v4426 = vmul.f32 %v4403, 1.442695
        %v4427 = vpow.pop %v4426
        %v4428 = vmul.f32 %v4404, 1.442695
        %v4429 = vpow.pop %v4428
        %v4430 = vmul.f32 %v4405, 1.442695
        %v4431 = vpow.pop %v4430
        %v4432 = vmul.f32 %v4406, 1.442695
        %v4433 = vpow.pop %v4432
        %v4434 = vmul.f32 %v4407, 1.442695
        %v4435 = vpow.pop %v4434
        %v4436 = vmul.f32 %v4408, 1.442695
        %v4437 = vpow.pop %v4436
        %v4438 = vmul.f32 %v4409, 1.442695
        %v4439 = vpow.pop %v4438
        %v4440 = vmul.f32 %v4410, 1.442695
        %v4441 = vpow.pop %v4440
        %v4442 = vmul.f32 %v4411, 1.442695
        %v4443 = vpow.pop %v4442
        %v4444 = vadd.f32 %v4413, 1.0
        %v4445 = vadd.f32 %v4415, 1.0
        %v4446 = vadd.f32 %v4417, 1.0
        %v4447 = vadd.f32 %v4419, 1.0
        %v4448 = vadd.f32 %v4421, 1.0
        %v4449 = vadd.f32 %v4423, 1.0
        %v4450 = vadd.f32 %v4425, 1.0
        %v4451 = vadd.f32 %v4427, 1.0
        %v4452 = vadd.f32 %v4429, 1.0
        %v4453 = vadd.f32 %v4431, 1.0
        %v4454 = vadd.f32 %v4433, 1.0
        %v4455 = vadd.f32 %v4435, 1.0
        %v4456 = vadd.f32 %v4437, 1.0
        %v4457 = vadd.f32 %v4439, 1.0
        %v4458 = vadd.f32 %v4441, 1.0
        %v4459 = vadd.f32 %v4443, 1.0
        %v4460 = vrcp.pop %v4444
        %v4461 = vrcp.pop %v4445
        %v4462 = vrcp.pop %v4446
        %v4463 = vrcp.pop %v4447
        %v4464 = vrcp.pop %v4448
        %v4465 = vrcp.pop %v4449
        %v4466 = vrcp.pop %v4450
        %v4467 = vrcp.pop %v4451
        %v4468 = vrcp.pop %v4452
        %v4469 = vrcp.pop %v4453
        %v4470 = vrcp.pop %v4454
        %v4471 = vrcp.pop %v4455
        %v4472 = vrcp.pop %v4456
        %v4473 = vrcp.pop %v4457
        %v4474 = vrcp.pop %v4458
        %v4475 = vrcp.pop %v4459
        %v4476 = vmul.f32 %v4380, %v4460
        %v4477 = vmul.f32 %v4381, %v4461
        %v4478 = vmul.f32 %v4382, %v4462
        %v4479 = vmul.f32 %v4383, %v4463
        %v4480 = vmul.f32 %v4384, %v4464
        %v4481 = vmul.f32 %v4385, %v4465
        %v4482 = vmul.f32 %v4386, %v4466
        %v4483 = vmul.f32 %v4387, %v4467
        %v4484 = vmul.f32 %v4388, %v4468
        %v4485 = vmul.f32 %v4389, %v4469
        %v4486 = vmul.f32 %v4390, %v4470
        %v4487 = vmul.f32 %v4391, %v4471
        %v4488 = vmul.f32 %v4392, %v4472
        %v4489 = vmul.f32 %v4393, %v4473
        %v4490 = vmul.f32 %v4394, %v4474
        %v4491 = vmul.f32 %v4395, %v4475
        %v4492 = vpack.c.bf16 %v4477, %v4476
        %v4493 = vpack.c.bf16 %v4479, %v4478
        %v4494 = vpack.c.bf16 %v4481, %v4480
        %v4495 = vpack.c.bf16 %v4483, %v4482
        %v4496 = vpack.c.bf16 %v4485, %v4484
        %v4497 = vpack.c.bf16 %v4487, %v4486
        %v4498 = vpack.c.bf16 %v4489, %v4488
        %v4499 = vpack.c.bf16 %v4491, %v4490
        %v4508 = vunpack.c.l.b16 %v4492
        %v4509 = vunpack.c.h.b16 %v4492
        %v4510 = vunpack.c.l.b16 %v4493
        %v4511 = vunpack.c.h.b16 %v4493
        %v4512 = vunpack.c.l.b16 %v4494
        %v4513 = vunpack.c.h.b16 %v4494
        %v4514 = vunpack.c.l.b16 %v4495
        %v4515 = vunpack.c.h.b16 %v4495
        %v4516 = vunpack.c.l.b16 %v4496
        %v4517 = vunpack.c.h.b16 %v4496
        %v4518 = vunpack.c.l.b16 %v4497
        %v4519 = vunpack.c.h.b16 %v4497
        %v4520 = vunpack.c.l.b16 %v4498
        %v4521 = vunpack.c.h.b16 %v4498
        %v4522 = vunpack.c.l.b16 %v4499
        %v4523 = vunpack.c.h.b16 %v4499
        %v4524 = vpack.c.b16 %v4508, %v4508
        %v4525 = vpack.c.b16 %v4509, %v4509
        %v4526 = vpack.c.b16 %v4510, %v4510
        %v4527 = vpack.c.b16 %v4511, %v4511
        %v4528 = vpack.c.b16 %v4512, %v4512
        %v4529 = vpack.c.b16 %v4513, %v4513
        %v4530 = vpack.c.b16 %v4514, %v4514
        %v4531 = vpack.c.b16 %v4515, %v4515
        %v4532 = vpack.c.b16 %v4516, %v4516
        %v4533 = vpack.c.b16 %v4517, %v4517
        %v4534 = vpack.c.b16 %v4518, %v4518
        %v4535 = vpack.c.b16 %v4519, %v4519
        %v4536 = vpack.c.b16 %v4520, %v4520
        %v4537 = vpack.c.b16 %v4521, %v4521
        %v4538 = vpack.c.b16 %v4522, %v4522
        %v4539 = vpack.c.b16 %v4523, %v4523
        %4540 = vst [vmem:[#allocation3] sm:$0xf] 0
        %4541 = vst [vmem:[#allocation3 + $0x4] sm:$0x1] 0
        %4542 = vst [vmem:[#allocation3 + $0x50] sm:$0xf] 0
        %4543 = vst [vmem:[#allocation3 + $0x54] sm:$0x1] 0
        %s4544 = scalar_lea.vmem [#allocation3], 72
        %4545 = vst [vmem:[%s4544] sm:$0xf] 0
        %4546 = vst [vmem:[%s4544 + $0x4] sm:$0x1] 0
        %4547 = vst [vmem:[%s4544 + $0x50] sm:$0xf] 0
        %4548 = vst [vmem:[%s4544 + $0x54] sm:$0x1] 0
        %vm4549 = vcmask 1040384
        %vm4550 = vmand %vm4549, %vm1375
        %v4551 = vld [vmem:[#allocation3] sm:$0x1]
        %v4552 = vsel %vm4550, 0, %v4551
        %4553 = vst [vmem:[#allocation3] sm:$0x1] %v4552
        %v4554 = vld [vmem:[#allocation3 + $0x8] sm:$0x1]
        %v4555 = vsel %vm4550, 0, %v4554
        %4556 = vst [vmem:[#allocation3 + $0x8] sm:$0x1] %v4555
        %v4557 = vld [vmem:[#allocation3 + $0x10] sm:$0x1]
        %v4558 = vsel %vm4550, 0, %v4557
        %4559 = vst [vmem:[#allocation3 + $0x10] sm:$0x1] %v4558
        %v4560 = vld [vmem:[#allocation3 + $0x18] sm:$0x1]
        %v4561 = vsel %vm4550, 0, %v4560
        %4562 = vst [vmem:[#allocation3 + $0x18] sm:$0x1] %v4561
        %v4563 = vld [vmem:[#allocation3 + $0x20] sm:$0x1]
        %v4564 = vsel %vm4550, 0, %v4563
        %4565 = vst [vmem:[#allocation3 + $0x20] sm:$0x1] %v4564
        %v4566 = vld [vmem:[#allocation3 + $0x28] sm:$0x1]
        %v4567 = vsel %vm4550, 0, %v4566
        %4568 = vst [vmem:[#allocation3 + $0x28] sm:$0x1] %v4567
        %v4569 = vld [vmem:[#allocation3 + $0x30] sm:$0x1]
        %v4570 = vsel %vm4550, 0, %v4569
        %4571 = vst [vmem:[#allocation3 + $0x30] sm:$0x1] %v4570
        %v4572 = vld [vmem:[#allocation3 + $0x38] sm:$0x1]
        %v4573 = vsel %vm4550, 0, %v4572
        %4574 = vst [vmem:[#allocation3 + $0x38] sm:$0x1] %v4573
        %v4575 = vld [vmem:[#allocation3 + $0x40] sm:$0x1]
        %v4576 = vsel %vm4550, 0, %v4575
        %4577 = vst [vmem:[#allocation3 + $0x40] sm:$0x1] %v4576
        %v4578 = vld [vmem:[#allocation3 + $0x48] sm:$0x1]
        %v4579 = vsel %vm4550, 0, %v4578
        %4580 = vst [vmem:[#allocation3 + $0x48] sm:$0x1] %v4579
        %v4581 = vld [vmem:[#allocation3 + $0x50] sm:$0x1]
        %v4582 = vsel %vm4550, 0, %v4581
        %4583 = vst [vmem:[#allocation3 + $0x50] sm:$0x1] %v4582
        %v4584 = vld [vmem:[#allocation3 + $0x58] sm:$0x1]
        %v4585 = vsel %vm4550, 0, %v4584
        %4586 = vst [vmem:[#allocation3 + $0x58] sm:$0x1] %v4585
        %v4587 = vld [vmem:[#allocation3 + $0x60] sm:$0x1]
        %v4588 = vsel %vm4550, 0, %v4587
        %4589 = vst [vmem:[#allocation3 + $0x60] sm:$0x1] %v4588
        %v4590 = vld [vmem:[#allocation3 + $0x68] sm:$0x1]
        %v4591 = vsel %vm4550, 0, %v4590
        %4592 = vst [vmem:[#allocation3 + $0x68] sm:$0x1] %v4591
        %v4593 = vld [vmem:[#allocation3 + $0x70] sm:$0x1]
        %v4594 = vsel %vm4550, 0, %v4593
        %4595 = vst [vmem:[#allocation3 + $0x70] sm:$0x1] %v4594
        %v4596 = vld [vmem:[#allocation3 + $0x78] sm:$0x1]
        %v4597 = vsel %vm4550, 0, %v4596
        %4598 = vst [vmem:[#allocation3 + $0x78] sm:$0x1] %v4597
        %v4599 = vld [vmem:[#allocation3 + $0x80] sm:$0x1]
        %v4600 = vsel %vm4550, 0, %v4599
        %4601 = vst [vmem:[#allocation3 + $0x80] sm:$0x1] %v4600
        %v4602 = vld [vmem:[#allocation3 + $0x88] sm:$0x1]
        %v4603 = vsel %vm4550, 0, %v4602
        %4604 = vst [vmem:[#allocation3 + $0x88] sm:$0x1] %v4603
        %v4605 = vld [vmem:[#allocation3 + $0x90] sm:$0x1]
        %v4606 = vsel %vm4550, 0, %v4605
        %4607 = vst [vmem:[#allocation3 + $0x90] sm:$0x1] %v4606
        %v4608 = vld [vmem:[#allocation3 + $0x98] sm:$0x1]
        %v4609 = vsel %vm4550, 0, %v4608
        %4610 = vst [vmem:[#allocation3 + $0x98] sm:$0x1] %v4609
        %vm4611 = vmand %vm4549, %vm1437
        %v4612 = vld [vmem:[#allocation3 + $0x4] sm:$0x1]
        %v4613 = vsel %vm4611, 0, %v4612
        %4614 = vst [vmem:[#allocation3 + $0x4] sm:$0x1] %v4613
        %v4615 = vld [vmem:[#allocation3 + $0xc] sm:$0x1]
        %v4616 = vsel %vm4611, 0, %v4615
        %4617 = vst [vmem:[#allocation3 + $0xc] sm:$0x1] %v4616
        %v4618 = vld [vmem:[#allocation3 + $0x14] sm:$0x1]
        %v4619 = vsel %vm4611, 0, %v4618
        %4620 = vst [vmem:[#allocation3 + $0x14] sm:$0x1] %v4619
        %v4621 = vld [vmem:[#allocation3 + $0x1c] sm:$0x1]
        %v4622 = vsel %vm4611, 0, %v4621
        %4623 = vst [vmem:[#allocation3 + $0x1c] sm:$0x1] %v4622
        %v4624 = vld [vmem:[#allocation3 + $0x24] sm:$0x1]
        %v4625 = vsel %vm4611, 0, %v4624
        %4626 = vst [vmem:[#allocation3 + $0x24] sm:$0x1] %v4625
        %v4627 = vld [vmem:[#allocation3 + $0x2c] sm:$0x1]
        %v4628 = vsel %vm4611, 0, %v4627
        %4629 = vst [vmem:[#allocation3 + $0x2c] sm:$0x1] %v4628
        %v4630 = vld [vmem:[#allocation3 + $0x34] sm:$0x1]
        %v4631 = vsel %vm4611, 0, %v4630
        %4632 = vst [vmem:[#allocation3 + $0x34] sm:$0x1] %v4631
        %v4633 = vld [vmem:[#allocation3 + $0x3c] sm:$0x1]
        %v4634 = vsel %vm4611, 0, %v4633
        %4635 = vst [vmem:[#allocation3 + $0x3c] sm:$0x1] %v4634
        %v4636 = vld [vmem:[#allocation3 + $0x44] sm:$0x1]
        %v4637 = vsel %vm4611, 0, %v4636
        %4638 = vst [vmem:[#allocation3 + $0x44] sm:$0x1] %v4637
        %v4639 = vld [vmem:[#allocation3 + $0x4c] sm:$0x1]
        %v4640 = vsel %vm4611, 0, %v4639
        %4641 = vst [vmem:[#allocation3 + $0x4c] sm:$0x1] %v4640
        %v4642 = vld [vmem:[#allocation3 + $0x54] sm:$0x1]
        %v4643 = vsel %vm4611, 0, %v4642
        %4644 = vst [vmem:[#allocation3 + $0x54] sm:$0x1] %v4643
        %v4645 = vld [vmem:[#allocation3 + $0x5c] sm:$0x1]
        %v4646 = vsel %vm4611, 0, %v4645
        %4647 = vst [vmem:[#allocation3 + $0x5c] sm:$0x1] %v4646
        %v4648 = vld [vmem:[#allocation3 + $0x64] sm:$0x1]
        %v4649 = vsel %vm4611, 0, %v4648
        %4650 = vst [vmem:[#allocation3 + $0x64] sm:$0x1] %v4649
        %v4651 = vld [vmem:[#allocation3 + $0x6c] sm:$0x1]
        %v4652 = vsel %vm4611, 0, %v4651
        %4653 = vst [vmem:[#allocation3 + $0x6c] sm:$0x1] %v4652
        %v4654 = vld [vmem:[#allocation3 + $0x74] sm:$0x1]
        %v4655 = vsel %vm4611, 0, %v4654
        %4656 = vst [vmem:[#allocation3 + $0x74] sm:$0x1] %v4655
        %v4657 = vld [vmem:[#allocation3 + $0x7c] sm:$0x1]
        %v4658 = vsel %vm4611, 0, %v4657
        %4659 = vst [vmem:[#allocation3 + $0x7c] sm:$0x1] %v4658
        %v4660 = vld [vmem:[#allocation3 + $0x84] sm:$0x1]
        %v4661 = vsel %vm4611, 0, %v4660
        %4662 = vst [vmem:[#allocation3 + $0x84] sm:$0x1] %v4661
        %v4663 = vld [vmem:[#allocation3 + $0x8c] sm:$0x1]
        %v4664 = vsel %vm4611, 0, %v4663
        %4665 = vst [vmem:[#allocation3 + $0x8c] sm:$0x1] %v4664
        %v4666 = vld [vmem:[#allocation3 + $0x94] sm:$0x1]
        %v4667 = vsel %vm4611, 0, %v4666
        %4668 = vst [vmem:[#allocation3 + $0x94] sm:$0x1] %v4667
        %v4669 = vld [vmem:[#allocation3 + $0x9c] sm:$0x1]
        %v4670 = vsel %vm4611, 0, %v4669
        %4671 = vst [vmem:[#allocation3 + $0x9c] sm:$0x1] %v4670
        %v4673 = vshrl.u32 %v4524, 16
        %v4675 = vrot.slane %v4673, 7
        %v4676 = vshll.u32 %v4524, 16
        %v4678 = vor.u32 %v4675, %v4676
        %v4679 = vrot.slane %v4675, 4
        %v4681 = vshrl.u32 %v4525, 16
        %v4683 = vrot.slane %v4681, 7
        %v4684 = vshll.u32 %v4525, 16
        %v4686 = vor.u32 %v4683, %v4684
        %v4687 = vrot.slane %v4683, 4
        %v4689 = vshrl.u32 %v4526, 16
        %v4691 = vrot.slane %v4689, 7
        %v4692 = vshll.u32 %v4526, 16
        %v4694 = vor.u32 %v4691, %v4692
        %v4695 = vrot.slane %v4691, 4
        %v4697 = vshrl.u32 %v4527, 16
        %v4699 = vrot.slane %v4697, 7
        %v4700 = vshll.u32 %v4527, 16
        %v4702 = vor.u32 %v4699, %v4700
        %v4703 = vrot.slane %v4699, 4
        %v4705 = vshrl.u32 %v4528, 16
        %v4707 = vrot.slane %v4705, 7
        %v4708 = vshll.u32 %v4528, 16
        %v4710 = vor.u32 %v4707, %v4708
        %v4711 = vrot.slane %v4707, 4
        %v4713 = vshrl.u32 %v4529, 16
        %v4715 = vrot.slane %v4713, 7
        %v4716 = vshll.u32 %v4529, 16
        %v4718 = vor.u32 %v4715, %v4716
        %v4719 = vrot.slane %v4715, 4
        %v4721 = vshrl.u32 %v4530, 16
        %v4723 = vrot.slane %v4721, 7
        %v4724 = vshll.u32 %v4530, 16
        %v4726 = vor.u32 %v4723, %v4724
        %v4727 = vrot.slane %v4723, 4
        %v4729 = vshrl.u32 %v4531, 16
        %v4731 = vrot.slane %v4729, 7
        %v4732 = vshll.u32 %v4531, 16
        %v4734 = vor.u32 %v4731, %v4732
        %v4735 = vrot.slane %v4731, 4
        %v4737 = vshrl.u32 %v4532, 16
        %v4739 = vrot.slane %v4737, 7
        %v4740 = vshll.u32 %v4532, 16
        %v4742 = vor.u32 %v4739, %v4740
        %v4743 = vrot.slane %v4739, 4
        %v4745 = vshrl.u32 %v4533, 16
        %v4747 = vrot.slane %v4745, 7
        %v4748 = vshll.u32 %v4533, 16
        %v4750 = vor.u32 %v4747, %v4748
        %v4751 = vrot.slane %v4747, 4
        %v4753 = vshrl.u32 %v4534, 16
        %v4755 = vrot.slane %v4753, 7
        %v4756 = vshll.u32 %v4534, 16
        %v4758 = vor.u32 %v4755, %v4756
        %v4759 = vrot.slane %v4755, 4
        %v4761 = vshrl.u32 %v4535, 16
        %v4763 = vrot.slane %v4761, 7
        %v4764 = vshll.u32 %v4535, 16
        %v4766 = vor.u32 %v4763, %v4764
        %v4767 = vrot.slane %v4763, 4
        %v4769 = vshrl.u32 %v4536, 16
        %v4771 = vrot.slane %v4769, 7
        %v4772 = vshll.u32 %v4536, 16
        %v4774 = vor.u32 %v4771, %v4772
        %v4775 = vrot.slane %v4771, 4
        %v4777 = vshrl.u32 %v4537, 16
        %v4779 = vrot.slane %v4777, 7
        %v4780 = vshll.u32 %v4537, 16
        %v4782 = vor.u32 %v4779, %v4780
        %v4783 = vrot.slane %v4779, 4
        %v4785 = vshrl.u32 %v4538, 16
        %v4787 = vrot.slane %v4785, 7
        %v4788 = vshll.u32 %v4538, 16
        %v4790 = vor.u32 %v4787, %v4788
        %v4791 = vrot.slane %v4787, 4
        %v4793 = vshrl.u32 %v4539, 16
        %v4795 = vrot.slane %v4793, 7
        %v4796 = vshll.u32 %v4539, 16
        %v4798 = vor.u32 %v4795, %v4796
        %v4799 = vrot.slane %v4795, 4
        %s4832 = scalar_lea.vmem [#allocation3], 8
        %vm4833 = vcmask 1043456
        %vm4834 = vmand %vm4833, %vm1437
        %v4835 = vld [vmem:[%s4832] sm:$0xf]
        %v4836 = vsel %vm4834, %v4678, %v4835
        %4837 = vst [vmem:[%s4832] sm:$0xf] %v4836
        %v4838 = vld [vmem:[%s4832 + $0x4] sm:$0x1]
        %v4839 = vsel %vm4550, %v4679, %v4838
        %4840 = vst [vmem:[%s4832 + $0x4] sm:$0x1] %v4839
        %v4841 = vld [vmem:[%s4832 + $0x8] sm:$0xf]
        %v4842 = vsel %vm4834, %v4686, %v4841
        %4843 = vst [vmem:[%s4832 + $0x8] sm:$0xf] %v4842
        %v4844 = vld [vmem:[%s4832 + $0xc] sm:$0x1]
        %v4845 = vsel %vm4550, %v4687, %v4844
        %4846 = vst [vmem:[%s4832 + $0xc] sm:$0x1] %v4845
        %v4847 = vld [vmem:[%s4832 + $0x10] sm:$0xf]
        %v4848 = vsel %vm4834, %v4694, %v4847
        %4849 = vst [vmem:[%s4832 + $0x10] sm:$0xf] %v4848
        %v4850 = vld [vmem:[%s4832 + $0x14] sm:$0x1]
        %v4851 = vsel %vm4550, %v4695, %v4850
        %4852 = vst [vmem:[%s4832 + $0x14] sm:$0x1] %v4851
        %v4853 = vld [vmem:[%s4832 + $0x18] sm:$0xf]
        %v4854 = vsel %vm4834, %v4702, %v4853
        %4855 = vst [vmem:[%s4832 + $0x18] sm:$0xf] %v4854
        %v4856 = vld [vmem:[%s4832 + $0x1c] sm:$0x1]
        %v4857 = vsel %vm4550, %v4703, %v4856
        %4858 = vst [vmem:[%s4832 + $0x1c] sm:$0x1] %v4857
        %v4859 = vld [vmem:[%s4832 + $0x20] sm:$0xf]
        %v4860 = vsel %vm4834, %v4710, %v4859
        %4861 = vst [vmem:[%s4832 + $0x20] sm:$0xf] %v4860
        %v4862 = vld [vmem:[%s4832 + $0x24] sm:$0x1]
        %v4863 = vsel %vm4550, %v4711, %v4862
        %4864 = vst [vmem:[%s4832 + $0x24] sm:$0x1] %v4863
        %v4865 = vld [vmem:[%s4832 + $0x28] sm:$0xf]
        %v4866 = vsel %vm4834, %v4718, %v4865
        %4867 = vst [vmem:[%s4832 + $0x28] sm:$0xf] %v4866
        %v4868 = vld [vmem:[%s4832 + $0x2c] sm:$0x1]
        %v4869 = vsel %vm4550, %v4719, %v4868
        %4870 = vst [vmem:[%s4832 + $0x2c] sm:$0x1] %v4869
        %v4871 = vld [vmem:[%s4832 + $0x30] sm:$0xf]
        %v4872 = vsel %vm4834, %v4726, %v4871
        %4873 = vst [vmem:[%s4832 + $0x30] sm:$0xf] %v4872
        %v4874 = vld [vmem:[%s4832 + $0x34] sm:$0x1]
        %v4875 = vsel %vm4550, %v4727, %v4874
        %4876 = vst [vmem:[%s4832 + $0x34] sm:$0x1] %v4875
        %v4877 = vld [vmem:[%s4832 + $0x38] sm:$0xf]
        %v4878 = vsel %vm4834, %v4734, %v4877
        %4879 = vst [vmem:[%s4832 + $0x38] sm:$0xf] %v4878
        %v4880 = vld [vmem:[%s4832 + $0x3c] sm:$0x1]
        %v4881 = vsel %vm4550, %v4735, %v4880
        %4882 = vst [vmem:[%s4832 + $0x3c] sm:$0x1] %v4881
        %v4883 = vld [vmem:[%s4832 + $0x50] sm:$0xf]
        %v4884 = vsel %vm4834, %v4742, %v4883
        %4885 = vst [vmem:[%s4832 + $0x50] sm:$0xf] %v4884
        %v4886 = vld [vmem:[%s4832 + $0x54] sm:$0x1]
        %v4887 = vsel %vm4550, %v4743, %v4886
        %4888 = vst [vmem:[%s4832 + $0x54] sm:$0x1] %v4887
        %v4889 = vld [vmem:[%s4832 + $0x58] sm:$0xf]
        %v4890 = vsel %vm4834, %v4750, %v4889
        %4891 = vst [vmem:[%s4832 + $0x58] sm:$0xf] %v4890
        %v4892 = vld [vmem:[%s4832 + $0x5c] sm:$0x1]
        %v4893 = vsel %vm4550, %v4751, %v4892
        %4894 = vst [vmem:[%s4832 + $0x5c] sm:$0x1] %v4893
        %v4895 = vld [vmem:[%s4832 + $0x60] sm:$0xf]
        %v4896 = vsel %vm4834, %v4758, %v4895
        %4897 = vst [vmem:[%s4832 + $0x60] sm:$0xf] %v4896
        %v4898 = vld [vmem:[%s4832 + $0x64] sm:$0x1]
        %v4899 = vsel %vm4550, %v4759, %v4898
        %4900 = vst [vmem:[%s4832 + $0x64] sm:$0x1] %v4899
        %v4901 = vld [vmem:[%s4832 + $0x68] sm:$0xf]
        %v4902 = vsel %vm4834, %v4766, %v4901
        %4903 = vst [vmem:[%s4832 + $0x68] sm:$0xf] %v4902
        %v4904 = vld [vmem:[%s4832 + $0x6c] sm:$0x1]
        %v4905 = vsel %vm4550, %v4767, %v4904
        %4906 = vst [vmem:[%s4832 + $0x6c] sm:$0x1] %v4905
        %v4907 = vld [vmem:[%s4832 + $0x70] sm:$0xf]
        %v4908 = vsel %vm4834, %v4774, %v4907
        %4909 = vst [vmem:[%s4832 + $0x70] sm:$0xf] %v4908
        %v4910 = vld [vmem:[%s4832 + $0x74] sm:$0x1]
        %v4911 = vsel %vm4550, %v4775, %v4910
        %4912 = vst [vmem:[%s4832 + $0x74] sm:$0x1] %v4911
        %v4913 = vld [vmem:[%s4832 + $0x78] sm:$0xf]
        %v4914 = vsel %vm4834, %v4782, %v4913
        %4915 = vst [vmem:[%s4832 + $0x78] sm:$0xf] %v4914
        %v4916 = vld [vmem:[%s4832 + $0x7c] sm:$0x1]
        %v4917 = vsel %vm4550, %v4783, %v4916
        %4918 = vst [vmem:[%s4832 + $0x7c] sm:$0x1] %v4917
        %v4919 = vld [vmem:[%s4832 + $0x80] sm:$0xf]
        %v4920 = vsel %vm4834, %v4790, %v4919
        %4921 = vst [vmem:[%s4832 + $0x80] sm:$0xf] %v4920
        %v4922 = vld [vmem:[%s4832 + $0x84] sm:$0x1]
        %v4923 = vsel %vm4550, %v4791, %v4922
        %4924 = vst [vmem:[%s4832 + $0x84] sm:$0x1] %v4923
        %v4925 = vld [vmem:[%s4832 + $0x88] sm:$0xf]
        %v4926 = vsel %vm4834, %v4798, %v4925
        %4927 = vst [vmem:[%s4832 + $0x88] sm:$0xf] %v4926
        %v4928 = vld [vmem:[%s4832 + $0x8c] sm:$0x1]
        %v4929 = vsel %vm4550, %v4799, %v4928
        %4930 = vst [vmem:[%s4832 + $0x8c] sm:$0x1] %v4929
        %v4931 = vld [vmem:[#allocation3] sm:$0xf]
        %v4932 = vld [vmem:[#allocation3 + $0x8] sm:$0xf]
        %v4933 = vld [vmem:[#allocation3 + $0x10] sm:$0xf]
        %v4934 = vld [vmem:[#allocation3 + $0x18] sm:$0xf]
        %v4935 = vld [vmem:[#allocation3 + $0x20] sm:$0xf]
        %v4936 = vld [vmem:[#allocation3 + $0x28] sm:$0xf]
        %v4937 = vld [vmem:[#allocation3 + $0x30] sm:$0xf]
        %v4938 = vld [vmem:[#allocation3 + $0x38] sm:$0xf]
        %v4939 = vld [vmem:[#allocation3 + $0x50] sm:$0xf]
        %v4940 = vld [vmem:[#allocation3 + $0x58] sm:$0xf]
        %v4941 = vld [vmem:[#allocation3 + $0x60] sm:$0xf]
        %v4942 = vld [vmem:[#allocation3 + $0x68] sm:$0xf]
        %v4943 = vld [vmem:[#allocation3 + $0x70] sm:$0xf]
        %v4944 = vld [vmem:[#allocation3 + $0x78] sm:$0xf]
        %v4945 = vld [vmem:[#allocation3 + $0x80] sm:$0xf]
        %v4946 = vld [vmem:[#allocation3 + $0x88] sm:$0xf]
        %v4947 = vld [vmem:[#allocation3 + $0x4] sm:$0x1]
        %v4948 = vld [vmem:[#allocation3 + $0xc] sm:$0x1]
        %v4949 = vld [vmem:[#allocation3 + $0x14] sm:$0x1]
        %v4950 = vld [vmem:[#allocation3 + $0x1c] sm:$0x1]
        %v4951 = vld [vmem:[#allocation3 + $0x24] sm:$0x1]
        %v4952 = vld [vmem:[#allocation3 + $0x2c] sm:$0x1]
        %v4953 = vld [vmem:[#allocation3 + $0x34] sm:$0x1]
        %v4954 = vld [vmem:[#allocation3 + $0x3c] sm:$0x1]
        %v4955 = vld [vmem:[#allocation3 + $0x54] sm:$0x1]
        %v4956 = vld [vmem:[#allocation3 + $0x5c] sm:$0x1]
        %v4957 = vld [vmem:[#allocation3 + $0x64] sm:$0x1]
        %v4958 = vld [vmem:[#allocation3 + $0x6c] sm:$0x1]
        %v4959 = vld [vmem:[#allocation3 + $0x74] sm:$0x1]
        %v4960 = vld [vmem:[#allocation3 + $0x7c] sm:$0x1]
        %v4961 = vld [vmem:[#allocation3 + $0x84] sm:$0x1]
        %v4962 = vld [vmem:[#allocation3 + $0x8c] sm:$0x1]
        %v4963 = vld [vmem:[#allocation3] sm:$0xe]
        %v4964 = vld [vmem:[#allocation3 + $0x8] sm:$0xe]
        %v4965 = vld [vmem:[#allocation3 + $0x10] sm:$0xe]
        %v4966 = vld [vmem:[#allocation3 + $0x18] sm:$0xe]
        %v4967 = vld [vmem:[#allocation3 + $0x20] sm:$0xe]
        %v4968 = vld [vmem:[#allocation3 + $0x28] sm:$0xe]
        %v4969 = vld [vmem:[#allocation3 + $0x30] sm:$0xe]
        %v4970 = vld [vmem:[#allocation3 + $0x38] sm:$0xe]
        %v4971 = vld [vmem:[#allocation3 + $0x50] sm:$0xe]
        %v4972 = vld [vmem:[#allocation3 + $0x58] sm:$0xe]
        %v4973 = vld [vmem:[#allocation3 + $0x60] sm:$0xe]
        %v4974 = vld [vmem:[#allocation3 + $0x68] sm:$0xe]
        %v4975 = vld [vmem:[#allocation3 + $0x70] sm:$0xe]
        %v4976 = vld [vmem:[#allocation3 + $0x78] sm:$0xe]
        %v4977 = vld [vmem:[#allocation3 + $0x80] sm:$0xe]
        %v4978 = vld [vmem:[#allocation3 + $0x88] sm:$0xe]
        %v4979 = vld [vmem:[%s4832] sm:$0xf]
        %v4980 = vld [vmem:[%s4832 + $0x8] sm:$0xf]
        %v4981 = vld [vmem:[%s4832 + $0x10] sm:$0xf]
        %v4982 = vld [vmem:[%s4832 + $0x18] sm:$0xf]
        %v4983 = vld [vmem:[%s4832 + $0x20] sm:$0xf]
        %v4984 = vld [vmem:[%s4832 + $0x28] sm:$0xf]
        %v4985 = vld [vmem:[%s4832 + $0x30] sm:$0xf]
        %v4986 = vld [vmem:[%s4832 + $0x38] sm:$0xf]
        %v4987 = vld [vmem:[%s4832 + $0x50] sm:$0xf]
        %v4988 = vld [vmem:[%s4832 + $0x58] sm:$0xf]
        %v4989 = vld [vmem:[%s4832 + $0x60] sm:$0xf]
        %v4990 = vld [vmem:[%s4832 + $0x68] sm:$0xf]
        %v4991 = vld [vmem:[%s4832 + $0x70] sm:$0xf]
        %v4992 = vld [vmem:[%s4832 + $0x78] sm:$0xf]
        %v4993 = vld [vmem:[%s4832 + $0x80] sm:$0xf]
        %v4994 = vld [vmem:[%s4832 + $0x88] sm:$0xf]
        %v4995 = vld [vmem:[%s4832 + $0x4] sm:$0x1]
        %v4996 = vld [vmem:[%s4832 + $0xc] sm:$0x1]
        %v4997 = vld [vmem:[%s4832 + $0x14] sm:$0x1]
        %v4998 = vld [vmem:[%s4832 + $0x1c] sm:$0x1]
        %v4999 = vld [vmem:[%s4832 + $0x24] sm:$0x1]
        %v5000 = vld [vmem:[%s4832 + $0x2c] sm:$0x1]
        %v5001 = vld [vmem:[%s4832 + $0x34] sm:$0x1]
        %v5002 = vld [vmem:[%s4832 + $0x3c] sm:$0x1]
        %v5003 = vld [vmem:[%s4832 + $0x54] sm:$0x1]
        %v5004 = vld [vmem:[%s4832 + $0x5c] sm:$0x1]
        %v5005 = vld [vmem:[%s4832 + $0x64] sm:$0x1]
        %v5006 = vld [vmem:[%s4832 + $0x6c] sm:$0x1]
        %v5007 = vld [vmem:[%s4832 + $0x74] sm:$0x1]
        %v5008 = vld [vmem:[%s4832 + $0x7c] sm:$0x1]
        %v5009 = vld [vmem:[%s4832 + $0x84] sm:$0x1]
        %v5010 = vld [vmem:[%s4832 + $0x8c] sm:$0x1]
        %v5011 = vld [vmem:[%s4832] sm:$0xe]
        %v5012 = vld [vmem:[%s4832 + $0x8] sm:$0xe]
        %v5013 = vld [vmem:[%s4832 + $0x10] sm:$0xe]
        %v5014 = vld [vmem:[%s4832 + $0x18] sm:$0xe]
        %v5015 = vld [vmem:[%s4832 + $0x20] sm:$0xe]
        %v5016 = vld [vmem:[%s4832 + $0x28] sm:$0xe]
        %v5017 = vld [vmem:[%s4832 + $0x30] sm:$0xe]
        %v5018 = vld [vmem:[%s4832 + $0x38] sm:$0xe]
        %v5019 = vld [vmem:[%s4832 + $0x50] sm:$0xe]
        %v5020 = vld [vmem:[%s4832 + $0x58] sm:$0xe]
        %v5021 = vld [vmem:[%s4832 + $0x60] sm:$0xe]
        %v5022 = vld [vmem:[%s4832 + $0x68] sm:$0xe]
        %v5023 = vld [vmem:[%s4832 + $0x70] sm:$0xe]
        %v5024 = vld [vmem:[%s4832 + $0x78] sm:$0xe]
        %v5025 = vld [vmem:[%s4832 + $0x80] sm:$0xe]
        %v5026 = vld [vmem:[%s4832 + $0x88] sm:$0xe]
        %s5027 = scalar_lea.vmem [#allocation3], 16
        %v5028 = vld [vmem:[%s5027] sm:$0xf]
        %v5029 = vld [vmem:[%s5027 + $0x8] sm:$0xf]
        %v5030 = vld [vmem:[%s5027 + $0x10] sm:$0xf]
        %v5031 = vld [vmem:[%s5027 + $0x18] sm:$0xf]
        %v5032 = vld [vmem:[%s5027 + $0x20] sm:$0xf]
        %v5033 = vld [vmem:[%s5027 + $0x28] sm:$0xf]
        %v5034 = vld [vmem:[%s5027 + $0x30] sm:$0xf]
        %v5035 = vld [vmem:[%s5027 + $0x38] sm:$0xf]
        %v5036 = vld [vmem:[%s5027 + $0x50] sm:$0xf]
        %v5037 = vld [vmem:[%s5027 + $0x58] sm:$0xf]
        %v5038 = vld [vmem:[%s5027 + $0x60] sm:$0xf]
        %v5039 = vld [vmem:[%s5027 + $0x68] sm:$0xf]
        %v5040 = vld [vmem:[%s5027 + $0x70] sm:$0xf]
        %v5041 = vld [vmem:[%s5027 + $0x78] sm:$0xf]
        %v5042 = vld [vmem:[%s5027 + $0x80] sm:$0xf]
        %v5043 = vld [vmem:[%s5027 + $0x88] sm:$0xf]
        %v5044 = vld [vmem:[%s5027 + $0x4] sm:$0x1]
        %v5045 = vld [vmem:[%s5027 + $0xc] sm:$0x1]
        %v5046 = vld [vmem:[%s5027 + $0x14] sm:$0x1]
        %v5047 = vld [vmem:[%s5027 + $0x1c] sm:$0x1]
        %v5048 = vld [vmem:[%s5027 + $0x24] sm:$0x1]
        %v5049 = vld [vmem:[%s5027 + $0x2c] sm:$0x1]
        %v5050 = vld [vmem:[%s5027 + $0x34] sm:$0x1]
        %v5051 = vld [vmem:[%s5027 + $0x3c] sm:$0x1]
        %v5052 = vld [vmem:[%s5027 + $0x54] sm:$0x1]
        %v5053 = vld [vmem:[%s5027 + $0x5c] sm:$0x1]
        %v5054 = vld [vmem:[%s5027 + $0x64] sm:$0x1]
        %v5055 = vld [vmem:[%s5027 + $0x6c] sm:$0x1]
        %v5056 = vld [vmem:[%s5027 + $0x74] sm:$0x1]
        %v5057 = vld [vmem:[%s5027 + $0x7c] sm:$0x1]
        %v5058 = vld [vmem:[%s5027 + $0x84] sm:$0x1]
        %v5059 = vld [vmem:[%s5027 + $0x8c] sm:$0x1]
        %v5060 = vld [vmem:[%s5027] sm:$0xe]
        %v5061 = vld [vmem:[%s5027 + $0x8] sm:$0xe]
        %v5062 = vld [vmem:[%s5027 + $0x10] sm:$0xe]
        %v5063 = vld [vmem:[%s5027 + $0x18] sm:$0xe]
        %v5064 = vld [vmem:[%s5027 + $0x20] sm:$0xe]
        %v5065 = vld [vmem:[%s5027 + $0x28] sm:$0xe]
        %v5066 = vld [vmem:[%s5027 + $0x30] sm:$0xe]
        %v5067 = vld [vmem:[%s5027 + $0x38] sm:$0xe]
        %v5068 = vld [vmem:[%s5027 + $0x50] sm:$0xe]
        %v5069 = vld [vmem:[%s5027 + $0x58] sm:$0xe]
        %v5070 = vld [vmem:[%s5027 + $0x60] sm:$0xe]
        %v5071 = vld [vmem:[%s5027 + $0x68] sm:$0xe]
        %v5072 = vld [vmem:[%s5027 + $0x70] sm:$0xe]
        %v5073 = vld [vmem:[%s5027 + $0x78] sm:$0xe]
        %v5074 = vld [vmem:[%s5027 + $0x80] sm:$0xe]
        %v5075 = vld [vmem:[%s5027 + $0x88] sm:$0xe]
        %v5108 = vunpack.c.l.b16 %v4931
        %v5109 = vunpack.c.l.b16 %v4947
        %v5110 = vunpack.c.l.b16 %v4932
        %v5111 = vunpack.c.l.b16 %v4948
        %v5112 = vunpack.c.l.b16 %v4933
        %v5113 = vunpack.c.l.b16 %v4949
        %v5114 = vunpack.c.l.b16 %v4934
        %v5115 = vunpack.c.l.b16 %v4950
        %v5116 = vunpack.c.l.b16 %v4935
        %v5117 = vunpack.c.l.b16 %v4951
        %v5118 = vunpack.c.l.b16 %v4936
        %v5119 = vunpack.c.l.b16 %v4952
        %v5120 = vunpack.c.l.b16 %v4937
        %v5121 = vunpack.c.l.b16 %v4953
        %v5122 = vunpack.c.l.b16 %v4938
        %v5123 = vunpack.c.l.b16 %v4954
        %v5124 = vunpack.c.l.b16 %v4939
        %v5125 = vunpack.c.l.b16 %v4955
        %v5126 = vunpack.c.l.b16 %v4940
        %v5127 = vunpack.c.l.b16 %v4956
        %v5128 = vunpack.c.l.b16 %v4941
        %v5129 = vunpack.c.l.b16 %v4957
        %v5130 = vunpack.c.l.b16 %v4942
        %v5131 = vunpack.c.l.b16 %v4958
        %v5132 = vunpack.c.l.b16 %v4943
        %v5133 = vunpack.c.l.b16 %v4959
        %v5134 = vunpack.c.l.b16 %v4944
        %v5135 = vunpack.c.l.b16 %v4960
        %v5136 = vunpack.c.l.b16 %v4945
        %v5137 = vunpack.c.l.b16 %v4961
        %v5138 = vunpack.c.l.b16 %v4946
        %v5139 = vunpack.c.l.b16 %v4962
        %v5140 = vpack.c.b16 %v5109, %v5108
        %v5141 = vpack.c.b16 %v5111, %v5110
        %v5142 = vpack.c.b16 %v5113, %v5112
        %v5143 = vpack.c.b16 %v5115, %v5114
        %v5144 = vpack.c.b16 %v5117, %v5116
        %v5145 = vpack.c.b16 %v5119, %v5118
        %v5146 = vpack.c.b16 %v5121, %v5120
        %v5147 = vpack.c.b16 %v5123, %v5122
        %v5148 = vpack.c.b16 %v5125, %v5124
        %v5149 = vpack.c.b16 %v5127, %v5126
        %v5150 = vpack.c.b16 %v5129, %v5128
        %v5151 = vpack.c.b16 %v5131, %v5130
        %v5152 = vpack.c.b16 %v5133, %v5132
        %v5153 = vpack.c.b16 %v5135, %v5134
        %v5154 = vpack.c.b16 %v5137, %v5136
        %v5155 = vpack.c.b16 %v5139, %v5138
        %v5157 = vshrl.u32 %v5140, 16
        %v5159 = vshll.u32 %v5140, 16
        %v5161 = vrot.slane %v5159, 1
        %v5162 = vor.u32 %v5157, %v5161
        %v5164 = vshrl.u32 %v5141, 16
        %v5166 = vshll.u32 %v5141, 16
        %v5168 = vrot.slane %v5166, 1
        %v5169 = vor.u32 %v5164, %v5168
        %v5171 = vshrl.u32 %v5142, 16
        %v5173 = vshll.u32 %v5142, 16
        %v5175 = vrot.slane %v5173, 1
        %v5176 = vor.u32 %v5171, %v5175
        %v5178 = vshrl.u32 %v5143, 16
        %v5180 = vshll.u32 %v5143, 16
        %v5182 = vrot.slane %v5180, 1
        %v5183 = vor.u32 %v5178, %v5182
        %v5185 = vshrl.u32 %v5144, 16
        %v5187 = vshll.u32 %v5144, 16
        %v5189 = vrot.slane %v5187, 1
        %v5190 = vor.u32 %v5185, %v5189
        %v5192 = vshrl.u32 %v5145, 16
        %v5194 = vshll.u32 %v5145, 16
        %v5196 = vrot.slane %v5194, 1
        %v5197 = vor.u32 %v5192, %v5196
        %v5199 = vshrl.u32 %v5146, 16
        %v5201 = vshll.u32 %v5146, 16
        %v5203 = vrot.slane %v5201, 1
        %v5204 = vor.u32 %v5199, %v5203
        %v5206 = vshrl.u32 %v5147, 16
        %v5208 = vshll.u32 %v5147, 16
        %v5210 = vrot.slane %v5208, 1
        %v5211 = vor.u32 %v5206, %v5210
        %v5213 = vshrl.u32 %v5148, 16
        %v5215 = vshll.u32 %v5148, 16
        %v5217 = vrot.slane %v5215, 1
        %v5218 = vor.u32 %v5213, %v5217
        %v5220 = vshrl.u32 %v5149, 16
        %v5222 = vshll.u32 %v5149, 16
        %v5224 = vrot.slane %v5222, 1
        %v5225 = vor.u32 %v5220, %v5224
        %v5227 = vshrl.u32 %v5150, 16
        %v5229 = vshll.u32 %v5150, 16
        %v5231 = vrot.slane %v5229, 1
        %v5232 = vor.u32 %v5227, %v5231
        %v5234 = vshrl.u32 %v5151, 16
        %v5236 = vshll.u32 %v5151, 16
        %v5238 = vrot.slane %v5236, 1
        %v5239 = vor.u32 %v5234, %v5238
        %v5241 = vshrl.u32 %v5152, 16
        %v5243 = vshll.u32 %v5152, 16
        %v5245 = vrot.slane %v5243, 1
        %v5246 = vor.u32 %v5241, %v5245
        %v5248 = vshrl.u32 %v5153, 16
        %v5250 = vshll.u32 %v5153, 16
        %v5252 = vrot.slane %v5250, 1
        %v5253 = vor.u32 %v5248, %v5252
        %v5255 = vshrl.u32 %v5154, 16
        %v5257 = vshll.u32 %v5154, 16
        %v5259 = vrot.slane %v5257, 1
        %v5260 = vor.u32 %v5255, %v5259
        %v5262 = vshrl.u32 %v5155, 16
        %v5264 = vshll.u32 %v5155, 16
        %v5266 = vrot.slane %v5264, 1
        %v5267 = vor.u32 %v5262, %v5266
        %v5284 = vunpack.c.l.b16 %v4963
        %v5285 = vunpack.c.l.b16 %v4964
        %v5286 = vunpack.c.l.b16 %v4965
        %v5287 = vunpack.c.l.b16 %v4966
        %v5288 = vunpack.c.l.b16 %v4967
        %v5289 = vunpack.c.l.b16 %v4968
        %v5290 = vunpack.c.l.b16 %v4969
        %v5291 = vunpack.c.l.b16 %v4970
        %v5292 = vunpack.c.l.b16 %v4971
        %v5293 = vunpack.c.l.b16 %v4972
        %v5294 = vunpack.c.l.b16 %v4973
        %v5295 = vunpack.c.l.b16 %v4974
        %v5296 = vunpack.c.l.b16 %v4975
        %v5297 = vunpack.c.l.b16 %v4976
        %v5298 = vunpack.c.l.b16 %v4977
        %v5299 = vunpack.c.l.b16 %v4978
        %v5300 = vpack.c.b16 %v5109, %v5284
        %v5301 = vpack.c.b16 %v5111, %v5285
        %v5302 = vpack.c.b16 %v5113, %v5286
        %v5303 = vpack.c.b16 %v5115, %v5287
        %v5304 = vpack.c.b16 %v5117, %v5288
        %v5305 = vpack.c.b16 %v5119, %v5289
        %v5306 = vpack.c.b16 %v5121, %v5290
        %v5307 = vpack.c.b16 %v5123, %v5291
        %v5308 = vpack.c.b16 %v5125, %v5292
        %v5309 = vpack.c.b16 %v5127, %v5293
        %v5310 = vpack.c.b16 %v5129, %v5294
        %v5311 = vpack.c.b16 %v5131, %v5295
        %v5312 = vpack.c.b16 %v5133, %v5296
        %v5313 = vpack.c.b16 %v5135, %v5297
        %v5314 = vpack.c.b16 %v5137, %v5298
        %v5315 = vpack.c.b16 %v5139, %v5299
        %v5316 = vrot.slane %v5300, 1
        %v5317 = vrot.slane %v5301, 1
        %v5318 = vrot.slane %v5302, 1
        %v5319 = vrot.slane %v5303, 1
        %v5320 = vrot.slane %v5304, 1
        %v5321 = vrot.slane %v5305, 1
        %v5322 = vrot.slane %v5306, 1
        %v5323 = vrot.slane %v5307, 1
        %v5324 = vrot.slane %v5308, 1
        %v5325 = vrot.slane %v5309, 1
        %v5326 = vrot.slane %v5310, 1
        %v5327 = vrot.slane %v5311, 1
        %v5328 = vrot.slane %v5312, 1
        %v5329 = vrot.slane %v5313, 1
        %v5330 = vrot.slane %v5314, 1
        %v5331 = vrot.slane %v5315, 1
        %v5364 = vunpack.c.l.b16 %v4979
        %v5365 = vunpack.c.l.b16 %v4995
        %v5366 = vunpack.c.l.b16 %v4980
        %v5367 = vunpack.c.l.b16 %v4996
        %v5368 = vunpack.c.l.b16 %v4981
        %v5369 = vunpack.c.l.b16 %v4997
        %v5370 = vunpack.c.l.b16 %v4982
        %v5371 = vunpack.c.l.b16 %v4998
        %v5372 = vunpack.c.l.b16 %v4983
        %v5373 = vunpack.c.l.b16 %v4999
        %v5374 = vunpack.c.l.b16 %v4984
        %v5375 = vunpack.c.l.b16 %v5000
        %v5376 = vunpack.c.l.b16 %v4985
        %v5377 = vunpack.c.l.b16 %v5001
        %v5378 = vunpack.c.l.b16 %v4986
        %v5379 = vunpack.c.l.b16 %v5002
        %v5380 = vunpack.c.l.b16 %v4987
        %v5381 = vunpack.c.l.b16 %v5003
        %v5382 = vunpack.c.l.b16 %v4988
        %v5383 = vunpack.c.l.b16 %v5004
        %v5384 = vunpack.c.l.b16 %v4989
        %v5385 = vunpack.c.l.b16 %v5005
        %v5386 = vunpack.c.l.b16 %v4990
        %v5387 = vunpack.c.l.b16 %v5006
        %v5388 = vunpack.c.l.b16 %v4991
        %v5389 = vunpack.c.l.b16 %v5007
        %v5390 = vunpack.c.l.b16 %v4992
        %v5391 = vunpack.c.l.b16 %v5008
        %v5392 = vunpack.c.l.b16 %v4993
        %v5393 = vunpack.c.l.b16 %v5009
        %v5394 = vunpack.c.l.b16 %v4994
        %v5395 = vunpack.c.l.b16 %v5010
        %v5396 = vpack.c.b16 %v5365, %v5364
        %v5397 = vpack.c.b16 %v5367, %v5366
        %v5398 = vpack.c.b16 %v5369, %v5368
        %v5399 = vpack.c.b16 %v5371, %v5370
        %v5400 = vpack.c.b16 %v5373, %v5372
        %v5401 = vpack.c.b16 %v5375, %v5374
        %v5402 = vpack.c.b16 %v5377, %v5376
        %v5403 = vpack.c.b16 %v5379, %v5378
        %v5404 = vpack.c.b16 %v5381, %v5380
        %v5405 = vpack.c.b16 %v5383, %v5382
        %v5406 = vpack.c.b16 %v5385, %v5384
        %v5407 = vpack.c.b16 %v5387, %v5386
        %v5408 = vpack.c.b16 %v5389, %v5388
        %v5409 = vpack.c.b16 %v5391, %v5390
        %v5410 = vpack.c.b16 %v5393, %v5392
        %v5411 = vpack.c.b16 %v5395, %v5394
        %v5413 = vshrl.u32 %v5396, 16
        %v5415 = vshll.u32 %v5396, 16
        %v5417 = vrot.slane %v5415, 1
        %v5418 = vor.u32 %v5413, %v5417
        %v5420 = vshrl.u32 %v5397, 16
        %v5422 = vshll.u32 %v5397, 16
        %v5424 = vrot.slane %v5422, 1
        %v5425 = vor.u32 %v5420, %v5424
        %v5427 = vshrl.u32 %v5398, 16
        %v5429 = vshll.u32 %v5398, 16
        %v5431 = vrot.slane %v5429, 1
        %v5432 = vor.u32 %v5427, %v5431
        %v5434 = vshrl.u32 %v5399, 16
        %v5436 = vshll.u32 %v5399, 16
        %v5438 = vrot.slane %v5436, 1
        %v5439 = vor.u32 %v5434, %v5438
        %v5441 = vshrl.u32 %v5400, 16
        %v5443 = vshll.u32 %v5400, 16
        %v5445 = vrot.slane %v5443, 1
        %v5446 = vor.u32 %v5441, %v5445
        %v5448 = vshrl.u32 %v5401, 16
        %v5450 = vshll.u32 %v5401, 16
        %v5452 = vrot.slane %v5450, 1
        %v5453 = vor.u32 %v5448, %v5452
        %v5455 = vshrl.u32 %v5402, 16
        %v5457 = vshll.u32 %v5402, 16
        %v5459 = vrot.slane %v5457, 1
        %v5460 = vor.u32 %v5455, %v5459
        %v5462 = vshrl.u32 %v5403, 16
        %v5464 = vshll.u32 %v5403, 16
        %v5466 = vrot.slane %v5464, 1
        %v5467 = vor.u32 %v5462, %v5466
        %v5469 = vshrl.u32 %v5404, 16
        %v5471 = vshll.u32 %v5404, 16
        %v5473 = vrot.slane %v5471, 1
        %v5474 = vor.u32 %v5469, %v5473
        %v5476 = vshrl.u32 %v5405, 16
        %v5478 = vshll.u32 %v5405, 16
        %v5480 = vrot.slane %v5478, 1
        %v5481 = vor.u32 %v5476, %v5480
        %v5483 = vshrl.u32 %v5406, 16
        %v5485 = vshll.u32 %v5406, 16
        %v5487 = vrot.slane %v5485, 1
        %v5488 = vor.u32 %v5483, %v5487
        %v5490 = vshrl.u32 %v5407, 16
        %v5492 = vshll.u32 %v5407, 16
        %v5494 = vrot.slane %v5492, 1
        %v5495 = vor.u32 %v5490, %v5494
        %v5497 = vshrl.u32 %v5408, 16
        %v5499 = vshll.u32 %v5408, 16
        %v5501 = vrot.slane %v5499, 1
        %v5502 = vor.u32 %v5497, %v5501
        %v5504 = vshrl.u32 %v5409, 16
        %v5506 = vshll.u32 %v5409, 16
        %v5508 = vrot.slane %v5506, 1
        %v5509 = vor.u32 %v5504, %v5508
        %v5511 = vshrl.u32 %v5410, 16
        %v5513 = vshll.u32 %v5410, 16
        %v5515 = vrot.slane %v5513, 1
        %v5516 = vor.u32 %v5511, %v5515
        %v5518 = vshrl.u32 %v5411, 16
        %v5520 = vshll.u32 %v5411, 16
        %v5522 = vrot.slane %v5520, 1
        %v5523 = vor.u32 %v5518, %v5522
        %v5540 = vunpack.c.l.b16 %v5011
        %v5541 = vunpack.c.l.b16 %v5012
        %v5542 = vunpack.c.l.b16 %v5013
        %v5543 = vunpack.c.l.b16 %v5014
        %v5544 = vunpack.c.l.b16 %v5015
        %v5545 = vunpack.c.l.b16 %v5016
        %v5546 = vunpack.c.l.b16 %v5017
        %v5547 = vunpack.c.l.b16 %v5018
        %v5548 = vunpack.c.l.b16 %v5019
        %v5549 = vunpack.c.l.b16 %v5020
        %v5550 = vunpack.c.l.b16 %v5021
        %v5551 = vunpack.c.l.b16 %v5022
        %v5552 = vunpack.c.l.b16 %v5023
        %v5553 = vunpack.c.l.b16 %v5024
        %v5554 = vunpack.c.l.b16 %v5025
        %v5555 = vunpack.c.l.b16 %v5026
        %v5556 = vpack.c.b16 %v5365, %v5540
        %v5557 = vpack.c.b16 %v5367, %v5541
        %v5558 = vpack.c.b16 %v5369, %v5542
        %v5559 = vpack.c.b16 %v5371, %v5543
        %v5560 = vpack.c.b16 %v5373, %v5544
        %v5561 = vpack.c.b16 %v5375, %v5545
        %v5562 = vpack.c.b16 %v5377, %v5546
        %v5563 = vpack.c.b16 %v5379, %v5547
        %v5564 = vpack.c.b16 %v5381, %v5548
        %v5565 = vpack.c.b16 %v5383, %v5549
        %v5566 = vpack.c.b16 %v5385, %v5550
        %v5567 = vpack.c.b16 %v5387, %v5551
        %v5568 = vpack.c.b16 %v5389, %v5552
        %v5569 = vpack.c.b16 %v5391, %v5553
        %v5570 = vpack.c.b16 %v5393, %v5554
        %v5571 = vpack.c.b16 %v5395, %v5555
        %v5572 = vrot.slane %v5556, 1
        %v5573 = vrot.slane %v5557, 1
        %v5574 = vrot.slane %v5558, 1
        %v5575 = vrot.slane %v5559, 1
        %v5576 = vrot.slane %v5560, 1
        %v5577 = vrot.slane %v5561, 1
        %v5578 = vrot.slane %v5562, 1
        %v5579 = vrot.slane %v5563, 1
        %v5580 = vrot.slane %v5564, 1
        %v5581 = vrot.slane %v5565, 1
        %v5582 = vrot.slane %v5566, 1
        %v5583 = vrot.slane %v5567, 1
        %v5584 = vrot.slane %v5568, 1
        %v5585 = vrot.slane %v5569, 1
        %v5586 = vrot.slane %v5570, 1
        %v5587 = vrot.slane %v5571, 1
        %v5620 = vunpack.c.l.b16 %v5028
        %v5621 = vunpack.c.l.b16 %v5044
        %v5622 = vunpack.c.l.b16 %v5029
        %v5623 = vunpack.c.l.b16 %v5045
        %v5624 = vunpack.c.l.b16 %v5030
        %v5625 = vunpack.c.l.b16 %v5046
        %v5626 = vunpack.c.l.b16 %v5031
        %v5627 = vunpack.c.l.b16 %v5047
        %v5628 = vunpack.c.l.b16 %v5032
        %v5629 = vunpack.c.l.b16 %v5048
        %v5630 = vunpack.c.l.b16 %v5033
        %v5631 = vunpack.c.l.b16 %v5049
        %v5632 = vunpack.c.l.b16 %v5034
        %v5633 = vunpack.c.l.b16 %v5050
        %v5634 = vunpack.c.l.b16 %v5035
        %v5635 = vunpack.c.l.b16 %v5051
        %v5636 = vunpack.c.l.b16 %v5036
        %v5637 = vunpack.c.l.b16 %v5052
        %v5638 = vunpack.c.l.b16 %v5037
        %v5639 = vunpack.c.l.b16 %v5053
        %v5640 = vunpack.c.l.b16 %v5038
        %v5641 = vunpack.c.l.b16 %v5054
        %v5642 = vunpack.c.l.b16 %v5039
        %v5643 = vunpack.c.l.b16 %v5055
        %v5644 = vunpack.c.l.b16 %v5040
        %v5645 = vunpack.c.l.b16 %v5056
        %v5646 = vunpack.c.l.b16 %v5041
        %v5647 = vunpack.c.l.b16 %v5057
        %v5648 = vunpack.c.l.b16 %v5042
        %v5649 = vunpack.c.l.b16 %v5058
        %v5650 = vunpack.c.l.b16 %v5043
        %v5651 = vunpack.c.l.b16 %v5059
        %v5652 = vpack.c.b16 %v5621, %v5620
        %v5653 = vpack.c.b16 %v5623, %v5622
        %v5654 = vpack.c.b16 %v5625, %v5624
        %v5655 = vpack.c.b16 %v5627, %v5626
        %v5656 = vpack.c.b16 %v5629, %v5628
        %v5657 = vpack.c.b16 %v5631, %v5630
        %v5658 = vpack.c.b16 %v5633, %v5632
        %v5659 = vpack.c.b16 %v5635, %v5634
        %v5660 = vpack.c.b16 %v5637, %v5636
        %v5661 = vpack.c.b16 %v5639, %v5638
        %v5662 = vpack.c.b16 %v5641, %v5640
        %v5663 = vpack.c.b16 %v5643, %v5642
        %v5664 = vpack.c.b16 %v5645, %v5644
        %v5665 = vpack.c.b16 %v5647, %v5646
        %v5666 = vpack.c.b16 %v5649, %v5648
        %v5667 = vpack.c.b16 %v5651, %v5650
        %v5669 = vshrl.u32 %v5652, 16
        %v5671 = vshll.u32 %v5652, 16
        %v5673 = vrot.slane %v5671, 1
        %v5674 = vor.u32 %v5669, %v5673
        %v5676 = vshrl.u32 %v5653, 16
        %v5678 = vshll.u32 %v5653, 16
        %v5680 = vrot.slane %v5678, 1
        %v5681 = vor.u32 %v5676, %v5680
        %v5683 = vshrl.u32 %v5654, 16
        %v5685 = vshll.u32 %v5654, 16
        %v5687 = vrot.slane %v5685, 1
        %v5688 = vor.u32 %v5683, %v5687
        %v5690 = vshrl.u32 %v5655, 16
        %v5692 = vshll.u32 %v5655, 16
        %v5694 = vrot.slane %v5692, 1
        %v5695 = vor.u32 %v5690, %v5694
        %v5697 = vshrl.u32 %v5656, 16
        %v5699 = vshll.u32 %v5656, 16
        %v5701 = vrot.slane %v5699, 1
        %v5702 = vor.u32 %v5697, %v5701
        %v5704 = vshrl.u32 %v5657, 16
        %v5706 = vshll.u32 %v5657, 16
        %v5708 = vrot.slane %v5706, 1
        %v5709 = vor.u32 %v5704, %v5708
        %v5711 = vshrl.u32 %v5658, 16
        %v5713 = vshll.u32 %v5658, 16
        %v5715 = vrot.slane %v5713, 1
        %v5716 = vor.u32 %v5711, %v5715
        %v5718 = vshrl.u32 %v5659, 16
        %v5720 = vshll.u32 %v5659, 16
        %v5722 = vrot.slane %v5720, 1
        %v5723 = vor.u32 %v5718, %v5722
        %v5725 = vshrl.u32 %v5660, 16
        %v5727 = vshll.u32 %v5660, 16
        %v5729 = vrot.slane %v5727, 1
        %v5730 = vor.u32 %v5725, %v5729
        %v5732 = vshrl.u32 %v5661, 16
        %v5734 = vshll.u32 %v5661, 16
        %v5736 = vrot.slane %v5734, 1
        %v5737 = vor.u32 %v5732, %v5736
        %v5739 = vshrl.u32 %v5662, 16
        %v5741 = vshll.u32 %v5662, 16
        %v5743 = vrot.slane %v5741, 1
        %v5744 = vor.u32 %v5739, %v5743
        %v5746 = vshrl.u32 %v5663, 16
        %v5748 = vshll.u32 %v5663, 16
        %v5750 = vrot.slane %v5748, 1
        %v5751 = vor.u32 %v5746, %v5750
        %v5753 = vshrl.u32 %v5664, 16
        %v5755 = vshll.u32 %v5664, 16
        %v5757 = vrot.slane %v5755, 1
        %v5758 = vor.u32 %v5753, %v5757
        %v5760 = vshrl.u32 %v5665, 16
        %v5762 = vshll.u32 %v5665, 16
        %v5764 = vrot.slane %v5762, 1
        %v5765 = vor.u32 %v5760, %v5764
        %v5767 = vshrl.u32 %v5666, 16
        %v5769 = vshll.u32 %v5666, 16
        %v5771 = vrot.slane %v5769, 1
        %v5772 = vor.u32 %v5767, %v5771
        %v5774 = vshrl.u32 %v5667, 16
        %v5776 = vshll.u32 %v5667, 16
        %v5778 = vrot.slane %v5776, 1
        %v5779 = vor.u32 %v5774, %v5778
        %v5796 = vunpack.c.l.b16 %v5060
        %v5797 = vunpack.c.l.b16 %v5061
        %v5798 = vunpack.c.l.b16 %v5062
        %v5799 = vunpack.c.l.b16 %v5063
        %v5800 = vunpack.c.l.b16 %v5064
        %v5801 = vunpack.c.l.b16 %v5065
        %v5802 = vunpack.c.l.b16 %v5066
        %v5803 = vunpack.c.l.b16 %v5067
        %v5804 = vunpack.c.l.b16 %v5068
        %v5805 = vunpack.c.l.b16 %v5069
        %v5806 = vunpack.c.l.b16 %v5070
        %v5807 = vunpack.c.l.b16 %v5071
        %v5808 = vunpack.c.l.b16 %v5072
        %v5809 = vunpack.c.l.b16 %v5073
        %v5810 = vunpack.c.l.b16 %v5074
        %v5811 = vunpack.c.l.b16 %v5075
        %v5812 = vpack.c.b16 %v5621, %v5796
        %v5813 = vpack.c.b16 %v5623, %v5797
        %v5814 = vpack.c.b16 %v5625, %v5798
        %v5815 = vpack.c.b16 %v5627, %v5799
        %v5816 = vpack.c.b16 %v5629, %v5800
        %v5817 = vpack.c.b16 %v5631, %v5801
        %v5818 = vpack.c.b16 %v5633, %v5802
        %v5819 = vpack.c.b16 %v5635, %v5803
        %v5820 = vpack.c.b16 %v5637, %v5804
        %v5821 = vpack.c.b16 %v5639, %v5805
        %v5822 = vpack.c.b16 %v5641, %v5806
        %v5823 = vpack.c.b16 %v5643, %v5807
        %v5824 = vpack.c.b16 %v5645, %v5808
        %v5825 = vpack.c.b16 %v5647, %v5809
        %v5826 = vpack.c.b16 %v5649, %v5810
        %v5827 = vpack.c.b16 %v5651, %v5811
        %v5828 = vrot.slane %v5812, 1
        %v5829 = vrot.slane %v5813, 1
        %v5830 = vrot.slane %v5814, 1
        %v5831 = vrot.slane %v5815, 1
        %v5832 = vrot.slane %v5816, 1
        %v5833 = vrot.slane %v5817, 1
        %v5834 = vrot.slane %v5818, 1
        %v5835 = vrot.slane %v5819, 1
        %v5836 = vrot.slane %v5820, 1
        %v5837 = vrot.slane %v5821, 1
        %v5838 = vrot.slane %v5822, 1
        %v5839 = vrot.slane %v5823, 1
        %v5840 = vrot.slane %v5824, 1
        %v5841 = vrot.slane %v5825, 1
        %v5842 = vrot.slane %v5826, 1
        %v5843 = vrot.slane %v5827, 1
        %v5844 = vunpack.c.l.b16 %v5162
        %v5845 = vunpack.c.l.b16 %v5316
        %v5846 = vunpack.c.l.b16 %v5418
        %v5847 = vunpack.c.l.b16 %v5572
        %v5848 = vunpack.c.l.b16 %v5674
        %v5849 = vunpack.c.l.b16 %v5828
        %v5850 = vunpack.c.l.b16 %v5169
        %v5851 = vunpack.c.l.b16 %v5317
        %v5852 = vunpack.c.l.b16 %v5425
        %v5853 = vunpack.c.l.b16 %v5573
        %v5854 = vunpack.c.l.b16 %v5681
        %v5855 = vunpack.c.l.b16 %v5829
        %v5856 = vunpack.c.l.b16 %v5176
        %v5857 = vunpack.c.l.b16 %v5318
        %v5858 = vunpack.c.l.b16 %v5432
        %v5859 = vunpack.c.l.b16 %v5574
        %v5860 = vunpack.c.l.b16 %v5688
        %v5861 = vunpack.c.l.b16 %v5830
        %v5862 = vunpack.c.l.b16 %v5183
        %v5863 = vunpack.c.l.b16 %v5319
        %v5864 = vunpack.c.l.b16 %v5439
        %v5865 = vunpack.c.l.b16 %v5575
        %v5866 = vunpack.c.l.b16 %v5695
        %v5867 = vunpack.c.l.b16 %v5831
        %v5868 = vunpack.c.l.b16 %v5190
        %v5869 = vunpack.c.l.b16 %v5320
        %v5870 = vunpack.c.l.b16 %v5446
        %v5871 = vunpack.c.l.b16 %v5576
        %v5872 = vunpack.c.l.b16 %v5702
        %v5873 = vunpack.c.l.b16 %v5832
        %v5874 = vunpack.c.l.b16 %v5197
        %v5875 = vunpack.c.l.b16 %v5321
        %v5876 = vunpack.c.l.b16 %v5453
        %v5877 = vunpack.c.l.b16 %v5577
        %v5878 = vunpack.c.l.b16 %v5709
        %v5879 = vunpack.c.l.b16 %v5833
        %v5880 = vunpack.c.l.b16 %v5204
        %v5881 = vunpack.c.l.b16 %v5322
        %v5882 = vunpack.c.l.b16 %v5460
        %v5883 = vunpack.c.l.b16 %v5578
        %v5884 = vunpack.c.l.b16 %v5716
        %v5885 = vunpack.c.l.b16 %v5834
        %v5886 = vunpack.c.l.b16 %v5211
        %v5887 = vunpack.c.l.b16 %v5323
        %v5888 = vunpack.c.l.b16 %v5467
        %v5889 = vunpack.c.l.b16 %v5579
        %v5890 = vunpack.c.l.b16 %v5723
        %v5891 = vunpack.c.l.b16 %v5835
        %v5892 = vunpack.c.l.b16 %v5218
        %v5893 = vunpack.c.l.b16 %v5324
        %v5894 = vunpack.c.l.b16 %v5474
        %v5895 = vunpack.c.l.b16 %v5580
        %v5896 = vunpack.c.l.b16 %v5730
        %v5897 = vunpack.c.l.b16 %v5836
        %v5898 = vunpack.c.l.b16 %v5225
        %v5899 = vunpack.c.l.b16 %v5325
        %v5900 = vunpack.c.l.b16 %v5481
        %v5901 = vunpack.c.l.b16 %v5581
        %v5902 = vunpack.c.l.b16 %v5737
        %v5903 = vunpack.c.l.b16 %v5837
        %v5904 = vunpack.c.l.b16 %v5232
        %v5905 = vunpack.c.l.b16 %v5326
        %v5906 = vunpack.c.l.b16 %v5488
        %v5907 = vunpack.c.l.b16 %v5582
        %v5908 = vunpack.c.l.b16 %v5744
        %v5909 = vunpack.c.l.b16 %v5838
        %v5910 = vunpack.c.l.b16 %v5239
        %v5911 = vunpack.c.l.b16 %v5327
        %v5912 = vunpack.c.l.b16 %v5495
        %v5913 = vunpack.c.l.b16 %v5583
        %v5914 = vunpack.c.l.b16 %v5751
        %v5915 = vunpack.c.l.b16 %v5839
        %v5916 = vunpack.c.l.b16 %v5246
        %v5917 = vunpack.c.l.b16 %v5328
        %v5918 = vunpack.c.l.b16 %v5502
        %v5919 = vunpack.c.l.b16 %v5584
        %v5920 = vunpack.c.l.b16 %v5758
        %v5921 = vunpack.c.l.b16 %v5840
        %v5922 = vunpack.c.l.b16 %v5253
        %v5923 = vunpack.c.l.b16 %v5329
        %v5924 = vunpack.c.l.b16 %v5509
        %v5925 = vunpack.c.l.b16 %v5585
        %v5926 = vunpack.c.l.b16 %v5765
        %v5927 = vunpack.c.l.b16 %v5841
        %v5928 = vunpack.c.l.b16 %v5260
        %v5929 = vunpack.c.l.b16 %v5330
        %v5930 = vunpack.c.l.b16 %v5516
        %v5931 = vunpack.c.l.b16 %v5586
        %v5932 = vunpack.c.l.b16 %v5772
        %v5933 = vunpack.c.l.b16 %v5842
        %v5934 = vunpack.c.l.b16 %v5267
        %v5935 = vunpack.c.l.b16 %v5331
        %v5936 = vunpack.c.l.b16 %v5523
        %v5937 = vunpack.c.l.b16 %v5587
        %v5938 = vunpack.c.l.b16 %v5779
        %v5939 = vunpack.c.l.b16 %v5843
        %v5940 = vld [vmem:[#allocation12] sm:$0xf]
        %v5941 = vld [vmem:[#allocation12 + $0x4] sm:$0xf]
        %v5942 = vld [vmem:[#allocation12 + $0x8] sm:$0xf]
        %v5943 = vld [vmem:[#allocation12 + $0xc] sm:$0xf]
        %v5944 = vld [vmem:[#allocation12 + $0x10] sm:$0xf]
        %v5945 = vld [vmem:[#allocation12 + $0x14] sm:$0xf]
        %v5946 = vld [vmem:[#allocation12 + $0x18] sm:$0xf]
        %v5947 = vld [vmem:[#allocation12 + $0x1c] sm:$0xf]
        %v5948 = vld [vmem:[#allocation12 + $0x20] sm:$0xf]
        %v5949 = vld [vmem:[#allocation12 + $0x24] sm:$0xf]
        %v5950 = vld [vmem:[#allocation12 + $0x28] sm:$0xf]
        %v5951 = vld [vmem:[#allocation12 + $0x2c] sm:$0xf]
        %v5952 = vld [vmem:[#allocation12 + $0x30] sm:$0xf]
        %v5953 = vld [vmem:[#allocation12 + $0x34] sm:$0xf]
        %v5954 = vld [vmem:[#allocation12 + $0x38] sm:$0xf]
        %v5955 = vld [vmem:[#allocation12 + $0x3c] sm:$0xf]
        %v5956 = vld [vmem:[#allocation12 + $0x40] sm:$0xf]
        %v5957 = vld [vmem:[#allocation12 + $0x44] sm:$0xf]
        %v5958 = vld [vmem:[#allocation12 + $0x48] sm:$0xf]
        %v5959 = vld [vmem:[#allocation12 + $0x4c] sm:$0xf]
        %v5960 = vld [vmem:[#allocation12 + $0x50] sm:$0xf]
        %v5961 = vld [vmem:[#allocation12 + $0x54] sm:$0xf]
        %v5962 = vld [vmem:[#allocation12 + $0x58] sm:$0xf]
        %v5963 = vld [vmem:[#allocation12 + $0x5c] sm:$0xf]
        %v5964 = vld [vmem:[#allocation12 + $0x60] sm:$0xf]
        %v5965 = vld [vmem:[#allocation12 + $0x64] sm:$0xf]
        %v5966 = vld [vmem:[#allocation12 + $0x68] sm:$0xf]
        %v5967 = vld [vmem:[#allocation12 + $0x6c] sm:$0xf]
        %v5968 = vld [vmem:[#allocation12 + $0x70] sm:$0xf]
        %v5969 = vld [vmem:[#allocation12 + $0x74] sm:$0xf]
        %v5970 = vld [vmem:[#allocation12 + $0x78] sm:$0xf]
        %v5971 = vld [vmem:[#allocation12 + $0x7c] sm:$0xf]
        %v5972 = vld [vmem:[#allocation12 + $0x80] sm:$0xf]
        %v5973 = vld [vmem:[#allocation12 + $0x84] sm:$0xf]
        %v5974 = vld [vmem:[#allocation12 + $0x88] sm:$0xf]
        %v5975 = vld [vmem:[#allocation12 + $0x8c] sm:$0xf]
        %v5976 = vld [vmem:[#allocation12 + $0x90] sm:$0xf]
        %v5977 = vld [vmem:[#allocation12 + $0x94] sm:$0xf]
        %v5978 = vld [vmem:[#allocation12 + $0x98] sm:$0xf]
        %v5979 = vld [vmem:[#allocation12 + $0x9c] sm:$0xf]
        %v5980 = vld [vmem:[#allocation12 + $0xa0] sm:$0xf]
        %v5981 = vld [vmem:[#allocation12 + $0xa4] sm:$0xf]
        %v5982 = vld [vmem:[#allocation12 + $0xa8] sm:$0xf]
        %v5983 = vld [vmem:[#allocation12 + $0xac] sm:$0xf]
        %v5984 = vld [vmem:[#allocation12 + $0xb0] sm:$0xf]
        %v5985 = vld [vmem:[#allocation12 + $0xb4] sm:$0xf]
        %v5986 = vld [vmem:[#allocation12 + $0xb8] sm:$0xf]
        %v5987 = vld [vmem:[#allocation12 + $0xbc] sm:$0xf]
        %v5988 = vld [vmem:[#allocation12 + $0xc0] sm:$0xf]
        %v5989 = vld [vmem:[#allocation12 + $0xc4] sm:$0xf]
        %v5990 = vld [vmem:[#allocation12 + $0xc8] sm:$0xf]
        %v5991 = vld [vmem:[#allocation12 + $0xcc] sm:$0xf]
        %v5992 = vld [vmem:[#allocation12 + $0xd0] sm:$0xf]
        %v5993 = vld [vmem:[#allocation12 + $0xd4] sm:$0xf]
        %v5994 = vld [vmem:[#allocation12 + $0xd8] sm:$0xf]
        %v5995 = vld [vmem:[#allocation12 + $0xdc] sm:$0xf]
        %v5996 = vld [vmem:[#allocation12 + $0xe0] sm:$0xf]
        %v5997 = vld [vmem:[#allocation12 + $0xe4] sm:$0xf]
        %v5998 = vld [vmem:[#allocation12 + $0xe8] sm:$0xf]
        %v5999 = vld [vmem:[#allocation12 + $0xec] sm:$0xf]
        %v6000 = vld [vmem:[#allocation12 + $0xf0] sm:$0xf]
        %v6001 = vld [vmem:[#allocation12 + $0xf4] sm:$0xf]
        %v6002 = vld [vmem:[#allocation12 + $0xf8] sm:$0xf]
        %v6003 = vld [vmem:[#allocation12 + $0xfc] sm:$0xf]
        %v6004 = vld [vmem:[#allocation12 + $0x100] sm:$0xf]
        %v6005 = vld [vmem:[#allocation12 + $0x104] sm:$0xf]
        %v6006 = vld [vmem:[#allocation12 + $0x108] sm:$0xf]
        %v6007 = vld [vmem:[#allocation12 + $0x10c] sm:$0xf]
        %v6008 = vld [vmem:[#allocation12 + $0x110] sm:$0xf]
        %v6009 = vld [vmem:[#allocation12 + $0x114] sm:$0xf]
        %v6010 = vld [vmem:[#allocation12 + $0x118] sm:$0xf]
        %v6011 = vld [vmem:[#allocation12 + $0x11c] sm:$0xf]
        %v6012 = vld [vmem:[#allocation12 + $0x120] sm:$0xf]
        %v6013 = vld [vmem:[#allocation12 + $0x124] sm:$0xf]
        %v6014 = vld [vmem:[#allocation12 + $0x128] sm:$0xf]
        %v6015 = vld [vmem:[#allocation12 + $0x12c] sm:$0xf]
        %v6016 = vld [vmem:[#allocation12 + $0x130] sm:$0xf]
        %v6017 = vld [vmem:[#allocation12 + $0x134] sm:$0xf]
        %v6018 = vld [vmem:[#allocation12 + $0x138] sm:$0xf]
        %v6019 = vld [vmem:[#allocation12 + $0x13c] sm:$0xf]
        %v6020 = vld [vmem:[#allocation12 + $0x140] sm:$0xf]
        %v6021 = vld [vmem:[#allocation12 + $0x144] sm:$0xf]
        %v6022 = vld [vmem:[#allocation12 + $0x148] sm:$0xf]
        %v6023 = vld [vmem:[#allocation12 + $0x14c] sm:$0xf]
        %v6024 = vld [vmem:[#allocation12 + $0x150] sm:$0xf]
        %v6025 = vld [vmem:[#allocation12 + $0x154] sm:$0xf]
        %v6026 = vld [vmem:[#allocation12 + $0x158] sm:$0xf]
        %v6027 = vld [vmem:[#allocation12 + $0x15c] sm:$0xf]
        %v6028 = vld [vmem:[#allocation12 + $0x160] sm:$0xf]
        %v6029 = vld [vmem:[#allocation12 + $0x164] sm:$0xf]
        %v6030 = vld [vmem:[#allocation12 + $0x168] sm:$0xf]
        %v6031 = vld [vmem:[#allocation12 + $0x16c] sm:$0xf]
        %v6032 = vld [vmem:[#allocation12 + $0x170] sm:$0xf]
        %v6033 = vld [vmem:[#allocation12 + $0x174] sm:$0xf]
        %v6034 = vld [vmem:[#allocation12 + $0x178] sm:$0xf]
        %v6035 = vld [vmem:[#allocation12 + $0x17c] sm:$0xf]
        %v6036 = vld [vmem:[#allocation12 + $0x180] sm:$0xf]
        %v6037 = vld [vmem:[#allocation12 + $0x184] sm:$0xf]
        %v6038 = vld [vmem:[#allocation12 + $0x188] sm:$0xf]
        %v6039 = vld [vmem:[#allocation12 + $0x18c] sm:$0xf]
        %v6040 = vld [vmem:[#allocation12 + $0x190] sm:$0xf]
        %v6041 = vld [vmem:[#allocation12 + $0x194] sm:$0xf]
        %v6042 = vld [vmem:[#allocation12 + $0x198] sm:$0xf]
        %v6043 = vld [vmem:[#allocation12 + $0x19c] sm:$0xf]
        %v6044 = vld [vmem:[#allocation12 + $0x1a0] sm:$0xf]
        %v6045 = vld [vmem:[#allocation12 + $0x1a4] sm:$0xf]
        %v6046 = vld [vmem:[#allocation12 + $0x1a8] sm:$0xf]
        %v6047 = vld [vmem:[#allocation12 + $0x1ac] sm:$0xf]
        %v6048 = vld [vmem:[#allocation12 + $0x1b0] sm:$0xf]
        %v6049 = vld [vmem:[#allocation12 + $0x1b4] sm:$0xf]
        %v6050 = vld [vmem:[#allocation12 + $0x1b8] sm:$0xf]
        %v6051 = vld [vmem:[#allocation12 + $0x1bc] sm:$0xf]
        %v6052 = vld [vmem:[#allocation12 + $0x1c0] sm:$0xf]
        %v6053 = vld [vmem:[#allocation12 + $0x1c4] sm:$0xf]
        %v6054 = vld [vmem:[#allocation12 + $0x1c8] sm:$0xf]
        %v6055 = vld [vmem:[#allocation12 + $0x1cc] sm:$0xf]
        %v6056 = vld [vmem:[#allocation12 + $0x1d0] sm:$0xf]
        %v6057 = vld [vmem:[#allocation12 + $0x1d4] sm:$0xf]
        %v6058 = vld [vmem:[#allocation12 + $0x1d8] sm:$0xf]
        %v6059 = vld [vmem:[#allocation12 + $0x1dc] sm:$0xf]
        %v6060 = vld [vmem:[#allocation12 + $0x1e0] sm:$0xf]
        %v6061 = vld [vmem:[#allocation12 + $0x1e4] sm:$0xf]
        %v6062 = vld [vmem:[#allocation12 + $0x1e8] sm:$0xf]
        %v6063 = vld [vmem:[#allocation12 + $0x1ec] sm:$0xf]
        %v6064 = vld [vmem:[#allocation12 + $0x1f0] sm:$0xf]
        %v6065 = vld [vmem:[#allocation12 + $0x1f4] sm:$0xf]
        %v6066 = vld [vmem:[#allocation12 + $0x1f8] sm:$0xf]
        %v6067 = vld [vmem:[#allocation12 + $0x1fc] sm:$0xf]
        %v6068 = vld [vmem:[#allocation12 + $0x200] sm:$0xf]
        %v6069 = vld [vmem:[#allocation12 + $0x204] sm:$0xf]
        %v6070 = vld [vmem:[#allocation12 + $0x208] sm:$0xf]
        %v6071 = vld [vmem:[#allocation12 + $0x20c] sm:$0xf]
        %v6072 = vld [vmem:[#allocation12 + $0x210] sm:$0xf]
        %v6073 = vld [vmem:[#allocation12 + $0x214] sm:$0xf]
        %v6074 = vld [vmem:[#allocation12 + $0x218] sm:$0xf]
        %v6075 = vld [vmem:[#allocation12 + $0x21c] sm:$0xf]
        %v6076 = vld [vmem:[#allocation12 + $0x220] sm:$0xf]
        %v6077 = vld [vmem:[#allocation12 + $0x224] sm:$0xf]
        %v6078 = vld [vmem:[#allocation12 + $0x228] sm:$0xf]
        %v6079 = vld [vmem:[#allocation12 + $0x22c] sm:$0xf]
        %v6080 = vld [vmem:[#allocation12 + $0x230] sm:$0xf]
        %v6081 = vld [vmem:[#allocation12 + $0x234] sm:$0xf]
        %v6082 = vld [vmem:[#allocation12 + $0x238] sm:$0xf]
        %v6083 = vld [vmem:[#allocation12 + $0x23c] sm:$0xf]
        %v6084 = vld [vmem:[%s13] sm:$0x1]
        %v6086 = vlaneseq
        %v6087 = vshrl.u32 %v6086, 7
        %v6088 = vsub.s32 0, %v6087
        %v6089 = vrot.slane %v6084, %v6088
        %v6091 = vpack.c.b16 %v5110, %v5108
        %v6092 = vpack.c.b16 %v5850, %v5844
        %v6093 = vpack.c.b16 %v5851, %v5845
        %v6094 = vpack.c.b16 %v5366, %v5364
        %v6095 = vpack.c.b16 %v5852, %v5846
        %v6096 = vpack.c.b16 %v5853, %v5847
        %v6097 = vpack.c.b16 %v5622, %v5620
        %v6098 = vpack.c.b16 %v5854, %v5848
        %v6099 = vpack.c.b16 %v5855, %v5849
        %v6100 = vpack.c.b16 %v5114, %v5112
        %v6101 = vpack.c.b16 %v5862, %v5856
        %v6102 = vpack.c.b16 %v5863, %v5857
        %v6103 = vpack.c.b16 %v5370, %v5368
        %v6104 = vpack.c.b16 %v5864, %v5858
        %v6105 = vpack.c.b16 %v5865, %v5859
        %v6106 = vpack.c.b16 %v5626, %v5624
        %v6107 = vpack.c.b16 %v5866, %v5860
        %v6108 = vpack.c.b16 %v5867, %v5861
        %v6109 = vpack.c.b16 %v5118, %v5116
        %v6110 = vpack.c.b16 %v5874, %v5868
        %v6111 = vpack.c.b16 %v5875, %v5869
        %v6112 = vpack.c.b16 %v5374, %v5372
        %v6113 = vpack.c.b16 %v5876, %v5870
        %v6114 = vpack.c.b16 %v5877, %v5871
        %v6115 = vpack.c.b16 %v5630, %v5628
        %v6116 = vpack.c.b16 %v5878, %v5872
        %v6117 = vpack.c.b16 %v5879, %v5873
        %v6118 = vpack.c.b16 %v5122, %v5120
        %v6119 = vpack.c.b16 %v5886, %v5880
        %v6120 = vpack.c.b16 %v5887, %v5881
        %v6121 = vpack.c.b16 %v5378, %v5376
        %v6122 = vpack.c.b16 %v5888, %v5882
        %v6123 = vpack.c.b16 %v5889, %v5883
        %v6124 = vpack.c.b16 %v5634, %v5632
        %v6125 = vpack.c.b16 %v5890, %v5884
        %v6126 = vpack.c.b16 %v5891, %v5885
        %v6127 = vpack.c.b16 %v5126, %v5124
        %v6128 = vpack.c.b16 %v5898, %v5892
        %v6129 = vpack.c.b16 %v5899, %v5893
        %v6130 = vpack.c.b16 %v5382, %v5380
        %v6131 = vpack.c.b16 %v5900, %v5894
        %v6132 = vpack.c.b16 %v5901, %v5895
        %v6133 = vpack.c.b16 %v5638, %v5636
        %v6134 = vpack.c.b16 %v5902, %v5896
        %v6135 = vpack.c.b16 %v5903, %v5897
        %v6136 = vpack.c.b16 %v5130, %v5128
        %v6137 = vpack.c.b16 %v5910, %v5904
        %v6138 = vpack.c.b16 %v5911, %v5905
        %v6139 = vpack.c.b16 %v5386, %v5384
        %v6140 = vpack.c.b16 %v5912, %v5906
        %v6141 = vpack.c.b16 %v5913, %v5907
        %v6142 = vpack.c.b16 %v5642, %v5640
        %v6143 = vpack.c.b16 %v5914, %v5908
        %v6144 = vpack.c.b16 %v5915, %v5909
        %v6145 = vpack.c.b16 %v5134, %v5132
        %v6146 = vpack.c.b16 %v5922, %v5916
        %v6147 = vpack.c.b16 %v5923, %v5917
        %v6148 = vpack.c.b16 %v5390, %v5388
        %v6149 = vpack.c.b16 %v5924, %v5918
        %v6150 = vpack.c.b16 %v5925, %v5919
        %v6151 = vpack.c.b16 %v5646, %v5644
        %v6152 = vpack.c.b16 %v5926, %v5920
        %v6153 = vpack.c.b16 %v5927, %v5921
        %v6154 = vpack.c.b16 %v5138, %v5136
        %v6155 = vpack.c.b16 %v5934, %v5928
        %v6156 = vpack.c.b16 %v5935, %v5929
        %v6157 = vpack.c.b16 %v5394, %v5392
        %v6158 = vpack.c.b16 %v5936, %v5930
        %v6159 = vpack.c.b16 %v5937, %v5931
        %v6160 = vpack.c.b16 %v5650, %v5648
        %v6161 = vpack.c.b16 %v5938, %v5932
        %v6162 = vpack.c.b16 %v5939, %v5933
        %v6379 = vunpack.c.l.b16 %v5940
        %v6380 = vunpack.c.l.b16 %v5941
        %v6381 = vunpack.c.l.b16 %v5942
        %v6382 = vunpack.c.l.b16 %v5943
        %v6383 = vunpack.c.l.b16 %v5944
        %v6384 = vunpack.c.l.b16 %v5945
        %v6385 = vunpack.c.l.b16 %v5946
        %v6386 = vunpack.c.l.b16 %v5947
        %v6387 = vunpack.c.l.b16 %v5948
        %v6388 = vunpack.c.l.b16 %v5949
        %v6389 = vunpack.c.l.b16 %v5950
        %v6390 = vunpack.c.l.b16 %v5951
        %v6391 = vunpack.c.l.b16 %v5952
        %v6392 = vunpack.c.l.b16 %v5953
        %v6393 = vunpack.c.l.b16 %v5954
        %v6394 = vunpack.c.l.b16 %v5955
        %v6395 = vunpack.c.l.b16 %v5956
        %v6396 = vunpack.c.l.b16 %v5957
        %v6397 = vunpack.c.l.b16 %v5958
        %v6398 = vunpack.c.l.b16 %v5959
        %v6399 = vunpack.c.l.b16 %v5960
        %v6400 = vunpack.c.l.b16 %v5961
        %v6401 = vunpack.c.l.b16 %v5962
        %v6402 = vunpack.c.l.b16 %v5963
        %v6403 = vunpack.c.l.b16 %v5964
        %v6404 = vunpack.c.l.b16 %v5965
        %v6405 = vunpack.c.l.b16 %v5966
        %v6406 = vunpack.c.l.b16 %v5967
        %v6407 = vunpack.c.l.b16 %v5968
        %v6408 = vunpack.c.l.b16 %v5969
        %v6409 = vunpack.c.l.b16 %v5970
        %v6410 = vunpack.c.l.b16 %v5971
        %v6411 = vunpack.c.l.b16 %v5972
        %v6412 = vunpack.c.l.b16 %v5973
        %v6413 = vunpack.c.l.b16 %v5974
        %v6414 = vunpack.c.l.b16 %v5975
        %v6415 = vunpack.c.l.b16 %v5976
        %v6416 = vunpack.c.l.b16 %v5977
        %v6417 = vunpack.c.l.b16 %v5978
        %v6418 = vunpack.c.l.b16 %v5979
        %v6419 = vunpack.c.l.b16 %v5980
        %v6420 = vunpack.c.l.b16 %v5981
        %v6421 = vunpack.c.l.b16 %v5982
        %v6422 = vunpack.c.l.b16 %v5983
        %v6423 = vunpack.c.l.b16 %v5984
        %v6424 = vunpack.c.l.b16 %v5985
        %v6425 = vunpack.c.l.b16 %v5986
        %v6426 = vunpack.c.l.b16 %v5987
        %v6427 = vunpack.c.l.b16 %v5988
        %v6428 = vunpack.c.l.b16 %v5989
        %v6429 = vunpack.c.l.b16 %v5990
        %v6430 = vunpack.c.l.b16 %v5991
        %v6431 = vunpack.c.l.b16 %v5992
        %v6432 = vunpack.c.l.b16 %v5993
        %v6433 = vunpack.c.l.b16 %v5994
        %v6434 = vunpack.c.l.b16 %v5995
        %v6435 = vunpack.c.l.b16 %v5996
        %v6436 = vunpack.c.l.b16 %v5997
        %v6437 = vunpack.c.l.b16 %v5998
        %v6438 = vunpack.c.l.b16 %v5999
        %v6439 = vunpack.c.l.b16 %v6000
        %v6440 = vunpack.c.l.b16 %v6001
        %v6441 = vunpack.c.l.b16 %v6002
        %v6442 = vunpack.c.l.b16 %v6003
        %v6443 = vunpack.c.l.b16 %v6004
        %v6444 = vunpack.c.l.b16 %v6005
        %v6445 = vunpack.c.l.b16 %v6006
        %v6446 = vunpack.c.l.b16 %v6007
        %v6447 = vunpack.c.l.b16 %v6008
        %v6448 = vunpack.c.l.b16 %v6009
        %v6449 = vunpack.c.l.b16 %v6010
        %v6450 = vunpack.c.l.b16 %v6011
        %v6451 = vunpack.c.l.b16 %v6012
        %v6452 = vunpack.c.l.b16 %v6013
        %v6453 = vunpack.c.l.b16 %v6014
        %v6454 = vunpack.c.l.b16 %v6015
        %v6455 = vunpack.c.l.b16 %v6016
        %v6456 = vunpack.c.l.b16 %v6017
        %v6457 = vunpack.c.l.b16 %v6018
        %v6458 = vunpack.c.l.b16 %v6019
        %v6459 = vunpack.c.l.b16 %v6020
        %v6460 = vunpack.c.l.b16 %v6021
        %v6461 = vunpack.c.l.b16 %v6022
        %v6462 = vunpack.c.l.b16 %v6023
        %v6463 = vunpack.c.l.b16 %v6024
        %v6464 = vunpack.c.l.b16 %v6025
        %v6465 = vunpack.c.l.b16 %v6026
        %v6466 = vunpack.c.l.b16 %v6027
        %v6467 = vunpack.c.l.b16 %v6028
        %v6468 = vunpack.c.l.b16 %v6029
        %v6469 = vunpack.c.l.b16 %v6030
        %v6470 = vunpack.c.l.b16 %v6031
        %v6471 = vunpack.c.l.b16 %v6032
        %v6472 = vunpack.c.l.b16 %v6033
        %v6473 = vunpack.c.l.b16 %v6034
        %v6474 = vunpack.c.l.b16 %v6035
        %v6475 = vunpack.c.l.b16 %v6036
        %v6476 = vunpack.c.l.b16 %v6037
        %v6477 = vunpack.c.l.b16 %v6038
        %v6478 = vunpack.c.l.b16 %v6039
        %v6479 = vunpack.c.l.b16 %v6040
        %v6480 = vunpack.c.l.b16 %v6041
        %v6481 = vunpack.c.l.b16 %v6042
        %v6482 = vunpack.c.l.b16 %v6043
        %v6483 = vunpack.c.l.b16 %v6044
        %v6484 = vunpack.c.l.b16 %v6045
        %v6485 = vunpack.c.l.b16 %v6046
        %v6486 = vunpack.c.l.b16 %v6047
        %v6487 = vunpack.c.l.b16 %v6048
        %v6488 = vunpack.c.l.b16 %v6049
        %v6489 = vunpack.c.l.b16 %v6050
        %v6490 = vunpack.c.l.b16 %v6051
        %v6491 = vunpack.c.l.b16 %v6052
        %v6492 = vunpack.c.l.b16 %v6053
        %v6493 = vunpack.c.l.b16 %v6054
        %v6494 = vunpack.c.l.b16 %v6055
        %v6495 = vunpack.c.l.b16 %v6056
        %v6496 = vunpack.c.l.b16 %v6057
        %v6497 = vunpack.c.l.b16 %v6058
        %v6498 = vunpack.c.l.b16 %v6059
        %v6499 = vunpack.c.l.b16 %v6060
        %v6500 = vunpack.c.l.b16 %v6061
        %v6501 = vunpack.c.l.b16 %v6062
        %v6502 = vunpack.c.l.b16 %v6063
        %v6503 = vunpack.c.l.b16 %v6064
        %v6504 = vunpack.c.l.b16 %v6065
        %v6505 = vunpack.c.l.b16 %v6066
        %v6506 = vunpack.c.l.b16 %v6067
        %v6507 = vunpack.c.l.b16 %v6068
        %v6508 = vunpack.c.l.b16 %v6069
        %v6509 = vunpack.c.l.b16 %v6070
        %v6510 = vunpack.c.l.b16 %v6071
        %v6511 = vunpack.c.l.b16 %v6072
        %v6512 = vunpack.c.l.b16 %v6073
        %v6513 = vunpack.c.l.b16 %v6074
        %v6514 = vunpack.c.l.b16 %v6075
        %v6515 = vunpack.c.l.b16 %v6076
        %v6516 = vunpack.c.l.b16 %v6077
        %v6517 = vunpack.c.l.b16 %v6078
        %v6518 = vunpack.c.l.b16 %v6079
        %v6519 = vunpack.c.l.b16 %v6080
        %v6520 = vunpack.c.l.b16 %v6081
        %v6521 = vunpack.c.l.b16 %v6082
        %v6522 = vunpack.c.l.b16 %v6083
        %v6523 = vpack.c.b16 %v6380, %v6379
        %v6524 = vpack.c.b16 %v6382, %v6381
        %v6525 = vpack.c.b16 %v6384, %v6383
        %v6526 = vpack.c.b16 %v6386, %v6385
        %v6527 = vpack.c.b16 %v6388, %v6387
        %v6528 = vpack.c.b16 %v6390, %v6389
        %v6529 = vpack.c.b16 %v6392, %v6391
        %v6530 = vpack.c.b16 %v6394, %v6393
        %v6531 = vpack.c.b16 %v6396, %v6395
        %v6532 = vpack.c.b16 %v6398, %v6397
        %v6533 = vpack.c.b16 %v6400, %v6399
        %v6534 = vpack.c.b16 %v6402, %v6401
        %v6535 = vpack.c.b16 %v6404, %v6403
        %v6536 = vpack.c.b16 %v6406, %v6405
        %v6537 = vpack.c.b16 %v6408, %v6407
        %v6538 = vpack.c.b16 %v6410, %v6409
        %v6539 = vpack.c.b16 %v6412, %v6411
        %v6540 = vpack.c.b16 %v6414, %v6413
        %v6541 = vpack.c.b16 %v6416, %v6415
        %v6542 = vpack.c.b16 %v6418, %v6417
        %v6543 = vpack.c.b16 %v6420, %v6419
        %v6544 = vpack.c.b16 %v6422, %v6421
        %v6545 = vpack.c.b16 %v6424, %v6423
        %v6546 = vpack.c.b16 %v6426, %v6425
        %v6547 = vpack.c.b16 %v6428, %v6427
        %v6548 = vpack.c.b16 %v6430, %v6429
        %v6549 = vpack.c.b16 %v6432, %v6431
        %v6550 = vpack.c.b16 %v6434, %v6433
        %v6551 = vpack.c.b16 %v6436, %v6435
        %v6552 = vpack.c.b16 %v6438, %v6437
        %v6553 = vpack.c.b16 %v6440, %v6439
        %v6554 = vpack.c.b16 %v6442, %v6441
        %v6555 = vpack.c.b16 %v6444, %v6443
        %v6556 = vpack.c.b16 %v6446, %v6445
        %v6557 = vpack.c.b16 %v6448, %v6447
        %v6558 = vpack.c.b16 %v6450, %v6449
        %v6559 = vpack.c.b16 %v6452, %v6451
        %v6560 = vpack.c.b16 %v6454, %v6453
        %v6561 = vpack.c.b16 %v6456, %v6455
        %v6562 = vpack.c.b16 %v6458, %v6457
        %v6563 = vpack.c.b16 %v6460, %v6459
        %v6564 = vpack.c.b16 %v6462, %v6461
        %v6565 = vpack.c.b16 %v6464, %v6463
        %v6566 = vpack.c.b16 %v6466, %v6465
        %v6567 = vpack.c.b16 %v6468, %v6467
        %v6568 = vpack.c.b16 %v6470, %v6469
        %v6569 = vpack.c.b16 %v6472, %v6471
        %v6570 = vpack.c.b16 %v6474, %v6473
        %v6571 = vpack.c.b16 %v6476, %v6475
        %v6572 = vpack.c.b16 %v6478, %v6477
        %v6573 = vpack.c.b16 %v6480, %v6479
        %v6574 = vpack.c.b16 %v6482, %v6481
        %v6575 = vpack.c.b16 %v6484, %v6483
        %v6576 = vpack.c.b16 %v6486, %v6485
        %v6577 = vpack.c.b16 %v6488, %v6487
        %v6578 = vpack.c.b16 %v6490, %v6489
        %v6579 = vpack.c.b16 %v6492, %v6491
        %v6580 = vpack.c.b16 %v6494, %v6493
        %v6581 = vpack.c.b16 %v6496, %v6495
        %v6582 = vpack.c.b16 %v6498, %v6497
        %v6583 = vpack.c.b16 %v6500, %v6499
        %v6584 = vpack.c.b16 %v6502, %v6501
        %v6585 = vpack.c.b16 %v6504, %v6503
        %v6586 = vpack.c.b16 %v6506, %v6505
        %v6587 = vpack.c.b16 %v6508, %v6507
        %v6588 = vpack.c.b16 %v6510, %v6509
        %v6589 = vpack.c.b16 %v6512, %v6511
        %v6590 = vpack.c.b16 %v6514, %v6513
        %v6591 = vpack.c.b16 %v6516, %v6515
        %v6592 = vpack.c.b16 %v6518, %v6517
        %v6593 = vpack.c.b16 %v6520, %v6519
        %v6594 = vpack.c.b16 %v6522, %v6521
        %6667 = vmatprep.subr.bf16.mxu0 0
        %6668 = vmatpush1.bf16.msra.mxu0 %v6530
        %6669 = vmatprep.subr.bf16.mxu0 0
        %6670 = vmatpush1.bf16.msra.mxu0 %v6529
        %6671 = vmatprep.subr.bf16.mxu0 0
        %6672 = vmatpush1.bf16.msra.mxu0 %v6528
        %6673 = vmatprep.subr.bf16.mxu0 0
        %6674 = vmatpush1.bf16.msra.mxu0 %v6527
        %6675 = vmatprep.subr.bf16.mxu0 0
        %6676 = vmatpush1.bf16.msra.mxu0 %v6526
        %6677 = vmatprep.subr.bf16.mxu0 0
        %6678 = vmatpush1.bf16.msra.mxu0 %v6525
        %6679 = vmatprep.subr.bf16.mxu0 0
        %6680 = vmatpush1.bf16.msra.mxu0 %v6524
        %6681 = vmatprep.subr.bf16.mxu0 0
        %6682 = vmatpush1.bf16.msra.mxu0 %v6523
        %6683 = vmatprep.subr.bf16.mxu0 0
        %6684 = vmatpush2.bf16.msra.mxu0 %v6538
        %6685 = vmatprep.subr.bf16.mxu0 0
        %6686 = vmatpush2.bf16.msra.mxu0 %v6537
        %6687 = vmatprep.subr.bf16.mxu0 0
        %6688 = vmatpush2.bf16.msra.mxu0 %v6536
        %6689 = vmatprep.subr.bf16.mxu0 0
        %6690 = vmatpush2.bf16.msra.mxu0 %v6535
        %6691 = vmatprep.subr.bf16.mxu0 0
        %6692 = vmatpush2.bf16.msra.mxu0 %v6534
        %6693 = vmatprep.subr.bf16.mxu0 0
        %6694 = vmatpush2.bf16.msra.mxu0 %v6533
        %6695 = vmatprep.subr.bf16.mxu0 0
        %6696 = vmatpush2.bf16.msra.mxu0 %v6532
        %6697 = vmatprep.subr.bf16.mxu0 0
        %6698 = vmatpush2.bf16.msra.mxu0 %v6531
        %6699 = vmatprep.mubr.bf16.mxu0 %v6092
        %6700 = vmatmul.mubr.bf16.gmra.mxu0 %v6091
        %v6701 = vpop.f32.mrf.mxu0
        %v6702 = vadd.f32 %v6089, %v6701
        %v6703 = vpop.f32.mrf.mxu0
        %v6704 = vpop.f32.mrf.mxu0
        %v6705 = vadd.f32 %v6089, %v6704
        %v6706 = vpop.f32.mrf.mxu0
        %6707 = vmatprep.mubr.bf16.mxu0 %v6101
        %6708 = vmatmul.mubr.bf16.gmra.mxu0 %v6100
        %v6709 = vpop.f32.mrf.mxu0
        %v6710 = vadd.f32 %v6089, %v6709
        %v6711 = vpop.f32.mrf.mxu0
        %v6712 = vpop.f32.mrf.mxu0
        %v6713 = vadd.f32 %v6089, %v6712
        %v6714 = vpop.f32.mrf.mxu0
        %6715 = vmatprep.mubr.bf16.mxu0 %v6110
        %6716 = vmatmul.mubr.bf16.gmra.mxu0 %v6109
        %v6717 = vpop.f32.mrf.mxu0
        %v6718 = vadd.f32 %v6089, %v6717
        %v6719 = vpop.f32.mrf.mxu0
        %v6720 = vpop.f32.mrf.mxu0
        %v6721 = vadd.f32 %v6089, %v6720
        %v6722 = vpop.f32.mrf.mxu0
        %6723 = vmatprep.mubr.bf16.mxu0 %v6119
        %6724 = vmatmul.mubr.bf16.gmra.mxu0 %v6118
        %v6725 = vpop.f32.mrf.mxu0
        %v6726 = vadd.f32 %v6089, %v6725
        %v6727 = vpop.f32.mrf.mxu0
        %v6728 = vpop.f32.mrf.mxu0
        %v6729 = vadd.f32 %v6089, %v6728
        %v6730 = vpop.f32.mrf.mxu0
        %6731 = vmatprep.mubr.bf16.mxu0 %v6128
        %6732 = vmatmul.mubr.bf16.gmra.mxu0 %v6127
        %v6733 = vpop.f32.mrf.mxu0
        %v6734 = vadd.f32 %v6089, %v6733
        %v6735 = vpop.f32.mrf.mxu0
        %v6736 = vpop.f32.mrf.mxu0
        %v6737 = vadd.f32 %v6089, %v6736
        %v6738 = vpop.f32.mrf.mxu0
        %6739 = vmatprep.mubr.bf16.mxu0 %v6137
        %6740 = vmatmul.mubr.bf16.gmra.mxu0 %v6136
        %v6741 = vpop.f32.mrf.mxu0
        %v6742 = vadd.f32 %v6089, %v6741
        %v6743 = vpop.f32.mrf.mxu0
        %v6744 = vpop.f32.mrf.mxu0
        %v6745 = vadd.f32 %v6089, %v6744
        %v6746 = vpop.f32.mrf.mxu0
        %6747 = vmatprep.mubr.bf16.mxu0 %v6146
        %6748 = vmatmul.mubr.bf16.gmra.mxu0 %v6145
        %v6749 = vpop.f32.mrf.mxu0
        %v6750 = vadd.f32 %v6089, %v6749
        %v6751 = vpop.f32.mrf.mxu0
        %v6752 = vpop.f32.mrf.mxu0
        %v6753 = vadd.f32 %v6089, %v6752
        %v6754 = vpop.f32.mrf.mxu0
        %6755 = vmatprep.mubr.bf16.mxu0 %v6155
        %6756 = vmatmul.mubr.bf16.gmra.mxu0 %v6154
        %v6757 = vpop.f32.mrf.mxu0
        %v6758 = vadd.f32 %v6089, %v6757
        %v6759 = vpop.f32.mrf.mxu0
        %v6760 = vpop.f32.mrf.mxu0
        %v6761 = vadd.f32 %v6089, %v6760
        %v6762 = vpop.f32.mrf.mxu0
        %6763 = vdwg.mxu0
        %6764 = vmatprep.subr.bf16.mxu0 0
        %6765 = vmatpush1.bf16.msra.mxu0 %v6546
        %6766 = vmatprep.subr.bf16.mxu0 0
        %6767 = vmatpush1.bf16.msra.mxu0 %v6545
        %6768 = vmatprep.subr.bf16.mxu0 0
        %6769 = vmatpush1.bf16.msra.mxu0 %v6544
        %6770 = vmatprep.subr.bf16.mxu0 0
        %6771 = vmatpush1.bf16.msra.mxu0 %v6543
        %6772 = vmatprep.subr.bf16.mxu0 0
        %6773 = vmatpush1.bf16.msra.mxu0 %v6542
        %6774 = vmatprep.subr.bf16.mxu0 0
        %6775 = vmatpush1.bf16.msra.mxu0 %v6541
        %6776 = vmatprep.subr.bf16.mxu0 0
        %6777 = vmatpush1.bf16.msra.mxu0 %v6540
        %6778 = vmatprep.subr.bf16.mxu0 0
        %6779 = vmatpush1.bf16.msra.mxu0 %v6539
        %6780 = vmatprep.subr.bf16.mxu0 0
        %6781 = vmatpush2.bf16.msra.mxu0 %v6554
        %6782 = vmatprep.subr.bf16.mxu0 0
        %6783 = vmatpush2.bf16.msra.mxu0 %v6553
        %6784 = vmatprep.subr.bf16.mxu0 0
        %6785 = vmatpush2.bf16.msra.mxu0 %v6552
        %6786 = vmatprep.subr.bf16.mxu0 0
        %6787 = vmatpush2.bf16.msra.mxu0 %v6551
        %6788 = vmatprep.subr.bf16.mxu0 0
        %6789 = vmatpush2.bf16.msra.mxu0 %v6550
        %6790 = vmatprep.subr.bf16.mxu0 0
        %6791 = vmatpush2.bf16.msra.mxu0 %v6549
        %6792 = vmatprep.subr.bf16.mxu0 0
        %6793 = vmatpush2.bf16.msra.mxu0 %v6548
        %6794 = vmatprep.subr.bf16.mxu0 0
        %6795 = vmatpush2.bf16.msra.mxu0 %v6547
        %6796 = vmatprep.mubr.bf16.mxu0 %v6094
        %6797 = vmatmul.mubr.bf16.gmra.mxu0 %v6093
        %v6798 = vpop.f32.mrf.mxu0
        %v6799 = vadd.f32 %v6702, %v6798
        %v6800 = vpop.f32.mrf.mxu0
        %v6801 = vpop.f32.mrf.mxu0
        %v6802 = vadd.f32 %v6705, %v6801
        %v6803 = vpop.f32.mrf.mxu0
        %6804 = vmatprep.mubr.bf16.mxu0 %v6103
        %6805 = vmatmul.mubr.bf16.gmra.mxu0 %v6102
        %v6806 = vpop.f32.mrf.mxu0
        %v6807 = vadd.f32 %v6710, %v6806
        %v6808 = vpop.f32.mrf.mxu0
        %v6809 = vpop.f32.mrf.mxu0
        %v6810 = vadd.f32 %v6713, %v6809
        %v6811 = vpop.f32.mrf.mxu0
        %6812 = vmatprep.mubr.bf16.mxu0 %v6112
        %6813 = vmatmul.mubr.bf16.gmra.mxu0 %v6111
        %v6814 = vpop.f32.mrf.mxu0
        %v6815 = vadd.f32 %v6718, %v6814
        %v6816 = vpop.f32.mrf.mxu0
        %v6817 = vpop.f32.mrf.mxu0
        %v6818 = vadd.f32 %v6721, %v6817
        %v6819 = vpop.f32.mrf.mxu0
        %6820 = vmatprep.mubr.bf16.mxu0 %v6121
        %6821 = vmatmul.mubr.bf16.gmra.mxu0 %v6120
        %v6822 = vpop.f32.mrf.mxu0
        %v6823 = vadd.f32 %v6726, %v6822
        %v6824 = vpop.f32.mrf.mxu0
        %v6825 = vpop.f32.mrf.mxu0
        %v6826 = vadd.f32 %v6729, %v6825
        %v6827 = vpop.f32.mrf.mxu0
        %6828 = vmatprep.mubr.bf16.mxu0 %v6130
        %6829 = vmatmul.mubr.bf16.gmra.mxu0 %v6129
        %v6830 = vpop.f32.mrf.mxu0
        %v6831 = vadd.f32 %v6734, %v6830
        %v6832 = vpop.f32.mrf.mxu0
        %v6833 = vpop.f32.mrf.mxu0
        %v6834 = vadd.f32 %v6737, %v6833
        %v6835 = vpop.f32.mrf.mxu0
        %6836 = vmatprep.mubr.bf16.mxu0 %v6139
        %6837 = vmatmul.mubr.bf16.gmra.mxu0 %v6138
        %v6838 = vpop.f32.mrf.mxu0
        %v6839 = vadd.f32 %v6742, %v6838
        %v6840 = vpop.f32.mrf.mxu0
        %v6841 = vpop.f32.mrf.mxu0
        %v6842 = vadd.f32 %v6745, %v6841
        %v6843 = vpop.f32.mrf.mxu0
        %6844 = vmatprep.mubr.bf16.mxu0 %v6148
        %6845 = vmatmul.mubr.bf16.gmra.mxu0 %v6147
        %v6846 = vpop.f32.mrf.mxu0
        %v6847 = vadd.f32 %v6750, %v6846
        %v6848 = vpop.f32.mrf.mxu0
        %v6849 = vpop.f32.mrf.mxu0
        %v6850 = vadd.f32 %v6753, %v6849
        %v6851 = vpop.f32.mrf.mxu0
        %6852 = vmatprep.mubr.bf16.mxu0 %v6157
        %6853 = vmatmul.mubr.bf16.gmra.mxu0 %v6156
        %v6854 = vpop.f32.mrf.mxu0
        %v6855 = vadd.f32 %v6758, %v6854
        %v6856 = vpop.f32.mrf.mxu0
        %v6857 = vpop.f32.mrf.mxu0
        %v6858 = vadd.f32 %v6761, %v6857
        %v6859 = vpop.f32.mrf.mxu0
        %6860 = vdwg.mxu0
        %6861 = vmatprep.subr.bf16.mxu0 0
        %6862 = vmatpush1.bf16.msra.mxu0 %v6562
        %6863 = vmatprep.subr.bf16.mxu0 0
        %6864 = vmatpush1.bf16.msra.mxu0 %v6561
        %6865 = vmatprep.subr.bf16.mxu0 0
        %6866 = vmatpush1.bf16.msra.mxu0 %v6560
        %6867 = vmatprep.subr.bf16.mxu0 0
        %6868 = vmatpush1.bf16.msra.mxu0 %v6559
        %6869 = vmatprep.subr.bf16.mxu0 0
        %6870 = vmatpush1.bf16.msra.mxu0 %v6558
        %6871 = vmatprep.subr.bf16.mxu0 0
        %6872 = vmatpush1.bf16.msra.mxu0 %v6557
        %6873 = vmatprep.subr.bf16.mxu0 0
        %6874 = vmatpush1.bf16.msra.mxu0 %v6556
        %6875 = vmatprep.subr.bf16.mxu0 0
        %6876 = vmatpush1.bf16.msra.mxu0 %v6555
        %6877 = vmatprep.subr.bf16.mxu0 0
        %6878 = vmatpush2.bf16.msra.mxu0 %v6570
        %6879 = vmatprep.subr.bf16.mxu0 0
        %6880 = vmatpush2.bf16.msra.mxu0 %v6569
        %6881 = vmatprep.subr.bf16.mxu0 0
        %6882 = vmatpush2.bf16.msra.mxu0 %v6568
        %6883 = vmatprep.subr.bf16.mxu0 0
        %6884 = vmatpush2.bf16.msra.mxu0 %v6567
        %6885 = vmatprep.subr.bf16.mxu0 0
        %6886 = vmatpush2.bf16.msra.mxu0 %v6566
        %6887 = vmatprep.subr.bf16.mxu0 0
        %6888 = vmatpush2.bf16.msra.mxu0 %v6565
        %6889 = vmatprep.subr.bf16.mxu0 0
        %6890 = vmatpush2.bf16.msra.mxu0 %v6564
        %6891 = vmatprep.subr.bf16.mxu0 0
        %6892 = vmatpush2.bf16.msra.mxu0 %v6563
        %6893 = vmatprep.mubr.bf16.mxu0 %v6096
        %6894 = vmatmul.mubr.bf16.gmra.mxu0 %v6095
        %v6895 = vpop.f32.mrf.mxu0
        %v6896 = vadd.f32 %v6799, %v6895
        %v6897 = vpop.f32.mrf.mxu0
        %v6898 = vpop.f32.mrf.mxu0
        %v6899 = vadd.f32 %v6802, %v6898
        %v6900 = vpop.f32.mrf.mxu0
        %6901 = vmatprep.mubr.bf16.mxu0 %v6105
        %6902 = vmatmul.mubr.bf16.gmra.mxu0 %v6104
        %v6903 = vpop.f32.mrf.mxu0
        %v6904 = vadd.f32 %v6807, %v6903
        %v6905 = vpop.f32.mrf.mxu0
        %v6906 = vpop.f32.mrf.mxu0
        %v6907 = vadd.f32 %v6810, %v6906
        %v6908 = vpop.f32.mrf.mxu0
        %6909 = vmatprep.mubr.bf16.mxu0 %v6114
        %6910 = vmatmul.mubr.bf16.gmra.mxu0 %v6113
        %v6911 = vpop.f32.mrf.mxu0
        %v6912 = vadd.f32 %v6815, %v6911
        %v6913 = vpop.f32.mrf.mxu0
        %v6914 = vpop.f32.mrf.mxu0
        %v6915 = vadd.f32 %v6818, %v6914
        %v6916 = vpop.f32.mrf.mxu0
        %6917 = vmatprep.mubr.bf16.mxu0 %v6123
        %6918 = vmatmul.mubr.bf16.gmra.mxu0 %v6122
        %v6919 = vpop.f32.mrf.mxu0
        %v6920 = vadd.f32 %v6823, %v6919
        %v6921 = vpop.f32.mrf.mxu0
        %v6922 = vpop.f32.mrf.mxu0
        %v6923 = vadd.f32 %v6826, %v6922
        %v6924 = vpop.f32.mrf.mxu0
        %6925 = vmatprep.mubr.bf16.mxu0 %v6132
        %6926 = vmatmul.mubr.bf16.gmra.mxu0 %v6131
        %v6927 = vpop.f32.mrf.mxu0
        %v6928 = vadd.f32 %v6831, %v6927
        %v6929 = vpop.f32.mrf.mxu0
        %v6930 = vpop.f32.mrf.mxu0
        %v6931 = vadd.f32 %v6834, %v6930
        %v6932 = vpop.f32.mrf.mxu0
        %6933 = vmatprep.mubr.bf16.mxu0 %v6141
        %6934 = vmatmul.mubr.bf16.gmra.mxu0 %v6140
        %v6935 = vpop.f32.mrf.mxu0
        %v6936 = vadd.f32 %v6839, %v6935
        %v6937 = vpop.f32.mrf.mxu0
        %v6938 = vpop.f32.mrf.mxu0
        %v6939 = vadd.f32 %v6842, %v6938
        %v6940 = vpop.f32.mrf.mxu0
        %6941 = vmatprep.mubr.bf16.mxu0 %v6150
        %6942 = vmatmul.mubr.bf16.gmra.mxu0 %v6149
        %v6943 = vpop.f32.mrf.mxu0
        %v6944 = vadd.f32 %v6847, %v6943
        %v6945 = vpop.f32.mrf.mxu0
        %v6946 = vpop.f32.mrf.mxu0
        %v6947 = vadd.f32 %v6850, %v6946
        %v6948 = vpop.f32.mrf.mxu0
        %6949 = vmatprep.mubr.bf16.mxu0 %v6159
        %6950 = vmatmul.mubr.bf16.gmra.mxu0 %v6158
        %v6951 = vpop.f32.mrf.mxu0
        %v6952 = vadd.f32 %v6855, %v6951
        %v6953 = vpop.f32.mrf.mxu0
        %v6954 = vpop.f32.mrf.mxu0
        %v6955 = vadd.f32 %v6858, %v6954
        %v6956 = vpop.f32.mrf.mxu0
        %6957 = vdwg.mxu0
        %6958 = vmatprep.subr.bf16.mxu0 0
        %6959 = vmatpush1.bf16.msra.mxu0 %v6578
        %6960 = vmatprep.subr.bf16.mxu0 0
        %6961 = vmatpush1.bf16.msra.mxu0 %v6577
        %6962 = vmatprep.subr.bf16.mxu0 0
        %6963 = vmatpush1.bf16.msra.mxu0 %v6576
        %6964 = vmatprep.subr.bf16.mxu0 0
        %6965 = vmatpush1.bf16.msra.mxu0 %v6575
        %6966 = vmatprep.subr.bf16.mxu0 0
        %6967 = vmatpush1.bf16.msra.mxu0 %v6574
        %6968 = vmatprep.subr.bf16.mxu0 0
        %6969 = vmatpush1.bf16.msra.mxu0 %v6573
        %6970 = vmatprep.subr.bf16.mxu0 0
        %6971 = vmatpush1.bf16.msra.mxu0 %v6572
        %6972 = vmatprep.subr.bf16.mxu0 0
        %6973 = vmatpush1.bf16.msra.mxu0 %v6571
        %6974 = vmatprep.subr.bf16.mxu0 0
        %6975 = vmatpush2.bf16.msra.mxu0 %v6586
        %6976 = vmatprep.subr.bf16.mxu0 0
        %6977 = vmatpush2.bf16.msra.mxu0 %v6585
        %6978 = vmatprep.subr.bf16.mxu0 0
        %6979 = vmatpush2.bf16.msra.mxu0 %v6584
        %6980 = vmatprep.subr.bf16.mxu0 0
        %6981 = vmatpush2.bf16.msra.mxu0 %v6583
        %6982 = vmatprep.subr.bf16.mxu0 0
        %6983 = vmatpush2.bf16.msra.mxu0 %v6582
        %6984 = vmatprep.subr.bf16.mxu0 0
        %6985 = vmatpush2.bf16.msra.mxu0 %v6581
        %6986 = vmatprep.subr.bf16.mxu0 0
        %6987 = vmatpush2.bf16.msra.mxu0 %v6580
        %6988 = vmatprep.subr.bf16.mxu0 0
        %6989 = vmatpush2.bf16.msra.mxu0 %v6579
        %6990 = vmatprep.mubr.bf16.mxu0 %v6098
        %6991 = vmatmul.mubr.bf16.gmra.mxu0 %v6097
        %v6992 = vpop.f32.mrf.mxu0
        %v6993 = vadd.f32 %v6896, %v6992
        %v6994 = vpop.f32.mrf.mxu0
        %v6995 = vpop.f32.mrf.mxu0
        %v6996 = vadd.f32 %v6899, %v6995
        %v6997 = vpop.f32.mrf.mxu0
        %6998 = vmatprep.mubr.bf16.mxu0 %v6107
        %6999 = vmatmul.mubr.bf16.gmra.mxu0 %v6106
        %v7000 = vpop.f32.mrf.mxu0
        %v7001 = vadd.f32 %v6904, %v7000
        %v7002 = vpop.f32.mrf.mxu0
        %v7003 = vpop.f32.mrf.mxu0
        %v7004 = vadd.f32 %v6907, %v7003
        %v7005 = vpop.f32.mrf.mxu0
        %7006 = vmatprep.mubr.bf16.mxu0 %v6116
        %7007 = vmatmul.mubr.bf16.gmra.mxu0 %v6115
        %v7008 = vpop.f32.mrf.mxu0
        %v7009 = vadd.f32 %v6912, %v7008
        %v7010 = vpop.f32.mrf.mxu0
        %v7011 = vpop.f32.mrf.mxu0
        %v7012 = vadd.f32 %v6915, %v7011
        %v7013 = vpop.f32.mrf.mxu0
        %7014 = vmatprep.mubr.bf16.mxu0 %v6125
        %7015 = vmatmul.mubr.bf16.gmra.mxu0 %v6124
        %v7016 = vpop.f32.mrf.mxu0
        %v7017 = vadd.f32 %v6920, %v7016
        %v7018 = vpop.f32.mrf.mxu0
        %v7019 = vpop.f32.mrf.mxu0
        %v7020 = vadd.f32 %v6923, %v7019
        %v7021 = vpop.f32.mrf.mxu0
        %7022 = vmatprep.mubr.bf16.mxu0 %v6134
        %7023 = vmatmul.mubr.bf16.gmra.mxu0 %v6133
        %v7024 = vpop.f32.mrf.mxu0
        %v7025 = vadd.f32 %v6928, %v7024
        %v7026 = vpop.f32.mrf.mxu0
        %v7027 = vpop.f32.mrf.mxu0
        %v7028 = vadd.f32 %v6931, %v7027
        %v7029 = vpop.f32.mrf.mxu0
        %7030 = vmatprep.mubr.bf16.mxu0 %v6143
        %7031 = vmatmul.mubr.bf16.gmra.mxu0 %v6142
        %v7032 = vpop.f32.mrf.mxu0
        %v7033 = vadd.f32 %v6936, %v7032
        %v7034 = vpop.f32.mrf.mxu0
        %v7035 = vpop.f32.mrf.mxu0
        %v7036 = vadd.f32 %v6939, %v7035
        %v7037 = vpop.f32.mrf.mxu0
        %7038 = vmatprep.mubr.bf16.mxu0 %v6152
        %7039 = vmatmul.mubr.bf16.gmra.mxu0 %v6151
        %v7040 = vpop.f32.mrf.mxu0
        %v7041 = vadd.f32 %v6944, %v7040
        %v7042 = vpop.f32.mrf.mxu0
        %v7043 = vpop.f32.mrf.mxu0
        %v7044 = vadd.f32 %v6947, %v7043
        %v7045 = vpop.f32.mrf.mxu0
        %7046 = vmatprep.mubr.bf16.mxu0 %v6161
        %7047 = vmatmul.mubr.bf16.gmra.mxu0 %v6160
        %v7048 = vpop.f32.mrf.mxu0
        %v7049 = vadd.f32 %v6952, %v7048
        %v7050 = vpop.f32.mrf.mxu0
        %v7051 = vpop.f32.mrf.mxu0
        %v7052 = vadd.f32 %v6955, %v7051
        %v7053 = vpop.f32.mrf.mxu0
        %7054 = vdwg.mxu0
        %7055 = vmatprep.subr.bf16.mxu0 0
        %7056 = vmatpush1.bf16.msra.mxu0 %v6594
        %7057 = vmatprep.subr.bf16.mxu0 0
        %7058 = vmatpush1.bf16.msra.mxu0 %v6593
        %7059 = vmatprep.subr.bf16.mxu0 0
        %7060 = vmatpush1.bf16.msra.mxu0 %v6592
        %7061 = vmatprep.subr.bf16.mxu0 0
        %7062 = vmatpush1.bf16.msra.mxu0 %v6591
        %7063 = vmatprep.subr.bf16.mxu0 0
        %7064 = vmatpush1.bf16.msra.mxu0 %v6590
        %7065 = vmatprep.subr.bf16.mxu0 0
        %7066 = vmatpush1.bf16.msra.mxu0 %v6589
        %7067 = vmatprep.subr.bf16.mxu0 0
        %7068 = vmatpush1.bf16.msra.mxu0 %v6588
        %7069 = vmatprep.subr.bf16.mxu0 0
        %7070 = vmatpush1.bf16.msra.mxu0 %v6587
        %7071 = vmatprep.subr.bf16.mxu0 0
        %7072 = vmatpush2.bf16.msra.mxu0 0
        %7073 = vmatprep.subr.bf16.mxu0 0
        %7074 = vmatpush2.bf16.msra.mxu0 0
        %7075 = vmatprep.subr.bf16.mxu0 0
        %7076 = vmatpush2.bf16.msra.mxu0 0
        %7077 = vmatprep.subr.bf16.mxu0 0
        %7078 = vmatpush2.bf16.msra.mxu0 0
        %7079 = vmatprep.subr.bf16.mxu0 0
        %7080 = vmatpush2.bf16.msra.mxu0 0
        %7081 = vmatprep.subr.bf16.mxu0 0
        %7082 = vmatpush2.bf16.msra.mxu0 0
        %7083 = vmatprep.subr.bf16.mxu0 0
        %7084 = vmatpush2.bf16.msra.mxu0 0
        %7085 = vmatprep.subr.bf16.mxu0 0
        %7086 = vmatpush2.bf16.msra.mxu0 0
        %7087 = vmatprep.mubr.bf16.mxu0 0
        %7088 = vmatmul.mubr.bf16.gmra.mxu0 %v6099
        %v7089 = vpop.f32.mrf.mxu0
        %v7090 = vadd.f32 %v6993, %v7089
        %v7091 = vpop.f32.mrf.mxu0
        %v7092 = vpop.f32.mrf.mxu0
        %v7093 = vadd.f32 %v6996, %v7092
        %v7094 = vpop.f32.mrf.mxu0
        %7095 = vmatprep.mubr.bf16.mxu0 0
        %7096 = vmatmul.mubr.bf16.gmra.mxu0 %v6108
        %v7097 = vpop.f32.mrf.mxu0
        %v7098 = vadd.f32 %v7001, %v7097
        %v7099 = vpop.f32.mrf.mxu0
        %v7100 = vpop.f32.mrf.mxu0
        %v7101 = vadd.f32 %v7004, %v7100
        %v7102 = vpop.f32.mrf.mxu0
        %7103 = vmatprep.mubr.bf16.mxu0 0
        %7104 = vmatmul.mubr.bf16.gmra.mxu0 %v6117
        %v7105 = vpop.f32.mrf.mxu0
        %v7106 = vadd.f32 %v7009, %v7105
        %v7107 = vpop.f32.mrf.mxu0
        %v7108 = vpop.f32.mrf.mxu0
        %v7109 = vadd.f32 %v7012, %v7108
        %v7110 = vpop.f32.mrf.mxu0
        %7111 = vmatprep.mubr.bf16.mxu0 0
        %7112 = vmatmul.mubr.bf16.gmra.mxu0 %v6126
        %v7113 = vpop.f32.mrf.mxu0
        %v7114 = vadd.f32 %v7017, %v7113
        %v7115 = vpop.f32.mrf.mxu0
        %v7116 = vpop.f32.mrf.mxu0
        %v7117 = vadd.f32 %v7020, %v7116
        %v7118 = vpop.f32.mrf.mxu0
        %7119 = vmatprep.mubr.bf16.mxu0 0
        %7120 = vmatmul.mubr.bf16.gmra.mxu0 %v6135
        %v7121 = vpop.f32.mrf.mxu0
        %v7122 = vadd.f32 %v7025, %v7121
        %v7123 = vpop.f32.mrf.mxu0
        %v7124 = vpop.f32.mrf.mxu0
        %v7125 = vadd.f32 %v7028, %v7124
        %v7126 = vpop.f32.mrf.mxu0
        %7127 = vmatprep.mubr.bf16.mxu0 0
        %7128 = vmatmul.mubr.bf16.gmra.mxu0 %v6144
        %v7129 = vpop.f32.mrf.mxu0
        %v7130 = vadd.f32 %v7033, %v7129
        %v7131 = vpop.f32.mrf.mxu0
        %v7132 = vpop.f32.mrf.mxu0
        %v7133 = vadd.f32 %v7036, %v7132
        %v7134 = vpop.f32.mrf.mxu0
        %7135 = vmatprep.mubr.bf16.mxu0 0
        %7136 = vmatmul.mubr.bf16.gmra.mxu0 %v6153
        %v7137 = vpop.f32.mrf.mxu0
        %v7138 = vadd.f32 %v7041, %v7137
        %v7139 = vpop.f32.mrf.mxu0
        %v7140 = vpop.f32.mrf.mxu0
        %v7141 = vadd.f32 %v7044, %v7140
        %v7142 = vpop.f32.mrf.mxu0
        %7143 = vmatprep.mubr.bf16.mxu0 0
        %7144 = vmatmul.mubr.bf16.gmra.mxu0 %v6162
        %v7145 = vpop.f32.mrf.mxu0
        %v7146 = vadd.f32 %v7049, %v7145
        %v7147 = vpop.f32.mrf.mxu0
        %v7148 = vpop.f32.mrf.mxu0
        %v7149 = vadd.f32 %v7052, %v7148
        %v7150 = vpop.f32.mrf.mxu0
        %7151 = vdwg.mxu0
        %v7152 = vpack.c.bf16 %v642, %v641
        %v7153 = vpack.c.bf16 %v644, %v643
        %v7154 = vpack.c.bf16 %v646, %v645
        %v7155 = vpack.c.bf16 %v648, %v647
        %v7156 = vpack.c.bf16 %v650, %v649
        %v7157 = vpack.c.bf16 %v652, %v651
        %v7158 = vpack.c.bf16 %v654, %v653
        %v7159 = vpack.c.bf16 %v656, %v655
        %v7160 = vld [vmem:[#allocation13] sm:$0xf]
        %v7161 = vld [vmem:[#allocation13 + $0x4] sm:$0xf]
        %v7162 = vld [vmem:[#allocation13 + $0x8] sm:$0xf]
        %v7163 = vld [vmem:[#allocation13 + $0xc] sm:$0xf]
        %v7164 = vld [vmem:[#allocation13 + $0x10] sm:$0xf]
        %v7165 = vld [vmem:[#allocation13 + $0x14] sm:$0xf]
        %v7166 = vld [vmem:[#allocation13 + $0x18] sm:$0xf]
        %v7167 = vld [vmem:[#allocation13 + $0x1c] sm:$0xf]
        %v7168 = vld [vmem:[%s15] sm:$0x1]
        %v7170 = vlaneseq
        %v7171 = vshrl.u32 %v7170, 7
        %v7172 = vsub.s32 0, %v7171
        %v7173 = vrot.slane %v7168, %v7172
        %v7183 = vunpack.c.l.b16 %v7160
        %v7184 = vunpack.c.l.b16 %v7161
        %v7185 = vunpack.c.l.b16 %v7162
        %v7186 = vunpack.c.l.b16 %v7163
        %v7187 = vunpack.c.l.b16 %v7164
        %v7188 = vunpack.c.l.b16 %v7165
        %v7189 = vunpack.c.l.b16 %v7166
        %v7190 = vunpack.c.l.b16 %v7167
        %v7191 = vpack.c.b16 %v7184, %v7183
        %v7192 = vpack.c.b16 %v7186, %v7185
        %v7193 = vpack.c.b16 %v7188, %v7187
        %v7194 = vpack.c.b16 %v7190, %v7189
        %v7200 = vsel %vm671, %v7152, 0
        %v7203 = vsel %vm671, %v7153, 0
        %v7206 = vsel %vm671, %v7154, 0
        %v7209 = vsel %vm671, %v7155, 0
        %v7212 = vsel %vm671, %v7156, 0
        %v7215 = vsel %vm671, %v7157, 0
        %v7218 = vsel %vm671, %v7158, 0
        %v7221 = vsel %vm671, %v7159, 0
        %7223 = vmatprep.subr.bf16.mxu0 0
        %7224 = vmatpush1.bf16.msra.mxu0 0
        %7225 = vmatprep.subr.bf16.mxu0 0
        %7226 = vmatpush1.bf16.msra.mxu0 0
        %7227 = vmatprep.subr.bf16.mxu0 0
        %7228 = vmatpush1.bf16.msra.mxu0 0
        %7229 = vmatprep.subr.bf16.mxu0 0
        %7230 = vmatpush1.bf16.msra.mxu0 0
        %7231 = vmatprep.subr.bf16.mxu0 0
        %7232 = vmatpush1.bf16.msra.mxu0 %v7194
        %7233 = vmatprep.subr.bf16.mxu0 0
        %7234 = vmatpush1.bf16.msra.mxu0 %v7193
        %7235 = vmatprep.subr.bf16.mxu0 0
        %7236 = vmatpush1.bf16.msra.mxu0 %v7192
        %7237 = vmatprep.subr.bf16.mxu0 0
        %7238 = vmatpush1.bf16.msra.mxu0 %v7191
        %7239 = vmatprep.subr.bf16.mxu0 0
        %7240 = vmatpush2.bf16.msra.mxu0 0
        %7241 = vmatprep.subr.bf16.mxu0 0
        %7242 = vmatpush2.bf16.msra.mxu0 0
        %7243 = vmatprep.subr.bf16.mxu0 0
        %7244 = vmatpush2.bf16.msra.mxu0 0
        %7245 = vmatprep.subr.bf16.mxu0 0
        %7246 = vmatpush2.bf16.msra.mxu0 0
        %7247 = vmatprep.subr.bf16.mxu0 0
        %7248 = vmatpush2.bf16.msra.mxu0 0
        %7249 = vmatprep.subr.bf16.mxu0 0
        %7250 = vmatpush2.bf16.msra.mxu0 0
        %7251 = vmatprep.subr.bf16.mxu0 0
        %7252 = vmatpush2.bf16.msra.mxu0 0
        %7253 = vmatprep.subr.bf16.mxu0 0
        %7254 = vmatpush2.bf16.msra.mxu0 0
        %7255 = vmatprep.mubr.bf16.mxu0 0
        %7256 = vmatmul.mubr.bf16.gmra.mxu0 %v7200
        %v7257 = vpop.f32.mrf.mxu0
        %v7258 = vadd.f32 %v7173, %v7257
        %v7259 = vpop.f32.mrf.mxu0
        %v7260 = vpop.f32.mrf.mxu0
        %v7261 = vadd.f32 %v7173, %v7260
        %v7262 = vpop.f32.mrf.mxu0
        %7263 = vmatprep.mubr.bf16.mxu0 0
        %7264 = vmatmul.mubr.bf16.gmra.mxu0 %v7203
        %v7265 = vpop.f32.mrf.mxu0
        %v7266 = vadd.f32 %v7173, %v7265
        %v7267 = vpop.f32.mrf.mxu0
        %v7268 = vpop.f32.mrf.mxu0
        %v7269 = vadd.f32 %v7173, %v7268
        %v7270 = vpop.f32.mrf.mxu0
        %7271 = vmatprep.mubr.bf16.mxu0 0
        %7272 = vmatmul.mubr.bf16.gmra.mxu0 %v7206
        %v7273 = vpop.f32.mrf.mxu0
        %v7274 = vadd.f32 %v7173, %v7273
        %v7275 = vpop.f32.mrf.mxu0
        %v7276 = vpop.f32.mrf.mxu0
        %v7277 = vadd.f32 %v7173, %v7276
        %v7278 = vpop.f32.mrf.mxu0
        %7279 = vmatprep.mubr.bf16.mxu0 0
        %7280 = vmatmul.mubr.bf16.gmra.mxu0 %v7209
        %v7281 = vpop.f32.mrf.mxu0
        %v7282 = vadd.f32 %v7173, %v7281
        %v7283 = vpop.f32.mrf.mxu0
        %v7284 = vpop.f32.mrf.mxu0
        %v7285 = vadd.f32 %v7173, %v7284
        %v7286 = vpop.f32.mrf.mxu0
        %7287 = vmatprep.mubr.bf16.mxu0 0
        %7288 = vmatmul.mubr.bf16.gmra.mxu0 %v7212
        %v7289 = vpop.f32.mrf.mxu0
        %v7290 = vadd.f32 %v7173, %v7289
        %v7291 = vpop.f32.mrf.mxu0
        %v7292 = vpop.f32.mrf.mxu0
        %v7293 = vadd.f32 %v7173, %v7292
        %v7294 = vpop.f32.mrf.mxu0
        %7295 = vmatprep.mubr.bf16.mxu0 0
        %7296 = vmatmul.mubr.bf16.gmra.mxu0 %v7215
        %v7297 = vpop.f32.mrf.mxu0
        %v7298 = vadd.f32 %v7173, %v7297
        %v7299 = vpop.f32.mrf.mxu0
        %v7300 = vpop.f32.mrf.mxu0
        %v7301 = vadd.f32 %v7173, %v7300
        %v7302 = vpop.f32.mrf.mxu0
        %7303 = vmatprep.mubr.bf16.mxu0 0
        %7304 = vmatmul.mubr.bf16.gmra.mxu0 %v7218
        %v7305 = vpop.f32.mrf.mxu0
        %v7306 = vadd.f32 %v7173, %v7305
        %v7307 = vpop.f32.mrf.mxu0
        %v7308 = vpop.f32.mrf.mxu0
        %v7309 = vadd.f32 %v7173, %v7308
        %v7310 = vpop.f32.mrf.mxu0
        %7311 = vmatprep.mubr.bf16.mxu0 0
        %7312 = vmatmul.mubr.bf16.gmra.mxu0 %v7221
        %v7313 = vpop.f32.mrf.mxu0
        %v7314 = vadd.f32 %v7173, %v7313
        %v7315 = vpop.f32.mrf.mxu0
        %v7316 = vpop.f32.mrf.mxu0
        %v7317 = vadd.f32 %v7173, %v7316
        %v7318 = vpop.f32.mrf.mxu0
        %7319 = vdwg.mxu0
        %v7320 = vadd.f32 %v7258, %v7090
        %v7321 = vadd.f32 %v7261, %v7093
        %v7322 = vadd.f32 %v7266, %v7098
        %v7323 = vadd.f32 %v7269, %v7101
        %v7324 = vadd.f32 %v7274, %v7106
        %v7325 = vadd.f32 %v7277, %v7109
        %v7326 = vadd.f32 %v7282, %v7114
        %v7327 = vadd.f32 %v7285, %v7117
        %v7328 = vadd.f32 %v7290, %v7122
        %v7329 = vadd.f32 %v7293, %v7125
        %v7330 = vadd.f32 %v7298, %v7130
        %v7331 = vadd.f32 %v7301, %v7133
        %v7332 = vadd.f32 %v7306, %v7138
        %v7333 = vadd.f32 %v7309, %v7141
        %v7334 = vadd.f32 %v7314, %v7146
        %v7335 = vadd.f32 %v7317, %v7149
        %7336 = vst [vmem:[%s630] sm:$0xff] %v7320
        %7337 = vst [vmem:[%s630 + $0x8] sm:$0xff] %v7321
        %7338 = vst [vmem:[%s630 + $0x10] sm:$0xff] %v7322
        %7339 = vst [vmem:[%s630 + $0x18] sm:$0xff] %v7323
        %7340 = vst [vmem:[%s630 + $0x20] sm:$0xff] %v7324
        %7341 = vst [vmem:[%s630 + $0x28] sm:$0xff] %v7325
        %7342 = vst [vmem:[%s630 + $0x30] sm:$0xff] %v7326
        %7343 = vst [vmem:[%s630 + $0x38] sm:$0xff] %v7327
        %7344 = vst [vmem:[%s630 + $0x40] sm:$0xff] %v7328
        %7345 = vst [vmem:[%s630 + $0x48] sm:$0xff] %v7329
        %7346 = vst [vmem:[%s630 + $0x50] sm:$0xff] %v7330
        %7347 = vst [vmem:[%s630 + $0x58] sm:$0xff] %v7331
        %7348 = vst [vmem:[%s630 + $0x60] sm:$0xff] %v7332
        %7349 = vst [vmem:[%s630 + $0x68] sm:$0xff] %v7333
        %7350 = vst [vmem:[%s630 + $0x70] sm:$0xff] %v7334
        %7351 = vst [vmem:[%s630 + $0x78] sm:$0xff] %v7335
        %s7352 = sand.u32 %s390, 1
        %s7353 = scalar_lea.sflag [#allocation6], %s7352
        %s7354 = sand.u32 %s390, 1
        %s7355 = smul.addr %s7354, 128
        %s7356 = scalar_lea.vmem [#allocation15], %s7355
        // Predicated region
        $region109: #{tpu_custom_call.1} parent=83 // pred_check
          %p7357 = pneg %p400
        $region110: #{tpu_custom_call.1} parent=83 // pred_check_branch
          %7359 = sbr.rel (%p7357) target = $region112
        $region111: #{tpu_custom_call.1} parent=83 // pred_region
          %s7360 = smul.u32 2, %s36
          %s7362 = ssub.s32 2048, 2048
          %7363 = vsyncadd %s7353, %s7362
          %s7364 = smul.addr %s7360, 8
          %s7365 = smul.addr %s7364, 128
          %s7366 = scalar_lea.hbm %s16, %s7365
          %s7367 = sshll.u32 %s7356, 4
          %s7368 = int_to_ptr.vmem [resolvable:$true] %s7367
          %7373 = dma.vmem_to_hbm [thread:$0]  %s7368, 2048, %s7366, %s7353, 128, 128, 8
        $region112: #{tpu_custom_call.1} parent=83 // pred_fallthru
          _
      $region84: #{tpu_custom_call.1} parent=5 // pred_fallthru
        _
      %p7374 = scmp.le.s32.totalorder 2, %s31
      // Predicated region
      $region113: #{tpu_custom_call.1} parent=5 // pred_check
        %p7375 = pneg %p7374
      $region114: #{tpu_custom_call.1} parent=5 // pred_check_branch
        %7377 = sbr.rel (%p7375) target = $region116
      $region115: #{tpu_custom_call.1} parent=5 // pred_region
        %s7378 = ssub.s32 %s31, 2
        // Predicated region
        $region117: #{tpu_custom_call.1} parent=115 // pred_check
          %p7379 = pneg %p406
        $region118: #{tpu_custom_call.1} parent=115 // pred_check_branch
          %7381 = sbr.rel (%p7379) target = $region120
        $region119: #{tpu_custom_call.1} parent=115 // pred_region
          %s7382 = sand.u32 %s391, 1
          %s7383 = scalar_lea.sflag [#allocation6], %s7382
          %s7384 = sand.u32 %s391, 1
          %s7385 = smul.addr %s7384, 128
          %s7386 = scalar_lea.vmem [#allocation15], %s7385
          %7387 = dma.done %s7383, 2048
        $region120: #{tpu_custom_call.1} parent=115 // pred_fallthru
          _
      $region116: #{tpu_custom_call.1} parent=5 // pred_fallthru
        _
    $region6: #{tpu_custom_call.1} parent=1 // loop_footer
      %s35 = sadd.s32 1, %s31
    $region7: #{tpu_custom_call.1} parent=1 // loop_footer_branch
      %30 = sbr.rel target = $region3
    $region8: #{tpu_custom_call.1} parent=1 // loop_exit
      _
    %7388 = vsyncpa [#allocation5], 1
    %s7389 = scalar_lea.sflag [#allocation5], 1
    %7390 = vsyncpa %s7389, 1
    %7391 = vsyncpa [#allocation8], 1
    %7392 = vsyncpa [#allocation11], 1
    %7393 = vsyncpa [#allocation14], 1
    %7394 = vsyncpa [#allocation6], 1
    %s7395 = scalar_lea.sflag [#allocation6], 1
    %7396 = vsyncpa %s7395, 1

</llo_original>
